<compile_context>
chip_gen: v7x
topology: tpu7x:2x2x1
jax: 0.10.0
libtpu: 0.0.40
codegen_flags: <defaults>
</compile_context>

<pallas_src>
import functools

import jax
import jax.numpy as jnp
from jax.experimental import pallas as pl
from jax.experimental.pallas import tpu as pltpu

EPS = 1e-5  # PyTorch LayerNorm default eps


def _layernorm(x, w, b):
    mu = jnp.mean(x, axis=-1, keepdims=True)
    var = jnp.mean((x - mu) ** 2, axis=-1, keepdims=True)
    return (x - mu) * jax.lax.rsqrt(var + EPS) * w + b


def fused_articles_kernel(x_ref,
                          wqkv_ref, bqkv_ref, wo_ref, bo_ref,
                          ln1_w_ref, ln1_b_ref,
                          w1_ref, b1_ref, w2_ref, b2_ref,
                          ln2_w_ref, ln2_b_ref,
                          pooled_ref,
                          act_ref,
                          *, num_heads):
    layer = pl.program_id(1)
    num_layers = pl.num_programs(1)

    TB, S, D = x_ref.shape
    M = TB * S
    dh = D // num_heads
    f32 = jnp.float32
    bf16 = jnp.bfloat16

    # ---- layer 0: load the activation tile into the resident f32 scratch ----
    @pl.when(layer == 0)
    def _():
        act_ref[...] = x_ref[...].reshape(M, D).astype(f32)

    x = act_ref[...]                                   # (M, D) f32
    xb = x.astype(bf16)

    # ---- QKV projection: one MXU matmul with M = TB*S rows ----
    qkv = jnp.dot(xb, wqkv_ref[0], preferred_element_type=f32) + bqkv_ref[0]
    q = qkv[:, :D].reshape(TB, S, D)
    k = qkv[:, D:2 * D].reshape(TB, S, D)
    v = qkv[:, 2 * D:].reshape(TB, S, D)

    scale = 1.0 / jnp.sqrt(jnp.float32(dh))

    # ---- multi-head self-attention, batched over the TB sequences ----
    head_outs = []
    for h in range(num_heads):                          # static unroll
        qh = (q[:, :, h * dh:(h + 1) * dh] * scale).astype(bf16)   # (TB, S, dh)
        kh = k[:, :, h * dh:(h + 1) * dh].astype(bf16)
        vh = v[:, :, h * dh:(h + 1) * dh].astype(bf16)
        s = jnp.einsum('bqd,bkd->bqk', qh, kh, preferred_element_type=f32)
        s = s - jnp.max(s, axis=-1, keepdims=True)
        p = jnp.exp(s)
        p = p * pl.reciprocal(jnp.sum(p, axis=-1, keepdims=True), approx=True)
        head_outs.append(
            jnp.einsum('bqk,bkd->bqd', p.astype(bf16), vh,
                       preferred_element_type=f32))
    attn = jnp.concatenate(head_outs, axis=-1).reshape(M, D)        # (M, D) f32

    attn = jnp.dot(attn.astype(bf16), wo_ref[0],
                   preferred_element_type=f32) + bo_ref[0]

    # ---- residual + LayerNorm 1 ----
    h1 = _layernorm(x + attn, ln1_w_ref[0], ln1_b_ref[0])

    # ---- feed-forward ----
    f = jnp.dot(h1.astype(bf16), w1_ref[0], preferred_element_type=f32) + b1_ref[0]
    f = jnp.maximum(f, 0.0)
    f = jnp.dot(f.astype(bf16), w2_ref[0], preferred_element_type=f32) + b2_ref[0]

    # ---- residual + LayerNorm 2 ----
    y = _layernorm(h1 + f, ln2_w_ref[0], ln2_b_ref[0])

    act_ref[...] = y

    # ---- last layer: fused AdaptiveAvgPool1d(1) epilogue (mean over D), ----
    # ---- stored lane-dense as a (1, 1, TB*S) row.                       ----
    @pl.when(layer == num_layers - 1)
    def _():
        pooled_ref[...] = jnp.mean(y, axis=-1).reshape(1, 1, M).astype(pooled_ref.dtype)


def _pick_tb(B, S, target_rows=128):
    """Largest divisor of B with TB*S ~ target_rows rows per grid step."""
    tb = max(1, min(B, target_rows // max(S, 1)))
    while B % tb != 0:
        tb -= 1
    return tb


def articles_nn_forward(x, p, num_heads):
    B, S, D = x.shape
    L = p["wqkv"].shape[0]
    H = p["w1"].shape[2]
    assert D % num_heads == 0

    TB = _pick_tb(B, S)
    nb = B // TB
    M = TB * S

    def wspec(full_shape):
        # per-layer weight slice; index_map selects the layer grid index
        nd = len(full_shape)
        return pl.BlockSpec((1,) + full_shape[1:],
                            lambda b, l, _nd=nd: (l,) + (0,) * (_nd - 1))

    grid_spec = pltpu.PrefetchScalarGridSpec(
        num_scalar_prefetch=0,
        grid=(nb, L),
        in_specs=[
            pl.BlockSpec((TB, S, D), lambda b, l: (b, 0, 0)),     # activations
            wspec((L, D, 3 * D)),   # wqkv (bf16)
            wspec((L, 1, 3 * D)),   # bqkv
            wspec((L, D, D)),       # wo   (bf16)
            wspec((L, 1, D)),       # bo
            wspec((L, 1, D)),       # ln1_w
            wspec((L, 1, D)),       # ln1_b
            wspec((L, D, H)),       # w1   (bf16)
            wspec((L, 1, H)),       # b1
            wspec((L, H, D)),       # w2   (bf16)
            wspec((L, 1, D)),       # b2
            wspec((L, 1, D)),       # ln2_w
            wspec((L, 1, D)),       # ln2_b
        ],
        out_specs=pl.BlockSpec((1, 1, M), lambda b, l: (b, 0, 0)),
        scratch_shapes=[pltpu.VMEM((M, D), jnp.float32)],
    )

    pooled = pl.pallas_call(
        functools.partial(fused_articles_kernel, num_heads=num_heads),
        out_shape=jax.ShapeDtypeStruct((nb, 1, M), jnp.float32),
        grid_spec=grid_spec,
        compiler_params=pltpu.CompilerParams(
            dimension_semantics=("parallel", "arbitrary"),
            vmem_limit_bytes=32 * 1024 * 1024,
        ),
    )(x,
      p["wqkv"], p["bqkv"], p["wo"], p["bo"],
      p["ln1_w"], p["ln1_b"],
      p["w1"], p["b1"], p["w2"], p["b2"],
      p["ln2_w"], p["ln2_b"])

    # (nb, 1, TB*S) rows are ordered (batch tile, seq-in-tile) == (B, S)
    return pooled.reshape(B, S, 1).astype(x.dtype)


def init_params(key, num_layers, D, H):
    scale = 0.02
    ks = jax.random.split(key, 12)

    def w(k, shape):
        return scale * jax.random.normal(k, shape, jnp.float32)

    return dict(
        wqkv=w(ks[0], (num_layers, D, 3 * D)).astype(jnp.bfloat16),
        bqkv=w(ks[1], (num_layers, 1, 3 * D)),
        wo=w(ks[2], (num_layers, D, D)).astype(jnp.bfloat16),
        bo=w(ks[3], (num_layers, 1, D)),
        ln1_w=1.0 + 0.05 * jax.random.normal(ks[4], (num_layers, 1, D), jnp.float32),
        ln1_b=0.05 * jax.random.normal(ks[5], (num_layers, 1, D), jnp.float32),
        w1=w(ks[6], (num_layers, D, H)).astype(jnp.bfloat16),
        b1=w(ks[7], (num_layers, 1, H)),
        w2=w(ks[8], (num_layers, H, D)).astype(jnp.bfloat16),
        b2=w(ks[9], (num_layers, 1, D)),
        ln2_w=1.0 + 0.05 * jax.random.normal(ks[10], (num_layers, 1, D), jnp.float32),
        ln2_b=0.05 * jax.random.normal(ks[11], (num_layers, 1, D), jnp.float32),
    )


def reference_forward(x, p, num_heads):
    """Pure-JAX f32 reference of the same module (for a loose sanity check)."""
    B, S, D = x.shape
    L = p["wqkv"].shape[0]
    dh = D // num_heads
    y = x.astype(jnp.float32)
    for l in range(L):
        qkv = y @ p["wqkv"][l].astype(jnp.float32) + p["bqkv"][l]
        q, k, v = qkv[..., :D], qkv[..., D:2 * D], qkv[..., 2 * D:]

        def split(t):
            return t.reshape(B, S, num_heads, dh).transpose(0, 2, 1, 3)

        qh, kh, vh = split(q), split(k), split(v)
        s = jnp.einsum('bhqd,bhkd->bhqk', qh, kh) / jnp.sqrt(jnp.float32(dh))
        a = jax.nn.softmax(s, axis=-1)
        o = jnp.einsum('bhqk,bhkd->bhqd', a, vh)
        o = o.transpose(0, 2, 1, 3).reshape(B, S, D)
        attn = o @ p["wo"][l].astype(jnp.float32) + p["bo"][l]
        h1 = _layernorm(y + attn, p["ln1_w"][l], p["ln1_b"][l])
        f = jnp.maximum(h1 @ p["w1"][l].astype(jnp.float32) + p["b1"][l], 0.0)
        f = f @ p["w2"][l].astype(jnp.float32) + p["b2"][l]
        y = _layernorm(h1 + f, p["ln2_w"][l], p["ln2_b"][l])
    # AdaptiveAvgPool1d(1) on (B, S, D) viewed as (N, C, L): mean over last axis.
    return jnp.mean(y, axis=-1, keepdims=True)


if __name__ == "__main__":
    # Small shapes consistent with the module (scaled down from 256/512 defaults);
    # B chosen so the per-step tile has 128 rows and the batch grid axis has 2 steps.
    B, S = 32, 8
    D, NUM_HEADS, HIDDEN, NUM_LAYERS = 128, 4, 256, 3

    key = jax.random.PRNGKey(0)
    xkey, pkey = jax.random.split(key)
    x = jax.random.normal(xkey, (B, S, D), dtype=jnp.float32)
    params = init_params(pkey, NUM_LAYERS, D, HIDDEN)

    out = jax.block_until_ready(articles_nn_forward(x, params, NUM_HEADS))
    assert out.shape == (B, S, 1), out.shape
    assert bool(jnp.all(jnp.isfinite(out)))

    # Loose numerical check vs. a pure-JAX f32 reference (kernel uses bf16 matmuls
    # and an approximate reciprocal, so the tolerance is generous).
    ref = reference_forward(x, params, NUM_HEADS)
    max_err = float(jnp.max(jnp.abs(out.astype(jnp.float32) - ref)))
    assert max_err < 5e-2, f"max abs err vs reference: {max_err}"

    print("KERNEL_OK")
</pallas_src>

<mosaic_0001>
module attributes {stable_mosaic.version = 11 : i64} {
  func.func @fused_articles_kernel(%arg0: i32, %arg1: i32, %arg2: memref<16x8x128xf32, #tpu.memory_space<vmem>>, %arg3: memref<1x128x384xbf16, #tpu.memory_space<vmem>>, %arg4: memref<1x1x384xf32, #tpu.memory_space<vmem>>, %arg5: memref<1x128x128xbf16, #tpu.memory_space<vmem>>, %arg6: memref<1x1x128xf32, #tpu.memory_space<vmem>>, %arg7: memref<1x1x128xf32, #tpu.memory_space<vmem>>, %arg8: memref<1x1x128xf32, #tpu.memory_space<vmem>>, %arg9: memref<1x128x256xbf16, #tpu.memory_space<vmem>>, %arg10: memref<1x1x256xf32, #tpu.memory_space<vmem>>, %arg11: memref<1x256x128xbf16, #tpu.memory_space<vmem>>, %arg12: memref<1x1x128xf32, #tpu.memory_space<vmem>>, %arg13: memref<1x1x128xf32, #tpu.memory_space<vmem>>, %arg14: memref<1x1x128xf32, #tpu.memory_space<vmem>>, %arg15: memref<1x1x128xf32, #tpu.memory_space<vmem>>, %arg16: memref<128x128xf32, #tpu.memory_space<vmem>>) attributes {dimension_semantics = [#tpu.dimension_semantics<parallel>, #tpu.dimension_semantics<arbitrary>], iteration_bounds = array<i64: 2, 3>, scalar_prefetch = 0 : i64, scratch_operands = 1 : i64, tpu.core_type = #tpu.core_type<tc>, window_params = [{transform_indices = @transform_0, window_bounds = array<i64: 16, 8, 128>}, {transform_indices = @transform_1, window_bounds = array<i64: 1, 128, 384>}, {transform_indices = @transform_2, window_bounds = array<i64: 1, 1, 384>}, {transform_indices = @transform_3, window_bounds = array<i64: 1, 128, 128>}, {transform_indices = @transform_4, window_bounds = array<i64: 1, 1, 128>}, {transform_indices = @transform_5, window_bounds = array<i64: 1, 1, 128>}, {transform_indices = @transform_6, window_bounds = array<i64: 1, 1, 128>}, {transform_indices = @transform_7, window_bounds = array<i64: 1, 128, 256>}, {transform_indices = @transform_8, window_bounds = array<i64: 1, 1, 256>}, {transform_indices = @transform_9, window_bounds = array<i64: 1, 256, 128>}, {transform_indices = @transform_10, window_bounds = array<i64: 1, 1, 128>}, {transform_indices = @transform_11, window_bounds = array<i64: 1, 1, 128>}, {transform_indices = @transform_12, window_bounds = array<i64: 1, 1, 128>}, {transform_indices = @transform_13, window_bounds = array<i64: 1, 1, 128>}]} {
    %c0_i32 = arith.constant 0 : i32
    %0 = arith.cmpi eq, %arg1, %c0_i32 : i32
    %1 = arith.extui %0 : i1 to i32
    %c0_i32_0 = arith.constant 0 : i32
    %2 = arith.cmpi ne, %1, %c0_i32_0 : i32
    scf.if %2 {
      %c0_73 = arith.constant 0 : index
      %c0_74 = arith.constant 0 : index
      %c0_75 = arith.constant 0 : index
      %190 = vector.load %arg2[%c0_73, %c0_74, %c0_75] : memref<16x8x128xf32, #tpu.memory_space<vmem>>, vector<16x8x128xf32>
      %191 = vector.shape_cast %190 : vector<16x8x128xf32> to vector<128x128xf32>
      %c0_76 = arith.constant 0 : index
      %c0_77 = arith.constant 0 : index
      %192 = vector.load %arg16[%c0_76, %c0_77] : memref<128x128xf32, #tpu.memory_space<vmem>>, vector<128x128xf32>
      tpu.vector_store %arg16[%c0_76, %c0_77], %191 {strides = array<i32>} : memref<128x128xf32, #tpu.memory_space<vmem>>, vector<128x128xf32>,
    } else {
    }
    %c0 = arith.constant 0 : index
    %c0_1 = arith.constant 0 : index
    %3 = vector.load %arg16[%c0, %c0_1] : memref<128x128xf32, #tpu.memory_space<vmem>>, vector<128x128xf32>
    %4 = arith.truncf %3 : vector<128x128xf32> to vector<128x128xbf16>
    %c0_2 = arith.constant 0 : index
    %c0_3 = arith.constant 0 : index
    %c0_4 = arith.constant 0 : index
    %5 = vector.load %arg3[%c0_2, %c0_3, %c0_4] : memref<1x128x384xbf16, #tpu.memory_space<vmem>>, vector<1x128x384xbf16>
    %6 = vector.shape_cast %5 : vector<1x128x384xbf16> to vector<128x384xbf16>
    %cst = arith.constant dense<0.000000e+00> : vector<128x384xf32>
    %7 = tpu.matmul %4, %6, %cst {dimension_numbers = #tpu.dot_dimension_numbers<[1], [0], [0], [1], [0, 0, 1, 1], [], []>} : vector<128x128xbf16>, vector<128x384xbf16>, vector<128x384xf32> -> vector<128x384xf32>
    %c0_5 = arith.constant 0 : index
    %c0_6 = arith.constant 0 : index
    %c0_7 = arith.constant 0 : index
    %8 = vector.load %arg4[%c0_5, %c0_6, %c0_7] : memref<1x1x384xf32, #tpu.memory_space<vmem>>, vector<1x1x384xf32>
    %9 = vector.shape_cast %8 : vector<1x1x384xf32> to vector<1x384xf32>
    %10 = vector.broadcast %9 : vector<1x384xf32> to vector<128x384xf32>
    %11 = arith.addf %7, %10 : vector<128x384xf32>
    %12 = vector.extract_strided_slice %11 {offsets = [0, 0], sizes = [128, 128], strides = [1, 1]} : vector<128x384xf32> to vector<128x128xf32>
    %13 = vector.shape_cast %12 : vector<128x128xf32> to vector<16x8x128xf32>
    %14 = vector.extract_strided_slice %11 {offsets = [0, 128], sizes = [128, 128], strides = [1, 1]} : vector<128x384xf32> to vector<128x128xf32>
    %15 = vector.shape_cast %14 : vector<128x128xf32> to vector<16x8x128xf32>
    %16 = vector.extract_strided_slice %11 {offsets = [0, 256], sizes = [128, 128], strides = [1, 1]} : vector<128x384xf32> to vector<128x128xf32>
    %17 = vector.shape_cast %16 : vector<128x128xf32> to vector<16x8x128xf32>
    %cst_8 = arith.constant 3.200000e+01 : f32
    %18 = math.sqrt %cst_8 : f32
    %cst_9 = arith.constant 1.000000e+00 : f32
    %19 = arith.divf %cst_9, %18 : f32
    %20 = vector.extract_strided_slice %13 {offsets = [0, 0, 0], sizes = [16, 8, 32], strides = [1, 1, 1]} : vector<16x8x128xf32> to vector<16x8x32xf32>
    %21 = vector.broadcast %19 : f32 to vector<16x8x32xf32>
    %22 = arith.mulf %20, %21 : vector<16x8x32xf32>
    %23 = arith.truncf %22 : vector<16x8x32xf32> to vector<16x8x32xbf16>
    %24 = vector.extract_strided_slice %15 {offsets = [0, 0, 0], sizes = [16, 8, 32], strides = [1, 1, 1]} : vector<16x8x128xf32> to vector<16x8x32xf32>
    %25 = arith.truncf %24 : vector<16x8x32xf32> to vector<16x8x32xbf16>
    %26 = vector.extract_strided_slice %17 {offsets = [0, 0, 0], sizes = [16, 8, 32], strides = [1, 1, 1]} : vector<16x8x128xf32> to vector<16x8x32xf32>
    %27 = arith.truncf %26 : vector<16x8x32xf32> to vector<16x8x32xbf16>
    "tpu.trace_start"() <{level = 10 : i32, message = "bqd,bkd->bqk"}> : () -> ()
    %cst_10 = arith.constant dense<0.000000e+00> : vector<16x8x8xf32>
    %28 = tpu.matmul %23, %25, %cst_10 {dimension_numbers = #tpu.dot_dimension_numbers<[2], [2], [1], [1], [0, 0, 0, 1, 1, 1], [0], [0]>} : vector<16x8x32xbf16>, vector<16x8x32xbf16>, vector<16x8x8xf32> -> vector<16x8x8xf32>
    "tpu.trace_stop"() : () -> ()
    %cst_11 = arith.constant dense<0xFF800000> : vector<16x8xf32>
    %29 = vector.multi_reduction <maximumf>, %28, %cst_11 [2] : vector<16x8x8xf32> to vector<16x8xf32>
    %30 = vector.shape_cast %29 : vector<16x8xf32> to vector<16x8x1xf32>
    %31 = vector.broadcast %30 : vector<16x8x1xf32> to vector<16x8x8xf32>
    %32 = arith.subf %28, %31 : vector<16x8x8xf32>
    %33 = math.exp %32 : vector<16x8x8xf32>
    %cst_12 = arith.constant dense<0.000000e+00> : vector<16x8xf32>
    %34 = vector.multi_reduction <add>, %33, %cst_12 [2] : vector<16x8x8xf32> to vector<16x8xf32>
    %35 = vector.shape_cast %34 : vector<16x8xf32> to vector<16x8x1xf32>
    %36 = tpu.reciprocal %35 {approx = true} : vector<16x8x1xf32> -> vector<16x8x1xf32>
    %37 = vector.broadcast %36 : vector<16x8x1xf32> to vector<16x8x8xf32>
    %38 = arith.mulf %33, %37 : vector<16x8x8xf32>
    %39 = arith.truncf %38 : vector<16x8x8xf32> to vector<16x8x8xbf16>
    "tpu.trace_start"() <{level = 10 : i32, message = "bqk,bkd->bqd"}> : () -> ()
    %cst_13 = arith.constant dense<0.000000e+00> : vector<16x8x32xf32>
    %40 = tpu.matmul %39, %27, %cst_13 {dimension_numbers = #tpu.dot_dimension_numbers<[2], [1], [1], [2], [0, 0, 0, 1, 1, 2], [0], [0]>} : vector<16x8x8xbf16>, vector<16x8x32xbf16>, vector<16x8x32xf32> -> vector<16x8x32xf32>
    "tpu.trace_stop"() : () -> ()
    %41 = vector.extract_strided_slice %13 {offsets = [0, 0, 32], sizes = [16, 8, 32], strides = [1, 1, 1]} : vector<16x8x128xf32> to vector<16x8x32xf32>
    %42 = vector.broadcast %19 : f32 to vector<16x8x32xf32>
    %43 = arith.mulf %41, %42 : vector<16x8x32xf32>
    %44 = arith.truncf %43 : vector<16x8x32xf32> to vector<16x8x32xbf16>
    %45 = vector.extract_strided_slice %15 {offsets = [0, 0, 32], sizes = [16, 8, 32], strides = [1, 1, 1]} : vector<16x8x128xf32> to vector<16x8x32xf32>
    %46 = arith.truncf %45 : vector<16x8x32xf32> to vector<16x8x32xbf16>
    %47 = vector.extract_strided_slice %17 {offsets = [0, 0, 32], sizes = [16, 8, 32], strides = [1, 1, 1]} : vector<16x8x128xf32> to vector<16x8x32xf32>
    %48 = arith.truncf %47 : vector<16x8x32xf32> to vector<16x8x32xbf16>
    "tpu.trace_start"() <{level = 10 : i32, message = "bqd,bkd->bqk"}> : () -> ()
    %cst_14 = arith.constant dense<0.000000e+00> : vector<16x8x8xf32>
    %49 = tpu.matmul %44, %46, %cst_14 {dimension_numbers = #tpu.dot_dimension_numbers<[2], [2], [1], [1], [0, 0, 0, 1, 1, 1], [0], [0]>} : vector<16x8x32xbf16>, vector<16x8x32xbf16>, vector<16x8x8xf32> -> vector<16x8x8xf32>
    "tpu.trace_stop"() : () -> ()
    %cst_15 = arith.constant dense<0xFF800000> : vector<16x8xf32>
    %50 = vector.multi_reduction <maximumf>, %49, %cst_15 [2] : vector<16x8x8xf32> to vector<16x8xf32>
    %51 = vector.shape_cast %50 : vector<16x8xf32> to vector<16x8x1xf32>
    %52 = vector.broadcast %51 : vector<16x8x1xf32> to vector<16x8x8xf32>
    %53 = arith.subf %49, %52 : vector<16x8x8xf32>
    %54 = math.exp %53 : vector<16x8x8xf32>
    %cst_16 = arith.constant dense<0.000000e+00> : vector<16x8xf32>
    %55 = vector.multi_reduction <add>, %54, %cst_16 [2] : vector<16x8x8xf32> to vector<16x8xf32>
    %56 = vector.shape_cast %55 : vector<16x8xf32> to vector<16x8x1xf32>
    %57 = tpu.reciprocal %56 {approx = true} : vector<16x8x1xf32> -> vector<16x8x1xf32>
    %58 = vector.broadcast %57 : vector<16x8x1xf32> to vector<16x8x8xf32>
    %59 = arith.mulf %54, %58 : vector<16x8x8xf32>
    %60 = arith.truncf %59 : vector<16x8x8xf32> to vector<16x8x8xbf16>
    "tpu.trace_start"() <{level = 10 : i32, message = "bqk,bkd->bqd"}> : () -> ()
    %cst_17 = arith.constant dense<0.000000e+00> : vector<16x8x32xf32>
    %61 = tpu.matmul %60, %48, %cst_17 {dimension_numbers = #tpu.dot_dimension_numbers<[2], [1], [1], [2], [0, 0, 0, 1, 1, 2], [0], [0]>} : vector<16x8x8xbf16>, vector<16x8x32xbf16>, vector<16x8x32xf32> -> vector<16x8x32xf32>
    "tpu.trace_stop"() : () -> ()
    %62 = vector.extract_strided_slice %13 {offsets = [0, 0, 64], sizes = [16, 8, 32], strides = [1, 1, 1]} : vector<16x8x128xf32> to vector<16x8x32xf32>
    %63 = vector.broadcast %19 : f32 to vector<16x8x32xf32>
    %64 = arith.mulf %62, %63 : vector<16x8x32xf32>
    %65 = arith.truncf %64 : vector<16x8x32xf32> to vector<16x8x32xbf16>
    %66 = vector.extract_strided_slice %15 {offsets = [0, 0, 64], sizes = [16, 8, 32], strides = [1, 1, 1]} : vector<16x8x128xf32> to vector<16x8x32xf32>
    %67 = arith.truncf %66 : vector<16x8x32xf32> to vector<16x8x32xbf16>
    %68 = vector.extract_strided_slice %17 {offsets = [0, 0, 64], sizes = [16, 8, 32], strides = [1, 1, 1]} : vector<16x8x128xf32> to vector<16x8x32xf32>
    %69 = arith.truncf %68 : vector<16x8x32xf32> to vector<16x8x32xbf16>
    "tpu.trace_start"() <{level = 10 : i32, message = "bqd,bkd->bqk"}> : () -> ()
    %cst_18 = arith.constant dense<0.000000e+00> : vector<16x8x8xf32>
    %70 = tpu.matmul %65, %67, %cst_18 {dimension_numbers = #tpu.dot_dimension_numbers<[2], [2], [1], [1], [0, 0, 0, 1, 1, 1], [0], [0]>} : vector<16x8x32xbf16>, vector<16x8x32xbf16>, vector<16x8x8xf32> -> vector<16x8x8xf32>
    "tpu.trace_stop"() : () -> ()
    %cst_19 = arith.constant dense<0xFF800000> : vector<16x8xf32>
    %71 = vector.multi_reduction <maximumf>, %70, %cst_19 [2] : vector<16x8x8xf32> to vector<16x8xf32>
    %72 = vector.shape_cast %71 : vector<16x8xf32> to vector<16x8x1xf32>
    %73 = vector.broadcast %72 : vector<16x8x1xf32> to vector<16x8x8xf32>
    %74 = arith.subf %70, %73 : vector<16x8x8xf32>
    %75 = math.exp %74 : vector<16x8x8xf32>
    %cst_20 = arith.constant dense<0.000000e+00> : vector<16x8xf32>
    %76 = vector.multi_reduction <add>, %75, %cst_20 [2] : vector<16x8x8xf32> to vector<16x8xf32>
    %77 = vector.shape_cast %76 : vector<16x8xf32> to vector<16x8x1xf32>
    %78 = tpu.reciprocal %77 {approx = true} : vector<16x8x1xf32> -> vector<16x8x1xf32>
    %79 = vector.broadcast %78 : vector<16x8x1xf32> to vector<16x8x8xf32>
    %80 = arith.mulf %75, %79 : vector<16x8x8xf32>
    %81 = arith.truncf %80 : vector<16x8x8xf32> to vector<16x8x8xbf16>
    "tpu.trace_start"() <{level = 10 : i32, message = "bqk,bkd->bqd"}> : () -> ()
    %cst_21 = arith.constant dense<0.000000e+00> : vector<16x8x32xf32>
    %82 = tpu.matmul %81, %69, %cst_21 {dimension_numbers = #tpu.dot_dimension_numbers<[2], [1], [1], [2], [0, 0, 0, 1, 1, 2], [0], [0]>} : vector<16x8x8xbf16>, vector<16x8x32xbf16>, vector<16x8x32xf32> -> vector<16x8x32xf32>
    "tpu.trace_stop"() : () -> ()
    %83 = vector.extract_strided_slice %13 {offsets = [0, 0, 96], sizes = [16, 8, 32], strides = [1, 1, 1]} : vector<16x8x128xf32> to vector<16x8x32xf32>
    %84 = vector.broadcast %19 : f32 to vector<16x8x32xf32>
    %85 = arith.mulf %83, %84 : vector<16x8x32xf32>
    %86 = arith.truncf %85 : vector<16x8x32xf32> to vector<16x8x32xbf16>
    %87 = vector.extract_strided_slice %15 {offsets = [0, 0, 96], sizes = [16, 8, 32], strides = [1, 1, 1]} : vector<16x8x128xf32> to vector<16x8x32xf32>
    %88 = arith.truncf %87 : vector<16x8x32xf32> to vector<16x8x32xbf16>
    %89 = vector.extract_strided_slice %17 {offsets = [0, 0, 96], sizes = [16, 8, 32], strides = [1, 1, 1]} : vector<16x8x128xf32> to vector<16x8x32xf32>
    %90 = arith.truncf %89 : vector<16x8x32xf32> to vector<16x8x32xbf16>
    "tpu.trace_start"() <{level = 10 : i32, message = "bqd,bkd->bqk"}> : () -> ()
    %cst_22 = arith.constant dense<0.000000e+00> : vector<16x8x8xf32>
    %91 = tpu.matmul %86, %88, %cst_22 {dimension_numbers = #tpu.dot_dimension_numbers<[2], [2], [1], [1], [0, 0, 0, 1, 1, 1], [0], [0]>} : vector<16x8x32xbf16>, vector<16x8x32xbf16>, vector<16x8x8xf32> -> vector<16x8x8xf32>
    "tpu.trace_stop"() : () -> ()
    %cst_23 = arith.constant dense<0xFF800000> : vector<16x8xf32>
    %92 = vector.multi_reduction <maximumf>, %91, %cst_23 [2] : vector<16x8x8xf32> to vector<16x8xf32>
    %93 = vector.shape_cast %92 : vector<16x8xf32> to vector<16x8x1xf32>
    %94 = vector.broadcast %93 : vector<16x8x1xf32> to vector<16x8x8xf32>
    %95 = arith.subf %91, %94 : vector<16x8x8xf32>
    %96 = math.exp %95 : vector<16x8x8xf32>
    %cst_24 = arith.constant dense<0.000000e+00> : vector<16x8xf32>
    %97 = vector.multi_reduction <add>, %96, %cst_24 [2] : vector<16x8x8xf32> to vector<16x8xf32>
    %98 = vector.shape_cast %97 : vector<16x8xf32> to vector<16x8x1xf32>
    %99 = tpu.reciprocal %98 {approx = true} : vector<16x8x1xf32> -> vector<16x8x1xf32>
    %100 = vector.broadcast %99 : vector<16x8x1xf32> to vector<16x8x8xf32>
    %101 = arith.mulf %96, %100 : vector<16x8x8xf32>
    %102 = arith.truncf %101 : vector<16x8x8xf32> to vector<16x8x8xbf16>
    "tpu.trace_start"() <{level = 10 : i32, message = "bqk,bkd->bqd"}> : () -> ()
    %cst_25 = arith.constant dense<0.000000e+00> : vector<16x8x32xf32>
    %103 = tpu.matmul %102, %90, %cst_25 {dimension_numbers = #tpu.dot_dimension_numbers<[2], [1], [1], [2], [0, 0, 0, 1, 1, 2], [0], [0]>} : vector<16x8x8xbf16>, vector<16x8x32xbf16>, vector<16x8x32xf32> -> vector<16x8x32xf32>
    "tpu.trace_stop"() : () -> ()
    %104 = tpu.concatenate %40, %61, %82, %103 in 2 : vector<16x8x32xf32>, vector<16x8x32xf32>, vector<16x8x32xf32>, vector<16x8x32xf32> -> vector<16x8x128xf32>
    %105 = vector.shape_cast %104 : vector<16x8x128xf32> to vector<128x128xf32>
    %106 = arith.truncf %105 : vector<128x128xf32> to vector<128x128xbf16>
    %c0_26 = arith.constant 0 : index
    %c0_27 = arith.constant 0 : index
    %c0_28 = arith.constant 0 : index
    %107 = vector.load %arg5[%c0_26, %c0_27, %c0_28] : memref<1x128x128xbf16, #tpu.memory_space<vmem>>, vector<1x128x128xbf16>
    %108 = vector.shape_cast %107 : vector<1x128x128xbf16> to vector<128x128xbf16>
    %cst_29 = arith.constant dense<0.000000e+00> : vector<128x128xf32>
    %109 = tpu.matmul %106, %108, %cst_29 {dimension_numbers = #tpu.dot_dimension_numbers<[1], [0], [0], [1], [0, 0, 1, 1], [], []>} : vector<128x128xbf16>, vector<128x128xbf16>, vector<128x128xf32> -> vector<128x128xf32>
    %c0_30 = arith.constant 0 : index
    %c0_31 = arith.constant 0 : index
    %c0_32 = arith.constant 0 : index
    %110 = vector.load %arg6[%c0_30, %c0_31, %c0_32] : memref<1x1x128xf32, #tpu.memory_space<vmem>>, vector<1x1x128xf32>
    %111 = vector.shape_cast %110 : vector<1x1x128xf32> to vector<1x128xf32>
    %112 = vector.broadcast %111 : vector<1x128xf32> to vector<128x128xf32>
    %113 = arith.addf %109, %112 : vector<128x128xf32>
    %114 = arith.addf %3, %113 : vector<128x128xf32>
    %c0_33 = arith.constant 0 : index
    %c0_34 = arith.constant 0 : index
    %c0_35 = arith.constant 0 : index
    %115 = vector.load %arg7[%c0_33, %c0_34, %c0_35] : memref<1x1x128xf32, #tpu.memory_space<vmem>>, vector<1x1x128xf32>
    %116 = vector.shape_cast %115 : vector<1x1x128xf32> to vector<1x128xf32>
    %c0_36 = arith.constant 0 : index
    %c0_37 = arith.constant 0 : index
    %c0_38 = arith.constant 0 : index
    %117 = vector.load %arg8[%c0_36, %c0_37, %c0_38] : memref<1x1x128xf32, #tpu.memory_space<vmem>>, vector<1x1x128xf32>
    %118 = vector.shape_cast %117 : vector<1x1x128xf32> to vector<1x128xf32>
    %cst_39 = arith.constant dense<0.000000e+00> : vector<128xf32>
    %119 = vector.multi_reduction <add>, %114, %cst_39 [1] : vector<128x128xf32> to vector<128xf32>
    %120 = vector.shape_cast %119 : vector<128xf32> to vector<128x1xf32>
    %cst_40 = arith.constant 1.280000e+02 : f32
    %121 = vector.broadcast %cst_40 : f32 to vector<128x1xf32>
    %122 = arith.divf %120, %121 : vector<128x1xf32>
    %123 = vector.broadcast %122 : vector<128x1xf32> to vector<128x128xf32>
    %124 = arith.subf %114, %123 : vector<128x128xf32>
    %125 = arith.mulf %124, %124 : vector<128x128xf32>
    %cst_41 = arith.constant dense<0.000000e+00> : vector<128xf32>
    %126 = vector.multi_reduction <add>, %125, %cst_41 [1] : vector<128x128xf32> to vector<128xf32>
    %127 = vector.shape_cast %126 : vector<128xf32> to vector<128x1xf32>
    %cst_42 = arith.constant 1.280000e+02 : f32
    %128 = vector.broadcast %cst_42 : f32 to vector<128x1xf32>
    %129 = arith.divf %127, %128 : vector<128x1xf32>
    %130 = vector.broadcast %122 : vector<128x1xf32> to vector<128x128xf32>
    %131 = arith.subf %114, %130 : vector<128x128xf32>
    %cst_43 = arith.constant 9.99999974E-6 : f32
    %132 = vector.broadcast %cst_43 : f32 to vector<128x1xf32>
    %133 = arith.addf %129, %132 : vector<128x1xf32>
    %134 = math.rsqrt %133 : vector<128x1xf32>
    %135 = vector.broadcast %134 : vector<128x1xf32> to vector<128x128xf32>
    %136 = arith.mulf %131, %135 : vector<128x128xf32>
    %137 = vector.broadcast %116 : vector<1x128xf32> to vector<128x128xf32>
    %138 = arith.mulf %136, %137 : vector<128x128xf32>
    %139 = vector.broadcast %118 : vector<1x128xf32> to vector<128x128xf32>
    %140 = arith.addf %138, %139 : vector<128x128xf32>
    %141 = arith.truncf %140 : vector<128x128xf32> to vector<128x128xbf16>
    %c0_44 = arith.constant 0 : index
    %c0_45 = arith.constant 0 : index
    %c0_46 = arith.constant 0 : index
    %142 = vector.load %arg9[%c0_44, %c0_45, %c0_46] : memref<1x128x256xbf16, #tpu.memory_space<vmem>>, vector<1x128x256xbf16>
    %143 = vector.shape_cast %142 : vector<1x128x256xbf16> to vector<128x256xbf16>
    %cst_47 = arith.constant dense<0.000000e+00> : vector<128x256xf32>
    %144 = tpu.matmul %141, %143, %cst_47 {dimension_numbers = #tpu.dot_dimension_numbers<[1], [0], [0], [1], [0, 0, 1, 1], [], []>} : vector<128x128xbf16>, vector<128x256xbf16>, vector<128x256xf32> -> vector<128x256xf32>
    %c0_48 = arith.constant 0 : index
    %c0_49 = arith.constant 0 : index
    %c0_50 = arith.constant 0 : index
    %145 = vector.load %arg10[%c0_48, %c0_49, %c0_50] : memref<1x1x256xf32, #tpu.memory_space<vmem>>, vector<1x1x256xf32>
    %146 = vector.shape_cast %145 : vector<1x1x256xf32> to vector<1x256xf32>
    %147 = vector.broadcast %146 : vector<1x256xf32> to vector<128x256xf32>
    %148 = arith.addf %144, %147 : vector<128x256xf32>
    %cst_51 = arith.constant 0.000000e+00 : f32
    %149 = vector.broadcast %cst_51 : f32 to vector<128x256xf32>
    %150 = arith.maximumf %148, %149 : vector<128x256xf32>
    %151 = arith.truncf %150 : vector<128x256xf32> to vector<128x256xbf16>
    %c0_52 = arith.constant 0 : index
    %c0_53 = arith.constant 0 : index
    %c0_54 = arith.constant 0 : index
    %152 = vector.load %arg11[%c0_52, %c0_53, %c0_54] : memref<1x256x128xbf16, #tpu.memory_space<vmem>>, vector<1x256x128xbf16>
    %153 = vector.shape_cast %152 : vector<1x256x128xbf16> to vector<256x128xbf16>
    %cst_55 = arith.constant dense<0.000000e+00> : vector<128x128xf32>
    %154 = tpu.matmul %151, %153, %cst_55 {dimension_numbers = #tpu.dot_dimension_numbers<[1], [0], [0], [1], [0, 0, 1, 1], [], []>} : vector<128x256xbf16>, vector<256x128xbf16>, vector<128x128xf32> -> vector<128x128xf32>
    %c0_56 = arith.constant 0 : index
    %c0_57 = arith.constant 0 : index
    %c0_58 = arith.constant 0 : index
    %155 = vector.load %arg12[%c0_56, %c0_57, %c0_58] : memref<1x1x128xf32, #tpu.memory_space<vmem>>, vector<1x1x128xf32>
    %156 = vector.shape_cast %155 : vector<1x1x128xf32> to vector<1x128xf32>
    %157 = vector.broadcast %156 : vector<1x128xf32> to vector<128x128xf32>
    %158 = arith.addf %154, %157 : vector<128x128xf32>
    %159 = arith.addf %140, %158 : vector<128x128xf32>
    %c0_59 = arith.constant 0 : index
    %c0_60 = arith.constant 0 : index
    %c0_61 = arith.constant 0 : index
    %160 = vector.load %arg13[%c0_59, %c0_60, %c0_61] : memref<1x1x128xf32, #tpu.memory_space<vmem>>, vector<1x1x128xf32>
    %161 = vector.shape_cast %160 : vector<1x1x128xf32> to vector<1x128xf32>
    %c0_62 = arith.constant 0 : index
    %c0_63 = arith.constant 0 : index
    %c0_64 = arith.constant 0 : index
    %162 = vector.load %arg14[%c0_62, %c0_63, %c0_64] : memref<1x1x128xf32, #tpu.memory_space<vmem>>, vector<1x1x128xf32>
    %163 = vector.shape_cast %162 : vector<1x1x128xf32> to vector<1x128xf32>
    %cst_65 = arith.constant dense<0.000000e+00> : vector<128xf32>
    %164 = vector.multi_reduction <add>, %159, %cst_65 [1] : vector<128x128xf32> to vector<128xf32>
    %165 = vector.shape_cast %164 : vector<128xf32> to vector<128x1xf32>
    %cst_66 = arith.constant 1.280000e+02 : f32
    %166 = vector.broadcast %cst_66 : f32 to vector<128x1xf32>
    %167 = arith.divf %165, %166 : vector<128x1xf32>
    %168 = vector.broadcast %167 : vector<128x1xf32> to vector<128x128xf32>
    %169 = arith.subf %159, %168 : vector<128x128xf32>
    %170 = arith.mulf %169, %169 : vector<128x128xf32>
    %cst_67 = arith.constant dense<0.000000e+00> : vector<128xf32>
    %171 = vector.multi_reduction <add>, %170, %cst_67 [1] : vector<128x128xf32> to vector<128xf32>
    %172 = vector.shape_cast %171 : vector<128xf32> to vector<128x1xf32>
    %cst_68 = arith.constant 1.280000e+02 : f32
    %173 = vector.broadcast %cst_68 : f32 to vector<128x1xf32>
    %174 = arith.divf %172, %173 : vector<128x1xf32>
    %175 = vector.broadcast %167 : vector<128x1xf32> to vector<128x128xf32>
    %176 = arith.subf %159, %175 : vector<128x128xf32>
    %cst_69 = arith.constant 9.99999974E-6 : f32
    %177 = vector.broadcast %cst_69 : f32 to vector<128x1xf32>
    %178 = arith.addf %174, %177 : vector<128x1xf32>
    %179 = math.rsqrt %178 : vector<128x1xf32>
    %180 = vector.broadcast %179 : vector<128x1xf32> to vector<128x128xf32>
    %181 = arith.mulf %176, %180 : vector<128x128xf32>
    %182 = vector.broadcast %161 : vector<1x128xf32> to vector<128x128xf32>
    %183 = arith.mulf %181, %182 : vector<128x128xf32>
    %184 = vector.broadcast %163 : vector<1x128xf32> to vector<128x128xf32>
    %185 = arith.addf %183, %184 : vector<128x128xf32>
    %c0_70 = arith.constant 0 : index
    %c0_71 = arith.constant 0 : index
    %186 = vector.load %arg16[%c0_70, %c0_71] : memref<128x128xf32, #tpu.memory_space<vmem>>, vector<128x128xf32>
    tpu.vector_store %arg16[%c0_70, %c0_71], %185 {strides = array<i32>} : memref<128x128xf32, #tpu.memory_space<vmem>>, vector<128x128xf32>,
    %c2_i32 = arith.constant 2 : i32
    %187 = arith.cmpi eq, %arg1, %c2_i32 : i32
    %188 = arith.extui %187 : i1 to i32
    %c0_i32_72 = arith.constant 0 : i32
    %189 = arith.cmpi ne, %188, %c0_i32_72 : i32
    scf.if %189 {
      %cst_73 = arith.constant dense<0.000000e+00> : vector<128xf32>
      %190 = vector.multi_reduction <add>, %185, %cst_73 [1] : vector<128x128xf32> to vector<128xf32>
      %cst_74 = arith.constant 1.280000e+02 : f32
      %191 = vector.broadcast %cst_74 : f32 to vector<128xf32>
      %192 = arith.divf %190, %191 : vector<128xf32>
      %193 = vector.shape_cast %192 : vector<128xf32> to vector<1x1x128xf32>
      %c0_75 = arith.constant 0 : index
      %c0_76 = arith.constant 0 : index
      %c0_77 = arith.constant 0 : index
      %194 = vector.load %arg15[%c0_75, %c0_76, %c0_77] : memref<1x1x128xf32, #tpu.memory_space<vmem>>, vector<1x1x128xf32>
      tpu.vector_store %arg15[%c0_75, %c0_76, %c0_77], %193 {strides = array<i32>} : memref<1x1x128xf32, #tpu.memory_space<vmem>>, vector<1x1x128xf32>,
    } else {
    }
    return
  }
  func.func @transform_0(%arg0: i32, %arg1: i32) -> (i32, i32, i32) {
    %c0_i32 = arith.constant 0 : i32
    %c0_i32_0 = arith.constant 0 : i32
    %c0_i32_1 = arith.constant 0 : i32
    return %arg0, %c0_i32, %c0_i32_0 : i32, i32, i32
  }
  func.func @transform_1(%arg0: i32, %arg1: i32) -> (i32, i32, i32) {
    %c0_i32 = arith.constant 0 : i32
    %c0_i32_0 = arith.constant 0 : i32
    %c0_i32_1 = arith.constant 0 : i32
    return %arg1, %c0_i32, %c0_i32_0 : i32, i32, i32
  }
  func.func @transform_2(%arg0: i32, %arg1: i32) -> (i32, i32, i32) {
    %c0_i32 = arith.constant 0 : i32
    %c0_i32_0 = arith.constant 0 : i32
    %c0_i32_1 = arith.constant 0 : i32
    return %arg1, %c0_i32, %c0_i32_0 : i32, i32, i32
  }
  func.func @transform_3(%arg0: i32, %arg1: i32) -> (i32, i32, i32) {
    %c0_i32 = arith.constant 0 : i32
    %c0_i32_0 = arith.constant 0 : i32
    %c0_i32_1 = arith.constant 0 : i32
    return %arg1, %c0_i32, %c0_i32_0 : i32, i32, i32
  }
  func.func @transform_4(%arg0: i32, %arg1: i32) -> (i32, i32, i32) {
    %c0_i32 = arith.constant 0 : i32
    %c0_i32_0 = arith.constant 0 : i32
    %c0_i32_1 = arith.constant 0 : i32
    return %arg1, %c0_i32, %c0_i32_0 : i32, i32, i32
  }
  func.func @transform_5(%arg0: i32, %arg1: i32) -> (i32, i32, i32) {
    %c0_i32 = arith.constant 0 : i32
    %c0_i32_0 = arith.constant 0 : i32
    %c0_i32_1 = arith.constant 0 : i32
    return %arg1, %c0_i32, %c0_i32_0 : i32, i32, i32
  }
  func.func @transform_6(%arg0: i32, %arg1: i32) -> (i32, i32, i32) {
    %c0_i32 = arith.constant 0 : i32
    %c0_i32_0 = arith.constant 0 : i32
    %c0_i32_1 = arith.constant 0 : i32
    return %arg1, %c0_i32, %c0_i32_0 : i32, i32, i32
  }
  func.func @transform_7(%arg0: i32, %arg1: i32) -> (i32, i32, i32) {
    %c0_i32 = arith.constant 0 : i32
    %c0_i32_0 = arith.constant 0 : i32
    %c0_i32_1 = arith.constant 0 : i32
    return %arg1, %c0_i32, %c0_i32_0 : i32, i32, i32
  }
  func.func @transform_8(%arg0: i32, %arg1: i32) -> (i32, i32, i32) {
    %c0_i32 = arith.constant 0 : i32
    %c0_i32_0 = arith.constant 0 : i32
    %c0_i32_1 = arith.constant 0 : i32
    return %arg1, %c0_i32, %c0_i32_0 : i32, i32, i32
  }
  func.func @transform_9(%arg0: i32, %arg1: i32) -> (i32, i32, i32) {
    %c0_i32 = arith.constant 0 : i32
    %c0_i32_0 = arith.constant 0 : i32
    %c0_i32_1 = arith.constant 0 : i32
    return %arg1, %c0_i32, %c0_i32_0 : i32, i32, i32
  }
  func.func @transform_10(%arg0: i32, %arg1: i32) -> (i32, i32, i32) {
    %c0_i32 = arith.constant 0 : i32
    %c0_i32_0 = arith.constant 0 : i32
    %c0_i32_1 = arith.constant 0 : i32
    return %arg1, %c0_i32, %c0_i32_0 : i32, i32, i32
  }
  func.func @transform_11(%arg0: i32, %arg1: i32) -> (i32, i32, i32) {
    %c0_i32 = arith.constant 0 : i32
    %c0_i32_0 = arith.constant 0 : i32
    %c0_i32_1 = arith.constant 0 : i32
    return %arg1, %c0_i32, %c0_i32_0 : i32, i32, i32
  }
  func.func @transform_12(%arg0: i32, %arg1: i32) -> (i32, i32, i32) {
    %c0_i32 = arith.constant 0 : i32
    %c0_i32_0 = arith.constant 0 : i32
    %c0_i32_1 = arith.constant 0 : i32
    return %arg1, %c0_i32, %c0_i32_0 : i32, i32, i32
  }
  func.func @transform_13(%arg0: i32, %arg1: i32) -> (i32, i32, i32) {
    %c0_i32 = arith.constant 0 : i32
    %c0_i32_0 = arith.constant 0 : i32
    %c0_i32_1 = arith.constant 0 : i32
    return %arg0, %c0_i32, %c0_i32_0 : i32, i32, i32
  }
}

</mosaic_0001>

<llo_original>
// kernel: tpu_custom_call.1
$region0: #{tpu_custom_call.1}
  #allocation0 [shape = 'u32[]', space=smem, size = 0x4, offset = 0x4, fixed_abs, tag = 'smem constant byte address 0x4 - core index']
  #allocation1 [shape = 'u32[144,128]{1,0:T(1,128)}', space=vmem, size = 0x12000, scoped, tag = 'internal scratch']
  #allocation2 [shape = 'f32[128,128]{1,0:T(8,128)}', space=vmem, size = 0x10000, scoped, tag = 'scratch operand']
  %s0 = inlined_call_operand.hbm [shape: f32[32,8,128], index: 0, kind: input, shape index: {}]
  %s1 = inlined_call_operand.hbm [shape: bf16[3,128,384], index: 1, kind: input, shape index: {}]
  %s2 = inlined_call_operand.hbm [shape: f32[3,1,384], index: 2, kind: input, shape index: {}]
  %s3 = inlined_call_operand.hbm [shape: bf16[3,128,128], index: 3, kind: input, shape index: {}]
  %s4 = inlined_call_operand.vmem [shape: f32[3,1,128], index: 4, kind: input, shape index: {}]
  %s5 = inlined_call_operand.vmem [shape: f32[3,1,128], index: 5, kind: input, shape index: {}]
  %s6 = inlined_call_operand.vmem [shape: f32[3,1,128], index: 6, kind: input, shape index: {}]
  %s7 = inlined_call_operand.hbm [shape: bf16[3,128,256], index: 7, kind: input, shape index: {}]
  %s8 = inlined_call_operand.vmem [shape: f32[3,1,256], index: 8, kind: input, shape index: {}]
  %s9 = inlined_call_operand.hbm [shape: bf16[3,256,128], index: 9, kind: input, shape index: {}]
  %s10 = inlined_call_operand.vmem [shape: f32[3,1,128], index: 10, kind: input, shape index: {}]
  %s11 = inlined_call_operand.vmem [shape: f32[3,1,128], index: 11, kind: input, shape index: {}]
  %s12 = inlined_call_operand.vmem [shape: f32[3,1,128], index: 12, kind: input, shape index: {}]
  %s13 = inlined_call_operand.hbm [shape: f32[2,1,128], index: 13, kind: output, shape index: {}]
  %s14 = sld [smem:[#allocation0]]
  $region117: #{tpu_custom_call.1} parent=0
    _
  %s16 = ssub.s32 1, %s14
  %s17 = scalar_select 0, %s16, %s14
  $region1: #{tpu_custom_call.1} parent=0
    #allocation3 [shape = 'u8[131072]{0}', space=vmem, size = 0x20000, scoped, tag = 'input window, operand 0']
    #allocation4 [shape = 's32[2]{0}', space=sflag, size = 0x8, scoped, tag = 'scoped memory for tpu_custom_call.1']
    #allocation5 [shape = 's32[2]{0}', space=sflag, size = 0x8, scoped, tag = 'scoped memory for tpu_custom_call.1']
    #allocation6 [shape = 'u8[196608]{0}', space=vmem, size = 0x30000, scoped, tag = 'input window, operand 1']
    #allocation7 [shape = 's32[2]{0}', space=sflag, size = 0x8, scoped, tag = 'scoped memory for tpu_custom_call.1']
    #allocation8 [shape = 'u8[3072]{0}', space=vmem, size = 0xc00, scoped, tag = 'input window, operand 2']
    #allocation9 [shape = 'u8[65536]{0}', space=vmem, size = 0x10000, scoped, tag = 'input window, operand 3']
    #allocation10 [shape = 's32[2]{0}', space=sflag, size = 0x8, scoped, tag = 'scoped memory for tpu_custom_call.1']
    #allocation11 [shape = 'u8[131072]{0}', space=vmem, size = 0x20000, scoped, tag = 'input window, operand 7']
    #allocation12 [shape = 'u8[131072]{0}', space=vmem, size = 0x20000, scoped, tag = 'input window, operand 9']
    #allocation13 [shape = 's32[2]{0}', space=sflag, size = 0x8, scoped, tag = 'scoped memory for tpu_custom_call.1']
    #allocation14 [shape = 'u8[1024]{0}', space=vmem, size = 0x400, scoped, tag = 'output window, operand 0']
    %18 = vsyncpa [#allocation4], 0
    %s19 = scalar_lea.sflag [#allocation4], 1
    %20 = vsyncpa %s19, 0
    %21 = vsyncpa [#allocation7], 0
    %s22 = scalar_lea.sflag [#allocation7], 1
    %23 = vsyncpa %s22, 0
    %24 = vsyncpa [#allocation10], 0
    %s25 = scalar_lea.sflag [#allocation10], 1
    %26 = vsyncpa %s25, 0
    %27 = vsyncpa [#allocation13], 0
    %s28 = scalar_lea.sflag [#allocation13], 1
    %29 = vsyncpa %s28, 0
    %30 = vsyncpa [#allocation5], 0
    %s31 = scalar_lea.sflag [#allocation5], 1
    %32 = vsyncpa %s31, 0
    loop: start=0, step=1, limit=8
    $region2: #{tpu_custom_call.1} parent=1 // loop_pre_header
      _
    $region3: #{tpu_custom_call.1} parent=1 // loop_header
      %s34 = sphi 0, %s38
      %p35 = scmp.ge.s32.totalorder %s34, 8
      %s41 = sphi 0, %s53
      %s42 = sphi 0, %s49
      %s43 = sphi 0, %s41
      %s44 = sphi 0, %s42
      %s45 = sphi 0, %s43
      %s46 = sphi 0, %s44
      %s56 = sphi 0, %s58
      %s59 = sphi 0, %s56
      %s60 = sphi 0, %s59
      %s76 = sphi 0, %s60
      %s82 = sphi 0, %s84
      %s85 = sphi 0, %s82
      %s86 = sphi 0, %s85
      %s102 = sphi 0, %s86
      %s108 = sphi 0, %s110
      %s111 = sphi 0, %s108
      %s112 = sphi 0, %s111
      %s128 = sphi 0, %s112
      %s134 = sphi 0, %s136
      %s137 = sphi 0, %s134
      %s138 = sphi 0, %s137
      %s154 = sphi 0, %s138
      %s160 = sphi 0, %s162
      %s163 = sphi 0, %s160
      %s164 = sphi 0, %s163
      %s180 = sphi 0, %s164
      %s186 = sphi 0, %s188
      %s189 = sphi 0, %s186
      %s190 = sphi 0, %s189
      %s206 = sphi 0, %s190
      %s212 = sphi 0, %s214
      %s215 = sphi 0, %s212
      %s216 = sphi 0, %s215
      %s232 = sphi 0, %s216
      %s238 = sphi 0, %s240
      %s241 = sphi 0, %s238
      %s242 = sphi 0, %s241
      %s258 = sphi 0, %s242
      %s264 = sphi 0, %s266
      %s267 = sphi 0, %s264
      %s268 = sphi 0, %s267
      %s284 = sphi 0, %s268
      %s290 = sphi 0, %s292
      %s293 = sphi 0, %s290
      %s294 = sphi 0, %s293
      %s310 = sphi 0, %s294
      %s316 = sphi 0, %s318
      %s319 = sphi 0, %s316
      %s320 = sphi 0, %s319
      %s336 = sphi 0, %s320
      %s342 = sphi 0, %s344
      %s345 = sphi 0, %s342
      %s346 = sphi 0, %s345
      %s362 = sphi 0, %s346
      %s368 = sphi 0, %s370
      %s371 = sphi 0, %s368
      %s372 = sphi 0, %s371
      %s388 = sphi 0, %s372
      %s394 = sphi 0, %s396
      %s397 = sphi 0, %s394
      %s398 = sphi 0, %s397
      %s414 = sphi 0, %s398
    $region4: #{tpu_custom_call.1} parent=1 // loop_header_branch
      %37 = sbr.rel (%p35) target = $region8
    $region5: #{tpu_custom_call.1} parent=1 // loop_body
      %s39 = ssub.s32 %s34, 1
      %s40 = ssub.s32 %s34, 2
      %s47 = sadd.s32 1, %s42
      %p48 = scmp.ge.s32.totalorder %s47, 3
      %s49 = scalar_select %p48, 0, %s47
      %s50 = sadd.s32 1, %s41
      %s51 = scalar_select %p48, %s50, %s41
      %p52 = scmp.ge.s32.totalorder %s51, 2
      %s53 = scalar_select %p52, 0, %s51
      %s54 = ssub.s32 %s41, %s53
      %p55 = scmp.eq.s32.totalorder %s54, 0
      %s57 = sadd.s32 %s56, 1
      %s58 = scalar_select %p55, %s56, %s57
      %p61 = pneg %p55
      %p62 = scmp.eq.s32.totalorder %s34, 5
      %p63 = por %p61, %p62
      %p64 = scmp.ne.s32.totalorder %s56, %s59
      %p65 = scmp.eq.s32.totalorder %s34, 0
      %p66 = por %p64, %p65
      %p67 = scmp.ne.s32.totalorder %s56, %s59
      %p68 = scmp.eq.s32.totalorder %s39, 5
      %p69 = por %p67, %p68
      %p70 = scmp.ne.s32.totalorder %s59, %s60
      %p71 = scmp.eq.s32.totalorder %s39, 0
      %p72 = por %p70, %p71
      %p73 = scmp.ne.s32.totalorder %s59, %s60
      %p74 = scmp.eq.s32.totalorder %s40, 5
      %p75 = por %p73, %p74
      %p77 = scmp.ne.s32.totalorder %s60, %s76
      %p78 = scmp.eq.s32.totalorder %s40, 0
      %p79 = por %p77, %p78
      %s80 = ssub.s32 %s42, %s49
      %p81 = scmp.eq.s32.totalorder %s80, 0
      %s83 = sadd.s32 %s82, 1
      %s84 = scalar_select %p81, %s82, %s83
      %p87 = pneg %p81
      %p88 = scmp.eq.s32.totalorder %s34, 5
      %p89 = por %p87, %p88
      %p90 = scmp.ne.s32.totalorder %s82, %s85
      %p91 = scmp.eq.s32.totalorder %s34, 0
      %p92 = por %p90, %p91
      %p93 = scmp.ne.s32.totalorder %s82, %s85
      %p94 = scmp.eq.s32.totalorder %s39, 5
      %p95 = por %p93, %p94
      %p96 = scmp.ne.s32.totalorder %s85, %s86
      %p97 = scmp.eq.s32.totalorder %s39, 0
      %p98 = por %p96, %p97
      %p99 = scmp.ne.s32.totalorder %s85, %s86
      %p100 = scmp.eq.s32.totalorder %s40, 5
      %p101 = por %p99, %p100
      %p103 = scmp.ne.s32.totalorder %s86, %s102
      %p104 = scmp.eq.s32.totalorder %s40, 0
      %p105 = por %p103, %p104
      %s106 = ssub.s32 %s42, %s49
      %p107 = scmp.eq.s32.totalorder %s106, 0
      %s109 = sadd.s32 %s108, 1
      %s110 = scalar_select %p107, %s108, %s109
      %p113 = pneg %p107
      %p114 = scmp.eq.s32.totalorder %s34, 5
      %p115 = por %p113, %p114
      %p116 = scmp.ne.s32.totalorder %s108, %s111
      %p117 = scmp.eq.s32.totalorder %s34, 0
      %p118 = por %p116, %p117
      %p119 = scmp.ne.s32.totalorder %s108, %s111
      %p120 = scmp.eq.s32.totalorder %s39, 5
      %p121 = por %p119, %p120
      %p122 = scmp.ne.s32.totalorder %s111, %s112
      %p123 = scmp.eq.s32.totalorder %s39, 0
      %p124 = por %p122, %p123
      %p125 = scmp.ne.s32.totalorder %s111, %s112
      %p126 = scmp.eq.s32.totalorder %s40, 5
      %p127 = por %p125, %p126
      %p129 = scmp.ne.s32.totalorder %s112, %s128
      %p130 = scmp.eq.s32.totalorder %s40, 0
      %p131 = por %p129, %p130
      %s132 = ssub.s32 %s42, %s49
      %p133 = scmp.eq.s32.totalorder %s132, 0
      %s135 = sadd.s32 %s134, 1
      %s136 = scalar_select %p133, %s134, %s135
      %p139 = pneg %p133
      %p140 = scmp.eq.s32.totalorder %s34, 5
      %p141 = por %p139, %p140
      %p142 = scmp.ne.s32.totalorder %s134, %s137
      %p143 = scmp.eq.s32.totalorder %s34, 0
      %p144 = por %p142, %p143
      %p145 = scmp.ne.s32.totalorder %s134, %s137
      %p146 = scmp.eq.s32.totalorder %s39, 5
      %p147 = por %p145, %p146
      %p148 = scmp.ne.s32.totalorder %s137, %s138
      %p149 = scmp.eq.s32.totalorder %s39, 0
      %p150 = por %p148, %p149
      %p151 = scmp.ne.s32.totalorder %s137, %s138
      %p152 = scmp.eq.s32.totalorder %s40, 5
      %p153 = por %p151, %p152
      %p155 = scmp.ne.s32.totalorder %s138, %s154
      %p156 = scmp.eq.s32.totalorder %s40, 0
      %p157 = por %p155, %p156
      %s158 = ssub.s32 %s42, %s49
      %p159 = scmp.eq.s32.totalorder %s158, 0
      %s161 = sadd.s32 %s160, 1
      %s162 = scalar_select %p159, %s160, %s161
      %p165 = pneg %p159
      %p166 = scmp.eq.s32.totalorder %s34, 5
      %p167 = por %p165, %p166
      %p168 = scmp.ne.s32.totalorder %s160, %s163
      %p169 = scmp.eq.s32.totalorder %s34, 0
      %p170 = por %p168, %p169
      %p171 = scmp.ne.s32.totalorder %s160, %s163
      %p172 = scmp.eq.s32.totalorder %s39, 5
      %p173 = por %p171, %p172
      %p174 = scmp.ne.s32.totalorder %s163, %s164
      %p175 = scmp.eq.s32.totalorder %s39, 0
      %p176 = por %p174, %p175
      %p177 = scmp.ne.s32.totalorder %s163, %s164
      %p178 = scmp.eq.s32.totalorder %s40, 5
      %p179 = por %p177, %p178
      %p181 = scmp.ne.s32.totalorder %s164, %s180
      %p182 = scmp.eq.s32.totalorder %s40, 0
      %p183 = por %p181, %p182
      %s184 = ssub.s32 %s42, %s49
      %p185 = scmp.eq.s32.totalorder %s184, 0
      %s187 = sadd.s32 %s186, 1
      %s188 = scalar_select %p185, %s186, %s187
      %p191 = pneg %p185
      %p192 = scmp.eq.s32.totalorder %s34, 5
      %p193 = por %p191, %p192
      %p194 = scmp.ne.s32.totalorder %s186, %s189
      %p195 = scmp.eq.s32.totalorder %s34, 0
      %p196 = por %p194, %p195
      %p197 = scmp.ne.s32.totalorder %s186, %s189
      %p198 = scmp.eq.s32.totalorder %s39, 5
      %p199 = por %p197, %p198
      %p200 = scmp.ne.s32.totalorder %s189, %s190
      %p201 = scmp.eq.s32.totalorder %s39, 0
      %p202 = por %p200, %p201
      %p203 = scmp.ne.s32.totalorder %s189, %s190
      %p204 = scmp.eq.s32.totalorder %s40, 5
      %p205 = por %p203, %p204
      %p207 = scmp.ne.s32.totalorder %s190, %s206
      %p208 = scmp.eq.s32.totalorder %s40, 0
      %p209 = por %p207, %p208
      %s210 = ssub.s32 %s42, %s49
      %p211 = scmp.eq.s32.totalorder %s210, 0
      %s213 = sadd.s32 %s212, 1
      %s214 = scalar_select %p211, %s212, %s213
      %p217 = pneg %p211
      %p218 = scmp.eq.s32.totalorder %s34, 5
      %p219 = por %p217, %p218
      %p220 = scmp.ne.s32.totalorder %s212, %s215
      %p221 = scmp.eq.s32.totalorder %s34, 0
      %p222 = por %p220, %p221
      %p223 = scmp.ne.s32.totalorder %s212, %s215
      %p224 = scmp.eq.s32.totalorder %s39, 5
      %p225 = por %p223, %p224
      %p226 = scmp.ne.s32.totalorder %s215, %s216
      %p227 = scmp.eq.s32.totalorder %s39, 0
      %p228 = por %p226, %p227
      %p229 = scmp.ne.s32.totalorder %s215, %s216
      %p230 = scmp.eq.s32.totalorder %s40, 5
      %p231 = por %p229, %p230
      %p233 = scmp.ne.s32.totalorder %s216, %s232
      %p234 = scmp.eq.s32.totalorder %s40, 0
      %p235 = por %p233, %p234
      %s236 = ssub.s32 %s42, %s49
      %p237 = scmp.eq.s32.totalorder %s236, 0
      %s239 = sadd.s32 %s238, 1
      %s240 = scalar_select %p237, %s238, %s239
      %p243 = pneg %p237
      %p244 = scmp.eq.s32.totalorder %s34, 5
      %p245 = por %p243, %p244
      %p246 = scmp.ne.s32.totalorder %s238, %s241
      %p247 = scmp.eq.s32.totalorder %s34, 0
      %p248 = por %p246, %p247
      %p249 = scmp.ne.s32.totalorder %s238, %s241
      %p250 = scmp.eq.s32.totalorder %s39, 5
      %p251 = por %p249, %p250
      %p252 = scmp.ne.s32.totalorder %s241, %s242
      %p253 = scmp.eq.s32.totalorder %s39, 0
      %p254 = por %p252, %p253
      %p255 = scmp.ne.s32.totalorder %s241, %s242
      %p256 = scmp.eq.s32.totalorder %s40, 5
      %p257 = por %p255, %p256
      %p259 = scmp.ne.s32.totalorder %s242, %s258
      %p260 = scmp.eq.s32.totalorder %s40, 0
      %p261 = por %p259, %p260
      %s262 = ssub.s32 %s42, %s49
      %p263 = scmp.eq.s32.totalorder %s262, 0
      %s265 = sadd.s32 %s264, 1
      %s266 = scalar_select %p263, %s264, %s265
      %p269 = pneg %p263
      %p270 = scmp.eq.s32.totalorder %s34, 5
      %p271 = por %p269, %p270
      %p272 = scmp.ne.s32.totalorder %s264, %s267
      %p273 = scmp.eq.s32.totalorder %s34, 0
      %p274 = por %p272, %p273
      %p275 = scmp.ne.s32.totalorder %s264, %s267
      %p276 = scmp.eq.s32.totalorder %s39, 5
      %p277 = por %p275, %p276
      %p278 = scmp.ne.s32.totalorder %s267, %s268
      %p279 = scmp.eq.s32.totalorder %s39, 0
      %p280 = por %p278, %p279
      %p281 = scmp.ne.s32.totalorder %s267, %s268
      %p282 = scmp.eq.s32.totalorder %s40, 5
      %p283 = por %p281, %p282
      %p285 = scmp.ne.s32.totalorder %s268, %s284
      %p286 = scmp.eq.s32.totalorder %s40, 0
      %p287 = por %p285, %p286
      %s288 = ssub.s32 %s42, %s49
      %p289 = scmp.eq.s32.totalorder %s288, 0
      %s291 = sadd.s32 %s290, 1
      %s292 = scalar_select %p289, %s290, %s291
      %p295 = pneg %p289
      %p296 = scmp.eq.s32.totalorder %s34, 5
      %p297 = por %p295, %p296
      %p298 = scmp.ne.s32.totalorder %s290, %s293
      %p299 = scmp.eq.s32.totalorder %s34, 0
      %p300 = por %p298, %p299
      %p301 = scmp.ne.s32.totalorder %s290, %s293
      %p302 = scmp.eq.s32.totalorder %s39, 5
      %p303 = por %p301, %p302
      %p304 = scmp.ne.s32.totalorder %s293, %s294
      %p305 = scmp.eq.s32.totalorder %s39, 0
      %p306 = por %p304, %p305
      %p307 = scmp.ne.s32.totalorder %s293, %s294
      %p308 = scmp.eq.s32.totalorder %s40, 5
      %p309 = por %p307, %p308
      %p311 = scmp.ne.s32.totalorder %s294, %s310
      %p312 = scmp.eq.s32.totalorder %s40, 0
      %p313 = por %p311, %p312
      %s314 = ssub.s32 %s42, %s49
      %p315 = scmp.eq.s32.totalorder %s314, 0
      %s317 = sadd.s32 %s316, 1
      %s318 = scalar_select %p315, %s316, %s317
      %p321 = pneg %p315
      %p322 = scmp.eq.s32.totalorder %s34, 5
      %p323 = por %p321, %p322
      %p324 = scmp.ne.s32.totalorder %s316, %s319
      %p325 = scmp.eq.s32.totalorder %s34, 0
      %p326 = por %p324, %p325
      %p327 = scmp.ne.s32.totalorder %s316, %s319
      %p328 = scmp.eq.s32.totalorder %s39, 5
      %p329 = por %p327, %p328
      %p330 = scmp.ne.s32.totalorder %s319, %s320
      %p331 = scmp.eq.s32.totalorder %s39, 0
      %p332 = por %p330, %p331
      %p333 = scmp.ne.s32.totalorder %s319, %s320
      %p334 = scmp.eq.s32.totalorder %s40, 5
      %p335 = por %p333, %p334
      %p337 = scmp.ne.s32.totalorder %s320, %s336
      %p338 = scmp.eq.s32.totalorder %s40, 0
      %p339 = por %p337, %p338
      %s340 = ssub.s32 %s42, %s49
      %p341 = scmp.eq.s32.totalorder %s340, 0
      %s343 = sadd.s32 %s342, 1
      %s344 = scalar_select %p341, %s342, %s343
      %p347 = pneg %p341
      %p348 = scmp.eq.s32.totalorder %s34, 5
      %p349 = por %p347, %p348
      %p350 = scmp.ne.s32.totalorder %s342, %s345
      %p351 = scmp.eq.s32.totalorder %s34, 0
      %p352 = por %p350, %p351
      %p353 = scmp.ne.s32.totalorder %s342, %s345
      %p354 = scmp.eq.s32.totalorder %s39, 5
      %p355 = por %p353, %p354
      %p356 = scmp.ne.s32.totalorder %s345, %s346
      %p357 = scmp.eq.s32.totalorder %s39, 0
      %p358 = por %p356, %p357
      %p359 = scmp.ne.s32.totalorder %s345, %s346
      %p360 = scmp.eq.s32.totalorder %s40, 5
      %p361 = por %p359, %p360
      %p363 = scmp.ne.s32.totalorder %s346, %s362
      %p364 = scmp.eq.s32.totalorder %s40, 0
      %p365 = por %p363, %p364
      %s366 = ssub.s32 %s42, %s49
      %p367 = scmp.eq.s32.totalorder %s366, 0
      %s369 = sadd.s32 %s368, 1
      %s370 = scalar_select %p367, %s368, %s369
      %p373 = pneg %p367
      %p374 = scmp.eq.s32.totalorder %s34, 5
      %p375 = por %p373, %p374
      %p376 = scmp.ne.s32.totalorder %s368, %s371
      %p377 = scmp.eq.s32.totalorder %s34, 0
      %p378 = por %p376, %p377
      %p379 = scmp.ne.s32.totalorder %s368, %s371
      %p380 = scmp.eq.s32.totalorder %s39, 5
      %p381 = por %p379, %p380
      %p382 = scmp.ne.s32.totalorder %s371, %s372
      %p383 = scmp.eq.s32.totalorder %s39, 0
      %p384 = por %p382, %p383
      %p385 = scmp.ne.s32.totalorder %s371, %s372
      %p386 = scmp.eq.s32.totalorder %s40, 5
      %p387 = por %p385, %p386
      %p389 = scmp.ne.s32.totalorder %s372, %s388
      %p390 = scmp.eq.s32.totalorder %s40, 0
      %p391 = por %p389, %p390
      %s392 = ssub.s32 %s41, %s53
      %p393 = scmp.eq.s32.totalorder %s392, 0
      %s395 = sadd.s32 %s394, 1
      %s396 = scalar_select %p393, %s394, %s395
      %p399 = pneg %p393
      %p400 = scmp.eq.s32.totalorder %s34, 5
      %p401 = por %p399, %p400
      %p402 = scmp.ne.s32.totalorder %s394, %s397
      %p403 = scmp.eq.s32.totalorder %s34, 0
      %p404 = por %p402, %p403
      %p405 = scmp.ne.s32.totalorder %s394, %s397
      %p406 = scmp.eq.s32.totalorder %s39, 5
      %p407 = por %p405, %p406
      %p408 = scmp.ne.s32.totalorder %s397, %s398
      %p409 = scmp.eq.s32.totalorder %s39, 0
      %p410 = por %p408, %p409
      %p411 = scmp.ne.s32.totalorder %s397, %s398
      %p412 = scmp.eq.s32.totalorder %s40, 5
      %p413 = por %p411, %p412
      %p415 = scmp.ne.s32.totalorder %s398, %s414
      %p416 = scmp.eq.s32.totalorder %s40, 0
      %p417 = por %p415, %p416
      %p418 = scmp.le.s32.totalorder 1, %s34
      %p419 = scmp.lt.s32.totalorder %s34, 7
      %p420 = pnand %p418, %p419
      %p421 = pneg %p420
      // Predicated region
      $region9: #{tpu_custom_call.1} parent=5 // pred_check
        _
      $region10: #{tpu_custom_call.1} parent=5 // pred_check_branch
        %423 = sbr.rel (%p420) target = $region12
      $region11: #{tpu_custom_call.1} parent=5 // pred_region
        %s424 = ssub.s32 %s34, 1
      $region12: #{tpu_custom_call.1} parent=5 // pred_fallthru
        _
      %p425 = scmp.lt.s32.totalorder %s34, 6
      // Predicated region
      $region13: #{tpu_custom_call.1} parent=5 // pred_check
        %p426 = pneg %p425
      $region14: #{tpu_custom_call.1} parent=5 // pred_check_branch
        %428 = sbr.rel (%p426) target = $region16
      $region15: #{tpu_custom_call.1} parent=5 // pred_region
        // Predicated region
        $region17: #{tpu_custom_call.1} parent=15 // pred_check
          %p429 = pneg %p66
        $region18: #{tpu_custom_call.1} parent=15 // pred_check_branch
          %431 = sbr.rel (%p429) target = $region20
        $region19: #{tpu_custom_call.1} parent=15 // pred_region
          %s432 = sand.u32 %s56, 1
          %s433 = scalar_lea.sflag [#allocation4], %s432
          %s434 = sand.u32 %s56, 1
          %s435 = smul.addr %s434, 128
          %s436 = scalar_lea.vmem [#allocation3], %s435
          %s437 = smul.u32 16, %s41
          %s439 = ssub.s32 2048, 2048
          %440 = vsyncadd %s433, %s439
          %s441 = smul.addr %s437, 128
          %s442 = scalar_lea.hbm %s0, %s441
          %s443 = sshll.u32 %s436, 4
          %s444 = int_to_ptr.vmem [resolvable:$true] %s443
          %449 = dma.hbm_to_vmem [thread:$0]  %s442, 2048, %s444, %s433, 128, 128, 8
        $region20: #{tpu_custom_call.1} parent=15 // pred_fallthru
          _
        // Predicated region
        $region21: #{tpu_custom_call.1} parent=15 // pred_check
          %p450 = pneg %p92
        $region22: #{tpu_custom_call.1} parent=15 // pred_check_branch
          %452 = sbr.rel (%p450) target = $region24
        $region23: #{tpu_custom_call.1} parent=15 // pred_region
          %s453 = sand.u32 %s34, 1
          %s454 = scalar_lea.sflag [#allocation7], %s453
          %s455 = sand.u32 %s82, 1
          %s456 = smul.addr %s455, 192
          %s457 = scalar_lea.vmem [#allocation6], %s456
          %s459 = ssub.s32 3072, 3072
          %460 = vsyncadd %s454, %s459
          %s461 = smul.addr %s42, 48
          %s462 = smul.addr %s461, 64
          %s463 = scalar_lea.hbm %s1, %s462
          %s464 = sshll.u32 %s457, 4
          %s465 = int_to_ptr.vmem [resolvable:$true] %s464
          %470 = dma.hbm_to_vmem [thread:$0]  %s463, 3072, %s465, %s454, 192, 192, 12
        $region24: #{tpu_custom_call.1} parent=15 // pred_fallthru
          _
        // Predicated region
        $region25: #{tpu_custom_call.1} parent=15 // pred_check
          %p471 = pneg %p118
        $region26: #{tpu_custom_call.1} parent=15 // pred_check_branch
          %473 = sbr.rel (%p471) target = $region28
        $region27: #{tpu_custom_call.1} parent=15 // pred_region
          %s474 = sand.u32 %s34, 1
          %s475 = scalar_lea.sflag [#allocation7], %s474
          %s476 = sand.u32 %s108, 1
          %s477 = smul.addr %s476, 3
          %s478 = scalar_lea.vmem [#allocation8], %s477
          %s480 = ssub.s32 48, 48
          %481 = vsyncadd %s475, %s480
          %s482 = smul.addr %s42, 3
          %s483 = smul.addr %s482, 16
          %s484 = scalar_lea.hbm %s2, %s483
          %s486 = sshll.u32 %s478, 4
          %s487 = int_to_ptr.vmem [resolvable:$true] %s486
          %489 = dma.hbm_to_vmem [thread:$0]  %s484, 48, %s487, %s475
        $region28: #{tpu_custom_call.1} parent=15 // pred_fallthru
          _
        // Predicated region
        $region29: #{tpu_custom_call.1} parent=15 // pred_check
          %p490 = pneg %p144
        $region30: #{tpu_custom_call.1} parent=15 // pred_check_branch
          %492 = sbr.rel (%p490) target = $region32
        $region31: #{tpu_custom_call.1} parent=15 // pred_region
          %s493 = sand.u32 %s34, 1
          %s494 = scalar_lea.sflag [#allocation10], %s493
          %s495 = sand.u32 %s134, 1
          %s496 = smul.addr %s495, 64
          %s497 = scalar_lea.vmem [#allocation9], %s496
          %s499 = ssub.s32 1024, 1024
          %500 = vsyncadd %s494, %s499
          %s501 = smul.addr %s42, 16
          %s502 = smul.addr %s501, 64
          %s503 = scalar_lea.hbm %s3, %s502
          %s504 = sshll.u32 %s497, 4
          %s505 = int_to_ptr.vmem [resolvable:$true] %s504
          %510 = dma.hbm_to_vmem [thread:$0]  %s503, 1024, %s505, %s494, 64, 64, 4
        $region32: #{tpu_custom_call.1} parent=15 // pred_fallthru
          _
        // Predicated region
        $region33: #{tpu_custom_call.1} parent=15 // pred_check
          %p511 = pneg %p170
        $region34: #{tpu_custom_call.1} parent=15 // pred_check_branch
          %513 = sbr.rel (%p511) target = $region36
        $region35: #{tpu_custom_call.1} parent=15 // pred_region
          %p514 = scmp.lt.s32.totalorder %s42, 2
          %s515 = scalar_select %p514, %s42, 2
          %s516 = scalar_lea.vmem %s4, %s515
        $region36: #{tpu_custom_call.1} parent=15 // pred_fallthru
          _
        // Predicated region
        $region37: #{tpu_custom_call.1} parent=15 // pred_check
          %p517 = pneg %p196
        $region38: #{tpu_custom_call.1} parent=15 // pred_check_branch
          %519 = sbr.rel (%p517) target = $region40
        $region39: #{tpu_custom_call.1} parent=15 // pred_region
          %p520 = scmp.lt.s32.totalorder %s42, 2
          %s521 = scalar_select %p520, %s42, 2
          %s522 = scalar_lea.vmem %s5, %s521
        $region40: #{tpu_custom_call.1} parent=15 // pred_fallthru
          _
        // Predicated region
        $region41: #{tpu_custom_call.1} parent=15 // pred_check
          %p523 = pneg %p222
        $region42: #{tpu_custom_call.1} parent=15 // pred_check_branch
          %525 = sbr.rel (%p523) target = $region44
        $region43: #{tpu_custom_call.1} parent=15 // pred_region
          %p526 = scmp.lt.s32.totalorder %s42, 2
          %s527 = scalar_select %p526, %s42, 2
          %s528 = scalar_lea.vmem %s6, %s527
        $region44: #{tpu_custom_call.1} parent=15 // pred_fallthru
          _
        // Predicated region
        $region45: #{tpu_custom_call.1} parent=15 // pred_check
          %p529 = pneg %p248
        $region46: #{tpu_custom_call.1} parent=15 // pred_check_branch
          %531 = sbr.rel (%p529) target = $region48
        $region47: #{tpu_custom_call.1} parent=15 // pred_region
          %s532 = sand.u32 %s34, 1
          %s533 = scalar_lea.sflag [#allocation10], %s532
          %s534 = sand.u32 %s238, 1
          %s535 = smul.addr %s534, 128
          %s536 = scalar_lea.vmem [#allocation11], %s535
          %s538 = ssub.s32 2048, 2048
          %539 = vsyncadd %s533, %s538
          %s540 = smul.addr %s42, 32
          %s541 = smul.addr %s540, 64
          %s542 = scalar_lea.hbm %s7, %s541
          %s543 = sshll.u32 %s536, 4
          %s544 = int_to_ptr.vmem [resolvable:$true] %s543
          %549 = dma.hbm_to_vmem [thread:$0]  %s542, 2048, %s544, %s533, 128, 128, 8
        $region48: #{tpu_custom_call.1} parent=15 // pred_fallthru
          _
        // Predicated region
        $region49: #{tpu_custom_call.1} parent=15 // pred_check
          %p550 = pneg %p274
        $region50: #{tpu_custom_call.1} parent=15 // pred_check_branch
          %552 = sbr.rel (%p550) target = $region52
        $region51: #{tpu_custom_call.1} parent=15 // pred_region
          %p553 = scmp.lt.s32.totalorder %s42, 2
          %s554 = scalar_select %p553, %s42, 2
          %s555 = smul.addr %s554, 2
          %s556 = scalar_lea.vmem %s8, %s555
        $region52: #{tpu_custom_call.1} parent=15 // pred_fallthru
          _
        // Predicated region
        $region53: #{tpu_custom_call.1} parent=15 // pred_check
          %p557 = pneg %p300
        $region54: #{tpu_custom_call.1} parent=15 // pred_check_branch
          %559 = sbr.rel (%p557) target = $region56
        $region55: #{tpu_custom_call.1} parent=15 // pred_region
          %s560 = sand.u32 %s290, 1
          %s561 = scalar_lea.sflag [#allocation13], %s560
          %s562 = sand.u32 %s290, 1
          %s563 = smul.addr %s562, 128
          %s564 = scalar_lea.vmem [#allocation12], %s563
          %s566 = ssub.s32 2048, 2048
          %567 = vsyncadd %s561, %s566
          %s568 = smul.addr %s42, 32
          %s569 = smul.addr %s568, 64
          %s570 = scalar_lea.hbm %s9, %s569
          %s571 = sshll.u32 %s564, 4
          %s572 = int_to_ptr.vmem [resolvable:$true] %s571
          %577 = dma.hbm_to_vmem [thread:$0]  %s570, 2048, %s572, %s561, 64, 64, 4
        $region56: #{tpu_custom_call.1} parent=15 // pred_fallthru
          _
        // Predicated region
        $region57: #{tpu_custom_call.1} parent=15 // pred_check
          %p578 = pneg %p326
        $region58: #{tpu_custom_call.1} parent=15 // pred_check_branch
          %580 = sbr.rel (%p578) target = $region60
        $region59: #{tpu_custom_call.1} parent=15 // pred_region
          %p581 = scmp.lt.s32.totalorder %s42, 2
          %s582 = scalar_select %p581, %s42, 2
          %s583 = scalar_lea.vmem %s10, %s582
        $region60: #{tpu_custom_call.1} parent=15 // pred_fallthru
          _
        // Predicated region
        $region61: #{tpu_custom_call.1} parent=15 // pred_check
          %p584 = pneg %p352
        $region62: #{tpu_custom_call.1} parent=15 // pred_check_branch
          %586 = sbr.rel (%p584) target = $region64
        $region63: #{tpu_custom_call.1} parent=15 // pred_region
          %p587 = scmp.lt.s32.totalorder %s42, 2
          %s588 = scalar_select %p587, %s42, 2
          %s589 = scalar_lea.vmem %s11, %s588
        $region64: #{tpu_custom_call.1} parent=15 // pred_fallthru
          _
        // Predicated region
        $region65: #{tpu_custom_call.1} parent=15 // pred_check
          %p590 = pneg %p378
        $region66: #{tpu_custom_call.1} parent=15 // pred_check_branch
          %592 = sbr.rel (%p590) target = $region68
        $region67: #{tpu_custom_call.1} parent=15 // pred_region
          %p593 = scmp.lt.s32.totalorder %s42, 2
          %s594 = scalar_select %p593, %s42, 2
          %s595 = scalar_lea.vmem %s12, %s594
        $region68: #{tpu_custom_call.1} parent=15 // pred_fallthru
          _
      $region16: #{tpu_custom_call.1} parent=5 // pred_fallthru
        _
      %p596 = scmp.le.s32.totalorder 1, %s34
      %p597 = scmp.lt.s32.totalorder %s34, 7
      %p598 = pnand %p596, %p597
      %p599 = pneg %p598
      // Predicated region
      $region69: #{tpu_custom_call.1} parent=5 // pred_check
        _
      $region70: #{tpu_custom_call.1} parent=5 // pred_check_branch
        %601 = sbr.rel (%p598) target = $region72
      $region71: #{tpu_custom_call.1} parent=5 // pred_region
        %s602 = ssub.s32 %s34, 1
        %s603 = sand.u32 %s59, 1
        %s604 = scalar_lea.sflag [#allocation4], %s603
        %s605 = sand.u32 %s59, 1
        %s606 = smul.addr %s605, 128
        %s607 = scalar_lea.vmem [#allocation3], %s606
        // Predicated region
        $region73: #{tpu_custom_call.1} parent=71 // pred_check
          %p608 = pneg %p72
        $region74: #{tpu_custom_call.1} parent=71 // pred_check_branch
          %610 = sbr.rel (%p608) target = $region76
        $region75: #{tpu_custom_call.1} parent=71 // pred_region
          %611 = dma.done %s604, 2048
        $region76: #{tpu_custom_call.1} parent=71 // pred_fallthru
          _
        %s612 = sand.u32 %s39, 1
        %s613 = scalar_lea.sflag [#allocation7], %s612
        %s614 = sand.u32 %s85, 1
        %s615 = smul.addr %s614, 192
        %s616 = scalar_lea.vmem [#allocation6], %s615
        // Predicated region
        $region77: #{tpu_custom_call.1} parent=71 // pred_check
          %p617 = pneg %p98
        $region78: #{tpu_custom_call.1} parent=71 // pred_check_branch
          %619 = sbr.rel (%p617) target = $region80
        $region79: #{tpu_custom_call.1} parent=71 // pred_region
          %620 = dma.done %s613, 3072
        $region80: #{tpu_custom_call.1} parent=71 // pred_fallthru
          _
        %s621 = sand.u32 %s39, 1
        %s622 = scalar_lea.sflag [#allocation7], %s621
        %s623 = sand.u32 %s111, 1
        %s624 = smul.addr %s623, 3
        %s625 = scalar_lea.vmem [#allocation8], %s624
        // Predicated region
        $region81: #{tpu_custom_call.1} parent=71 // pred_check
          %p626 = pneg %p124
        $region82: #{tpu_custom_call.1} parent=71 // pred_check_branch
          %628 = sbr.rel (%p626) target = $region84
        $region83: #{tpu_custom_call.1} parent=71 // pred_region
          %629 = dma.done %s622, 48
        $region84: #{tpu_custom_call.1} parent=71 // pred_fallthru
          _
        %s630 = sand.u32 %s39, 1
        %s631 = scalar_lea.sflag [#allocation10], %s630
        %s632 = sand.u32 %s137, 1
        %s633 = smul.addr %s632, 64
        %s634 = scalar_lea.vmem [#allocation9], %s633
        // Predicated region
        $region85: #{tpu_custom_call.1} parent=71 // pred_check
          %p635 = pneg %p150
        $region86: #{tpu_custom_call.1} parent=71 // pred_check_branch
          %637 = sbr.rel (%p635) target = $region88
        $region87: #{tpu_custom_call.1} parent=71 // pred_region
          %638 = dma.done %s631, 1024
        $region88: #{tpu_custom_call.1} parent=71 // pred_fallthru
          _
        %s639 = sand.u32 %s39, 1
        %s640 = scalar_lea.sflag [#allocation10], %s639
        %s641 = sand.u32 %s241, 1
        %s642 = smul.addr %s641, 128
        %s643 = scalar_lea.vmem [#allocation11], %s642
        // Predicated region
        $region89: #{tpu_custom_call.1} parent=71 // pred_check
          %p644 = pneg %p254
        $region90: #{tpu_custom_call.1} parent=71 // pred_check_branch
          %646 = sbr.rel (%p644) target = $region92
        $region91: #{tpu_custom_call.1} parent=71 // pred_region
          %647 = dma.done %s640, 2048
        $region92: #{tpu_custom_call.1} parent=71 // pred_fallthru
          _
        %s648 = sand.u32 %s293, 1
        %s649 = scalar_lea.sflag [#allocation13], %s648
        %s650 = sand.u32 %s293, 1
        %s651 = smul.addr %s650, 128
        %s652 = scalar_lea.vmem [#allocation12], %s651
        // Predicated region
        $region93: #{tpu_custom_call.1} parent=71 // pred_check
          %p653 = pneg %p306
        $region94: #{tpu_custom_call.1} parent=71 // pred_check_branch
          %655 = sbr.rel (%p653) target = $region96
        $region95: #{tpu_custom_call.1} parent=71 // pred_region
          %656 = dma.done %s649, 2048
        $region96: #{tpu_custom_call.1} parent=71 // pred_fallthru
          _
        %s657 = sand.u32 %s59, 1
        %s658 = scalar_lea.sflag [#allocation4], %s657
        %s659 = sand.u32 %s59, 1
        %s660 = smul.addr %s659, 128
        %s661 = scalar_lea.vmem [#allocation3], %s660
        %p662 = pneg %p72
        %p663 = pneg %p69
        %s664 = sand.u32 %s39, 1
        %s665 = scalar_lea.sflag [#allocation7], %s664
        %s666 = sand.u32 %s85, 1
        %s667 = smul.addr %s666, 192
        %s668 = scalar_lea.vmem [#allocation6], %s667
        %p669 = pneg %p98
        %p670 = pneg %p95
        %s671 = sand.u32 %s39, 1
        %s672 = scalar_lea.sflag [#allocation7], %s671
        %s673 = sand.u32 %s111, 1
        %s674 = smul.addr %s673, 3
        %s675 = scalar_lea.vmem [#allocation8], %s674
        %p676 = pneg %p124
        %p677 = pneg %p121
        %s678 = sand.u32 %s39, 1
        %s679 = scalar_lea.sflag [#allocation10], %s678
        %s680 = sand.u32 %s137, 1
        %s681 = smul.addr %s680, 64
        %s682 = scalar_lea.vmem [#allocation9], %s681
        %p683 = pneg %p150
        %p684 = pneg %p147
        %p685 = scmp.lt.s32.totalorder %s44, 2
        %s686 = scalar_select %p685, %s44, 2
        %s687 = scalar_lea.vmem %s4, %s686
        %p688 = pneg %p176
        %p689 = pneg %p173
        %p690 = scmp.lt.s32.totalorder %s44, 2
        %s691 = scalar_select %p690, %s44, 2
        %s692 = scalar_lea.vmem %s5, %s691
        %p693 = pneg %p202
        %p694 = pneg %p199
        %p695 = scmp.lt.s32.totalorder %s44, 2
        %s696 = scalar_select %p695, %s44, 2
        %s697 = scalar_lea.vmem %s6, %s696
        %p698 = pneg %p228
        %p699 = pneg %p225
        %s700 = sand.u32 %s39, 1
        %s701 = scalar_lea.sflag [#allocation10], %s700
        %s702 = sand.u32 %s241, 1
        %s703 = smul.addr %s702, 128
        %s704 = scalar_lea.vmem [#allocation11], %s703
        %p705 = pneg %p254
        %p706 = pneg %p251
        %p707 = scmp.lt.s32.totalorder %s44, 2
        %s708 = scalar_select %p707, %s44, 2
        %s709 = smul.addr %s708, 2
        %s710 = scalar_lea.vmem %s8, %s709
        %p711 = pneg %p280
        %p712 = pneg %p277
        %s713 = sand.u32 %s293, 1
        %s714 = scalar_lea.sflag [#allocation13], %s713
        %s715 = sand.u32 %s293, 1
        %s716 = smul.addr %s715, 128
        %s717 = scalar_lea.vmem [#allocation12], %s716
        %p718 = pneg %p306
        %p719 = pneg %p303
        %p720 = scmp.lt.s32.totalorder %s44, 2
        %s721 = scalar_select %p720, %s44, 2
        %s722 = scalar_lea.vmem %s10, %s721
        %p723 = pneg %p332
        %p724 = pneg %p329
        %p725 = scmp.lt.s32.totalorder %s44, 2
        %s726 = scalar_select %p725, %s44, 2
        %s727 = scalar_lea.vmem %s11, %s726
        %p728 = pneg %p358
        %p729 = pneg %p355
        %p730 = scmp.lt.s32.totalorder %s44, 2
        %s731 = scalar_select %p730, %s44, 2
        %s732 = scalar_lea.vmem %s12, %s731
        %p733 = pneg %p384
        %p734 = pneg %p381
        %p735 = pneg %p410
        %p736 = pneg %p407
        %s737 = sand.u32 %s397, 1
        %s738 = scalar_lea.sflag [#allocation5], %s737
        %s739 = sand.u32 %s397, 1
        %s740 = scalar_lea.vmem [#allocation14], %s739
        %s741 = smul.u32 16, %s43
        %p742 = scmp.lt.s32.totalorder %s44, 2
        %s743 = scalar_select %p742, %s44, 2
        %s744 = scalar_lea.vmem %s4, %s743
        %p745 = scmp.lt.s32.totalorder %s44, 2
        %s746 = scalar_select %p745, %s44, 2
        %s747 = scalar_lea.vmem %s5, %s746
        %p748 = scmp.lt.s32.totalorder %s44, 2
        %s749 = scalar_select %p748, %s44, 2
        %s750 = scalar_lea.vmem %s6, %s749
        %p751 = scmp.lt.s32.totalorder %s44, 2
        %s752 = scalar_select %p751, %s44, 2
        %s753 = smul.addr %s752, 2
        %s754 = scalar_lea.vmem %s8, %s753
        %p755 = scmp.lt.s32.totalorder %s44, 2
        %s756 = scalar_select %p755, %s44, 2
        %s757 = scalar_lea.vmem %s10, %s756
        %p758 = scmp.lt.s32.totalorder %s44, 2
        %s759 = scalar_select %p758, %s44, 2
        %s760 = scalar_lea.vmem %s11, %s759
        %p761 = scmp.lt.s32.totalorder %s44, 2
        %s762 = scalar_select %p761, %s44, 2
        %s763 = scalar_lea.vmem %s12, %s762
        %p765 = scmp.eq.s32.totalorder %s44, 0
        // Predicated region
        $region97: #{tpu_custom_call.1} parent=71 // pred_check
          %p766 = pneg %p765
        $region98: #{tpu_custom_call.1} parent=71 // pred_check_branch
          %768 = sbr.rel (%p766) target = $region100
        $region99: #{tpu_custom_call.1} parent=71 // pred_region
          %v769 = vld [vmem:[%s607] sm:$0xff]
          %v770 = vld [vmem:[%s607 + $0x8] sm:$0xff]
          %v771 = vld [vmem:[%s607 + $0x10] sm:$0xff]
          %v772 = vld [vmem:[%s607 + $0x18] sm:$0xff]
          %v773 = vld [vmem:[%s607 + $0x20] sm:$0xff]
          %v774 = vld [vmem:[%s607 + $0x28] sm:$0xff]
          %v775 = vld [vmem:[%s607 + $0x30] sm:$0xff]
          %v776 = vld [vmem:[%s607 + $0x38] sm:$0xff]
          %v777 = vld [vmem:[%s607 + $0x40] sm:$0xff]
          %v778 = vld [vmem:[%s607 + $0x48] sm:$0xff]
          %v779 = vld [vmem:[%s607 + $0x50] sm:$0xff]
          %v780 = vld [vmem:[%s607 + $0x58] sm:$0xff]
          %v781 = vld [vmem:[%s607 + $0x60] sm:$0xff]
          %v782 = vld [vmem:[%s607 + $0x68] sm:$0xff]
          %v783 = vld [vmem:[%s607 + $0x70] sm:$0xff]
          %v784 = vld [vmem:[%s607 + $0x78] sm:$0xff]
          %785 = vst [vmem:[#allocation2] sm:$0xff] %v769
          %786 = vst [vmem:[#allocation2 + $0x8] sm:$0xff] %v770
          %787 = vst [vmem:[#allocation2 + $0x10] sm:$0xff] %v771
          %788 = vst [vmem:[#allocation2 + $0x18] sm:$0xff] %v772
          %789 = vst [vmem:[#allocation2 + $0x20] sm:$0xff] %v773
          %790 = vst [vmem:[#allocation2 + $0x28] sm:$0xff] %v774
          %791 = vst [vmem:[#allocation2 + $0x30] sm:$0xff] %v775
          %792 = vst [vmem:[#allocation2 + $0x38] sm:$0xff] %v776
          %793 = vst [vmem:[#allocation2 + $0x40] sm:$0xff] %v777
          %794 = vst [vmem:[#allocation2 + $0x48] sm:$0xff] %v778
          %795 = vst [vmem:[#allocation2 + $0x50] sm:$0xff] %v779
          %796 = vst [vmem:[#allocation2 + $0x58] sm:$0xff] %v780
          %797 = vst [vmem:[#allocation2 + $0x60] sm:$0xff] %v781
          %798 = vst [vmem:[#allocation2 + $0x68] sm:$0xff] %v782
          %799 = vst [vmem:[#allocation2 + $0x70] sm:$0xff] %v783
          %800 = vst [vmem:[#allocation2 + $0x78] sm:$0xff] %v784
        $region100: #{tpu_custom_call.1} parent=71 // pred_fallthru
          _
        %v801 = vld [vmem:[#allocation2] sm:$0xff]
        %v802 = vld [vmem:[#allocation2 + $0x8] sm:$0xff]
        %v803 = vld [vmem:[#allocation2 + $0x10] sm:$0xff]
        %v804 = vld [vmem:[#allocation2 + $0x18] sm:$0xff]
        %v805 = vld [vmem:[#allocation2 + $0x20] sm:$0xff]
        %v806 = vld [vmem:[#allocation2 + $0x28] sm:$0xff]
        %v807 = vld [vmem:[#allocation2 + $0x30] sm:$0xff]
        %v808 = vld [vmem:[#allocation2 + $0x38] sm:$0xff]
        %v809 = vld [vmem:[#allocation2 + $0x40] sm:$0xff]
        %v810 = vld [vmem:[#allocation2 + $0x48] sm:$0xff]
        %v811 = vld [vmem:[#allocation2 + $0x50] sm:$0xff]
        %v812 = vld [vmem:[#allocation2 + $0x58] sm:$0xff]
        %v813 = vld [vmem:[#allocation2 + $0x60] sm:$0xff]
        %v814 = vld [vmem:[#allocation2 + $0x68] sm:$0xff]
        %v815 = vld [vmem:[#allocation2 + $0x70] sm:$0xff]
        %v816 = vld [vmem:[#allocation2 + $0x78] sm:$0xff]
        %v817 = vpack.c.bf16 %v802, %v801
        %v818 = vpack.c.bf16 %v804, %v803
        %v819 = vpack.c.bf16 %v806, %v805
        %v820 = vpack.c.bf16 %v808, %v807
        %v821 = vpack.c.bf16 %v810, %v809
        %v822 = vpack.c.bf16 %v812, %v811
        %v823 = vpack.c.bf16 %v814, %v813
        %v824 = vpack.c.bf16 %v816, %v815
        %v825 = vld [vmem:[%s616] sm:$0xff]
        %v826 = vld [vmem:[%s616 + $0x8] sm:$0xf]
        %v827 = vld [vmem:[%s616 + $0xc] sm:$0xff]
        %v828 = vld [vmem:[%s616 + $0x14] sm:$0xf]
        %v829 = vld [vmem:[%s616 + $0x18] sm:$0xff]
        %v830 = vld [vmem:[%s616 + $0x20] sm:$0xf]
        %v831 = vld [vmem:[%s616 + $0x24] sm:$0xff]
        %v832 = vld [vmem:[%s616 + $0x2c] sm:$0xf]
        %v833 = vld [vmem:[%s616 + $0x30] sm:$0xff]
        %v834 = vld [vmem:[%s616 + $0x38] sm:$0xf]
        %v835 = vld [vmem:[%s616 + $0x3c] sm:$0xff]
        %v836 = vld [vmem:[%s616 + $0x44] sm:$0xf]
        %v837 = vld [vmem:[%s616 + $0x48] sm:$0xff]
        %v838 = vld [vmem:[%s616 + $0x50] sm:$0xf]
        %v839 = vld [vmem:[%s616 + $0x54] sm:$0xff]
        %v840 = vld [vmem:[%s616 + $0x5c] sm:$0xf]
        %v841 = vld [vmem:[%s616 + $0x60] sm:$0xff]
        %v842 = vld [vmem:[%s616 + $0x68] sm:$0xf]
        %v843 = vld [vmem:[%s616 + $0x6c] sm:$0xff]
        %v844 = vld [vmem:[%s616 + $0x74] sm:$0xf]
        %v845 = vld [vmem:[%s616 + $0x78] sm:$0xff]
        %v846 = vld [vmem:[%s616 + $0x80] sm:$0xf]
        %v847 = vld [vmem:[%s616 + $0x84] sm:$0xff]
        %v848 = vld [vmem:[%s616 + $0x8c] sm:$0xf]
        %v849 = vld [vmem:[%s616 + $0x90] sm:$0xff]
        %v850 = vld [vmem:[%s616 + $0x98] sm:$0xf]
        %v851 = vld [vmem:[%s616 + $0x9c] sm:$0xff]
        %v852 = vld [vmem:[%s616 + $0xa4] sm:$0xf]
        %v853 = vld [vmem:[%s616 + $0xa8] sm:$0xff]
        %v854 = vld [vmem:[%s616 + $0xb0] sm:$0xf]
        %v855 = vld [vmem:[%s616 + $0xb4] sm:$0xff]
        %v856 = vld [vmem:[%s616 + $0xbc] sm:$0xf]
        %v857 = vld [vmem:[%s625] sm:$0x7]
        %v859 = vlaneseq
        %v860 = vshrl.u32 %v859, 7
        %v861 = vsub.s32 0, %v860
        %v862 = vrot.slane %v857, %v861
        %v863 = vlaneseq
        %v864 = vshrl.u32 %v863, 7
        %v865 = vsub.s32 1, %v864
        %v866 = vrot.slane %v857, %v865
        %v867 = vlaneseq
        %v868 = vshrl.u32 %v867, 7
        %v869 = vsub.s32 2, %v868
        %v870 = vrot.slane %v857, %v869
        %v906 = vunpack.c.l.b16 %v825
        %v907 = vunpack.c.h.b16 %v825
        %v908 = vunpack.c.l.b16 %v826
        %v909 = vunpack.c.l.b16 %v827
        %v910 = vunpack.c.h.b16 %v827
        %v911 = vunpack.c.l.b16 %v828
        %v912 = vunpack.c.l.b16 %v829
        %v913 = vunpack.c.h.b16 %v829
        %v914 = vunpack.c.l.b16 %v830
        %v915 = vunpack.c.l.b16 %v831
        %v916 = vunpack.c.h.b16 %v831
        %v917 = vunpack.c.l.b16 %v832
        %v918 = vunpack.c.l.b16 %v833
        %v919 = vunpack.c.h.b16 %v833
        %v920 = vunpack.c.l.b16 %v834
        %v921 = vunpack.c.l.b16 %v835
        %v922 = vunpack.c.h.b16 %v835
        %v923 = vunpack.c.l.b16 %v836
        %v924 = vunpack.c.l.b16 %v837
        %v925 = vunpack.c.h.b16 %v837
        %v926 = vunpack.c.l.b16 %v838
        %v927 = vunpack.c.l.b16 %v839
        %v928 = vunpack.c.h.b16 %v839
        %v929 = vunpack.c.l.b16 %v840
        %v930 = vunpack.c.l.b16 %v841
        %v931 = vunpack.c.h.b16 %v841
        %v932 = vunpack.c.l.b16 %v842
        %v933 = vunpack.c.l.b16 %v843
        %v934 = vunpack.c.h.b16 %v843
        %v935 = vunpack.c.l.b16 %v844
        %v936 = vunpack.c.l.b16 %v845
        %v937 = vunpack.c.h.b16 %v845
        %v938 = vunpack.c.l.b16 %v846
        %v939 = vunpack.c.l.b16 %v847
        %v940 = vunpack.c.h.b16 %v847
        %v941 = vunpack.c.l.b16 %v848
        %v942 = vunpack.c.l.b16 %v849
        %v943 = vunpack.c.h.b16 %v849
        %v944 = vunpack.c.l.b16 %v850
        %v945 = vunpack.c.l.b16 %v851
        %v946 = vunpack.c.h.b16 %v851
        %v947 = vunpack.c.l.b16 %v852
        %v948 = vunpack.c.l.b16 %v853
        %v949 = vunpack.c.h.b16 %v853
        %v950 = vunpack.c.l.b16 %v854
        %v951 = vunpack.c.l.b16 %v855
        %v952 = vunpack.c.h.b16 %v855
        %v953 = vunpack.c.l.b16 %v856
        %v954 = vpack.c.b16 %v909, %v906
        %v955 = vpack.c.b16 %v910, %v907
        %v956 = vpack.c.b16 %v911, %v908
        %v957 = vpack.c.b16 %v915, %v912
        %v958 = vpack.c.b16 %v916, %v913
        %v959 = vpack.c.b16 %v917, %v914
        %v960 = vpack.c.b16 %v921, %v918
        %v961 = vpack.c.b16 %v922, %v919
        %v962 = vpack.c.b16 %v923, %v920
        %v963 = vpack.c.b16 %v927, %v924
        %v964 = vpack.c.b16 %v928, %v925
        %v965 = vpack.c.b16 %v929, %v926
        %v966 = vpack.c.b16 %v933, %v930
        %v967 = vpack.c.b16 %v934, %v931
        %v968 = vpack.c.b16 %v935, %v932
        %v969 = vpack.c.b16 %v939, %v936
        %v970 = vpack.c.b16 %v940, %v937
        %v971 = vpack.c.b16 %v941, %v938
        %v972 = vpack.c.b16 %v945, %v942
        %v973 = vpack.c.b16 %v946, %v943
        %v974 = vpack.c.b16 %v947, %v944
        %v975 = vpack.c.b16 %v951, %v948
        %v976 = vpack.c.b16 %v952, %v949
        %v977 = vpack.c.b16 %v953, %v950
        %1002 = vmatprep.subr.bf16.mxu0 %v955
        %1003 = vmatpush1.bf16.msra.mxu0 %v954
        %1004 = vmatprep.subr.bf16.mxu0 %v958
        %1005 = vmatpush1.bf16.msra.mxu0 %v957
        %1006 = vmatprep.subr.bf16.mxu0 %v961
        %1007 = vmatpush1.bf16.msra.mxu0 %v960
        %1008 = vmatprep.subr.bf16.mxu0 %v964
        %1009 = vmatpush1.bf16.msra.mxu0 %v963
        %1010 = vmatprep.subr.bf16.mxu0 %v967
        %1011 = vmatpush1.bf16.msra.mxu0 %v966
        %1012 = vmatprep.subr.bf16.mxu0 %v970
        %1013 = vmatpush1.bf16.msra.mxu0 %v969
        %1014 = vmatprep.subr.bf16.mxu0 %v973
        %1015 = vmatpush1.bf16.msra.mxu0 %v972
        %1016 = vmatprep.subr.bf16.mxu0 %v976
        %1017 = vmatpush1.bf16.msra.mxu0 %v975
        %1018 = vmatprep.subr.bf16.mxu0 0
        %1019 = vmatpush1.bf16.msra.mxu0 0
        %1020 = vmatprep.subr.bf16.mxu0 0
        %1021 = vmatpush1.bf16.msra.mxu0 0
        %1022 = vmatprep.subr.bf16.mxu0 0
        %1023 = vmatpush1.bf16.msra.mxu0 0
        %1024 = vmatprep.subr.bf16.mxu0 0
        %1025 = vmatpush1.bf16.msra.mxu0 0
        %1026 = vmatprep.subr.bf16.mxu0 0
        %1027 = vmatpush1.bf16.msra.mxu0 0
        %1028 = vmatprep.subr.bf16.mxu0 0
        %1029 = vmatpush1.bf16.msra.mxu0 0
        %1030 = vmatprep.subr.bf16.mxu0 0
        %1031 = vmatpush1.bf16.msra.mxu0 0
        %1032 = vmatprep.subr.bf16.mxu0 0
        %1033 = vmatpush1.bf16.msra.mxu0 0
        %1034 = vmatprep.mubr.bf16.mxu0 0
        %1035 = vmatmul.mubr.bf16.gmra.mrb[0].mxu0 %v817
        %v1036 = vpop.f32.mrb[0].mxu0
        %v1037 = vadd.f32 %v862, %v1036
        %v1038 = vpop.f32.mrb[0].mxu0
        %v1039 = vadd.f32 %v866, %v1038
        %v1040 = vpop.f32.mrb[0].mxu0
        %v1041 = vadd.f32 %v862, %v1040
        %v1042 = vpop.f32.mrb[0].mxu0
        %v1043 = vadd.f32 %v866, %v1042
        %1044 = vmatprep.mubr.bf16.mxu0 0
        %1045 = vmatmul.mubr.bf16.gmra.mrb[0].mxu0 %v818
        %v1046 = vpop.f32.mrb[0].mxu0
        %v1047 = vadd.f32 %v862, %v1046
        %v1048 = vpop.f32.mrb[0].mxu0
        %v1049 = vadd.f32 %v866, %v1048
        %v1050 = vpop.f32.mrb[0].mxu0
        %v1051 = vadd.f32 %v862, %v1050
        %v1052 = vpop.f32.mrb[0].mxu0
        %v1053 = vadd.f32 %v866, %v1052
        %1054 = vmatprep.mubr.bf16.mxu0 0
        %1055 = vmatmul.mubr.bf16.gmra.mrb[0].mxu0 %v819
        %v1056 = vpop.f32.mrb[0].mxu0
        %v1057 = vadd.f32 %v862, %v1056
        %v1058 = vpop.f32.mrb[0].mxu0
        %v1059 = vadd.f32 %v866, %v1058
        %v1060 = vpop.f32.mrb[0].mxu0
        %v1061 = vadd.f32 %v862, %v1060
        %v1062 = vpop.f32.mrb[0].mxu0
        %v1063 = vadd.f32 %v866, %v1062
        %1064 = vmatprep.mubr.bf16.mxu0 0
        %1065 = vmatmul.mubr.bf16.gmra.mrb[0].mxu0 %v820
        %v1066 = vpop.f32.mrb[0].mxu0
        %v1067 = vadd.f32 %v862, %v1066
        %v1068 = vpop.f32.mrb[0].mxu0
        %v1069 = vadd.f32 %v866, %v1068
        %v1070 = vpop.f32.mrb[0].mxu0
        %v1071 = vadd.f32 %v862, %v1070
        %v1072 = vpop.f32.mrb[0].mxu0
        %v1073 = vadd.f32 %v866, %v1072
        %1074 = vmatprep.mubr.bf16.mxu0 0
        %1075 = vmatmul.mubr.bf16.gmra.mrb[0].mxu0 %v821
        %v1076 = vpop.f32.mrb[0].mxu0
        %v1077 = vadd.f32 %v862, %v1076
        %v1078 = vpop.f32.mrb[0].mxu0
        %v1079 = vadd.f32 %v866, %v1078
        %v1080 = vpop.f32.mrb[0].mxu0
        %v1081 = vadd.f32 %v862, %v1080
        %v1082 = vpop.f32.mrb[0].mxu0
        %v1083 = vadd.f32 %v866, %v1082
        %1084 = vmatprep.mubr.bf16.mxu0 0
        %1085 = vmatmul.mubr.bf16.gmra.mrb[0].mxu0 %v822
        %v1086 = vpop.f32.mrb[0].mxu0
        %v1087 = vadd.f32 %v862, %v1086
        %v1088 = vpop.f32.mrb[0].mxu0
        %v1089 = vadd.f32 %v866, %v1088
        %v1090 = vpop.f32.mrb[0].mxu0
        %v1091 = vadd.f32 %v862, %v1090
        %v1092 = vpop.f32.mrb[0].mxu0
        %v1093 = vadd.f32 %v866, %v1092
        %1094 = vmatprep.mubr.bf16.mxu0 0
        %1095 = vmatmul.mubr.bf16.gmra.mrb[0].mxu0 %v823
        %v1096 = vpop.f32.mrb[0].mxu0
        %v1097 = vadd.f32 %v862, %v1096
        %v1098 = vpop.f32.mrb[0].mxu0
        %v1099 = vadd.f32 %v866, %v1098
        %v1100 = vpop.f32.mrb[0].mxu0
        %v1101 = vadd.f32 %v862, %v1100
        %v1102 = vpop.f32.mrb[0].mxu0
        %v1103 = vadd.f32 %v866, %v1102
        %1104 = vmatprep.mubr.bf16.mxu0 0
        %1105 = vmatmul.mubr.bf16.gmra.mrb[0].mxu0 %v824
        %v1106 = vpop.f32.mrb[0].mxu0
        %v1107 = vadd.f32 %v862, %v1106
        %v1108 = vpop.f32.mrb[0].mxu0
        %v1109 = vadd.f32 %v866, %v1108
        %v1110 = vpop.f32.mrb[0].mxu0
        %v1111 = vadd.f32 %v862, %v1110
        %v1112 = vpop.f32.mrb[0].mxu0
        %v1113 = vadd.f32 %v866, %v1112
        %1114 = vdwg.mxu0
        %1115 = vmatprep.subr.bf16.mxu0 0
        %1116 = vmatpush1.bf16.msra.mxu0 %v956
        %1117 = vmatprep.subr.bf16.mxu0 0
        %1118 = vmatpush1.bf16.msra.mxu0 %v959
        %1119 = vmatprep.subr.bf16.mxu0 0
        %1120 = vmatpush1.bf16.msra.mxu0 %v962
        %1121 = vmatprep.subr.bf16.mxu0 0
        %1122 = vmatpush1.bf16.msra.mxu0 %v965
        %1123 = vmatprep.subr.bf16.mxu0 0
        %1124 = vmatpush1.bf16.msra.mxu0 %v968
        %1125 = vmatprep.subr.bf16.mxu0 0
        %1126 = vmatpush1.bf16.msra.mxu0 %v971
        %1127 = vmatprep.subr.bf16.mxu0 0
        %1128 = vmatpush1.bf16.msra.mxu0 %v974
        %1129 = vmatprep.subr.bf16.mxu0 0
        %1130 = vmatpush1.bf16.msra.mxu0 %v977
        %1131 = vmatprep.subr.bf16.mxu0 0
        %1132 = vmatpush1.bf16.msra.mxu0 0
        %1133 = vmatprep.subr.bf16.mxu0 0
        %1134 = vmatpush1.bf16.msra.mxu0 0
        %1135 = vmatprep.subr.bf16.mxu0 0
        %1136 = vmatpush1.bf16.msra.mxu0 0
        %1137 = vmatprep.subr.bf16.mxu0 0
        %1138 = vmatpush1.bf16.msra.mxu0 0
        %1139 = vmatprep.subr.bf16.mxu0 0
        %1140 = vmatpush1.bf16.msra.mxu0 0
        %1141 = vmatprep.subr.bf16.mxu0 0
        %1142 = vmatpush1.bf16.msra.mxu0 0
        %1143 = vmatprep.subr.bf16.mxu0 0
        %1144 = vmatpush1.bf16.msra.mxu0 0
        %1145 = vmatprep.subr.bf16.mxu0 0
        %1146 = vmatpush1.bf16.msra.mxu0 0
        %1147 = vmatprep.mubr.bf16.mxu0 0
        %1148 = vmatmul.mubr.bf16.gmra.mrb[0].mxu0 %v817
        %v1149 = vpop.f32.mrb[0].mxu0
        %v1150 = vadd.f32 %v870, %v1149
        %v1151 = vpop.f32.mrb[0].mxu0
        %v1152 = vpop.f32.mrb[0].mxu0
        %v1153 = vadd.f32 %v870, %v1152
        %v1154 = vpop.f32.mrb[0].mxu0
        %1155 = vmatprep.mubr.bf16.mxu0 0
        %1156 = vmatmul.mubr.bf16.gmra.mrb[0].mxu0 %v818
        %v1157 = vpop.f32.mrb[0].mxu0
        %v1158 = vadd.f32 %v870, %v1157
        %v1159 = vpop.f32.mrb[0].mxu0
        %v1160 = vpop.f32.mrb[0].mxu0
        %v1161 = vadd.f32 %v870, %v1160
        %v1162 = vpop.f32.mrb[0].mxu0
        %1163 = vmatprep.mubr.bf16.mxu0 0
        %1164 = vmatmul.mubr.bf16.gmra.mrb[0].mxu0 %v819
        %v1165 = vpop.f32.mrb[0].mxu0
        %v1166 = vadd.f32 %v870, %v1165
        %v1167 = vpop.f32.mrb[0].mxu0
        %v1168 = vpop.f32.mrb[0].mxu0
        %v1169 = vadd.f32 %v870, %v1168
        %v1170 = vpop.f32.mrb[0].mxu0
        %1171 = vmatprep.mubr.bf16.mxu0 0
        %1172 = vmatmul.mubr.bf16.gmra.mrb[0].mxu0 %v820
        %v1173 = vpop.f32.mrb[0].mxu0
        %v1174 = vadd.f32 %v870, %v1173
        %v1175 = vpop.f32.mrb[0].mxu0
        %v1176 = vpop.f32.mrb[0].mxu0
        %v1177 = vadd.f32 %v870, %v1176
        %v1178 = vpop.f32.mrb[0].mxu0
        %1179 = vmatprep.mubr.bf16.mxu0 0
        %1180 = vmatmul.mubr.bf16.gmra.mrb[0].mxu0 %v821
        %v1181 = vpop.f32.mrb[0].mxu0
        %v1182 = vadd.f32 %v870, %v1181
        %v1183 = vpop.f32.mrb[0].mxu0
        %v1184 = vpop.f32.mrb[0].mxu0
        %v1185 = vadd.f32 %v870, %v1184
        %v1186 = vpop.f32.mrb[0].mxu0
        %1187 = vmatprep.mubr.bf16.mxu0 0
        %1188 = vmatmul.mubr.bf16.gmra.mrb[0].mxu0 %v822
        %v1189 = vpop.f32.mrb[0].mxu0
        %v1190 = vadd.f32 %v870, %v1189
        %v1191 = vpop.f32.mrb[0].mxu0
        %v1192 = vpop.f32.mrb[0].mxu0
        %v1193 = vadd.f32 %v870, %v1192
        %v1194 = vpop.f32.mrb[0].mxu0
        %1195 = vmatprep.mubr.bf16.mxu0 0
        %1196 = vmatmul.mubr.bf16.gmra.mrb[0].mxu0 %v823
        %v1197 = vpop.f32.mrb[0].mxu0
        %v1198 = vadd.f32 %v870, %v1197
        %v1199 = vpop.f32.mrb[0].mxu0
        %v1200 = vpop.f32.mrb[0].mxu0
        %v1201 = vadd.f32 %v870, %v1200
        %v1202 = vpop.f32.mrb[0].mxu0
        %1203 = vmatprep.mubr.bf16.mxu0 0
        %1204 = vmatmul.mubr.bf16.gmra.mrb[0].mxu0 %v824
        %v1205 = vpop.f32.mrb[0].mxu0
        %v1206 = vadd.f32 %v870, %v1205
        %v1207 = vpop.f32.mrb[0].mxu0
        %v1208 = vpop.f32.mrb[0].mxu0
        %v1209 = vadd.f32 %v870, %v1208
        %v1210 = vpop.f32.mrb[0].mxu0
        %1211 = vdwg.mxu0
        %v1212 = vmul.f32 %v1037, 0.17677669
        %v1213 = vmul.f32 %v1041, 0.17677669
        %v1214 = vmul.f32 %v1047, 0.17677669
        %v1215 = vmul.f32 %v1051, 0.17677669
        %v1216 = vmul.f32 %v1057, 0.17677669
        %v1217 = vmul.f32 %v1061, 0.17677669
        %v1218 = vmul.f32 %v1067, 0.17677669
        %v1219 = vmul.f32 %v1071, 0.17677669
        %v1220 = vmul.f32 %v1077, 0.17677669
        %v1221 = vmul.f32 %v1081, 0.17677669
        %v1222 = vmul.f32 %v1087, 0.17677669
        %v1223 = vmul.f32 %v1091, 0.17677669
        %v1224 = vmul.f32 %v1097, 0.17677669
        %v1225 = vmul.f32 %v1101, 0.17677669
        %v1226 = vmul.f32 %v1107, 0.17677669
        %v1227 = vmul.f32 %v1111, 0.17677669
        %v1228 = vpack.c.bf16 %v1212, %v1212
        %v1229 = vpack.c.bf16 %v1213, %v1213
        %v1230 = vpack.c.bf16 %v1214, %v1214
        %v1231 = vpack.c.bf16 %v1215, %v1215
        %v1232 = vpack.c.bf16 %v1216, %v1216
        %v1233 = vpack.c.bf16 %v1217, %v1217
        %v1234 = vpack.c.bf16 %v1218, %v1218
        %v1235 = vpack.c.bf16 %v1219, %v1219
        %v1236 = vpack.c.bf16 %v1220, %v1220
        %v1237 = vpack.c.bf16 %v1221, %v1221
        %v1238 = vpack.c.bf16 %v1222, %v1222
        %v1239 = vpack.c.bf16 %v1223, %v1223
        %v1240 = vpack.c.bf16 %v1224, %v1224
        %v1241 = vpack.c.bf16 %v1225, %v1225
        %v1242 = vpack.c.bf16 %v1226, %v1226
        %v1243 = vpack.c.bf16 %v1227, %v1227
        %v1244 = vpack.c.bf16 %v1039, %v1039
        %v1245 = vpack.c.bf16 %v1043, %v1043
        %v1246 = vpack.c.bf16 %v1049, %v1049
        %v1247 = vpack.c.bf16 %v1053, %v1053
        %v1248 = vpack.c.bf16 %v1059, %v1059
        %v1249 = vpack.c.bf16 %v1063, %v1063
        %v1250 = vpack.c.bf16 %v1069, %v1069
        %v1251 = vpack.c.bf16 %v1073, %v1073
        %v1252 = vpack.c.bf16 %v1079, %v1079
        %v1253 = vpack.c.bf16 %v1083, %v1083
        %v1254 = vpack.c.bf16 %v1089, %v1089
        %v1255 = vpack.c.bf16 %v1093, %v1093
        %v1256 = vpack.c.bf16 %v1099, %v1099
        %v1257 = vpack.c.bf16 %v1103, %v1103
        %v1258 = vpack.c.bf16 %v1109, %v1109
        %v1259 = vpack.c.bf16 %v1113, %v1113
        %v1260 = vpack.c.bf16 %v1150, %v1150
        %v1261 = vpack.c.bf16 %v1153, %v1153
        %v1262 = vpack.c.bf16 %v1158, %v1158
        %v1263 = vpack.c.bf16 %v1161, %v1161
        %v1264 = vpack.c.bf16 %v1166, %v1166
        %v1265 = vpack.c.bf16 %v1169, %v1169
        %v1266 = vpack.c.bf16 %v1174, %v1174
        %v1267 = vpack.c.bf16 %v1177, %v1177
        %v1268 = vpack.c.bf16 %v1182, %v1182
        %v1269 = vpack.c.bf16 %v1185, %v1185
        %v1270 = vpack.c.bf16 %v1190, %v1190
        %v1271 = vpack.c.bf16 %v1193, %v1193
        %v1272 = vpack.c.bf16 %v1198, %v1198
        %v1273 = vpack.c.bf16 %v1201, %v1201
        %v1274 = vpack.c.bf16 %v1206, %v1206
        %v1275 = vpack.c.bf16 %v1209, %v1209
        %vm1276 = vcmask 261120
        %v1278 = vsel %vm1276, %v1228, 0
        %v1281 = vsel %vm1276, %v1244, 0
        %1283 = vmatprep.subr.bf16.mxu0 0
        %1284 = vmatpush1.bf16.xpose.msra.mxu0 %v1281
        %1285 = vmatprep.subr.bf16.mxu0 0
        %1286 = vmatpush1.bf16.xpose.msra.mxu0 0
        %1287 = vmatprep.subr.bf16.mxu0 0
        %1288 = vmatpush1.bf16.xpose.msra.mxu0 0
        %1289 = vmatprep.subr.bf16.mxu0 0
        %1290 = vmatpush1.bf16.xpose.msra.mxu0 0
        %1291 = vmatprep.subr.bf16.mxu0 0
        %1292 = vmatpush1.bf16.xpose.msra.mxu0 0
        %1293 = vmatprep.subr.bf16.mxu0 0
        %1294 = vmatpush1.bf16.xpose.msra.mxu0 0
        %1295 = vmatprep.subr.bf16.mxu0 0
        %1296 = vmatpush1.bf16.xpose.msra.mxu0 0
        %1297 = vmatprep.subr.bf16.mxu0 0
        %1298 = vmatpush1.bf16.xpose.msra.mxu0 0
        %1299 = vmatprep.subr.bf16.mxu0 0
        %1300 = vmatpush1.bf16.xpose.msra.mxu0 0
        %1301 = vmatprep.subr.bf16.mxu0 0
        %1302 = vmatpush1.bf16.xpose.msra.mxu0 0
        %1303 = vmatprep.subr.bf16.mxu0 0
        %1304 = vmatpush1.bf16.xpose.msra.mxu0 0
        %1305 = vmatprep.subr.bf16.mxu0 0
        %1306 = vmatpush1.bf16.xpose.msra.mxu0 0
        %1307 = vmatprep.subr.bf16.mxu0 0
        %1308 = vmatpush1.bf16.xpose.msra.mxu0 0
        %1309 = vmatprep.subr.bf16.mxu0 0
        %1310 = vmatpush1.bf16.xpose.msra.mxu0 0
        %1311 = vmatprep.subr.bf16.mxu0 0
        %1312 = vmatpush1.bf16.xpose.msra.mxu0 0
        %1313 = vmatprep.subr.bf16.mxu0 0
        %1314 = vmatpush1.bf16.xpose.msra.mxu0 0
        %1315 = vmatprep.mubr.bf16.mxu0 0
        %1316 = vmatmul.mubr.bf16.gmra.mrb[0].mxu0 %v1278
        %v1317 = vpop.f32.mrb[0].mxu0
        %v1318 = vadd.f32 0.0, %v1317
        %v1319 = vpop.f32.mrb[0].mxu0
        %v1320 = vpop.f32.mrb[0].mxu0
        %v1321 = vpop.f32.mrb[0].mxu0
        %1322 = vdwg.mxu0
        %v1324 = vsel %vm1276, %v1229, 0
        %v1327 = vsel %vm1276, %v1245, 0
        %1329 = vmatprep.subr.bf16.mxu0 0
        %1330 = vmatpush1.bf16.xpose.msra.mxu0 %v1327
        %1331 = vmatprep.subr.bf16.mxu0 0
        %1332 = vmatpush1.bf16.xpose.msra.mxu0 0
        %1333 = vmatprep.subr.bf16.mxu0 0
        %1334 = vmatpush1.bf16.xpose.msra.mxu0 0
        %1335 = vmatprep.subr.bf16.mxu0 0
        %1336 = vmatpush1.bf16.xpose.msra.mxu0 0
        %1337 = vmatprep.subr.bf16.mxu0 0
        %1338 = vmatpush1.bf16.xpose.msra.mxu0 0
        %1339 = vmatprep.subr.bf16.mxu0 0
        %1340 = vmatpush1.bf16.xpose.msra.mxu0 0
        %1341 = vmatprep.subr.bf16.mxu0 0
        %1342 = vmatpush1.bf16.xpose.msra.mxu0 0
        %1343 = vmatprep.subr.bf16.mxu0 0
        %1344 = vmatpush1.bf16.xpose.msra.mxu0 0
        %1345 = vmatprep.subr.bf16.mxu0 0
        %1346 = vmatpush1.bf16.xpose.msra.mxu0 0
        %1347 = vmatprep.subr.bf16.mxu0 0
        %1348 = vmatpush1.bf16.xpose.msra.mxu0 0
        %1349 = vmatprep.subr.bf16.mxu0 0
        %1350 = vmatpush1.bf16.xpose.msra.mxu0 0
        %1351 = vmatprep.subr.bf16.mxu0 0
        %1352 = vmatpush1.bf16.xpose.msra.mxu0 0
        %1353 = vmatprep.subr.bf16.mxu0 0
        %1354 = vmatpush1.bf16.xpose.msra.mxu0 0
        %1355 = vmatprep.subr.bf16.mxu0 0
        %1356 = vmatpush1.bf16.xpose.msra.mxu0 0
        %1357 = vmatprep.subr.bf16.mxu0 0
        %1358 = vmatpush1.bf16.xpose.msra.mxu0 0
        %1359 = vmatprep.subr.bf16.mxu0 0
        %1360 = vmatpush1.bf16.xpose.msra.mxu0 0
        %1361 = vmatprep.mubr.bf16.mxu0 0
        %1362 = vmatmul.mubr.bf16.gmra.mrb[0].mxu0 %v1324
        %v1363 = vpop.f32.mrb[0].mxu0
        %v1364 = vadd.f32 0.0, %v1363
        %v1365 = vpop.f32.mrb[0].mxu0
        %v1366 = vpop.f32.mrb[0].mxu0
        %v1367 = vpop.f32.mrb[0].mxu0
        %1368 = vdwg.mxu0
        %v1370 = vsel %vm1276, %v1230, 0
        %v1373 = vsel %vm1276, %v1246, 0
        %1375 = vmatprep.subr.bf16.mxu0 0
        %1376 = vmatpush1.bf16.xpose.msra.mxu0 %v1373
        %1377 = vmatprep.subr.bf16.mxu0 0
        %1378 = vmatpush1.bf16.xpose.msra.mxu0 0
        %1379 = vmatprep.subr.bf16.mxu0 0
        %1380 = vmatpush1.bf16.xpose.msra.mxu0 0
        %1381 = vmatprep.subr.bf16.mxu0 0
        %1382 = vmatpush1.bf16.xpose.msra.mxu0 0
        %1383 = vmatprep.subr.bf16.mxu0 0
        %1384 = vmatpush1.bf16.xpose.msra.mxu0 0
        %1385 = vmatprep.subr.bf16.mxu0 0
        %1386 = vmatpush1.bf16.xpose.msra.mxu0 0
        %1387 = vmatprep.subr.bf16.mxu0 0
        %1388 = vmatpush1.bf16.xpose.msra.mxu0 0
        %1389 = vmatprep.subr.bf16.mxu0 0
        %1390 = vmatpush1.bf16.xpose.msra.mxu0 0
        %1391 = vmatprep.subr.bf16.mxu0 0
        %1392 = vmatpush1.bf16.xpose.msra.mxu0 0
        %1393 = vmatprep.subr.bf16.mxu0 0
        %1394 = vmatpush1.bf16.xpose.msra.mxu0 0
        %1395 = vmatprep.subr.bf16.mxu0 0
        %1396 = vmatpush1.bf16.xpose.msra.mxu0 0
        %1397 = vmatprep.subr.bf16.mxu0 0
        %1398 = vmatpush1.bf16.xpose.msra.mxu0 0
        %1399 = vmatprep.subr.bf16.mxu0 0
        %1400 = vmatpush1.bf16.xpose.msra.mxu0 0
        %1401 = vmatprep.subr.bf16.mxu0 0
        %1402 = vmatpush1.bf16.xpose.msra.mxu0 0
        %1403 = vmatprep.subr.bf16.mxu0 0
        %1404 = vmatpush1.bf16.xpose.msra.mxu0 0
        %1405 = vmatprep.subr.bf16.mxu0 0
        %1406 = vmatpush1.bf16.xpose.msra.mxu0 0
        %1407 = vmatprep.mubr.bf16.mxu0 0
        %1408 = vmatmul.mubr.bf16.gmra.mrb[0].mxu0 %v1370
        %v1409 = vpop.f32.mrb[0].mxu0
        %v1410 = vadd.f32 0.0, %v1409
        %v1411 = vpop.f32.mrb[0].mxu0
        %v1412 = vpop.f32.mrb[0].mxu0
        %v1413 = vpop.f32.mrb[0].mxu0
        %1414 = vdwg.mxu0
        %v1416 = vsel %vm1276, %v1231, 0
        %v1419 = vsel %vm1276, %v1247, 0
        %1421 = vmatprep.subr.bf16.mxu0 0
        %1422 = vmatpush1.bf16.xpose.msra.mxu0 %v1419
        %1423 = vmatprep.subr.bf16.mxu0 0
        %1424 = vmatpush1.bf16.xpose.msra.mxu0 0
        %1425 = vmatprep.subr.bf16.mxu0 0
        %1426 = vmatpush1.bf16.xpose.msra.mxu0 0
        %1427 = vmatprep.subr.bf16.mxu0 0
        %1428 = vmatpush1.bf16.xpose.msra.mxu0 0
        %1429 = vmatprep.subr.bf16.mxu0 0
        %1430 = vmatpush1.bf16.xpose.msra.mxu0 0
        %1431 = vmatprep.subr.bf16.mxu0 0
        %1432 = vmatpush1.bf16.xpose.msra.mxu0 0
        %1433 = vmatprep.subr.bf16.mxu0 0
        %1434 = vmatpush1.bf16.xpose.msra.mxu0 0
        %1435 = vmatprep.subr.bf16.mxu0 0
        %1436 = vmatpush1.bf16.xpose.msra.mxu0 0
        %1437 = vmatprep.subr.bf16.mxu0 0
        %1438 = vmatpush1.bf16.xpose.msra.mxu0 0
        %1439 = vmatprep.subr.bf16.mxu0 0
        %1440 = vmatpush1.bf16.xpose.msra.mxu0 0
        %1441 = vmatprep.subr.bf16.mxu0 0
        %1442 = vmatpush1.bf16.xpose.msra.mxu0 0
        %1443 = vmatprep.subr.bf16.mxu0 0
        %1444 = vmatpush1.bf16.xpose.msra.mxu0 0
        %1445 = vmatprep.subr.bf16.mxu0 0
        %1446 = vmatpush1.bf16.xpose.msra.mxu0 0
        %1447 = vmatprep.subr.bf16.mxu0 0
        %1448 = vmatpush1.bf16.xpose.msra.mxu0 0
        %1449 = vmatprep.subr.bf16.mxu0 0
        %1450 = vmatpush1.bf16.xpose.msra.mxu0 0
        %1451 = vmatprep.subr.bf16.mxu0 0
        %1452 = vmatpush1.bf16.xpose.msra.mxu0 0
        %1453 = vmatprep.mubr.bf16.mxu0 0
        %1454 = vmatmul.mubr.bf16.gmra.mrb[0].mxu0 %v1416
        %v1455 = vpop.f32.mrb[0].mxu0
        %v1456 = vadd.f32 0.0, %v1455
        %v1457 = vpop.f32.mrb[0].mxu0
        %v1458 = vpop.f32.mrb[0].mxu0
        %v1459 = vpop.f32.mrb[0].mxu0
        %1460 = vdwg.mxu0
        %v1462 = vsel %vm1276, %v1232, 0
        %v1465 = vsel %vm1276, %v1248, 0
        %1467 = vmatprep.subr.bf16.mxu0 0
        %1468 = vmatpush1.bf16.xpose.msra.mxu0 %v1465
        %1469 = vmatprep.subr.bf16.mxu0 0
        %1470 = vmatpush1.bf16.xpose.msra.mxu0 0
        %1471 = vmatprep.subr.bf16.mxu0 0
        %1472 = vmatpush1.bf16.xpose.msra.mxu0 0
        %1473 = vmatprep.subr.bf16.mxu0 0
        %1474 = vmatpush1.bf16.xpose.msra.mxu0 0
        %1475 = vmatprep.subr.bf16.mxu0 0
        %1476 = vmatpush1.bf16.xpose.msra.mxu0 0
        %1477 = vmatprep.subr.bf16.mxu0 0
        %1478 = vmatpush1.bf16.xpose.msra.mxu0 0
        %1479 = vmatprep.subr.bf16.mxu0 0
        %1480 = vmatpush1.bf16.xpose.msra.mxu0 0
        %1481 = vmatprep.subr.bf16.mxu0 0
        %1482 = vmatpush1.bf16.xpose.msra.mxu0 0
        %1483 = vmatprep.subr.bf16.mxu0 0
        %1484 = vmatpush1.bf16.xpose.msra.mxu0 0
        %1485 = vmatprep.subr.bf16.mxu0 0
        %1486 = vmatpush1.bf16.xpose.msra.mxu0 0
        %1487 = vmatprep.subr.bf16.mxu0 0
        %1488 = vmatpush1.bf16.xpose.msra.mxu0 0
        %1489 = vmatprep.subr.bf16.mxu0 0
        %1490 = vmatpush1.bf16.xpose.msra.mxu0 0
        %1491 = vmatprep.subr.bf16.mxu0 0
        %1492 = vmatpush1.bf16.xpose.msra.mxu0 0
        %1493 = vmatprep.subr.bf16.mxu0 0
        %1494 = vmatpush1.bf16.xpose.msra.mxu0 0
        %1495 = vmatprep.subr.bf16.mxu0 0
        %1496 = vmatpush1.bf16.xpose.msra.mxu0 0
        %1497 = vmatprep.subr.bf16.mxu0 0
        %1498 = vmatpush1.bf16.xpose.msra.mxu0 0
        %1499 = vmatprep.mubr.bf16.mxu0 0
        %1500 = vmatmul.mubr.bf16.gmra.mrb[0].mxu0 %v1462
        %v1501 = vpop.f32.mrb[0].mxu0
        %v1502 = vadd.f32 0.0, %v1501
        %v1503 = vpop.f32.mrb[0].mxu0
        %v1504 = vpop.f32.mrb[0].mxu0
        %v1505 = vpop.f32.mrb[0].mxu0
        %1506 = vdwg.mxu0
        %v1508 = vsel %vm1276, %v1233, 0
        %v1511 = vsel %vm1276, %v1249, 0
        %1513 = vmatprep.subr.bf16.mxu0 0
        %1514 = vmatpush1.bf16.xpose.msra.mxu0 %v1511
        %1515 = vmatprep.subr.bf16.mxu0 0
        %1516 = vmatpush1.bf16.xpose.msra.mxu0 0
        %1517 = vmatprep.subr.bf16.mxu0 0
        %1518 = vmatpush1.bf16.xpose.msra.mxu0 0
        %1519 = vmatprep.subr.bf16.mxu0 0
        %1520 = vmatpush1.bf16.xpose.msra.mxu0 0
        %1521 = vmatprep.subr.bf16.mxu0 0
        %1522 = vmatpush1.bf16.xpose.msra.mxu0 0
        %1523 = vmatprep.subr.bf16.mxu0 0
        %1524 = vmatpush1.bf16.xpose.msra.mxu0 0
        %1525 = vmatprep.subr.bf16.mxu0 0
        %1526 = vmatpush1.bf16.xpose.msra.mxu0 0
        %1527 = vmatprep.subr.bf16.mxu0 0
        %1528 = vmatpush1.bf16.xpose.msra.mxu0 0
        %1529 = vmatprep.subr.bf16.mxu0 0
        %1530 = vmatpush1.bf16.xpose.msra.mxu0 0
        %1531 = vmatprep.subr.bf16.mxu0 0
        %1532 = vmatpush1.bf16.xpose.msra.mxu0 0
        %1533 = vmatprep.subr.bf16.mxu0 0
        %1534 = vmatpush1.bf16.xpose.msra.mxu0 0
        %1535 = vmatprep.subr.bf16.mxu0 0
        %1536 = vmatpush1.bf16.xpose.msra.mxu0 0
        %1537 = vmatprep.subr.bf16.mxu0 0
        %1538 = vmatpush1.bf16.xpose.msra.mxu0 0
        %1539 = vmatprep.subr.bf16.mxu0 0
        %1540 = vmatpush1.bf16.xpose.msra.mxu0 0
        %1541 = vmatprep.subr.bf16.mxu0 0
        %1542 = vmatpush1.bf16.xpose.msra.mxu0 0
        %1543 = vmatprep.subr.bf16.mxu0 0
        %1544 = vmatpush1.bf16.xpose.msra.mxu0 0
        %1545 = vmatprep.mubr.bf16.mxu0 0
        %1546 = vmatmul.mubr.bf16.gmra.mrb[0].mxu0 %v1508
        %v1547 = vpop.f32.mrb[0].mxu0
        %v1548 = vadd.f32 0.0, %v1547
        %v1549 = vpop.f32.mrb[0].mxu0
        %v1550 = vpop.f32.mrb[0].mxu0
        %v1551 = vpop.f32.mrb[0].mxu0
        %1552 = vdwg.mxu0
        %v1554 = vsel %vm1276, %v1234, 0
        %v1557 = vsel %vm1276, %v1250, 0
        %1559 = vmatprep.subr.bf16.mxu0 0
        %1560 = vmatpush1.bf16.xpose.msra.mxu0 %v1557
        %1561 = vmatprep.subr.bf16.mxu0 0
        %1562 = vmatpush1.bf16.xpose.msra.mxu0 0
        %1563 = vmatprep.subr.bf16.mxu0 0
        %1564 = vmatpush1.bf16.xpose.msra.mxu0 0
        %1565 = vmatprep.subr.bf16.mxu0 0
        %1566 = vmatpush1.bf16.xpose.msra.mxu0 0
        %1567 = vmatprep.subr.bf16.mxu0 0
        %1568 = vmatpush1.bf16.xpose.msra.mxu0 0
        %1569 = vmatprep.subr.bf16.mxu0 0
        %1570 = vmatpush1.bf16.xpose.msra.mxu0 0
        %1571 = vmatprep.subr.bf16.mxu0 0
        %1572 = vmatpush1.bf16.xpose.msra.mxu0 0
        %1573 = vmatprep.subr.bf16.mxu0 0
        %1574 = vmatpush1.bf16.xpose.msra.mxu0 0
        %1575 = vmatprep.subr.bf16.mxu0 0
        %1576 = vmatpush1.bf16.xpose.msra.mxu0 0
        %1577 = vmatprep.subr.bf16.mxu0 0
        %1578 = vmatpush1.bf16.xpose.msra.mxu0 0
        %1579 = vmatprep.subr.bf16.mxu0 0
        %1580 = vmatpush1.bf16.xpose.msra.mxu0 0
        %1581 = vmatprep.subr.bf16.mxu0 0
        %1582 = vmatpush1.bf16.xpose.msra.mxu0 0
        %1583 = vmatprep.subr.bf16.mxu0 0
        %1584 = vmatpush1.bf16.xpose.msra.mxu0 0
        %1585 = vmatprep.subr.bf16.mxu0 0
        %1586 = vmatpush1.bf16.xpose.msra.mxu0 0
        %1587 = vmatprep.subr.bf16.mxu0 0
        %1588 = vmatpush1.bf16.xpose.msra.mxu0 0
        %1589 = vmatprep.subr.bf16.mxu0 0
        %1590 = vmatpush1.bf16.xpose.msra.mxu0 0
        %1591 = vmatprep.mubr.bf16.mxu0 0
        %1592 = vmatmul.mubr.bf16.gmra.mrb[0].mxu0 %v1554
        %v1593 = vpop.f32.mrb[0].mxu0
        %v1594 = vadd.f32 0.0, %v1593
        %v1595 = vpop.f32.mrb[0].mxu0
        %v1596 = vpop.f32.mrb[0].mxu0
        %v1597 = vpop.f32.mrb[0].mxu0
        %1598 = vdwg.mxu0
        %v1600 = vsel %vm1276, %v1235, 0
        %v1603 = vsel %vm1276, %v1251, 0
        %1605 = vmatprep.subr.bf16.mxu0 0
        %1606 = vmatpush1.bf16.xpose.msra.mxu0 %v1603
        %1607 = vmatprep.subr.bf16.mxu0 0
        %1608 = vmatpush1.bf16.xpose.msra.mxu0 0
        %1609 = vmatprep.subr.bf16.mxu0 0
        %1610 = vmatpush1.bf16.xpose.msra.mxu0 0
        %1611 = vmatprep.subr.bf16.mxu0 0
        %1612 = vmatpush1.bf16.xpose.msra.mxu0 0
        %1613 = vmatprep.subr.bf16.mxu0 0
        %1614 = vmatpush1.bf16.xpose.msra.mxu0 0
        %1615 = vmatprep.subr.bf16.mxu0 0
        %1616 = vmatpush1.bf16.xpose.msra.mxu0 0
        %1617 = vmatprep.subr.bf16.mxu0 0
        %1618 = vmatpush1.bf16.xpose.msra.mxu0 0
        %1619 = vmatprep.subr.bf16.mxu0 0
        %1620 = vmatpush1.bf16.xpose.msra.mxu0 0
        %1621 = vmatprep.subr.bf16.mxu0 0
        %1622 = vmatpush1.bf16.xpose.msra.mxu0 0
        %1623 = vmatprep.subr.bf16.mxu0 0
        %1624 = vmatpush1.bf16.xpose.msra.mxu0 0
        %1625 = vmatprep.subr.bf16.mxu0 0
        %1626 = vmatpush1.bf16.xpose.msra.mxu0 0
        %1627 = vmatprep.subr.bf16.mxu0 0
        %1628 = vmatpush1.bf16.xpose.msra.mxu0 0
        %1629 = vmatprep.subr.bf16.mxu0 0
        %1630 = vmatpush1.bf16.xpose.msra.mxu0 0
        %1631 = vmatprep.subr.bf16.mxu0 0
        %1632 = vmatpush1.bf16.xpose.msra.mxu0 0
        %1633 = vmatprep.subr.bf16.mxu0 0
        %1634 = vmatpush1.bf16.xpose.msra.mxu0 0
        %1635 = vmatprep.subr.bf16.mxu0 0
        %1636 = vmatpush1.bf16.xpose.msra.mxu0 0
        %1637 = vmatprep.mubr.bf16.mxu0 0
        %1638 = vmatmul.mubr.bf16.gmra.mrb[0].mxu0 %v1600
        %v1639 = vpop.f32.mrb[0].mxu0
        %v1640 = vadd.f32 0.0, %v1639
        %v1641 = vpop.f32.mrb[0].mxu0
        %v1642 = vpop.f32.mrb[0].mxu0
        %v1643 = vpop.f32.mrb[0].mxu0
        %1644 = vdwg.mxu0
        %v1646 = vsel %vm1276, %v1236, 0
        %v1649 = vsel %vm1276, %v1252, 0
        %1651 = vmatprep.subr.bf16.mxu0 0
        %1652 = vmatpush1.bf16.xpose.msra.mxu0 %v1649
        %1653 = vmatprep.subr.bf16.mxu0 0
        %1654 = vmatpush1.bf16.xpose.msra.mxu0 0
        %1655 = vmatprep.subr.bf16.mxu0 0
        %1656 = vmatpush1.bf16.xpose.msra.mxu0 0
        %1657 = vmatprep.subr.bf16.mxu0 0
        %1658 = vmatpush1.bf16.xpose.msra.mxu0 0
        %1659 = vmatprep.subr.bf16.mxu0 0
        %1660 = vmatpush1.bf16.xpose.msra.mxu0 0
        %1661 = vmatprep.subr.bf16.mxu0 0
        %1662 = vmatpush1.bf16.xpose.msra.mxu0 0
        %1663 = vmatprep.subr.bf16.mxu0 0
        %1664 = vmatpush1.bf16.xpose.msra.mxu0 0
        %1665 = vmatprep.subr.bf16.mxu0 0
        %1666 = vmatpush1.bf16.xpose.msra.mxu0 0
        %1667 = vmatprep.subr.bf16.mxu0 0
        %1668 = vmatpush1.bf16.xpose.msra.mxu0 0
        %1669 = vmatprep.subr.bf16.mxu0 0
        %1670 = vmatpush1.bf16.xpose.msra.mxu0 0
        %1671 = vmatprep.subr.bf16.mxu0 0
        %1672 = vmatpush1.bf16.xpose.msra.mxu0 0
        %1673 = vmatprep.subr.bf16.mxu0 0
        %1674 = vmatpush1.bf16.xpose.msra.mxu0 0
        %1675 = vmatprep.subr.bf16.mxu0 0
        %1676 = vmatpush1.bf16.xpose.msra.mxu0 0
        %1677 = vmatprep.subr.bf16.mxu0 0
        %1678 = vmatpush1.bf16.xpose.msra.mxu0 0
        %1679 = vmatprep.subr.bf16.mxu0 0
        %1680 = vmatpush1.bf16.xpose.msra.mxu0 0
        %1681 = vmatprep.subr.bf16.mxu0 0
        %1682 = vmatpush1.bf16.xpose.msra.mxu0 0
        %1683 = vmatprep.mubr.bf16.mxu0 0
        %1684 = vmatmul.mubr.bf16.gmra.mrb[0].mxu0 %v1646
        %v1685 = vpop.f32.mrb[0].mxu0
        %v1686 = vadd.f32 0.0, %v1685
        %v1687 = vpop.f32.mrb[0].mxu0
        %v1688 = vpop.f32.mrb[0].mxu0
        %v1689 = vpop.f32.mrb[0].mxu0
        %1690 = vdwg.mxu0
        %v1692 = vsel %vm1276, %v1237, 0
        %v1695 = vsel %vm1276, %v1253, 0
        %1697 = vmatprep.subr.bf16.mxu0 0
        %1698 = vmatpush1.bf16.xpose.msra.mxu0 %v1695
        %1699 = vmatprep.subr.bf16.mxu0 0
        %1700 = vmatpush1.bf16.xpose.msra.mxu0 0
        %1701 = vmatprep.subr.bf16.mxu0 0
        %1702 = vmatpush1.bf16.xpose.msra.mxu0 0
        %1703 = vmatprep.subr.bf16.mxu0 0
        %1704 = vmatpush1.bf16.xpose.msra.mxu0 0
        %1705 = vmatprep.subr.bf16.mxu0 0
        %1706 = vmatpush1.bf16.xpose.msra.mxu0 0
        %1707 = vmatprep.subr.bf16.mxu0 0
        %1708 = vmatpush1.bf16.xpose.msra.mxu0 0
        %1709 = vmatprep.subr.bf16.mxu0 0
        %1710 = vmatpush1.bf16.xpose.msra.mxu0 0
        %1711 = vmatprep.subr.bf16.mxu0 0
        %1712 = vmatpush1.bf16.xpose.msra.mxu0 0
        %1713 = vmatprep.subr.bf16.mxu0 0
        %1714 = vmatpush1.bf16.xpose.msra.mxu0 0
        %1715 = vmatprep.subr.bf16.mxu0 0
        %1716 = vmatpush1.bf16.xpose.msra.mxu0 0
        %1717 = vmatprep.subr.bf16.mxu0 0
        %1718 = vmatpush1.bf16.xpose.msra.mxu0 0
        %1719 = vmatprep.subr.bf16.mxu0 0
        %1720 = vmatpush1.bf16.xpose.msra.mxu0 0
        %1721 = vmatprep.subr.bf16.mxu0 0
        %1722 = vmatpush1.bf16.xpose.msra.mxu0 0
        %1723 = vmatprep.subr.bf16.mxu0 0
        %1724 = vmatpush1.bf16.xpose.msra.mxu0 0
        %1725 = vmatprep.subr.bf16.mxu0 0
        %1726 = vmatpush1.bf16.xpose.msra.mxu0 0
        %1727 = vmatprep.subr.bf16.mxu0 0
        %1728 = vmatpush1.bf16.xpose.msra.mxu0 0
        %1729 = vmatprep.mubr.bf16.mxu0 0
        %1730 = vmatmul.mubr.bf16.gmra.mrb[0].mxu0 %v1692
        %v1731 = vpop.f32.mrb[0].mxu0
        %v1732 = vadd.f32 0.0, %v1731
        %v1733 = vpop.f32.mrb[0].mxu0
        %v1734 = vpop.f32.mrb[0].mxu0
        %v1735 = vpop.f32.mrb[0].mxu0
        %1736 = vdwg.mxu0
        %v1738 = vsel %vm1276, %v1238, 0
        %v1741 = vsel %vm1276, %v1254, 0
        %1743 = vmatprep.subr.bf16.mxu0 0
        %1744 = vmatpush1.bf16.xpose.msra.mxu0 %v1741
        %1745 = vmatprep.subr.bf16.mxu0 0
        %1746 = vmatpush1.bf16.xpose.msra.mxu0 0
        %1747 = vmatprep.subr.bf16.mxu0 0
        %1748 = vmatpush1.bf16.xpose.msra.mxu0 0
        %1749 = vmatprep.subr.bf16.mxu0 0
        %1750 = vmatpush1.bf16.xpose.msra.mxu0 0
        %1751 = vmatprep.subr.bf16.mxu0 0
        %1752 = vmatpush1.bf16.xpose.msra.mxu0 0
        %1753 = vmatprep.subr.bf16.mxu0 0
        %1754 = vmatpush1.bf16.xpose.msra.mxu0 0
        %1755 = vmatprep.subr.bf16.mxu0 0
        %1756 = vmatpush1.bf16.xpose.msra.mxu0 0
        %1757 = vmatprep.subr.bf16.mxu0 0
        %1758 = vmatpush1.bf16.xpose.msra.mxu0 0
        %1759 = vmatprep.subr.bf16.mxu0 0
        %1760 = vmatpush1.bf16.xpose.msra.mxu0 0
        %1761 = vmatprep.subr.bf16.mxu0 0
        %1762 = vmatpush1.bf16.xpose.msra.mxu0 0
        %1763 = vmatprep.subr.bf16.mxu0 0
        %1764 = vmatpush1.bf16.xpose.msra.mxu0 0
        %1765 = vmatprep.subr.bf16.mxu0 0
        %1766 = vmatpush1.bf16.xpose.msra.mxu0 0
        %1767 = vmatprep.subr.bf16.mxu0 0
        %1768 = vmatpush1.bf16.xpose.msra.mxu0 0
        %1769 = vmatprep.subr.bf16.mxu0 0
        %1770 = vmatpush1.bf16.xpose.msra.mxu0 0
        %1771 = vmatprep.subr.bf16.mxu0 0
        %1772 = vmatpush1.bf16.xpose.msra.mxu0 0
        %1773 = vmatprep.subr.bf16.mxu0 0
        %1774 = vmatpush1.bf16.xpose.msra.mxu0 0
        %1775 = vmatprep.mubr.bf16.mxu0 0
        %1776 = vmatmul.mubr.bf16.gmra.mrb[0].mxu0 %v1738
        %v1777 = vpop.f32.mrb[0].mxu0
        %v1778 = vadd.f32 0.0, %v1777
        %v1779 = vpop.f32.mrb[0].mxu0
        %v1780 = vpop.f32.mrb[0].mxu0
        %v1781 = vpop.f32.mrb[0].mxu0
        %1782 = vdwg.mxu0
        %v1784 = vsel %vm1276, %v1239, 0
        %v1787 = vsel %vm1276, %v1255, 0
        %1789 = vmatprep.subr.bf16.mxu0 0
        %1790 = vmatpush1.bf16.xpose.msra.mxu0 %v1787
        %1791 = vmatprep.subr.bf16.mxu0 0
        %1792 = vmatpush1.bf16.xpose.msra.mxu0 0
        %1793 = vmatprep.subr.bf16.mxu0 0
        %1794 = vmatpush1.bf16.xpose.msra.mxu0 0
        %1795 = vmatprep.subr.bf16.mxu0 0
        %1796 = vmatpush1.bf16.xpose.msra.mxu0 0
        %1797 = vmatprep.subr.bf16.mxu0 0
        %1798 = vmatpush1.bf16.xpose.msra.mxu0 0
        %1799 = vmatprep.subr.bf16.mxu0 0
        %1800 = vmatpush1.bf16.xpose.msra.mxu0 0
        %1801 = vmatprep.subr.bf16.mxu0 0
        %1802 = vmatpush1.bf16.xpose.msra.mxu0 0
        %1803 = vmatprep.subr.bf16.mxu0 0
        %1804 = vmatpush1.bf16.xpose.msra.mxu0 0
        %1805 = vmatprep.subr.bf16.mxu0 0
        %1806 = vmatpush1.bf16.xpose.msra.mxu0 0
        %1807 = vmatprep.subr.bf16.mxu0 0
        %1808 = vmatpush1.bf16.xpose.msra.mxu0 0
        %1809 = vmatprep.subr.bf16.mxu0 0
        %1810 = vmatpush1.bf16.xpose.msra.mxu0 0
        %1811 = vmatprep.subr.bf16.mxu0 0
        %1812 = vmatpush1.bf16.xpose.msra.mxu0 0
        %1813 = vmatprep.subr.bf16.mxu0 0
        %1814 = vmatpush1.bf16.xpose.msra.mxu0 0
        %1815 = vmatprep.subr.bf16.mxu0 0
        %1816 = vmatpush1.bf16.xpose.msra.mxu0 0
        %1817 = vmatprep.subr.bf16.mxu0 0
        %1818 = vmatpush1.bf16.xpose.msra.mxu0 0
        %1819 = vmatprep.subr.bf16.mxu0 0
        %1820 = vmatpush1.bf16.xpose.msra.mxu0 0
        %1821 = vmatprep.mubr.bf16.mxu0 0
        %1822 = vmatmul.mubr.bf16.gmra.mrb[0].mxu0 %v1784
        %v1823 = vpop.f32.mrb[0].mxu0
        %v1824 = vadd.f32 0.0, %v1823
        %v1825 = vpop.f32.mrb[0].mxu0
        %v1826 = vpop.f32.mrb[0].mxu0
        %v1827 = vpop.f32.mrb[0].mxu0
        %1828 = vdwg.mxu0
        %v1830 = vsel %vm1276, %v1240, 0
        %v1833 = vsel %vm1276, %v1256, 0
        %1835 = vmatprep.subr.bf16.mxu0 0
        %1836 = vmatpush1.bf16.xpose.msra.mxu0 %v1833
        %1837 = vmatprep.subr.bf16.mxu0 0
        %1838 = vmatpush1.bf16.xpose.msra.mxu0 0
        %1839 = vmatprep.subr.bf16.mxu0 0
        %1840 = vmatpush1.bf16.xpose.msra.mxu0 0
        %1841 = vmatprep.subr.bf16.mxu0 0
        %1842 = vmatpush1.bf16.xpose.msra.mxu0 0
        %1843 = vmatprep.subr.bf16.mxu0 0
        %1844 = vmatpush1.bf16.xpose.msra.mxu0 0
        %1845 = vmatprep.subr.bf16.mxu0 0
        %1846 = vmatpush1.bf16.xpose.msra.mxu0 0
        %1847 = vmatprep.subr.bf16.mxu0 0
        %1848 = vmatpush1.bf16.xpose.msra.mxu0 0
        %1849 = vmatprep.subr.bf16.mxu0 0
        %1850 = vmatpush1.bf16.xpose.msra.mxu0 0
        %1851 = vmatprep.subr.bf16.mxu0 0
        %1852 = vmatpush1.bf16.xpose.msra.mxu0 0
        %1853 = vmatprep.subr.bf16.mxu0 0
        %1854 = vmatpush1.bf16.xpose.msra.mxu0 0
        %1855 = vmatprep.subr.bf16.mxu0 0
        %1856 = vmatpush1.bf16.xpose.msra.mxu0 0
        %1857 = vmatprep.subr.bf16.mxu0 0
        %1858 = vmatpush1.bf16.xpose.msra.mxu0 0
        %1859 = vmatprep.subr.bf16.mxu0 0
        %1860 = vmatpush1.bf16.xpose.msra.mxu0 0
        %1861 = vmatprep.subr.bf16.mxu0 0
        %1862 = vmatpush1.bf16.xpose.msra.mxu0 0
        %1863 = vmatprep.subr.bf16.mxu0 0
        %1864 = vmatpush1.bf16.xpose.msra.mxu0 0
        %1865 = vmatprep.subr.bf16.mxu0 0
        %1866 = vmatpush1.bf16.xpose.msra.mxu0 0
        %1867 = vmatprep.mubr.bf16.mxu0 0
        %1868 = vmatmul.mubr.bf16.gmra.mrb[0].mxu0 %v1830
        %v1869 = vpop.f32.mrb[0].mxu0
        %v1870 = vadd.f32 0.0, %v1869
        %v1871 = vpop.f32.mrb[0].mxu0
        %v1872 = vpop.f32.mrb[0].mxu0
        %v1873 = vpop.f32.mrb[0].mxu0
        %1874 = vdwg.mxu0
        %v1876 = vsel %vm1276, %v1241, 0
        %v1879 = vsel %vm1276, %v1257, 0
        %1881 = vmatprep.subr.bf16.mxu0 0
        %1882 = vmatpush1.bf16.xpose.msra.mxu0 %v1879
        %1883 = vmatprep.subr.bf16.mxu0 0
        %1884 = vmatpush1.bf16.xpose.msra.mxu0 0
        %1885 = vmatprep.subr.bf16.mxu0 0
        %1886 = vmatpush1.bf16.xpose.msra.mxu0 0
        %1887 = vmatprep.subr.bf16.mxu0 0
        %1888 = vmatpush1.bf16.xpose.msra.mxu0 0
        %1889 = vmatprep.subr.bf16.mxu0 0
        %1890 = vmatpush1.bf16.xpose.msra.mxu0 0
        %1891 = vmatprep.subr.bf16.mxu0 0
        %1892 = vmatpush1.bf16.xpose.msra.mxu0 0
        %1893 = vmatprep.subr.bf16.mxu0 0
        %1894 = vmatpush1.bf16.xpose.msra.mxu0 0
        %1895 = vmatprep.subr.bf16.mxu0 0
        %1896 = vmatpush1.bf16.xpose.msra.mxu0 0
        %1897 = vmatprep.subr.bf16.mxu0 0
        %1898 = vmatpush1.bf16.xpose.msra.mxu0 0
        %1899 = vmatprep.subr.bf16.mxu0 0
        %1900 = vmatpush1.bf16.xpose.msra.mxu0 0
        %1901 = vmatprep.subr.bf16.mxu0 0
        %1902 = vmatpush1.bf16.xpose.msra.mxu0 0
        %1903 = vmatprep.subr.bf16.mxu0 0
        %1904 = vmatpush1.bf16.xpose.msra.mxu0 0
        %1905 = vmatprep.subr.bf16.mxu0 0
        %1906 = vmatpush1.bf16.xpose.msra.mxu0 0
        %1907 = vmatprep.subr.bf16.mxu0 0
        %1908 = vmatpush1.bf16.xpose.msra.mxu0 0
        %1909 = vmatprep.subr.bf16.mxu0 0
        %1910 = vmatpush1.bf16.xpose.msra.mxu0 0
        %1911 = vmatprep.subr.bf16.mxu0 0
        %1912 = vmatpush1.bf16.xpose.msra.mxu0 0
        %1913 = vmatprep.mubr.bf16.mxu0 0
        %1914 = vmatmul.mubr.bf16.gmra.mrb[0].mxu0 %v1876
        %v1915 = vpop.f32.mrb[0].mxu0
        %v1916 = vadd.f32 0.0, %v1915
        %v1917 = vpop.f32.mrb[0].mxu0
        %v1918 = vpop.f32.mrb[0].mxu0
        %v1919 = vpop.f32.mrb[0].mxu0
        %1920 = vdwg.mxu0
        %v1922 = vsel %vm1276, %v1242, 0
        %v1925 = vsel %vm1276, %v1258, 0
        %1927 = vmatprep.subr.bf16.mxu0 0
        %1928 = vmatpush1.bf16.xpose.msra.mxu0 %v1925
        %1929 = vmatprep.subr.bf16.mxu0 0
        %1930 = vmatpush1.bf16.xpose.msra.mxu0 0
        %1931 = vmatprep.subr.bf16.mxu0 0
        %1932 = vmatpush1.bf16.xpose.msra.mxu0 0
        %1933 = vmatprep.subr.bf16.mxu0 0
        %1934 = vmatpush1.bf16.xpose.msra.mxu0 0
        %1935 = vmatprep.subr.bf16.mxu0 0
        %1936 = vmatpush1.bf16.xpose.msra.mxu0 0
        %1937 = vmatprep.subr.bf16.mxu0 0
        %1938 = vmatpush1.bf16.xpose.msra.mxu0 0
        %1939 = vmatprep.subr.bf16.mxu0 0
        %1940 = vmatpush1.bf16.xpose.msra.mxu0 0
        %1941 = vmatprep.subr.bf16.mxu0 0
        %1942 = vmatpush1.bf16.xpose.msra.mxu0 0
        %1943 = vmatprep.subr.bf16.mxu0 0
        %1944 = vmatpush1.bf16.xpose.msra.mxu0 0
        %1945 = vmatprep.subr.bf16.mxu0 0
        %1946 = vmatpush1.bf16.xpose.msra.mxu0 0
        %1947 = vmatprep.subr.bf16.mxu0 0
        %1948 = vmatpush1.bf16.xpose.msra.mxu0 0
        %1949 = vmatprep.subr.bf16.mxu0 0
        %1950 = vmatpush1.bf16.xpose.msra.mxu0 0
        %1951 = vmatprep.subr.bf16.mxu0 0
        %1952 = vmatpush1.bf16.xpose.msra.mxu0 0
        %1953 = vmatprep.subr.bf16.mxu0 0
        %1954 = vmatpush1.bf16.xpose.msra.mxu0 0
        %1955 = vmatprep.subr.bf16.mxu0 0
        %1956 = vmatpush1.bf16.xpose.msra.mxu0 0
        %1957 = vmatprep.subr.bf16.mxu0 0
        %1958 = vmatpush1.bf16.xpose.msra.mxu0 0
        %1959 = vmatprep.mubr.bf16.mxu0 0
        %1960 = vmatmul.mubr.bf16.gmra.mrb[0].mxu0 %v1922
        %v1961 = vpop.f32.mrb[0].mxu0
        %v1962 = vadd.f32 0.0, %v1961
        %v1963 = vpop.f32.mrb[0].mxu0
        %v1964 = vpop.f32.mrb[0].mxu0
        %v1965 = vpop.f32.mrb[0].mxu0
        %1966 = vdwg.mxu0
        %v1968 = vsel %vm1276, %v1243, 0
        %v1971 = vsel %vm1276, %v1259, 0
        %1973 = vmatprep.subr.bf16.mxu0 0
        %1974 = vmatpush1.bf16.xpose.msra.mxu0 %v1971
        %1975 = vmatprep.subr.bf16.mxu0 0
        %1976 = vmatpush1.bf16.xpose.msra.mxu0 0
        %1977 = vmatprep.subr.bf16.mxu0 0
        %1978 = vmatpush1.bf16.xpose.msra.mxu0 0
        %1979 = vmatprep.subr.bf16.mxu0 0
        %1980 = vmatpush1.bf16.xpose.msra.mxu0 0
        %1981 = vmatprep.subr.bf16.mxu0 0
        %1982 = vmatpush1.bf16.xpose.msra.mxu0 0
        %1983 = vmatprep.subr.bf16.mxu0 0
        %1984 = vmatpush1.bf16.xpose.msra.mxu0 0
        %1985 = vmatprep.subr.bf16.mxu0 0
        %1986 = vmatpush1.bf16.xpose.msra.mxu0 0
        %1987 = vmatprep.subr.bf16.mxu0 0
        %1988 = vmatpush1.bf16.xpose.msra.mxu0 0
        %1989 = vmatprep.subr.bf16.mxu0 0
        %1990 = vmatpush1.bf16.xpose.msra.mxu0 0
        %1991 = vmatprep.subr.bf16.mxu0 0
        %1992 = vmatpush1.bf16.xpose.msra.mxu0 0
        %1993 = vmatprep.subr.bf16.mxu0 0
        %1994 = vmatpush1.bf16.xpose.msra.mxu0 0
        %1995 = vmatprep.subr.bf16.mxu0 0
        %1996 = vmatpush1.bf16.xpose.msra.mxu0 0
        %1997 = vmatprep.subr.bf16.mxu0 0
        %1998 = vmatpush1.bf16.xpose.msra.mxu0 0
        %1999 = vmatprep.subr.bf16.mxu0 0
        %2000 = vmatpush1.bf16.xpose.msra.mxu0 0
        %2001 = vmatprep.subr.bf16.mxu0 0
        %2002 = vmatpush1.bf16.xpose.msra.mxu0 0
        %2003 = vmatprep.subr.bf16.mxu0 0
        %2004 = vmatpush1.bf16.xpose.msra.mxu0 0
        %2005 = vmatprep.mubr.bf16.mxu0 0
        %2006 = vmatmul.mubr.bf16.gmra.mrb[0].mxu0 %v1968
        %v2007 = vpop.f32.mrb[0].mxu0
        %v2008 = vadd.f32 0.0, %v2007
        %v2009 = vpop.f32.mrb[0].mxu0
        %v2010 = vpop.f32.mrb[0].mxu0
        %v2011 = vpop.f32.mrb[0].mxu0
        %2012 = vdwg.mxu0
        %vm2013 = vcmask 64512
        %v2014 = vsel %vm2013, %v1318, -inf
        %2015 = vmax.xlane.f32.xlu0 %v2014
        %v2016 = vpop.xlane.xlu0 %2015
        %v2017 = vsel %vm2013, %v1364, -inf
        %2018 = vmax.xlane.f32.xlu0 %v2017
        %v2019 = vpop.xlane.xlu0 %2018
        %v2020 = vsel %vm2013, %v1410, -inf
        %2021 = vmax.xlane.f32.xlu0 %v2020
        %v2022 = vpop.xlane.xlu0 %2021
        %v2023 = vsel %vm2013, %v1456, -inf
        %2024 = vmax.xlane.f32.xlu0 %v2023
        %v2025 = vpop.xlane.xlu0 %2024
        %v2026 = vsel %vm2013, %v1502, -inf
        %2027 = vmax.xlane.f32.xlu0 %v2026
        %v2028 = vpop.xlane.xlu0 %2027
        %v2029 = vsel %vm2013, %v1548, -inf
        %2030 = vmax.xlane.f32.xlu0 %v2029
        %v2031 = vpop.xlane.xlu0 %2030
        %v2032 = vsel %vm2013, %v1594, -inf
        %2033 = vmax.xlane.f32.xlu0 %v2032
        %v2034 = vpop.xlane.xlu0 %2033
        %v2035 = vsel %vm2013, %v1640, -inf
        %2036 = vmax.xlane.f32.xlu0 %v2035
        %v2037 = vpop.xlane.xlu0 %2036
        %v2038 = vsel %vm2013, %v1686, -inf
        %2039 = vmax.xlane.f32.xlu0 %v2038
        %v2040 = vpop.xlane.xlu0 %2039
        %v2041 = vsel %vm2013, %v1732, -inf
        %2042 = vmax.xlane.f32.xlu0 %v2041
        %v2043 = vpop.xlane.xlu0 %2042
        %v2044 = vsel %vm2013, %v1778, -inf
        %2045 = vmax.xlane.f32.xlu0 %v2044
        %v2046 = vpop.xlane.xlu0 %2045
        %v2047 = vsel %vm2013, %v1824, -inf
        %2048 = vmax.xlane.f32.xlu0 %v2047
        %v2049 = vpop.xlane.xlu0 %2048
        %v2050 = vsel %vm2013, %v1870, -inf
        %2051 = vmax.xlane.f32.xlu0 %v2050
        %v2052 = vpop.xlane.xlu0 %2051
        %v2053 = vsel %vm2013, %v1916, -inf
        %2054 = vmax.xlane.f32.xlu0 %v2053
        %v2055 = vpop.xlane.xlu0 %2054
        %v2056 = vsel %vm2013, %v1962, -inf
        %2057 = vmax.xlane.f32.xlu0 %v2056
        %v2058 = vpop.xlane.xlu0 %2057
        %v2059 = vsel %vm2013, %v2008, -inf
        %2060 = vmax.xlane.f32.xlu0 %v2059
        %v2061 = vpop.xlane.xlu0 %2060
        %v2062 = vsub.f32 %v1318, %v2016
        %v2063 = vsub.f32 %v1364, %v2019
        %v2064 = vsub.f32 %v1410, %v2022
        %v2065 = vsub.f32 %v1456, %v2025
        %v2066 = vsub.f32 %v1502, %v2028
        %v2067 = vsub.f32 %v1548, %v2031
        %v2068 = vsub.f32 %v1594, %v2034
        %v2069 = vsub.f32 %v1640, %v2037
        %v2070 = vsub.f32 %v1686, %v2040
        %v2071 = vsub.f32 %v1732, %v2043
        %v2072 = vsub.f32 %v1778, %v2046
        %v2073 = vsub.f32 %v1824, %v2049
        %v2074 = vsub.f32 %v1870, %v2052
        %v2075 = vsub.f32 %v1916, %v2055
        %v2076 = vsub.f32 %v1962, %v2058
        %v2077 = vsub.f32 %v2008, %v2061
        %v2078 = vmul.f32 %v2062, 1.442695
        %v2079 = vpow.pop %v2078
        %v2080 = vmul.f32 %v2063, 1.442695
        %v2081 = vpow.pop %v2080
        %v2082 = vmul.f32 %v2064, 1.442695
        %v2083 = vpow.pop %v2082
        %v2084 = vmul.f32 %v2065, 1.442695
        %v2085 = vpow.pop %v2084
        %v2086 = vmul.f32 %v2066, 1.442695
        %v2087 = vpow.pop %v2086
        %v2088 = vmul.f32 %v2067, 1.442695
        %v2089 = vpow.pop %v2088
        %v2090 = vmul.f32 %v2068, 1.442695
        %v2091 = vpow.pop %v2090
        %v2092 = vmul.f32 %v2069, 1.442695
        %v2093 = vpow.pop %v2092
        %v2094 = vmul.f32 %v2070, 1.442695
        %v2095 = vpow.pop %v2094
        %v2096 = vmul.f32 %v2071, 1.442695
        %v2097 = vpow.pop %v2096
        %v2098 = vmul.f32 %v2072, 1.442695
        %v2099 = vpow.pop %v2098
        %v2100 = vmul.f32 %v2073, 1.442695
        %v2101 = vpow.pop %v2100
        %v2102 = vmul.f32 %v2074, 1.442695
        %v2103 = vpow.pop %v2102
        %v2104 = vmul.f32 %v2075, 1.442695
        %v2105 = vpow.pop %v2104
        %v2106 = vmul.f32 %v2076, 1.442695
        %v2107 = vpow.pop %v2106
        %v2108 = vmul.f32 %v2077, 1.442695
        %v2109 = vpow.pop %v2108
        %v2110 = vsel %vm2013, %v2079, 0.0
        %2111 = vadd.xlane.f32.xlu0 %v2110
        %v2112 = vpop.xlane.xlu0 %2111
        %v2113 = vsel %vm2013, %v2081, 0.0
        %2114 = vadd.xlane.f32.xlu0 %v2113
        %v2115 = vpop.xlane.xlu0 %2114
        %v2116 = vsel %vm2013, %v2083, 0.0
        %2117 = vadd.xlane.f32.xlu0 %v2116
        %v2118 = vpop.xlane.xlu0 %2117
        %v2119 = vsel %vm2013, %v2085, 0.0
        %2120 = vadd.xlane.f32.xlu0 %v2119
        %v2121 = vpop.xlane.xlu0 %2120
        %v2122 = vsel %vm2013, %v2087, 0.0
        %2123 = vadd.xlane.f32.xlu0 %v2122
        %v2124 = vpop.xlane.xlu0 %2123
        %v2125 = vsel %vm2013, %v2089, 0.0
        %2126 = vadd.xlane.f32.xlu0 %v2125
        %v2127 = vpop.xlane.xlu0 %2126
        %v2128 = vsel %vm2013, %v2091, 0.0
        %2129 = vadd.xlane.f32.xlu0 %v2128
        %v2130 = vpop.xlane.xlu0 %2129
        %v2131 = vsel %vm2013, %v2093, 0.0
        %2132 = vadd.xlane.f32.xlu0 %v2131
        %v2133 = vpop.xlane.xlu0 %2132
        %v2134 = vsel %vm2013, %v2095, 0.0
        %2135 = vadd.xlane.f32.xlu0 %v2134
        %v2136 = vpop.xlane.xlu0 %2135
        %v2137 = vsel %vm2013, %v2097, 0.0
        %2138 = vadd.xlane.f32.xlu0 %v2137
        %v2139 = vpop.xlane.xlu0 %2138
        %v2140 = vsel %vm2013, %v2099, 0.0
        %2141 = vadd.xlane.f32.xlu0 %v2140
        %v2142 = vpop.xlane.xlu0 %2141
        %v2143 = vsel %vm2013, %v2101, 0.0
        %2144 = vadd.xlane.f32.xlu0 %v2143
        %v2145 = vpop.xlane.xlu0 %2144
        %v2146 = vsel %vm2013, %v2103, 0.0
        %2147 = vadd.xlane.f32.xlu0 %v2146
        %v2148 = vpop.xlane.xlu0 %2147
        %v2149 = vsel %vm2013, %v2105, 0.0
        %2150 = vadd.xlane.f32.xlu0 %v2149
        %v2151 = vpop.xlane.xlu0 %2150
        %v2152 = vsel %vm2013, %v2107, 0.0
        %2153 = vadd.xlane.f32.xlu0 %v2152
        %v2154 = vpop.xlane.xlu0 %2153
        %v2155 = vsel %vm2013, %v2109, 0.0
        %2156 = vadd.xlane.f32.xlu0 %v2155
        %v2157 = vpop.xlane.xlu0 %2156
        %v2158 = vrcp.pop %v2112
        %v2159 = vrcp.pop %v2115
        %v2160 = vrcp.pop %v2118
        %v2161 = vrcp.pop %v2121
        %v2162 = vrcp.pop %v2124
        %v2163 = vrcp.pop %v2127
        %v2164 = vrcp.pop %v2130
        %v2165 = vrcp.pop %v2133
        %v2166 = vrcp.pop %v2136
        %v2167 = vrcp.pop %v2139
        %v2168 = vrcp.pop %v2142
        %v2169 = vrcp.pop %v2145
        %v2170 = vrcp.pop %v2148
        %v2171 = vrcp.pop %v2151
        %v2172 = vrcp.pop %v2154
        %v2173 = vrcp.pop %v2157
        %v2174 = vmul.f32 %v2079, %v2158
        %v2175 = vmul.f32 %v2081, %v2159
        %v2176 = vmul.f32 %v2083, %v2160
        %v2177 = vmul.f32 %v2085, %v2161
        %v2178 = vmul.f32 %v2087, %v2162
        %v2179 = vmul.f32 %v2089, %v2163
        %v2180 = vmul.f32 %v2091, %v2164
        %v2181 = vmul.f32 %v2093, %v2165
        %v2182 = vmul.f32 %v2095, %v2166
        %v2183 = vmul.f32 %v2097, %v2167
        %v2184 = vmul.f32 %v2099, %v2168
        %v2185 = vmul.f32 %v2101, %v2169
        %v2186 = vmul.f32 %v2103, %v2170
        %v2187 = vmul.f32 %v2105, %v2171
        %v2188 = vmul.f32 %v2107, %v2172
        %v2189 = vmul.f32 %v2109, %v2173
        %v2190 = vpack.c.bf16 %v2174, %v2174
        %v2191 = vpack.c.bf16 %v2175, %v2175
        %v2192 = vpack.c.bf16 %v2176, %v2176
        %v2193 = vpack.c.bf16 %v2177, %v2177
        %v2194 = vpack.c.bf16 %v2178, %v2178
        %v2195 = vpack.c.bf16 %v2179, %v2179
        %v2196 = vpack.c.bf16 %v2180, %v2180
        %v2197 = vpack.c.bf16 %v2181, %v2181
        %v2198 = vpack.c.bf16 %v2182, %v2182
        %v2199 = vpack.c.bf16 %v2183, %v2183
        %v2200 = vpack.c.bf16 %v2184, %v2184
        %v2201 = vpack.c.bf16 %v2185, %v2185
        %v2202 = vpack.c.bf16 %v2186, %v2186
        %v2203 = vpack.c.bf16 %v2187, %v2187
        %v2204 = vpack.c.bf16 %v2188, %v2188
        %v2205 = vpack.c.bf16 %v2189, %v2189
        %v2207 = vsel %vm2013, %v2190, 0
        %vm2209 = vcmask 1043456
        %v2211 = vsel %vm2209, %v1260, 0
        %2213 = vmatprep.subr.bf16.mxu0 0
        %2214 = vmatpush1.bf16.msra.mxu0 %v2211
        %2215 = vmatprep.subr.bf16.mxu0 0
        %2216 = vmatpush1.bf16.msra.mxu0 0
        %2217 = vmatprep.subr.bf16.mxu0 0
        %2218 = vmatpush1.bf16.msra.mxu0 0
        %2219 = vmatprep.subr.bf16.mxu0 0
        %2220 = vmatpush1.bf16.msra.mxu0 0
        %2221 = vmatprep.subr.bf16.mxu0 0
        %2222 = vmatpush1.bf16.msra.mxu0 0
        %2223 = vmatprep.subr.bf16.mxu0 0
        %2224 = vmatpush1.bf16.msra.mxu0 0
        %2225 = vmatprep.subr.bf16.mxu0 0
        %2226 = vmatpush1.bf16.msra.mxu0 0
        %2227 = vmatprep.subr.bf16.mxu0 0
        %2228 = vmatpush1.bf16.msra.mxu0 0
        %2229 = vmatprep.subr.bf16.mxu0 0
        %2230 = vmatpush1.bf16.msra.mxu0 0
        %2231 = vmatprep.subr.bf16.mxu0 0
        %2232 = vmatpush1.bf16.msra.mxu0 0
        %2233 = vmatprep.subr.bf16.mxu0 0
        %2234 = vmatpush1.bf16.msra.mxu0 0
        %2235 = vmatprep.subr.bf16.mxu0 0
        %2236 = vmatpush1.bf16.msra.mxu0 0
        %2237 = vmatprep.subr.bf16.mxu0 0
        %2238 = vmatpush1.bf16.msra.mxu0 0
        %2239 = vmatprep.subr.bf16.mxu0 0
        %2240 = vmatpush1.bf16.msra.mxu0 0
        %2241 = vmatprep.subr.bf16.mxu0 0
        %2242 = vmatpush1.bf16.msra.mxu0 0
        %2243 = vmatprep.subr.bf16.mxu0 0
        %2244 = vmatpush1.bf16.msra.mxu0 0
        %2245 = vmatprep.mubr.bf16.mxu0 0
        %2246 = vmatmul.mubr.bf16.gmra.mrb[0].mxu0 %v2207
        %v2247 = vpop.f32.mrb[0].mxu0
        %v2248 = vadd.f32 0.0, %v2247
        %v2249 = vpop.f32.mrb[0].mxu0
        %v2250 = vpop.f32.mrb[0].mxu0
        %v2251 = vpop.f32.mrb[0].mxu0
        %2252 = vdwg.mxu0
        %v2254 = vsel %vm2013, %v2191, 0
        %v2257 = vsel %vm2209, %v1261, 0
        %2259 = vmatprep.subr.bf16.mxu0 0
        %2260 = vmatpush1.bf16.msra.mxu0 %v2257
        %2261 = vmatprep.subr.bf16.mxu0 0
        %2262 = vmatpush1.bf16.msra.mxu0 0
        %2263 = vmatprep.subr.bf16.mxu0 0
        %2264 = vmatpush1.bf16.msra.mxu0 0
        %2265 = vmatprep.subr.bf16.mxu0 0
        %2266 = vmatpush1.bf16.msra.mxu0 0
        %2267 = vmatprep.subr.bf16.mxu0 0
        %2268 = vmatpush1.bf16.msra.mxu0 0
        %2269 = vmatprep.subr.bf16.mxu0 0
        %2270 = vmatpush1.bf16.msra.mxu0 0
        %2271 = vmatprep.subr.bf16.mxu0 0
        %2272 = vmatpush1.bf16.msra.mxu0 0
        %2273 = vmatprep.subr.bf16.mxu0 0
        %2274 = vmatpush1.bf16.msra.mxu0 0
        %2275 = vmatprep.subr.bf16.mxu0 0
        %2276 = vmatpush1.bf16.msra.mxu0 0
        %2277 = vmatprep.subr.bf16.mxu0 0
        %2278 = vmatpush1.bf16.msra.mxu0 0
        %2279 = vmatprep.subr.bf16.mxu0 0
        %2280 = vmatpush1.bf16.msra.mxu0 0
        %2281 = vmatprep.subr.bf16.mxu0 0
        %2282 = vmatpush1.bf16.msra.mxu0 0
        %2283 = vmatprep.subr.bf16.mxu0 0
        %2284 = vmatpush1.bf16.msra.mxu0 0
        %2285 = vmatprep.subr.bf16.mxu0 0
        %2286 = vmatpush1.bf16.msra.mxu0 0
        %2287 = vmatprep.subr.bf16.mxu0 0
        %2288 = vmatpush1.bf16.msra.mxu0 0
        %2289 = vmatprep.subr.bf16.mxu0 0
        %2290 = vmatpush1.bf16.msra.mxu0 0
        %2291 = vmatprep.mubr.bf16.mxu0 0
        %2292 = vmatmul.mubr.bf16.gmra.mrb[0].mxu0 %v2254
        %v2293 = vpop.f32.mrb[0].mxu0
        %v2294 = vadd.f32 0.0, %v2293
        %v2295 = vpop.f32.mrb[0].mxu0
        %v2296 = vpop.f32.mrb[0].mxu0
        %v2297 = vpop.f32.mrb[0].mxu0
        %2298 = vdwg.mxu0
        %v2300 = vsel %vm2013, %v2192, 0
        %v2303 = vsel %vm2209, %v1262, 0
        %2305 = vmatprep.subr.bf16.mxu0 0
        %2306 = vmatpush1.bf16.msra.mxu0 %v2303
        %2307 = vmatprep.subr.bf16.mxu0 0
        %2308 = vmatpush1.bf16.msra.mxu0 0
        %2309 = vmatprep.subr.bf16.mxu0 0
        %2310 = vmatpush1.bf16.msra.mxu0 0
        %2311 = vmatprep.subr.bf16.mxu0 0
        %2312 = vmatpush1.bf16.msra.mxu0 0
        %2313 = vmatprep.subr.bf16.mxu0 0
        %2314 = vmatpush1.bf16.msra.mxu0 0
        %2315 = vmatprep.subr.bf16.mxu0 0
        %2316 = vmatpush1.bf16.msra.mxu0 0
        %2317 = vmatprep.subr.bf16.mxu0 0
        %2318 = vmatpush1.bf16.msra.mxu0 0
        %2319 = vmatprep.subr.bf16.mxu0 0
        %2320 = vmatpush1.bf16.msra.mxu0 0
        %2321 = vmatprep.subr.bf16.mxu0 0
        %2322 = vmatpush1.bf16.msra.mxu0 0
        %2323 = vmatprep.subr.bf16.mxu0 0
        %2324 = vmatpush1.bf16.msra.mxu0 0
        %2325 = vmatprep.subr.bf16.mxu0 0
        %2326 = vmatpush1.bf16.msra.mxu0 0
        %2327 = vmatprep.subr.bf16.mxu0 0
        %2328 = vmatpush1.bf16.msra.mxu0 0
        %2329 = vmatprep.subr.bf16.mxu0 0
        %2330 = vmatpush1.bf16.msra.mxu0 0
        %2331 = vmatprep.subr.bf16.mxu0 0
        %2332 = vmatpush1.bf16.msra.mxu0 0
        %2333 = vmatprep.subr.bf16.mxu0 0
        %2334 = vmatpush1.bf16.msra.mxu0 0
        %2335 = vmatprep.subr.bf16.mxu0 0
        %2336 = vmatpush1.bf16.msra.mxu0 0
        %2337 = vmatprep.mubr.bf16.mxu0 0
        %2338 = vmatmul.mubr.bf16.gmra.mrb[0].mxu0 %v2300
        %v2339 = vpop.f32.mrb[0].mxu0
        %v2340 = vadd.f32 0.0, %v2339
        %v2341 = vpop.f32.mrb[0].mxu0
        %v2342 = vpop.f32.mrb[0].mxu0
        %v2343 = vpop.f32.mrb[0].mxu0
        %2344 = vdwg.mxu0
        %v2346 = vsel %vm2013, %v2193, 0
        %v2349 = vsel %vm2209, %v1263, 0
        %2351 = vmatprep.subr.bf16.mxu0 0
        %2352 = vmatpush1.bf16.msra.mxu0 %v2349
        %2353 = vmatprep.subr.bf16.mxu0 0
        %2354 = vmatpush1.bf16.msra.mxu0 0
        %2355 = vmatprep.subr.bf16.mxu0 0
        %2356 = vmatpush1.bf16.msra.mxu0 0
        %2357 = vmatprep.subr.bf16.mxu0 0
        %2358 = vmatpush1.bf16.msra.mxu0 0
        %2359 = vmatprep.subr.bf16.mxu0 0
        %2360 = vmatpush1.bf16.msra.mxu0 0
        %2361 = vmatprep.subr.bf16.mxu0 0
        %2362 = vmatpush1.bf16.msra.mxu0 0
        %2363 = vmatprep.subr.bf16.mxu0 0
        %2364 = vmatpush1.bf16.msra.mxu0 0
        %2365 = vmatprep.subr.bf16.mxu0 0
        %2366 = vmatpush1.bf16.msra.mxu0 0
        %2367 = vmatprep.subr.bf16.mxu0 0
        %2368 = vmatpush1.bf16.msra.mxu0 0
        %2369 = vmatprep.subr.bf16.mxu0 0
        %2370 = vmatpush1.bf16.msra.mxu0 0
        %2371 = vmatprep.subr.bf16.mxu0 0
        %2372 = vmatpush1.bf16.msra.mxu0 0
        %2373 = vmatprep.subr.bf16.mxu0 0
        %2374 = vmatpush1.bf16.msra.mxu0 0
        %2375 = vmatprep.subr.bf16.mxu0 0
        %2376 = vmatpush1.bf16.msra.mxu0 0
        %2377 = vmatprep.subr.bf16.mxu0 0
        %2378 = vmatpush1.bf16.msra.mxu0 0
        %2379 = vmatprep.subr.bf16.mxu0 0
        %2380 = vmatpush1.bf16.msra.mxu0 0
        %2381 = vmatprep.subr.bf16.mxu0 0
        %2382 = vmatpush1.bf16.msra.mxu0 0
        %2383 = vmatprep.mubr.bf16.mxu0 0
        %2384 = vmatmul.mubr.bf16.gmra.mrb[0].mxu0 %v2346
        %v2385 = vpop.f32.mrb[0].mxu0
        %v2386 = vadd.f32 0.0, %v2385
        %v2387 = vpop.f32.mrb[0].mxu0
        %v2388 = vpop.f32.mrb[0].mxu0
        %v2389 = vpop.f32.mrb[0].mxu0
        %2390 = vdwg.mxu0
        %v2392 = vsel %vm2013, %v2194, 0
        %v2395 = vsel %vm2209, %v1264, 0
        %2397 = vmatprep.subr.bf16.mxu0 0
        %2398 = vmatpush1.bf16.msra.mxu0 %v2395
        %2399 = vmatprep.subr.bf16.mxu0 0
        %2400 = vmatpush1.bf16.msra.mxu0 0
        %2401 = vmatprep.subr.bf16.mxu0 0
        %2402 = vmatpush1.bf16.msra.mxu0 0
        %2403 = vmatprep.subr.bf16.mxu0 0
        %2404 = vmatpush1.bf16.msra.mxu0 0
        %2405 = vmatprep.subr.bf16.mxu0 0
        %2406 = vmatpush1.bf16.msra.mxu0 0
        %2407 = vmatprep.subr.bf16.mxu0 0
        %2408 = vmatpush1.bf16.msra.mxu0 0
        %2409 = vmatprep.subr.bf16.mxu0 0
        %2410 = vmatpush1.bf16.msra.mxu0 0
        %2411 = vmatprep.subr.bf16.mxu0 0
        %2412 = vmatpush1.bf16.msra.mxu0 0
        %2413 = vmatprep.subr.bf16.mxu0 0
        %2414 = vmatpush1.bf16.msra.mxu0 0
        %2415 = vmatprep.subr.bf16.mxu0 0
        %2416 = vmatpush1.bf16.msra.mxu0 0
        %2417 = vmatprep.subr.bf16.mxu0 0
        %2418 = vmatpush1.bf16.msra.mxu0 0
        %2419 = vmatprep.subr.bf16.mxu0 0
        %2420 = vmatpush1.bf16.msra.mxu0 0
        %2421 = vmatprep.subr.bf16.mxu0 0
        %2422 = vmatpush1.bf16.msra.mxu0 0
        %2423 = vmatprep.subr.bf16.mxu0 0
        %2424 = vmatpush1.bf16.msra.mxu0 0
        %2425 = vmatprep.subr.bf16.mxu0 0
        %2426 = vmatpush1.bf16.msra.mxu0 0
        %2427 = vmatprep.subr.bf16.mxu0 0
        %2428 = vmatpush1.bf16.msra.mxu0 0
        %2429 = vmatprep.mubr.bf16.mxu0 0
        %2430 = vmatmul.mubr.bf16.gmra.mrb[0].mxu0 %v2392
        %v2431 = vpop.f32.mrb[0].mxu0
        %v2432 = vadd.f32 0.0, %v2431
        %v2433 = vpop.f32.mrb[0].mxu0
        %v2434 = vpop.f32.mrb[0].mxu0
        %v2435 = vpop.f32.mrb[0].mxu0
        %2436 = vdwg.mxu0
        %v2438 = vsel %vm2013, %v2195, 0
        %v2441 = vsel %vm2209, %v1265, 0
        %2443 = vmatprep.subr.bf16.mxu0 0
        %2444 = vmatpush1.bf16.msra.mxu0 %v2441
        %2445 = vmatprep.subr.bf16.mxu0 0
        %2446 = vmatpush1.bf16.msra.mxu0 0
        %2447 = vmatprep.subr.bf16.mxu0 0
        %2448 = vmatpush1.bf16.msra.mxu0 0
        %2449 = vmatprep.subr.bf16.mxu0 0
        %2450 = vmatpush1.bf16.msra.mxu0 0
        %2451 = vmatprep.subr.bf16.mxu0 0
        %2452 = vmatpush1.bf16.msra.mxu0 0
        %2453 = vmatprep.subr.bf16.mxu0 0
        %2454 = vmatpush1.bf16.msra.mxu0 0
        %2455 = vmatprep.subr.bf16.mxu0 0
        %2456 = vmatpush1.bf16.msra.mxu0 0
        %2457 = vmatprep.subr.bf16.mxu0 0
        %2458 = vmatpush1.bf16.msra.mxu0 0
        %2459 = vmatprep.subr.bf16.mxu0 0
        %2460 = vmatpush1.bf16.msra.mxu0 0
        %2461 = vmatprep.subr.bf16.mxu0 0
        %2462 = vmatpush1.bf16.msra.mxu0 0
        %2463 = vmatprep.subr.bf16.mxu0 0
        %2464 = vmatpush1.bf16.msra.mxu0 0
        %2465 = vmatprep.subr.bf16.mxu0 0
        %2466 = vmatpush1.bf16.msra.mxu0 0
        %2467 = vmatprep.subr.bf16.mxu0 0
        %2468 = vmatpush1.bf16.msra.mxu0 0
        %2469 = vmatprep.subr.bf16.mxu0 0
        %2470 = vmatpush1.bf16.msra.mxu0 0
        %2471 = vmatprep.subr.bf16.mxu0 0
        %2472 = vmatpush1.bf16.msra.mxu0 0
        %2473 = vmatprep.subr.bf16.mxu0 0
        %2474 = vmatpush1.bf16.msra.mxu0 0
        %2475 = vmatprep.mubr.bf16.mxu0 0
        %2476 = vmatmul.mubr.bf16.gmra.mrb[0].mxu0 %v2438
        %v2477 = vpop.f32.mrb[0].mxu0
        %v2478 = vadd.f32 0.0, %v2477
        %v2479 = vpop.f32.mrb[0].mxu0
        %v2480 = vpop.f32.mrb[0].mxu0
        %v2481 = vpop.f32.mrb[0].mxu0
        %2482 = vdwg.mxu0
        %v2484 = vsel %vm2013, %v2196, 0
        %v2487 = vsel %vm2209, %v1266, 0
        %2489 = vmatprep.subr.bf16.mxu0 0
        %2490 = vmatpush1.bf16.msra.mxu0 %v2487
        %2491 = vmatprep.subr.bf16.mxu0 0
        %2492 = vmatpush1.bf16.msra.mxu0 0
        %2493 = vmatprep.subr.bf16.mxu0 0
        %2494 = vmatpush1.bf16.msra.mxu0 0
        %2495 = vmatprep.subr.bf16.mxu0 0
        %2496 = vmatpush1.bf16.msra.mxu0 0
        %2497 = vmatprep.subr.bf16.mxu0 0
        %2498 = vmatpush1.bf16.msra.mxu0 0
        %2499 = vmatprep.subr.bf16.mxu0 0
        %2500 = vmatpush1.bf16.msra.mxu0 0
        %2501 = vmatprep.subr.bf16.mxu0 0
        %2502 = vmatpush1.bf16.msra.mxu0 0
        %2503 = vmatprep.subr.bf16.mxu0 0
        %2504 = vmatpush1.bf16.msra.mxu0 0
        %2505 = vmatprep.subr.bf16.mxu0 0
        %2506 = vmatpush1.bf16.msra.mxu0 0
        %2507 = vmatprep.subr.bf16.mxu0 0
        %2508 = vmatpush1.bf16.msra.mxu0 0
        %2509 = vmatprep.subr.bf16.mxu0 0
        %2510 = vmatpush1.bf16.msra.mxu0 0
        %2511 = vmatprep.subr.bf16.mxu0 0
        %2512 = vmatpush1.bf16.msra.mxu0 0
        %2513 = vmatprep.subr.bf16.mxu0 0
        %2514 = vmatpush1.bf16.msra.mxu0 0
        %2515 = vmatprep.subr.bf16.mxu0 0
        %2516 = vmatpush1.bf16.msra.mxu0 0
        %2517 = vmatprep.subr.bf16.mxu0 0
        %2518 = vmatpush1.bf16.msra.mxu0 0
        %2519 = vmatprep.subr.bf16.mxu0 0
        %2520 = vmatpush1.bf16.msra.mxu0 0
        %2521 = vmatprep.mubr.bf16.mxu0 0
        %2522 = vmatmul.mubr.bf16.gmra.mrb[0].mxu0 %v2484
        %v2523 = vpop.f32.mrb[0].mxu0
        %v2524 = vadd.f32 0.0, %v2523
        %v2525 = vpop.f32.mrb[0].mxu0
        %v2526 = vpop.f32.mrb[0].mxu0
        %v2527 = vpop.f32.mrb[0].mxu0
        %2528 = vdwg.mxu0
        %v2530 = vsel %vm2013, %v2197, 0
        %v2533 = vsel %vm2209, %v1267, 0
        %2535 = vmatprep.subr.bf16.mxu0 0
        %2536 = vmatpush1.bf16.msra.mxu0 %v2533
        %2537 = vmatprep.subr.bf16.mxu0 0
        %2538 = vmatpush1.bf16.msra.mxu0 0
        %2539 = vmatprep.subr.bf16.mxu0 0
        %2540 = vmatpush1.bf16.msra.mxu0 0
        %2541 = vmatprep.subr.bf16.mxu0 0
        %2542 = vmatpush1.bf16.msra.mxu0 0
        %2543 = vmatprep.subr.bf16.mxu0 0
        %2544 = vmatpush1.bf16.msra.mxu0 0
        %2545 = vmatprep.subr.bf16.mxu0 0
        %2546 = vmatpush1.bf16.msra.mxu0 0
        %2547 = vmatprep.subr.bf16.mxu0 0
        %2548 = vmatpush1.bf16.msra.mxu0 0
        %2549 = vmatprep.subr.bf16.mxu0 0
        %2550 = vmatpush1.bf16.msra.mxu0 0
        %2551 = vmatprep.subr.bf16.mxu0 0
        %2552 = vmatpush1.bf16.msra.mxu0 0
        %2553 = vmatprep.subr.bf16.mxu0 0
        %2554 = vmatpush1.bf16.msra.mxu0 0
        %2555 = vmatprep.subr.bf16.mxu0 0
        %2556 = vmatpush1.bf16.msra.mxu0 0
        %2557 = vmatprep.subr.bf16.mxu0 0
        %2558 = vmatpush1.bf16.msra.mxu0 0
        %2559 = vmatprep.subr.bf16.mxu0 0
        %2560 = vmatpush1.bf16.msra.mxu0 0
        %2561 = vmatprep.subr.bf16.mxu0 0
        %2562 = vmatpush1.bf16.msra.mxu0 0
        %2563 = vmatprep.subr.bf16.mxu0 0
        %2564 = vmatpush1.bf16.msra.mxu0 0
        %2565 = vmatprep.subr.bf16.mxu0 0
        %2566 = vmatpush1.bf16.msra.mxu0 0
        %2567 = vmatprep.mubr.bf16.mxu0 0
        %2568 = vmatmul.mubr.bf16.gmra.mrb[0].mxu0 %v2530
        %v2569 = vpop.f32.mrb[0].mxu0
        %v2570 = vadd.f32 0.0, %v2569
        %v2571 = vpop.f32.mrb[0].mxu0
        %v2572 = vpop.f32.mrb[0].mxu0
        %v2573 = vpop.f32.mrb[0].mxu0
        %2574 = vdwg.mxu0
        %v2576 = vsel %vm2013, %v2198, 0
        %v2579 = vsel %vm2209, %v1268, 0
        %2581 = vmatprep.subr.bf16.mxu0 0
        %2582 = vmatpush1.bf16.msra.mxu0 %v2579
        %2583 = vmatprep.subr.bf16.mxu0 0
        %2584 = vmatpush1.bf16.msra.mxu0 0
        %2585 = vmatprep.subr.bf16.mxu0 0
        %2586 = vmatpush1.bf16.msra.mxu0 0
        %2587 = vmatprep.subr.bf16.mxu0 0
        %2588 = vmatpush1.bf16.msra.mxu0 0
        %2589 = vmatprep.subr.bf16.mxu0 0
        %2590 = vmatpush1.bf16.msra.mxu0 0
        %2591 = vmatprep.subr.bf16.mxu0 0
        %2592 = vmatpush1.bf16.msra.mxu0 0
        %2593 = vmatprep.subr.bf16.mxu0 0
        %2594 = vmatpush1.bf16.msra.mxu0 0
        %2595 = vmatprep.subr.bf16.mxu0 0
        %2596 = vmatpush1.bf16.msra.mxu0 0
        %2597 = vmatprep.subr.bf16.mxu0 0
        %2598 = vmatpush1.bf16.msra.mxu0 0
        %2599 = vmatprep.subr.bf16.mxu0 0
        %2600 = vmatpush1.bf16.msra.mxu0 0
        %2601 = vmatprep.subr.bf16.mxu0 0
        %2602 = vmatpush1.bf16.msra.mxu0 0
        %2603 = vmatprep.subr.bf16.mxu0 0
        %2604 = vmatpush1.bf16.msra.mxu0 0
        %2605 = vmatprep.subr.bf16.mxu0 0
        %2606 = vmatpush1.bf16.msra.mxu0 0
        %2607 = vmatprep.subr.bf16.mxu0 0
        %2608 = vmatpush1.bf16.msra.mxu0 0
        %2609 = vmatprep.subr.bf16.mxu0 0
        %2610 = vmatpush1.bf16.msra.mxu0 0
        %2611 = vmatprep.subr.bf16.mxu0 0
        %2612 = vmatpush1.bf16.msra.mxu0 0
        %2613 = vmatprep.mubr.bf16.mxu0 0
        %2614 = vmatmul.mubr.bf16.gmra.mrb[0].mxu0 %v2576
        %v2615 = vpop.f32.mrb[0].mxu0
        %v2616 = vadd.f32 0.0, %v2615
        %v2617 = vpop.f32.mrb[0].mxu0
        %v2618 = vpop.f32.mrb[0].mxu0
        %v2619 = vpop.f32.mrb[0].mxu0
        %2620 = vdwg.mxu0
        %v2622 = vsel %vm2013, %v2199, 0
        %v2625 = vsel %vm2209, %v1269, 0
        %2627 = vmatprep.subr.bf16.mxu0 0
        %2628 = vmatpush1.bf16.msra.mxu0 %v2625
        %2629 = vmatprep.subr.bf16.mxu0 0
        %2630 = vmatpush1.bf16.msra.mxu0 0
        %2631 = vmatprep.subr.bf16.mxu0 0
        %2632 = vmatpush1.bf16.msra.mxu0 0
        %2633 = vmatprep.subr.bf16.mxu0 0
        %2634 = vmatpush1.bf16.msra.mxu0 0
        %2635 = vmatprep.subr.bf16.mxu0 0
        %2636 = vmatpush1.bf16.msra.mxu0 0
        %2637 = vmatprep.subr.bf16.mxu0 0
        %2638 = vmatpush1.bf16.msra.mxu0 0
        %2639 = vmatprep.subr.bf16.mxu0 0
        %2640 = vmatpush1.bf16.msra.mxu0 0
        %2641 = vmatprep.subr.bf16.mxu0 0
        %2642 = vmatpush1.bf16.msra.mxu0 0
        %2643 = vmatprep.subr.bf16.mxu0 0
        %2644 = vmatpush1.bf16.msra.mxu0 0
        %2645 = vmatprep.subr.bf16.mxu0 0
        %2646 = vmatpush1.bf16.msra.mxu0 0
        %2647 = vmatprep.subr.bf16.mxu0 0
        %2648 = vmatpush1.bf16.msra.mxu0 0
        %2649 = vmatprep.subr.bf16.mxu0 0
        %2650 = vmatpush1.bf16.msra.mxu0 0
        %2651 = vmatprep.subr.bf16.mxu0 0
        %2652 = vmatpush1.bf16.msra.mxu0 0
        %2653 = vmatprep.subr.bf16.mxu0 0
        %2654 = vmatpush1.bf16.msra.mxu0 0
        %2655 = vmatprep.subr.bf16.mxu0 0
        %2656 = vmatpush1.bf16.msra.mxu0 0
        %2657 = vmatprep.subr.bf16.mxu0 0
        %2658 = vmatpush1.bf16.msra.mxu0 0
        %2659 = vmatprep.mubr.bf16.mxu0 0
        %2660 = vmatmul.mubr.bf16.gmra.mrb[0].mxu0 %v2622
        %v2661 = vpop.f32.mrb[0].mxu0
        %v2662 = vadd.f32 0.0, %v2661
        %v2663 = vpop.f32.mrb[0].mxu0
        %v2664 = vpop.f32.mrb[0].mxu0
        %v2665 = vpop.f32.mrb[0].mxu0
        %2666 = vdwg.mxu0
        %v2668 = vsel %vm2013, %v2200, 0
        %v2671 = vsel %vm2209, %v1270, 0
        %2673 = vmatprep.subr.bf16.mxu0 0
        %2674 = vmatpush1.bf16.msra.mxu0 %v2671
        %2675 = vmatprep.subr.bf16.mxu0 0
        %2676 = vmatpush1.bf16.msra.mxu0 0
        %2677 = vmatprep.subr.bf16.mxu0 0
        %2678 = vmatpush1.bf16.msra.mxu0 0
        %2679 = vmatprep.subr.bf16.mxu0 0
        %2680 = vmatpush1.bf16.msra.mxu0 0
        %2681 = vmatprep.subr.bf16.mxu0 0
        %2682 = vmatpush1.bf16.msra.mxu0 0
        %2683 = vmatprep.subr.bf16.mxu0 0
        %2684 = vmatpush1.bf16.msra.mxu0 0
        %2685 = vmatprep.subr.bf16.mxu0 0
        %2686 = vmatpush1.bf16.msra.mxu0 0
        %2687 = vmatprep.subr.bf16.mxu0 0
        %2688 = vmatpush1.bf16.msra.mxu0 0
        %2689 = vmatprep.subr.bf16.mxu0 0
        %2690 = vmatpush1.bf16.msra.mxu0 0
        %2691 = vmatprep.subr.bf16.mxu0 0
        %2692 = vmatpush1.bf16.msra.mxu0 0
        %2693 = vmatprep.subr.bf16.mxu0 0
        %2694 = vmatpush1.bf16.msra.mxu0 0
        %2695 = vmatprep.subr.bf16.mxu0 0
        %2696 = vmatpush1.bf16.msra.mxu0 0
        %2697 = vmatprep.subr.bf16.mxu0 0
        %2698 = vmatpush1.bf16.msra.mxu0 0
        %2699 = vmatprep.subr.bf16.mxu0 0
        %2700 = vmatpush1.bf16.msra.mxu0 0
        %2701 = vmatprep.subr.bf16.mxu0 0
        %2702 = vmatpush1.bf16.msra.mxu0 0
        %2703 = vmatprep.subr.bf16.mxu0 0
        %2704 = vmatpush1.bf16.msra.mxu0 0
        %2705 = vmatprep.mubr.bf16.mxu0 0
        %2706 = vmatmul.mubr.bf16.gmra.mrb[0].mxu0 %v2668
        %v2707 = vpop.f32.mrb[0].mxu0
        %v2708 = vadd.f32 0.0, %v2707
        %v2709 = vpop.f32.mrb[0].mxu0
        %v2710 = vpop.f32.mrb[0].mxu0
        %v2711 = vpop.f32.mrb[0].mxu0
        %2712 = vdwg.mxu0
        %v2714 = vsel %vm2013, %v2201, 0
        %v2717 = vsel %vm2209, %v1271, 0
        %2719 = vmatprep.subr.bf16.mxu0 0
        %2720 = vmatpush1.bf16.msra.mxu0 %v2717
        %2721 = vmatprep.subr.bf16.mxu0 0
        %2722 = vmatpush1.bf16.msra.mxu0 0
        %2723 = vmatprep.subr.bf16.mxu0 0
        %2724 = vmatpush1.bf16.msra.mxu0 0
        %2725 = vmatprep.subr.bf16.mxu0 0
        %2726 = vmatpush1.bf16.msra.mxu0 0
        %2727 = vmatprep.subr.bf16.mxu0 0
        %2728 = vmatpush1.bf16.msra.mxu0 0
        %2729 = vmatprep.subr.bf16.mxu0 0
        %2730 = vmatpush1.bf16.msra.mxu0 0
        %2731 = vmatprep.subr.bf16.mxu0 0
        %2732 = vmatpush1.bf16.msra.mxu0 0
        %2733 = vmatprep.subr.bf16.mxu0 0
        %2734 = vmatpush1.bf16.msra.mxu0 0
        %2735 = vmatprep.subr.bf16.mxu0 0
        %2736 = vmatpush1.bf16.msra.mxu0 0
        %2737 = vmatprep.subr.bf16.mxu0 0
        %2738 = vmatpush1.bf16.msra.mxu0 0
        %2739 = vmatprep.subr.bf16.mxu0 0
        %2740 = vmatpush1.bf16.msra.mxu0 0
        %2741 = vmatprep.subr.bf16.mxu0 0
        %2742 = vmatpush1.bf16.msra.mxu0 0
        %2743 = vmatprep.subr.bf16.mxu0 0
        %2744 = vmatpush1.bf16.msra.mxu0 0
        %2745 = vmatprep.subr.bf16.mxu0 0
        %2746 = vmatpush1.bf16.msra.mxu0 0
        %2747 = vmatprep.subr.bf16.mxu0 0
        %2748 = vmatpush1.bf16.msra.mxu0 0
        %2749 = vmatprep.subr.bf16.mxu0 0
        %2750 = vmatpush1.bf16.msra.mxu0 0
        %2751 = vmatprep.mubr.bf16.mxu0 0
        %2752 = vmatmul.mubr.bf16.gmra.mrb[0].mxu0 %v2714
        %v2753 = vpop.f32.mrb[0].mxu0
        %v2754 = vadd.f32 0.0, %v2753
        %v2755 = vpop.f32.mrb[0].mxu0
        %v2756 = vpop.f32.mrb[0].mxu0
        %v2757 = vpop.f32.mrb[0].mxu0
        %2758 = vdwg.mxu0
        %v2760 = vsel %vm2013, %v2202, 0
        %v2763 = vsel %vm2209, %v1272, 0
        %2765 = vmatprep.subr.bf16.mxu0 0
        %2766 = vmatpush1.bf16.msra.mxu0 %v2763
        %2767 = vmatprep.subr.bf16.mxu0 0
        %2768 = vmatpush1.bf16.msra.mxu0 0
        %2769 = vmatprep.subr.bf16.mxu0 0
        %2770 = vmatpush1.bf16.msra.mxu0 0
        %2771 = vmatprep.subr.bf16.mxu0 0
        %2772 = vmatpush1.bf16.msra.mxu0 0
        %2773 = vmatprep.subr.bf16.mxu0 0
        %2774 = vmatpush1.bf16.msra.mxu0 0
        %2775 = vmatprep.subr.bf16.mxu0 0
        %2776 = vmatpush1.bf16.msra.mxu0 0
        %2777 = vmatprep.subr.bf16.mxu0 0
        %2778 = vmatpush1.bf16.msra.mxu0 0
        %2779 = vmatprep.subr.bf16.mxu0 0
        %2780 = vmatpush1.bf16.msra.mxu0 0
        %2781 = vmatprep.subr.bf16.mxu0 0
        %2782 = vmatpush1.bf16.msra.mxu0 0
        %2783 = vmatprep.subr.bf16.mxu0 0
        %2784 = vmatpush1.bf16.msra.mxu0 0
        %2785 = vmatprep.subr.bf16.mxu0 0
        %2786 = vmatpush1.bf16.msra.mxu0 0
        %2787 = vmatprep.subr.bf16.mxu0 0
        %2788 = vmatpush1.bf16.msra.mxu0 0
        %2789 = vmatprep.subr.bf16.mxu0 0
        %2790 = vmatpush1.bf16.msra.mxu0 0
        %2791 = vmatprep.subr.bf16.mxu0 0
        %2792 = vmatpush1.bf16.msra.mxu0 0
        %2793 = vmatprep.subr.bf16.mxu0 0
        %2794 = vmatpush1.bf16.msra.mxu0 0
        %2795 = vmatprep.subr.bf16.mxu0 0
        %2796 = vmatpush1.bf16.msra.mxu0 0
        %2797 = vmatprep.mubr.bf16.mxu0 0
        %2798 = vmatmul.mubr.bf16.gmra.mrb[0].mxu0 %v2760
        %v2799 = vpop.f32.mrb[0].mxu0
        %v2800 = vadd.f32 0.0, %v2799
        %v2801 = vpop.f32.mrb[0].mxu0
        %v2802 = vpop.f32.mrb[0].mxu0
        %v2803 = vpop.f32.mrb[0].mxu0
        %2804 = vdwg.mxu0
        %v2806 = vsel %vm2013, %v2203, 0
        %v2809 = vsel %vm2209, %v1273, 0
        %2811 = vmatprep.subr.bf16.mxu0 0
        %2812 = vmatpush1.bf16.msra.mxu0 %v2809
        %2813 = vmatprep.subr.bf16.mxu0 0
        %2814 = vmatpush1.bf16.msra.mxu0 0
        %2815 = vmatprep.subr.bf16.mxu0 0
        %2816 = vmatpush1.bf16.msra.mxu0 0
        %2817 = vmatprep.subr.bf16.mxu0 0
        %2818 = vmatpush1.bf16.msra.mxu0 0
        %2819 = vmatprep.subr.bf16.mxu0 0
        %2820 = vmatpush1.bf16.msra.mxu0 0
        %2821 = vmatprep.subr.bf16.mxu0 0
        %2822 = vmatpush1.bf16.msra.mxu0 0
        %2823 = vmatprep.subr.bf16.mxu0 0
        %2824 = vmatpush1.bf16.msra.mxu0 0
        %2825 = vmatprep.subr.bf16.mxu0 0
        %2826 = vmatpush1.bf16.msra.mxu0 0
        %2827 = vmatprep.subr.bf16.mxu0 0
        %2828 = vmatpush1.bf16.msra.mxu0 0
        %2829 = vmatprep.subr.bf16.mxu0 0
        %2830 = vmatpush1.bf16.msra.mxu0 0
        %2831 = vmatprep.subr.bf16.mxu0 0
        %2832 = vmatpush1.bf16.msra.mxu0 0
        %2833 = vmatprep.subr.bf16.mxu0 0
        %2834 = vmatpush1.bf16.msra.mxu0 0
        %2835 = vmatprep.subr.bf16.mxu0 0
        %2836 = vmatpush1.bf16.msra.mxu0 0
        %2837 = vmatprep.subr.bf16.mxu0 0
        %2838 = vmatpush1.bf16.msra.mxu0 0
        %2839 = vmatprep.subr.bf16.mxu0 0
        %2840 = vmatpush1.bf16.msra.mxu0 0
        %2841 = vmatprep.subr.bf16.mxu0 0
        %2842 = vmatpush1.bf16.msra.mxu0 0
        %2843 = vmatprep.mubr.bf16.mxu0 0
        %2844 = vmatmul.mubr.bf16.gmra.mrb[0].mxu0 %v2806
        %v2845 = vpop.f32.mrb[0].mxu0
        %v2846 = vadd.f32 0.0, %v2845
        %v2847 = vpop.f32.mrb[0].mxu0
        %v2848 = vpop.f32.mrb[0].mxu0
        %v2849 = vpop.f32.mrb[0].mxu0
        %2850 = vdwg.mxu0
        %v2852 = vsel %vm2013, %v2204, 0
        %v2855 = vsel %vm2209, %v1274, 0
        %2857 = vmatprep.subr.bf16.mxu0 0
        %2858 = vmatpush1.bf16.msra.mxu0 %v2855
        %2859 = vmatprep.subr.bf16.mxu0 0
        %2860 = vmatpush1.bf16.msra.mxu0 0
        %2861 = vmatprep.subr.bf16.mxu0 0
        %2862 = vmatpush1.bf16.msra.mxu0 0
        %2863 = vmatprep.subr.bf16.mxu0 0
        %2864 = vmatpush1.bf16.msra.mxu0 0
        %2865 = vmatprep.subr.bf16.mxu0 0
        %2866 = vmatpush1.bf16.msra.mxu0 0
        %2867 = vmatprep.subr.bf16.mxu0 0
        %2868 = vmatpush1.bf16.msra.mxu0 0
        %2869 = vmatprep.subr.bf16.mxu0 0
        %2870 = vmatpush1.bf16.msra.mxu0 0
        %2871 = vmatprep.subr.bf16.mxu0 0
        %2872 = vmatpush1.bf16.msra.mxu0 0
        %2873 = vmatprep.subr.bf16.mxu0 0
        %2874 = vmatpush1.bf16.msra.mxu0 0
        %2875 = vmatprep.subr.bf16.mxu0 0
        %2876 = vmatpush1.bf16.msra.mxu0 0
        %2877 = vmatprep.subr.bf16.mxu0 0
        %2878 = vmatpush1.bf16.msra.mxu0 0
        %2879 = vmatprep.subr.bf16.mxu0 0
        %2880 = vmatpush1.bf16.msra.mxu0 0
        %2881 = vmatprep.subr.bf16.mxu0 0
        %2882 = vmatpush1.bf16.msra.mxu0 0
        %2883 = vmatprep.subr.bf16.mxu0 0
        %2884 = vmatpush1.bf16.msra.mxu0 0
        %2885 = vmatprep.subr.bf16.mxu0 0
        %2886 = vmatpush1.bf16.msra.mxu0 0
        %2887 = vmatprep.subr.bf16.mxu0 0
        %2888 = vmatpush1.bf16.msra.mxu0 0
        %2889 = vmatprep.mubr.bf16.mxu0 0
        %2890 = vmatmul.mubr.bf16.gmra.mrb[0].mxu0 %v2852
        %v2891 = vpop.f32.mrb[0].mxu0
        %v2892 = vadd.f32 0.0, %v2891
        %v2893 = vpop.f32.mrb[0].mxu0
        %v2894 = vpop.f32.mrb[0].mxu0
        %v2895 = vpop.f32.mrb[0].mxu0
        %2896 = vdwg.mxu0
        %v2898 = vsel %vm2013, %v2205, 0
        %v2901 = vsel %vm2209, %v1275, 0
        %2903 = vmatprep.subr.bf16.mxu0 0
        %2904 = vmatpush1.bf16.msra.mxu0 %v2901
        %2905 = vmatprep.subr.bf16.mxu0 0
        %2906 = vmatpush1.bf16.msra.mxu0 0
        %2907 = vmatprep.subr.bf16.mxu0 0
        %2908 = vmatpush1.bf16.msra.mxu0 0
        %2909 = vmatprep.subr.bf16.mxu0 0
        %2910 = vmatpush1.bf16.msra.mxu0 0
        %2911 = vmatprep.subr.bf16.mxu0 0
        %2912 = vmatpush1.bf16.msra.mxu0 0
        %2913 = vmatprep.subr.bf16.mxu0 0
        %2914 = vmatpush1.bf16.msra.mxu0 0
        %2915 = vmatprep.subr.bf16.mxu0 0
        %2916 = vmatpush1.bf16.msra.mxu0 0
        %2917 = vmatprep.subr.bf16.mxu0 0
        %2918 = vmatpush1.bf16.msra.mxu0 0
        %2919 = vmatprep.subr.bf16.mxu0 0
        %2920 = vmatpush1.bf16.msra.mxu0 0
        %2921 = vmatprep.subr.bf16.mxu0 0
        %2922 = vmatpush1.bf16.msra.mxu0 0
        %2923 = vmatprep.subr.bf16.mxu0 0
        %2924 = vmatpush1.bf16.msra.mxu0 0
        %2925 = vmatprep.subr.bf16.mxu0 0
        %2926 = vmatpush1.bf16.msra.mxu0 0
        %2927 = vmatprep.subr.bf16.mxu0 0
        %2928 = vmatpush1.bf16.msra.mxu0 0
        %2929 = vmatprep.subr.bf16.mxu0 0
        %2930 = vmatpush1.bf16.msra.mxu0 0
        %2931 = vmatprep.subr.bf16.mxu0 0
        %2932 = vmatpush1.bf16.msra.mxu0 0
        %2933 = vmatprep.subr.bf16.mxu0 0
        %2934 = vmatpush1.bf16.msra.mxu0 0
        %2935 = vmatprep.mubr.bf16.mxu0 0
        %2936 = vmatmul.mubr.bf16.gmra.mrb[0].mxu0 %v2898
        %v2937 = vpop.f32.mrb[0].mxu0
        %v2938 = vadd.f32 0.0, %v2937
        %v2939 = vpop.f32.mrb[0].mxu0
        %v2940 = vpop.f32.mrb[0].mxu0
        %v2941 = vpop.f32.mrb[0].mxu0
        %2942 = vdwg.mxu0
        %2944 = vrot.lane.b32.xlu0 %v1228, 96
        %v2945 = vpop.permute.xlu0 %2944
        %2947 = vrot.lane.b32.xlu0 %v1244, 96
        %v2948 = vpop.permute.xlu0 %2947
        %v2950 = vsel %vm1276, %v2945, 0
        %v2953 = vsel %vm1276, %v2948, 0
        %2955 = vmatprep.subr.bf16.mxu0 0
        %2956 = vmatpush1.bf16.xpose.msra.mxu0 %v2953
        %2957 = vmatprep.subr.bf16.mxu0 0
        %2958 = vmatpush1.bf16.xpose.msra.mxu0 0
        %2959 = vmatprep.subr.bf16.mxu0 0
        %2960 = vmatpush1.bf16.xpose.msra.mxu0 0
        %2961 = vmatprep.subr.bf16.mxu0 0
        %2962 = vmatpush1.bf16.xpose.msra.mxu0 0
        %2963 = vmatprep.subr.bf16.mxu0 0
        %2964 = vmatpush1.bf16.xpose.msra.mxu0 0
        %2965 = vmatprep.subr.bf16.mxu0 0
        %2966 = vmatpush1.bf16.xpose.msra.mxu0 0
        %2967 = vmatprep.subr.bf16.mxu0 0
        %2968 = vmatpush1.bf16.xpose.msra.mxu0 0
        %2969 = vmatprep.subr.bf16.mxu0 0
        %2970 = vmatpush1.bf16.xpose.msra.mxu0 0
        %2971 = vmatprep.subr.bf16.mxu0 0
        %2972 = vmatpush1.bf16.xpose.msra.mxu0 0
        %2973 = vmatprep.subr.bf16.mxu0 0
        %2974 = vmatpush1.bf16.xpose.msra.mxu0 0
        %2975 = vmatprep.subr.bf16.mxu0 0
        %2976 = vmatpush1.bf16.xpose.msra.mxu0 0
        %2977 = vmatprep.subr.bf16.mxu0 0
        %2978 = vmatpush1.bf16.xpose.msra.mxu0 0
        %2979 = vmatprep.subr.bf16.mxu0 0
        %2980 = vmatpush1.bf16.xpose.msra.mxu0 0
        %2981 = vmatprep.subr.bf16.mxu0 0
        %2982 = vmatpush1.bf16.xpose.msra.mxu0 0
        %2983 = vmatprep.subr.bf16.mxu0 0
        %2984 = vmatpush1.bf16.xpose.msra.mxu0 0
        %2985 = vmatprep.subr.bf16.mxu0 0
        %2986 = vmatpush1.bf16.xpose.msra.mxu0 0
        %2987 = vmatprep.mubr.bf16.mxu0 0
        %2988 = vmatmul.mubr.bf16.gmra.mrb[0].mxu0 %v2950
        %v2989 = vpop.f32.mrb[0].mxu0
        %v2990 = vadd.f32 0.0, %v2989
        %v2991 = vpop.f32.mrb[0].mxu0
        %v2992 = vpop.f32.mrb[0].mxu0
        %v2993 = vpop.f32.mrb[0].mxu0
        %2994 = vdwg.mxu0
        %2996 = vrot.lane.b32.xlu0 %v1229, 96
        %v2997 = vpop.permute.xlu0 %2996
        %2999 = vrot.lane.b32.xlu0 %v1245, 96
        %v3000 = vpop.permute.xlu0 %2999
        %v3002 = vsel %vm1276, %v2997, 0
        %v3005 = vsel %vm1276, %v3000, 0
        %3007 = vmatprep.subr.bf16.mxu0 0
        %3008 = vmatpush1.bf16.xpose.msra.mxu0 %v3005
        %3009 = vmatprep.subr.bf16.mxu0 0
        %3010 = vmatpush1.bf16.xpose.msra.mxu0 0
        %3011 = vmatprep.subr.bf16.mxu0 0
        %3012 = vmatpush1.bf16.xpose.msra.mxu0 0
        %3013 = vmatprep.subr.bf16.mxu0 0
        %3014 = vmatpush1.bf16.xpose.msra.mxu0 0
        %3015 = vmatprep.subr.bf16.mxu0 0
        %3016 = vmatpush1.bf16.xpose.msra.mxu0 0
        %3017 = vmatprep.subr.bf16.mxu0 0
        %3018 = vmatpush1.bf16.xpose.msra.mxu0 0
        %3019 = vmatprep.subr.bf16.mxu0 0
        %3020 = vmatpush1.bf16.xpose.msra.mxu0 0
        %3021 = vmatprep.subr.bf16.mxu0 0
        %3022 = vmatpush1.bf16.xpose.msra.mxu0 0
        %3023 = vmatprep.subr.bf16.mxu0 0
        %3024 = vmatpush1.bf16.xpose.msra.mxu0 0
        %3025 = vmatprep.subr.bf16.mxu0 0
        %3026 = vmatpush1.bf16.xpose.msra.mxu0 0
        %3027 = vmatprep.subr.bf16.mxu0 0
        %3028 = vmatpush1.bf16.xpose.msra.mxu0 0
        %3029 = vmatprep.subr.bf16.mxu0 0
        %3030 = vmatpush1.bf16.xpose.msra.mxu0 0
        %3031 = vmatprep.subr.bf16.mxu0 0
        %3032 = vmatpush1.bf16.xpose.msra.mxu0 0
        %3033 = vmatprep.subr.bf16.mxu0 0
        %3034 = vmatpush1.bf16.xpose.msra.mxu0 0
        %3035 = vmatprep.subr.bf16.mxu0 0
        %3036 = vmatpush1.bf16.xpose.msra.mxu0 0
        %3037 = vmatprep.subr.bf16.mxu0 0
        %3038 = vmatpush1.bf16.xpose.msra.mxu0 0
        %3039 = vmatprep.mubr.bf16.mxu0 0
        %3040 = vmatmul.mubr.bf16.gmra.mrb[0].mxu0 %v3002
        %v3041 = vpop.f32.mrb[0].mxu0
        %v3042 = vadd.f32 0.0, %v3041
        %v3043 = vpop.f32.mrb[0].mxu0
        %v3044 = vpop.f32.mrb[0].mxu0
        %v3045 = vpop.f32.mrb[0].mxu0
        %3046 = vdwg.mxu0
        %3048 = vrot.lane.b32.xlu0 %v1230, 96
        %v3049 = vpop.permute.xlu0 %3048
        %3051 = vrot.lane.b32.xlu0 %v1246, 96
        %v3052 = vpop.permute.xlu0 %3051
        %v3054 = vsel %vm1276, %v3049, 0
        %v3057 = vsel %vm1276, %v3052, 0
        %3059 = vmatprep.subr.bf16.mxu0 0
        %3060 = vmatpush1.bf16.xpose.msra.mxu0 %v3057
        %3061 = vmatprep.subr.bf16.mxu0 0
        %3062 = vmatpush1.bf16.xpose.msra.mxu0 0
        %3063 = vmatprep.subr.bf16.mxu0 0
        %3064 = vmatpush1.bf16.xpose.msra.mxu0 0
        %3065 = vmatprep.subr.bf16.mxu0 0
        %3066 = vmatpush1.bf16.xpose.msra.mxu0 0
        %3067 = vmatprep.subr.bf16.mxu0 0
        %3068 = vmatpush1.bf16.xpose.msra.mxu0 0
        %3069 = vmatprep.subr.bf16.mxu0 0
        %3070 = vmatpush1.bf16.xpose.msra.mxu0 0
        %3071 = vmatprep.subr.bf16.mxu0 0
        %3072 = vmatpush1.bf16.xpose.msra.mxu0 0
        %3073 = vmatprep.subr.bf16.mxu0 0
        %3074 = vmatpush1.bf16.xpose.msra.mxu0 0
        %3075 = vmatprep.subr.bf16.mxu0 0
        %3076 = vmatpush1.bf16.xpose.msra.mxu0 0
        %3077 = vmatprep.subr.bf16.mxu0 0
        %3078 = vmatpush1.bf16.xpose.msra.mxu0 0
        %3079 = vmatprep.subr.bf16.mxu0 0
        %3080 = vmatpush1.bf16.xpose.msra.mxu0 0
        %3081 = vmatprep.subr.bf16.mxu0 0
        %3082 = vmatpush1.bf16.xpose.msra.mxu0 0
        %3083 = vmatprep.subr.bf16.mxu0 0
        %3084 = vmatpush1.bf16.xpose.msra.mxu0 0
        %3085 = vmatprep.subr.bf16.mxu0 0
        %3086 = vmatpush1.bf16.xpose.msra.mxu0 0
        %3087 = vmatprep.subr.bf16.mxu0 0
        %3088 = vmatpush1.bf16.xpose.msra.mxu0 0
        %3089 = vmatprep.subr.bf16.mxu0 0
        %3090 = vmatpush1.bf16.xpose.msra.mxu0 0
        %3091 = vmatprep.mubr.bf16.mxu0 0
        %3092 = vmatmul.mubr.bf16.gmra.mrb[0].mxu0 %v3054
        %v3093 = vpop.f32.mrb[0].mxu0
        %v3094 = vadd.f32 0.0, %v3093
        %v3095 = vpop.f32.mrb[0].mxu0
        %v3096 = vpop.f32.mrb[0].mxu0
        %v3097 = vpop.f32.mrb[0].mxu0
        %3098 = vdwg.mxu0
        %3100 = vrot.lane.b32.xlu0 %v1231, 96
        %v3101 = vpop.permute.xlu0 %3100
        %3103 = vrot.lane.b32.xlu0 %v1247, 96
        %v3104 = vpop.permute.xlu0 %3103
        %v3106 = vsel %vm1276, %v3101, 0
        %v3109 = vsel %vm1276, %v3104, 0
        %3111 = vmatprep.subr.bf16.mxu0 0
        %3112 = vmatpush1.bf16.xpose.msra.mxu0 %v3109
        %3113 = vmatprep.subr.bf16.mxu0 0
        %3114 = vmatpush1.bf16.xpose.msra.mxu0 0
        %3115 = vmatprep.subr.bf16.mxu0 0
        %3116 = vmatpush1.bf16.xpose.msra.mxu0 0
        %3117 = vmatprep.subr.bf16.mxu0 0
        %3118 = vmatpush1.bf16.xpose.msra.mxu0 0
        %3119 = vmatprep.subr.bf16.mxu0 0
        %3120 = vmatpush1.bf16.xpose.msra.mxu0 0
        %3121 = vmatprep.subr.bf16.mxu0 0
        %3122 = vmatpush1.bf16.xpose.msra.mxu0 0
        %3123 = vmatprep.subr.bf16.mxu0 0
        %3124 = vmatpush1.bf16.xpose.msra.mxu0 0
        %3125 = vmatprep.subr.bf16.mxu0 0
        %3126 = vmatpush1.bf16.xpose.msra.mxu0 0
        %3127 = vmatprep.subr.bf16.mxu0 0
        %3128 = vmatpush1.bf16.xpose.msra.mxu0 0
        %3129 = vmatprep.subr.bf16.mxu0 0
        %3130 = vmatpush1.bf16.xpose.msra.mxu0 0
        %3131 = vmatprep.subr.bf16.mxu0 0
        %3132 = vmatpush1.bf16.xpose.msra.mxu0 0
        %3133 = vmatprep.subr.bf16.mxu0 0
        %3134 = vmatpush1.bf16.xpose.msra.mxu0 0
        %3135 = vmatprep.subr.bf16.mxu0 0
        %3136 = vmatpush1.bf16.xpose.msra.mxu0 0
        %3137 = vmatprep.subr.bf16.mxu0 0
        %3138 = vmatpush1.bf16.xpose.msra.mxu0 0
        %3139 = vmatprep.subr.bf16.mxu0 0
        %3140 = vmatpush1.bf16.xpose.msra.mxu0 0
        %3141 = vmatprep.subr.bf16.mxu0 0
        %3142 = vmatpush1.bf16.xpose.msra.mxu0 0
        %3143 = vmatprep.mubr.bf16.mxu0 0
        %3144 = vmatmul.mubr.bf16.gmra.mrb[0].mxu0 %v3106
        %v3145 = vpop.f32.mrb[0].mxu0
        %v3146 = vadd.f32 0.0, %v3145
        %v3147 = vpop.f32.mrb[0].mxu0
        %v3148 = vpop.f32.mrb[0].mxu0
        %v3149 = vpop.f32.mrb[0].mxu0
        %3150 = vdwg.mxu0
        %3152 = vrot.lane.b32.xlu0 %v1232, 96
        %v3153 = vpop.permute.xlu0 %3152
        %3155 = vrot.lane.b32.xlu0 %v1248, 96
        %v3156 = vpop.permute.xlu0 %3155
        %v3158 = vsel %vm1276, %v3153, 0
        %v3161 = vsel %vm1276, %v3156, 0
        %3163 = vmatprep.subr.bf16.mxu0 0
        %3164 = vmatpush1.bf16.xpose.msra.mxu0 %v3161
        %3165 = vmatprep.subr.bf16.mxu0 0
        %3166 = vmatpush1.bf16.xpose.msra.mxu0 0
        %3167 = vmatprep.subr.bf16.mxu0 0
        %3168 = vmatpush1.bf16.xpose.msra.mxu0 0
        %3169 = vmatprep.subr.bf16.mxu0 0
        %3170 = vmatpush1.bf16.xpose.msra.mxu0 0
        %3171 = vmatprep.subr.bf16.mxu0 0
        %3172 = vmatpush1.bf16.xpose.msra.mxu0 0
        %3173 = vmatprep.subr.bf16.mxu0 0
        %3174 = vmatpush1.bf16.xpose.msra.mxu0 0
        %3175 = vmatprep.subr.bf16.mxu0 0
        %3176 = vmatpush1.bf16.xpose.msra.mxu0 0
        %3177 = vmatprep.subr.bf16.mxu0 0
        %3178 = vmatpush1.bf16.xpose.msra.mxu0 0
        %3179 = vmatprep.subr.bf16.mxu0 0
        %3180 = vmatpush1.bf16.xpose.msra.mxu0 0
        %3181 = vmatprep.subr.bf16.mxu0 0
        %3182 = vmatpush1.bf16.xpose.msra.mxu0 0
        %3183 = vmatprep.subr.bf16.mxu0 0
        %3184 = vmatpush1.bf16.xpose.msra.mxu0 0
        %3185 = vmatprep.subr.bf16.mxu0 0
        %3186 = vmatpush1.bf16.xpose.msra.mxu0 0
        %3187 = vmatprep.subr.bf16.mxu0 0
        %3188 = vmatpush1.bf16.xpose.msra.mxu0 0
        %3189 = vmatprep.subr.bf16.mxu0 0
        %3190 = vmatpush1.bf16.xpose.msra.mxu0 0
        %3191 = vmatprep.subr.bf16.mxu0 0
        %3192 = vmatpush1.bf16.xpose.msra.mxu0 0
        %3193 = vmatprep.subr.bf16.mxu0 0
        %3194 = vmatpush1.bf16.xpose.msra.mxu0 0
        %3195 = vmatprep.mubr.bf16.mxu0 0
        %3196 = vmatmul.mubr.bf16.gmra.mrb[0].mxu0 %v3158
        %v3197 = vpop.f32.mrb[0].mxu0
        %v3198 = vadd.f32 0.0, %v3197
        %v3199 = vpop.f32.mrb[0].mxu0
        %v3200 = vpop.f32.mrb[0].mxu0
        %v3201 = vpop.f32.mrb[0].mxu0
        %3202 = vdwg.mxu0
        %3204 = vrot.lane.b32.xlu0 %v1233, 96
        %v3205 = vpop.permute.xlu0 %3204
        %3207 = vrot.lane.b32.xlu0 %v1249, 96
        %v3208 = vpop.permute.xlu0 %3207
        %v3210 = vsel %vm1276, %v3205, 0
        %v3213 = vsel %vm1276, %v3208, 0
        %3215 = vmatprep.subr.bf16.mxu0 0
        %3216 = vmatpush1.bf16.xpose.msra.mxu0 %v3213
        %3217 = vmatprep.subr.bf16.mxu0 0
        %3218 = vmatpush1.bf16.xpose.msra.mxu0 0
        %3219 = vmatprep.subr.bf16.mxu0 0
        %3220 = vmatpush1.bf16.xpose.msra.mxu0 0
        %3221 = vmatprep.subr.bf16.mxu0 0
        %3222 = vmatpush1.bf16.xpose.msra.mxu0 0
        %3223 = vmatprep.subr.bf16.mxu0 0
        %3224 = vmatpush1.bf16.xpose.msra.mxu0 0
        %3225 = vmatprep.subr.bf16.mxu0 0
        %3226 = vmatpush1.bf16.xpose.msra.mxu0 0
        %3227 = vmatprep.subr.bf16.mxu0 0
        %3228 = vmatpush1.bf16.xpose.msra.mxu0 0
        %3229 = vmatprep.subr.bf16.mxu0 0
        %3230 = vmatpush1.bf16.xpose.msra.mxu0 0
        %3231 = vmatprep.subr.bf16.mxu0 0
        %3232 = vmatpush1.bf16.xpose.msra.mxu0 0
        %3233 = vmatprep.subr.bf16.mxu0 0
        %3234 = vmatpush1.bf16.xpose.msra.mxu0 0
        %3235 = vmatprep.subr.bf16.mxu0 0
        %3236 = vmatpush1.bf16.xpose.msra.mxu0 0
        %3237 = vmatprep.subr.bf16.mxu0 0
        %3238 = vmatpush1.bf16.xpose.msra.mxu0 0
        %3239 = vmatprep.subr.bf16.mxu0 0
        %3240 = vmatpush1.bf16.xpose.msra.mxu0 0
        %3241 = vmatprep.subr.bf16.mxu0 0
        %3242 = vmatpush1.bf16.xpose.msra.mxu0 0
        %3243 = vmatprep.subr.bf16.mxu0 0
        %3244 = vmatpush1.bf16.xpose.msra.mxu0 0
        %3245 = vmatprep.subr.bf16.mxu0 0
        %3246 = vmatpush1.bf16.xpose.msra.mxu0 0
        %3247 = vmatprep.mubr.bf16.mxu0 0
        %3248 = vmatmul.mubr.bf16.gmra.mrb[0].mxu0 %v3210
        %v3249 = vpop.f32.mrb[0].mxu0
        %v3250 = vadd.f32 0.0, %v3249
        %v3251 = vpop.f32.mrb[0].mxu0
        %v3252 = vpop.f32.mrb[0].mxu0
        %v3253 = vpop.f32.mrb[0].mxu0
        %3254 = vdwg.mxu0
        %3256 = vrot.lane.b32.xlu0 %v1234, 96
        %v3257 = vpop.permute.xlu0 %3256
        %3259 = vrot.lane.b32.xlu0 %v1250, 96
        %v3260 = vpop.permute.xlu0 %3259
        %v3262 = vsel %vm1276, %v3257, 0
        %v3265 = vsel %vm1276, %v3260, 0
        %3267 = vmatprep.subr.bf16.mxu0 0
        %3268 = vmatpush1.bf16.xpose.msra.mxu0 %v3265
        %3269 = vmatprep.subr.bf16.mxu0 0
        %3270 = vmatpush1.bf16.xpose.msra.mxu0 0
        %3271 = vmatprep.subr.bf16.mxu0 0
        %3272 = vmatpush1.bf16.xpose.msra.mxu0 0
        %3273 = vmatprep.subr.bf16.mxu0 0
        %3274 = vmatpush1.bf16.xpose.msra.mxu0 0
        %3275 = vmatprep.subr.bf16.mxu0 0
        %3276 = vmatpush1.bf16.xpose.msra.mxu0 0
        %3277 = vmatprep.subr.bf16.mxu0 0
        %3278 = vmatpush1.bf16.xpose.msra.mxu0 0
        %3279 = vmatprep.subr.bf16.mxu0 0
        %3280 = vmatpush1.bf16.xpose.msra.mxu0 0
        %3281 = vmatprep.subr.bf16.mxu0 0
        %3282 = vmatpush1.bf16.xpose.msra.mxu0 0
        %3283 = vmatprep.subr.bf16.mxu0 0
        %3284 = vmatpush1.bf16.xpose.msra.mxu0 0
        %3285 = vmatprep.subr.bf16.mxu0 0
        %3286 = vmatpush1.bf16.xpose.msra.mxu0 0
        %3287 = vmatprep.subr.bf16.mxu0 0
        %3288 = vmatpush1.bf16.xpose.msra.mxu0 0
        %3289 = vmatprep.subr.bf16.mxu0 0
        %3290 = vmatpush1.bf16.xpose.msra.mxu0 0
        %3291 = vmatprep.subr.bf16.mxu0 0
        %3292 = vmatpush1.bf16.xpose.msra.mxu0 0
        %3293 = vmatprep.subr.bf16.mxu0 0
        %3294 = vmatpush1.bf16.xpose.msra.mxu0 0
        %3295 = vmatprep.subr.bf16.mxu0 0
        %3296 = vmatpush1.bf16.xpose.msra.mxu0 0
        %3297 = vmatprep.subr.bf16.mxu0 0
        %3298 = vmatpush1.bf16.xpose.msra.mxu0 0
        %3299 = vmatprep.mubr.bf16.mxu0 0
        %3300 = vmatmul.mubr.bf16.gmra.mrb[0].mxu0 %v3262
        %v3301 = vpop.f32.mrb[0].mxu0
        %v3302 = vadd.f32 0.0, %v3301
        %v3303 = vpop.f32.mrb[0].mxu0
        %v3304 = vpop.f32.mrb[0].mxu0
        %v3305 = vpop.f32.mrb[0].mxu0
        %3306 = vdwg.mxu0
        %3308 = vrot.lane.b32.xlu0 %v1235, 96
        %v3309 = vpop.permute.xlu0 %3308
        %3311 = vrot.lane.b32.xlu0 %v1251, 96
        %v3312 = vpop.permute.xlu0 %3311
        %v3314 = vsel %vm1276, %v3309, 0
        %v3317 = vsel %vm1276, %v3312, 0
        %3319 = vmatprep.subr.bf16.mxu0 0
        %3320 = vmatpush1.bf16.xpose.msra.mxu0 %v3317
        %3321 = vmatprep.subr.bf16.mxu0 0
        %3322 = vmatpush1.bf16.xpose.msra.mxu0 0
        %3323 = vmatprep.subr.bf16.mxu0 0
        %3324 = vmatpush1.bf16.xpose.msra.mxu0 0
        %3325 = vmatprep.subr.bf16.mxu0 0
        %3326 = vmatpush1.bf16.xpose.msra.mxu0 0
        %3327 = vmatprep.subr.bf16.mxu0 0
        %3328 = vmatpush1.bf16.xpose.msra.mxu0 0
        %3329 = vmatprep.subr.bf16.mxu0 0
        %3330 = vmatpush1.bf16.xpose.msra.mxu0 0
        %3331 = vmatprep.subr.bf16.mxu0 0
        %3332 = vmatpush1.bf16.xpose.msra.mxu0 0
        %3333 = vmatprep.subr.bf16.mxu0 0
        %3334 = vmatpush1.bf16.xpose.msra.mxu0 0
        %3335 = vmatprep.subr.bf16.mxu0 0
        %3336 = vmatpush1.bf16.xpose.msra.mxu0 0
        %3337 = vmatprep.subr.bf16.mxu0 0
        %3338 = vmatpush1.bf16.xpose.msra.mxu0 0
        %3339 = vmatprep.subr.bf16.mxu0 0
        %3340 = vmatpush1.bf16.xpose.msra.mxu0 0
        %3341 = vmatprep.subr.bf16.mxu0 0
        %3342 = vmatpush1.bf16.xpose.msra.mxu0 0
        %3343 = vmatprep.subr.bf16.mxu0 0
        %3344 = vmatpush1.bf16.xpose.msra.mxu0 0
        %3345 = vmatprep.subr.bf16.mxu0 0
        %3346 = vmatpush1.bf16.xpose.msra.mxu0 0
        %3347 = vmatprep.subr.bf16.mxu0 0
        %3348 = vmatpush1.bf16.xpose.msra.mxu0 0
        %3349 = vmatprep.subr.bf16.mxu0 0
        %3350 = vmatpush1.bf16.xpose.msra.mxu0 0
        %3351 = vmatprep.mubr.bf16.mxu0 0
        %3352 = vmatmul.mubr.bf16.gmra.mrb[0].mxu0 %v3314
        %v3353 = vpop.f32.mrb[0].mxu0
        %v3354 = vadd.f32 0.0, %v3353
        %v3355 = vpop.f32.mrb[0].mxu0
        %v3356 = vpop.f32.mrb[0].mxu0
        %v3357 = vpop.f32.mrb[0].mxu0
        %3358 = vdwg.mxu0
        %3360 = vrot.lane.b32.xlu0 %v1236, 96
        %v3361 = vpop.permute.xlu0 %3360
        %3363 = vrot.lane.b32.xlu0 %v1252, 96
        %v3364 = vpop.permute.xlu0 %3363
        %v3366 = vsel %vm1276, %v3361, 0
        %v3369 = vsel %vm1276, %v3364, 0
        %3371 = vmatprep.subr.bf16.mxu0 0
        %3372 = vmatpush1.bf16.xpose.msra.mxu0 %v3369
        %3373 = vmatprep.subr.bf16.mxu0 0
        %3374 = vmatpush1.bf16.xpose.msra.mxu0 0
        %3375 = vmatprep.subr.bf16.mxu0 0
        %3376 = vmatpush1.bf16.xpose.msra.mxu0 0
        %3377 = vmatprep.subr.bf16.mxu0 0
        %3378 = vmatpush1.bf16.xpose.msra.mxu0 0
        %3379 = vmatprep.subr.bf16.mxu0 0
        %3380 = vmatpush1.bf16.xpose.msra.mxu0 0
        %3381 = vmatprep.subr.bf16.mxu0 0
        %3382 = vmatpush1.bf16.xpose.msra.mxu0 0
        %3383 = vmatprep.subr.bf16.mxu0 0
        %3384 = vmatpush1.bf16.xpose.msra.mxu0 0
        %3385 = vmatprep.subr.bf16.mxu0 0
        %3386 = vmatpush1.bf16.xpose.msra.mxu0 0
        %3387 = vmatprep.subr.bf16.mxu0 0
        %3388 = vmatpush1.bf16.xpose.msra.mxu0 0
        %3389 = vmatprep.subr.bf16.mxu0 0
        %3390 = vmatpush1.bf16.xpose.msra.mxu0 0
        %3391 = vmatprep.subr.bf16.mxu0 0
        %3392 = vmatpush1.bf16.xpose.msra.mxu0 0
        %3393 = vmatprep.subr.bf16.mxu0 0
        %3394 = vmatpush1.bf16.xpose.msra.mxu0 0
        %3395 = vmatprep.subr.bf16.mxu0 0
        %3396 = vmatpush1.bf16.xpose.msra.mxu0 0
        %3397 = vmatprep.subr.bf16.mxu0 0
        %3398 = vmatpush1.bf16.xpose.msra.mxu0 0
        %3399 = vmatprep.subr.bf16.mxu0 0
        %3400 = vmatpush1.bf16.xpose.msra.mxu0 0
        %3401 = vmatprep.subr.bf16.mxu0 0
        %3402 = vmatpush1.bf16.xpose.msra.mxu0 0
        %3403 = vmatprep.mubr.bf16.mxu0 0
        %3404 = vmatmul.mubr.bf16.gmra.mrb[0].mxu0 %v3366
        %v3405 = vpop.f32.mrb[0].mxu0
        %v3406 = vadd.f32 0.0, %v3405
        %v3407 = vpop.f32.mrb[0].mxu0
        %v3408 = vpop.f32.mrb[0].mxu0
        %v3409 = vpop.f32.mrb[0].mxu0
        %3410 = vdwg.mxu0
        %3412 = vrot.lane.b32.xlu0 %v1237, 96
        %v3413 = vpop.permute.xlu0 %3412
        %3415 = vrot.lane.b32.xlu0 %v1253, 96
        %v3416 = vpop.permute.xlu0 %3415
        %v3418 = vsel %vm1276, %v3413, 0
        %v3421 = vsel %vm1276, %v3416, 0
        %3423 = vmatprep.subr.bf16.mxu0 0
        %3424 = vmatpush1.bf16.xpose.msra.mxu0 %v3421
        %3425 = vmatprep.subr.bf16.mxu0 0
        %3426 = vmatpush1.bf16.xpose.msra.mxu0 0
        %3427 = vmatprep.subr.bf16.mxu0 0
        %3428 = vmatpush1.bf16.xpose.msra.mxu0 0
        %3429 = vmatprep.subr.bf16.mxu0 0
        %3430 = vmatpush1.bf16.xpose.msra.mxu0 0
        %3431 = vmatprep.subr.bf16.mxu0 0
        %3432 = vmatpush1.bf16.xpose.msra.mxu0 0
        %3433 = vmatprep.subr.bf16.mxu0 0
        %3434 = vmatpush1.bf16.xpose.msra.mxu0 0
        %3435 = vmatprep.subr.bf16.mxu0 0
        %3436 = vmatpush1.bf16.xpose.msra.mxu0 0
        %3437 = vmatprep.subr.bf16.mxu0 0
        %3438 = vmatpush1.bf16.xpose.msra.mxu0 0
        %3439 = vmatprep.subr.bf16.mxu0 0
        %3440 = vmatpush1.bf16.xpose.msra.mxu0 0
        %3441 = vmatprep.subr.bf16.mxu0 0
        %3442 = vmatpush1.bf16.xpose.msra.mxu0 0
        %3443 = vmatprep.subr.bf16.mxu0 0
        %3444 = vmatpush1.bf16.xpose.msra.mxu0 0
        %3445 = vmatprep.subr.bf16.mxu0 0
        %3446 = vmatpush1.bf16.xpose.msra.mxu0 0
        %3447 = vmatprep.subr.bf16.mxu0 0
        %3448 = vmatpush1.bf16.xpose.msra.mxu0 0
        %3449 = vmatprep.subr.bf16.mxu0 0
        %3450 = vmatpush1.bf16.xpose.msra.mxu0 0
        %3451 = vmatprep.subr.bf16.mxu0 0
        %3452 = vmatpush1.bf16.xpose.msra.mxu0 0
        %3453 = vmatprep.subr.bf16.mxu0 0
        %3454 = vmatpush1.bf16.xpose.msra.mxu0 0
        %3455 = vmatprep.mubr.bf16.mxu0 0
        %3456 = vmatmul.mubr.bf16.gmra.mrb[0].mxu0 %v3418
        %v3457 = vpop.f32.mrb[0].mxu0
        %v3458 = vadd.f32 0.0, %v3457
        %v3459 = vpop.f32.mrb[0].mxu0
        %v3460 = vpop.f32.mrb[0].mxu0
        %v3461 = vpop.f32.mrb[0].mxu0
        %3462 = vdwg.mxu0
        %3464 = vrot.lane.b32.xlu0 %v1238, 96
        %v3465 = vpop.permute.xlu0 %3464
        %3467 = vrot.lane.b32.xlu0 %v1254, 96
        %v3468 = vpop.permute.xlu0 %3467
        %v3470 = vsel %vm1276, %v3465, 0
        %v3473 = vsel %vm1276, %v3468, 0
        %3475 = vmatprep.subr.bf16.mxu0 0
        %3476 = vmatpush1.bf16.xpose.msra.mxu0 %v3473
        %3477 = vmatprep.subr.bf16.mxu0 0
        %3478 = vmatpush1.bf16.xpose.msra.mxu0 0
        %3479 = vmatprep.subr.bf16.mxu0 0
        %3480 = vmatpush1.bf16.xpose.msra.mxu0 0
        %3481 = vmatprep.subr.bf16.mxu0 0
        %3482 = vmatpush1.bf16.xpose.msra.mxu0 0
        %3483 = vmatprep.subr.bf16.mxu0 0
        %3484 = vmatpush1.bf16.xpose.msra.mxu0 0
        %3485 = vmatprep.subr.bf16.mxu0 0
        %3486 = vmatpush1.bf16.xpose.msra.mxu0 0
        %3487 = vmatprep.subr.bf16.mxu0 0
        %3488 = vmatpush1.bf16.xpose.msra.mxu0 0
        %3489 = vmatprep.subr.bf16.mxu0 0
        %3490 = vmatpush1.bf16.xpose.msra.mxu0 0
        %3491 = vmatprep.subr.bf16.mxu0 0
        %3492 = vmatpush1.bf16.xpose.msra.mxu0 0
        %3493 = vmatprep.subr.bf16.mxu0 0
        %3494 = vmatpush1.bf16.xpose.msra.mxu0 0
        %3495 = vmatprep.subr.bf16.mxu0 0
        %3496 = vmatpush1.bf16.xpose.msra.mxu0 0
        %3497 = vmatprep.subr.bf16.mxu0 0
        %3498 = vmatpush1.bf16.xpose.msra.mxu0 0
        %3499 = vmatprep.subr.bf16.mxu0 0
        %3500 = vmatpush1.bf16.xpose.msra.mxu0 0
        %3501 = vmatprep.subr.bf16.mxu0 0
        %3502 = vmatpush1.bf16.xpose.msra.mxu0 0
        %3503 = vmatprep.subr.bf16.mxu0 0
        %3504 = vmatpush1.bf16.xpose.msra.mxu0 0
        %3505 = vmatprep.subr.bf16.mxu0 0
        %3506 = vmatpush1.bf16.xpose.msra.mxu0 0
        %3507 = vmatprep.mubr.bf16.mxu0 0
        %3508 = vmatmul.mubr.bf16.gmra.mrb[0].mxu0 %v3470
        %v3509 = vpop.f32.mrb[0].mxu0
        %v3510 = vadd.f32 0.0, %v3509
        %v3511 = vpop.f32.mrb[0].mxu0
        %v3512 = vpop.f32.mrb[0].mxu0
        %v3513 = vpop.f32.mrb[0].mxu0
        %3514 = vdwg.mxu0
        %3516 = vrot.lane.b32.xlu0 %v1239, 96
        %v3517 = vpop.permute.xlu0 %3516
        %3519 = vrot.lane.b32.xlu0 %v1255, 96
        %v3520 = vpop.permute.xlu0 %3519
        %v3522 = vsel %vm1276, %v3517, 0
        %v3525 = vsel %vm1276, %v3520, 0
        %3527 = vmatprep.subr.bf16.mxu0 0
        %3528 = vmatpush1.bf16.xpose.msra.mxu0 %v3525
        %3529 = vmatprep.subr.bf16.mxu0 0
        %3530 = vmatpush1.bf16.xpose.msra.mxu0 0
        %3531 = vmatprep.subr.bf16.mxu0 0
        %3532 = vmatpush1.bf16.xpose.msra.mxu0 0
        %3533 = vmatprep.subr.bf16.mxu0 0
        %3534 = vmatpush1.bf16.xpose.msra.mxu0 0
        %3535 = vmatprep.subr.bf16.mxu0 0
        %3536 = vmatpush1.bf16.xpose.msra.mxu0 0
        %3537 = vmatprep.subr.bf16.mxu0 0
        %3538 = vmatpush1.bf16.xpose.msra.mxu0 0
        %3539 = vmatprep.subr.bf16.mxu0 0
        %3540 = vmatpush1.bf16.xpose.msra.mxu0 0
        %3541 = vmatprep.subr.bf16.mxu0 0
        %3542 = vmatpush1.bf16.xpose.msra.mxu0 0
        %3543 = vmatprep.subr.bf16.mxu0 0
        %3544 = vmatpush1.bf16.xpose.msra.mxu0 0
        %3545 = vmatprep.subr.bf16.mxu0 0
        %3546 = vmatpush1.bf16.xpose.msra.mxu0 0
        %3547 = vmatprep.subr.bf16.mxu0 0
        %3548 = vmatpush1.bf16.xpose.msra.mxu0 0
        %3549 = vmatprep.subr.bf16.mxu0 0
        %3550 = vmatpush1.bf16.xpose.msra.mxu0 0
        %3551 = vmatprep.subr.bf16.mxu0 0
        %3552 = vmatpush1.bf16.xpose.msra.mxu0 0
        %3553 = vmatprep.subr.bf16.mxu0 0
        %3554 = vmatpush1.bf16.xpose.msra.mxu0 0
        %3555 = vmatprep.subr.bf16.mxu0 0
        %3556 = vmatpush1.bf16.xpose.msra.mxu0 0
        %3557 = vmatprep.subr.bf16.mxu0 0
        %3558 = vmatpush1.bf16.xpose.msra.mxu0 0
        %3559 = vmatprep.mubr.bf16.mxu0 0
        %3560 = vmatmul.mubr.bf16.gmra.mrb[0].mxu0 %v3522
        %v3561 = vpop.f32.mrb[0].mxu0
        %v3562 = vadd.f32 0.0, %v3561
        %v3563 = vpop.f32.mrb[0].mxu0
        %v3564 = vpop.f32.mrb[0].mxu0
        %v3565 = vpop.f32.mrb[0].mxu0
        %3566 = vdwg.mxu0
        %3568 = vrot.lane.b32.xlu0 %v1240, 96
        %v3569 = vpop.permute.xlu0 %3568
        %3571 = vrot.lane.b32.xlu0 %v1256, 96
        %v3572 = vpop.permute.xlu0 %3571
        %v3574 = vsel %vm1276, %v3569, 0
        %v3577 = vsel %vm1276, %v3572, 0
        %3579 = vmatprep.subr.bf16.mxu0 0
        %3580 = vmatpush1.bf16.xpose.msra.mxu0 %v3577
        %3581 = vmatprep.subr.bf16.mxu0 0
        %3582 = vmatpush1.bf16.xpose.msra.mxu0 0
        %3583 = vmatprep.subr.bf16.mxu0 0
        %3584 = vmatpush1.bf16.xpose.msra.mxu0 0
        %3585 = vmatprep.subr.bf16.mxu0 0
        %3586 = vmatpush1.bf16.xpose.msra.mxu0 0
        %3587 = vmatprep.subr.bf16.mxu0 0
        %3588 = vmatpush1.bf16.xpose.msra.mxu0 0
        %3589 = vmatprep.subr.bf16.mxu0 0
        %3590 = vmatpush1.bf16.xpose.msra.mxu0 0
        %3591 = vmatprep.subr.bf16.mxu0 0
        %3592 = vmatpush1.bf16.xpose.msra.mxu0 0
        %3593 = vmatprep.subr.bf16.mxu0 0
        %3594 = vmatpush1.bf16.xpose.msra.mxu0 0
        %3595 = vmatprep.subr.bf16.mxu0 0
        %3596 = vmatpush1.bf16.xpose.msra.mxu0 0
        %3597 = vmatprep.subr.bf16.mxu0 0
        %3598 = vmatpush1.bf16.xpose.msra.mxu0 0
        %3599 = vmatprep.subr.bf16.mxu0 0
        %3600 = vmatpush1.bf16.xpose.msra.mxu0 0
        %3601 = vmatprep.subr.bf16.mxu0 0
        %3602 = vmatpush1.bf16.xpose.msra.mxu0 0
        %3603 = vmatprep.subr.bf16.mxu0 0
        %3604 = vmatpush1.bf16.xpose.msra.mxu0 0
        %3605 = vmatprep.subr.bf16.mxu0 0
        %3606 = vmatpush1.bf16.xpose.msra.mxu0 0
        %3607 = vmatprep.subr.bf16.mxu0 0
        %3608 = vmatpush1.bf16.xpose.msra.mxu0 0
        %3609 = vmatprep.subr.bf16.mxu0 0
        %3610 = vmatpush1.bf16.xpose.msra.mxu0 0
        %3611 = vmatprep.mubr.bf16.mxu0 0
        %3612 = vmatmul.mubr.bf16.gmra.mrb[0].mxu0 %v3574
        %v3613 = vpop.f32.mrb[0].mxu0
        %v3614 = vadd.f32 0.0, %v3613
        %v3615 = vpop.f32.mrb[0].mxu0
        %v3616 = vpop.f32.mrb[0].mxu0
        %v3617 = vpop.f32.mrb[0].mxu0
        %3618 = vdwg.mxu0
        %3620 = vrot.lane.b32.xlu0 %v1241, 96
        %v3621 = vpop.permute.xlu0 %3620
        %3623 = vrot.lane.b32.xlu0 %v1257, 96
        %v3624 = vpop.permute.xlu0 %3623
        %v3626 = vsel %vm1276, %v3621, 0
        %v3629 = vsel %vm1276, %v3624, 0
        %3631 = vmatprep.subr.bf16.mxu0 0
        %3632 = vmatpush1.bf16.xpose.msra.mxu0 %v3629
        %3633 = vmatprep.subr.bf16.mxu0 0
        %3634 = vmatpush1.bf16.xpose.msra.mxu0 0
        %3635 = vmatprep.subr.bf16.mxu0 0
        %3636 = vmatpush1.bf16.xpose.msra.mxu0 0
        %3637 = vmatprep.subr.bf16.mxu0 0
        %3638 = vmatpush1.bf16.xpose.msra.mxu0 0
        %3639 = vmatprep.subr.bf16.mxu0 0
        %3640 = vmatpush1.bf16.xpose.msra.mxu0 0
        %3641 = vmatprep.subr.bf16.mxu0 0
        %3642 = vmatpush1.bf16.xpose.msra.mxu0 0
        %3643 = vmatprep.subr.bf16.mxu0 0
        %3644 = vmatpush1.bf16.xpose.msra.mxu0 0
        %3645 = vmatprep.subr.bf16.mxu0 0
        %3646 = vmatpush1.bf16.xpose.msra.mxu0 0
        %3647 = vmatprep.subr.bf16.mxu0 0
        %3648 = vmatpush1.bf16.xpose.msra.mxu0 0
        %3649 = vmatprep.subr.bf16.mxu0 0
        %3650 = vmatpush1.bf16.xpose.msra.mxu0 0
        %3651 = vmatprep.subr.bf16.mxu0 0
        %3652 = vmatpush1.bf16.xpose.msra.mxu0 0
        %3653 = vmatprep.subr.bf16.mxu0 0
        %3654 = vmatpush1.bf16.xpose.msra.mxu0 0
        %3655 = vmatprep.subr.bf16.mxu0 0
        %3656 = vmatpush1.bf16.xpose.msra.mxu0 0
        %3657 = vmatprep.subr.bf16.mxu0 0
        %3658 = vmatpush1.bf16.xpose.msra.mxu0 0
        %3659 = vmatprep.subr.bf16.mxu0 0
        %3660 = vmatpush1.bf16.xpose.msra.mxu0 0
        %3661 = vmatprep.subr.bf16.mxu0 0
        %3662 = vmatpush1.bf16.xpose.msra.mxu0 0
        %3663 = vmatprep.mubr.bf16.mxu0 0
        %3664 = vmatmul.mubr.bf16.gmra.mrb[0].mxu0 %v3626
        %v3665 = vpop.f32.mrb[0].mxu0
        %v3666 = vadd.f32 0.0, %v3665
        %v3667 = vpop.f32.mrb[0].mxu0
        %v3668 = vpop.f32.mrb[0].mxu0
        %v3669 = vpop.f32.mrb[0].mxu0
        %3670 = vdwg.mxu0
        %3672 = vrot.lane.b32.xlu0 %v1242, 96
        %v3673 = vpop.permute.xlu0 %3672
        %3675 = vrot.lane.b32.xlu0 %v1258, 96
        %v3676 = vpop.permute.xlu0 %3675
        %v3678 = vsel %vm1276, %v3673, 0
        %v3681 = vsel %vm1276, %v3676, 0
        %3683 = vmatprep.subr.bf16.mxu0 0
        %3684 = vmatpush1.bf16.xpose.msra.mxu0 %v3681
        %3685 = vmatprep.subr.bf16.mxu0 0
        %3686 = vmatpush1.bf16.xpose.msra.mxu0 0
        %3687 = vmatprep.subr.bf16.mxu0 0
        %3688 = vmatpush1.bf16.xpose.msra.mxu0 0
        %3689 = vmatprep.subr.bf16.mxu0 0
        %3690 = vmatpush1.bf16.xpose.msra.mxu0 0
        %3691 = vmatprep.subr.bf16.mxu0 0
        %3692 = vmatpush1.bf16.xpose.msra.mxu0 0
        %3693 = vmatprep.subr.bf16.mxu0 0
        %3694 = vmatpush1.bf16.xpose.msra.mxu0 0
        %3695 = vmatprep.subr.bf16.mxu0 0
        %3696 = vmatpush1.bf16.xpose.msra.mxu0 0
        %3697 = vmatprep.subr.bf16.mxu0 0
        %3698 = vmatpush1.bf16.xpose.msra.mxu0 0
        %3699 = vmatprep.subr.bf16.mxu0 0
        %3700 = vmatpush1.bf16.xpose.msra.mxu0 0
        %3701 = vmatprep.subr.bf16.mxu0 0
        %3702 = vmatpush1.bf16.xpose.msra.mxu0 0
        %3703 = vmatprep.subr.bf16.mxu0 0
        %3704 = vmatpush1.bf16.xpose.msra.mxu0 0
        %3705 = vmatprep.subr.bf16.mxu0 0
        %3706 = vmatpush1.bf16.xpose.msra.mxu0 0
        %3707 = vmatprep.subr.bf16.mxu0 0
        %3708 = vmatpush1.bf16.xpose.msra.mxu0 0
        %3709 = vmatprep.subr.bf16.mxu0 0
        %3710 = vmatpush1.bf16.xpose.msra.mxu0 0
        %3711 = vmatprep.subr.bf16.mxu0 0
        %3712 = vmatpush1.bf16.xpose.msra.mxu0 0
        %3713 = vmatprep.subr.bf16.mxu0 0
        %3714 = vmatpush1.bf16.xpose.msra.mxu0 0
        %3715 = vmatprep.mubr.bf16.mxu0 0
        %3716 = vmatmul.mubr.bf16.gmra.mrb[0].mxu0 %v3678
        %v3717 = vpop.f32.mrb[0].mxu0
        %v3718 = vadd.f32 0.0, %v3717
        %v3719 = vpop.f32.mrb[0].mxu0
        %v3720 = vpop.f32.mrb[0].mxu0
        %v3721 = vpop.f32.mrb[0].mxu0
        %3722 = vdwg.mxu0
        %3724 = vrot.lane.b32.xlu0 %v1243, 96
        %v3725 = vpop.permute.xlu0 %3724
        %3727 = vrot.lane.b32.xlu0 %v1259, 96
        %v3728 = vpop.permute.xlu0 %3727
        %v3730 = vsel %vm1276, %v3725, 0
        %v3733 = vsel %vm1276, %v3728, 0
        %3735 = vmatprep.subr.bf16.mxu0 0
        %3736 = vmatpush1.bf16.xpose.msra.mxu0 %v3733
        %3737 = vmatprep.subr.bf16.mxu0 0
        %3738 = vmatpush1.bf16.xpose.msra.mxu0 0
        %3739 = vmatprep.subr.bf16.mxu0 0
        %3740 = vmatpush1.bf16.xpose.msra.mxu0 0
        %3741 = vmatprep.subr.bf16.mxu0 0
        %3742 = vmatpush1.bf16.xpose.msra.mxu0 0
        %3743 = vmatprep.subr.bf16.mxu0 0
        %3744 = vmatpush1.bf16.xpose.msra.mxu0 0
        %3745 = vmatprep.subr.bf16.mxu0 0
        %3746 = vmatpush1.bf16.xpose.msra.mxu0 0
        %3747 = vmatprep.subr.bf16.mxu0 0
        %3748 = vmatpush1.bf16.xpose.msra.mxu0 0
        %3749 = vmatprep.subr.bf16.mxu0 0
        %3750 = vmatpush1.bf16.xpose.msra.mxu0 0
        %3751 = vmatprep.subr.bf16.mxu0 0
        %3752 = vmatpush1.bf16.xpose.msra.mxu0 0
        %3753 = vmatprep.subr.bf16.mxu0 0
        %3754 = vmatpush1.bf16.xpose.msra.mxu0 0
        %3755 = vmatprep.subr.bf16.mxu0 0
        %3756 = vmatpush1.bf16.xpose.msra.mxu0 0
        %3757 = vmatprep.subr.bf16.mxu0 0
        %3758 = vmatpush1.bf16.xpose.msra.mxu0 0
        %3759 = vmatprep.subr.bf16.mxu0 0
        %3760 = vmatpush1.bf16.xpose.msra.mxu0 0
        %3761 = vmatprep.subr.bf16.mxu0 0
        %3762 = vmatpush1.bf16.xpose.msra.mxu0 0
        %3763 = vmatprep.subr.bf16.mxu0 0
        %3764 = vmatpush1.bf16.xpose.msra.mxu0 0
        %3765 = vmatprep.subr.bf16.mxu0 0
        %3766 = vmatpush1.bf16.xpose.msra.mxu0 0
        %3767 = vmatprep.mubr.bf16.mxu0 0
        %3768 = vmatmul.mubr.bf16.gmra.mrb[0].mxu0 %v3730
        %v3769 = vpop.f32.mrb[0].mxu0
        %v3770 = vadd.f32 0.0, %v3769
        %v3771 = vpop.f32.mrb[0].mxu0
        %v3772 = vpop.f32.mrb[0].mxu0
        %v3773 = vpop.f32.mrb[0].mxu0
        %3774 = vdwg.mxu0
        %v3775 = vsel %vm2013, %v2990, -inf
        %3776 = vmax.xlane.f32.xlu0 %v3775
        %v3777 = vpop.xlane.xlu0 %3776
        %v3778 = vsel %vm2013, %v3042, -inf
        %3779 = vmax.xlane.f32.xlu0 %v3778
        %v3780 = vpop.xlane.xlu0 %3779
        %v3781 = vsel %vm2013, %v3094, -inf
        %3782 = vmax.xlane.f32.xlu0 %v3781
        %v3783 = vpop.xlane.xlu0 %3782
        %v3784 = vsel %vm2013, %v3146, -inf
        %3785 = vmax.xlane.f32.xlu0 %v3784
        %v3786 = vpop.xlane.xlu0 %3785
        %v3787 = vsel %vm2013, %v3198, -inf
        %3788 = vmax.xlane.f32.xlu0 %v3787
        %v3789 = vpop.xlane.xlu0 %3788
        %v3790 = vsel %vm2013, %v3250, -inf
        %3791 = vmax.xlane.f32.xlu0 %v3790
        %v3792 = vpop.xlane.xlu0 %3791
        %v3793 = vsel %vm2013, %v3302, -inf
        %3794 = vmax.xlane.f32.xlu0 %v3793
        %v3795 = vpop.xlane.xlu0 %3794
        %v3796 = vsel %vm2013, %v3354, -inf
        %3797 = vmax.xlane.f32.xlu0 %v3796
        %v3798 = vpop.xlane.xlu0 %3797
        %v3799 = vsel %vm2013, %v3406, -inf
        %3800 = vmax.xlane.f32.xlu0 %v3799
        %v3801 = vpop.xlane.xlu0 %3800
        %v3802 = vsel %vm2013, %v3458, -inf
        %3803 = vmax.xlane.f32.xlu0 %v3802
        %v3804 = vpop.xlane.xlu0 %3803
        %v3805 = vsel %vm2013, %v3510, -inf
        %3806 = vmax.xlane.f32.xlu0 %v3805
        %v3807 = vpop.xlane.xlu0 %3806
        %v3808 = vsel %vm2013, %v3562, -inf
        %3809 = vmax.xlane.f32.xlu0 %v3808
        %v3810 = vpop.xlane.xlu0 %3809
        %v3811 = vsel %vm2013, %v3614, -inf
        %3812 = vmax.xlane.f32.xlu0 %v3811
        %v3813 = vpop.xlane.xlu0 %3812
        %v3814 = vsel %vm2013, %v3666, -inf
        %3815 = vmax.xlane.f32.xlu0 %v3814
        %v3816 = vpop.xlane.xlu0 %3815
        %v3817 = vsel %vm2013, %v3718, -inf
        %3818 = vmax.xlane.f32.xlu0 %v3817
        %v3819 = vpop.xlane.xlu0 %3818
        %v3820 = vsel %vm2013, %v3770, -inf
        %3821 = vmax.xlane.f32.xlu0 %v3820
        %v3822 = vpop.xlane.xlu0 %3821
        %v3823 = vsub.f32 %v2990, %v3777
        %v3824 = vsub.f32 %v3042, %v3780
        %v3825 = vsub.f32 %v3094, %v3783
        %v3826 = vsub.f32 %v3146, %v3786
        %v3827 = vsub.f32 %v3198, %v3789
        %v3828 = vsub.f32 %v3250, %v3792
        %v3829 = vsub.f32 %v3302, %v3795
        %v3830 = vsub.f32 %v3354, %v3798
        %v3831 = vsub.f32 %v3406, %v3801
        %v3832 = vsub.f32 %v3458, %v3804
        %v3833 = vsub.f32 %v3510, %v3807
        %v3834 = vsub.f32 %v3562, %v3810
        %v3835 = vsub.f32 %v3614, %v3813
        %v3836 = vsub.f32 %v3666, %v3816
        %v3837 = vsub.f32 %v3718, %v3819
        %v3838 = vsub.f32 %v3770, %v3822
        %v3839 = vmul.f32 %v3823, 1.442695
        %v3840 = vpow.pop %v3839
        %v3841 = vmul.f32 %v3824, 1.442695
        %v3842 = vpow.pop %v3841
        %v3843 = vmul.f32 %v3825, 1.442695
        %v3844 = vpow.pop %v3843
        %v3845 = vmul.f32 %v3826, 1.442695
        %v3846 = vpow.pop %v3845
        %v3847 = vmul.f32 %v3827, 1.442695
        %v3848 = vpow.pop %v3847
        %v3849 = vmul.f32 %v3828, 1.442695
        %v3850 = vpow.pop %v3849
        %v3851 = vmul.f32 %v3829, 1.442695
        %v3852 = vpow.pop %v3851
        %v3853 = vmul.f32 %v3830, 1.442695
        %v3854 = vpow.pop %v3853
        %v3855 = vmul.f32 %v3831, 1.442695
        %v3856 = vpow.pop %v3855
        %v3857 = vmul.f32 %v3832, 1.442695
        %v3858 = vpow.pop %v3857
        %v3859 = vmul.f32 %v3833, 1.442695
        %v3860 = vpow.pop %v3859
        %v3861 = vmul.f32 %v3834, 1.442695
        %v3862 = vpow.pop %v3861
        %v3863 = vmul.f32 %v3835, 1.442695
        %v3864 = vpow.pop %v3863
        %v3865 = vmul.f32 %v3836, 1.442695
        %v3866 = vpow.pop %v3865
        %v3867 = vmul.f32 %v3837, 1.442695
        %v3868 = vpow.pop %v3867
        %v3869 = vmul.f32 %v3838, 1.442695
        %v3870 = vpow.pop %v3869
        %v3871 = vsel %vm2013, %v3840, 0.0
        %3872 = vadd.xlane.f32.xlu0 %v3871
        %v3873 = vpop.xlane.xlu0 %3872
        %v3874 = vsel %vm2013, %v3842, 0.0
        %3875 = vadd.xlane.f32.xlu0 %v3874
        %v3876 = vpop.xlane.xlu0 %3875
        %v3877 = vsel %vm2013, %v3844, 0.0
        %3878 = vadd.xlane.f32.xlu0 %v3877
        %v3879 = vpop.xlane.xlu0 %3878
        %v3880 = vsel %vm2013, %v3846, 0.0
        %3881 = vadd.xlane.f32.xlu0 %v3880
        %v3882 = vpop.xlane.xlu0 %3881
        %v3883 = vsel %vm2013, %v3848, 0.0
        %3884 = vadd.xlane.f32.xlu0 %v3883
        %v3885 = vpop.xlane.xlu0 %3884
        %v3886 = vsel %vm2013, %v3850, 0.0
        %3887 = vadd.xlane.f32.xlu0 %v3886
        %v3888 = vpop.xlane.xlu0 %3887
        %v3889 = vsel %vm2013, %v3852, 0.0
        %3890 = vadd.xlane.f32.xlu0 %v3889
        %v3891 = vpop.xlane.xlu0 %3890
        %v3892 = vsel %vm2013, %v3854, 0.0
        %3893 = vadd.xlane.f32.xlu0 %v3892
        %v3894 = vpop.xlane.xlu0 %3893
        %v3895 = vsel %vm2013, %v3856, 0.0
        %3896 = vadd.xlane.f32.xlu0 %v3895
        %v3897 = vpop.xlane.xlu0 %3896
        %v3898 = vsel %vm2013, %v3858, 0.0
        %3899 = vadd.xlane.f32.xlu0 %v3898
        %v3900 = vpop.xlane.xlu0 %3899
        %v3901 = vsel %vm2013, %v3860, 0.0
        %3902 = vadd.xlane.f32.xlu0 %v3901
        %v3903 = vpop.xlane.xlu0 %3902
        %v3904 = vsel %vm2013, %v3862, 0.0
        %3905 = vadd.xlane.f32.xlu0 %v3904
        %v3906 = vpop.xlane.xlu0 %3905
        %v3907 = vsel %vm2013, %v3864, 0.0
        %3908 = vadd.xlane.f32.xlu0 %v3907
        %v3909 = vpop.xlane.xlu0 %3908
        %v3910 = vsel %vm2013, %v3866, 0.0
        %3911 = vadd.xlane.f32.xlu0 %v3910
        %v3912 = vpop.xlane.xlu0 %3911
        %v3913 = vsel %vm2013, %v3868, 0.0
        %3914 = vadd.xlane.f32.xlu0 %v3913
        %v3915 = vpop.xlane.xlu0 %3914
        %v3916 = vsel %vm2013, %v3870, 0.0
        %3917 = vadd.xlane.f32.xlu0 %v3916
        %v3918 = vpop.xlane.xlu0 %3917
        %v3919 = vrcp.pop %v3873
        %v3920 = vrcp.pop %v3876
        %v3921 = vrcp.pop %v3879
        %v3922 = vrcp.pop %v3882
        %v3923 = vrcp.pop %v3885
        %v3924 = vrcp.pop %v3888
        %v3925 = vrcp.pop %v3891
        %v3926 = vrcp.pop %v3894
        %v3927 = vrcp.pop %v3897
        %v3928 = vrcp.pop %v3900
        %v3929 = vrcp.pop %v3903
        %v3930 = vrcp.pop %v3906
        %v3931 = vrcp.pop %v3909
        %v3932 = vrcp.pop %v3912
        %v3933 = vrcp.pop %v3915
        %v3934 = vrcp.pop %v3918
        %v3935 = vmul.f32 %v3840, %v3919
        %v3936 = vmul.f32 %v3842, %v3920
        %v3937 = vmul.f32 %v3844, %v3921
        %v3938 = vmul.f32 %v3846, %v3922
        %v3939 = vmul.f32 %v3848, %v3923
        %v3940 = vmul.f32 %v3850, %v3924
        %v3941 = vmul.f32 %v3852, %v3925
        %v3942 = vmul.f32 %v3854, %v3926
        %v3943 = vmul.f32 %v3856, %v3927
        %v3944 = vmul.f32 %v3858, %v3928
        %v3945 = vmul.f32 %v3860, %v3929
        %v3946 = vmul.f32 %v3862, %v3930
        %v3947 = vmul.f32 %v3864, %v3931
        %v3948 = vmul.f32 %v3866, %v3932
        %v3949 = vmul.f32 %v3868, %v3933
        %v3950 = vmul.f32 %v3870, %v3934
        %v3951 = vpack.c.bf16 %v3935, %v3935
        %v3952 = vpack.c.bf16 %v3936, %v3936
        %v3953 = vpack.c.bf16 %v3937, %v3937
        %v3954 = vpack.c.bf16 %v3938, %v3938
        %v3955 = vpack.c.bf16 %v3939, %v3939
        %v3956 = vpack.c.bf16 %v3940, %v3940
        %v3957 = vpack.c.bf16 %v3941, %v3941
        %v3958 = vpack.c.bf16 %v3942, %v3942
        %v3959 = vpack.c.bf16 %v3943, %v3943
        %v3960 = vpack.c.bf16 %v3944, %v3944
        %v3961 = vpack.c.bf16 %v3945, %v3945
        %v3962 = vpack.c.bf16 %v3946, %v3946
        %v3963 = vpack.c.bf16 %v3947, %v3947
        %v3964 = vpack.c.bf16 %v3948, %v3948
        %v3965 = vpack.c.bf16 %v3949, %v3949
        %v3966 = vpack.c.bf16 %v3950, %v3950
        %3968 = vrot.lane.b32.xlu0 %v1260, 96
        %v3969 = vpop.permute.xlu0 %3968
        %v3971 = vsel %vm2013, %v3951, 0
        %v3974 = vsel %vm2209, %v3969, 0
        %3976 = vmatprep.subr.bf16.mxu0 0
        %3977 = vmatpush1.bf16.msra.mxu0 %v3974
        %3978 = vmatprep.subr.bf16.mxu0 0
        %3979 = vmatpush1.bf16.msra.mxu0 0
        %3980 = vmatprep.subr.bf16.mxu0 0
        %3981 = vmatpush1.bf16.msra.mxu0 0
        %3982 = vmatprep.subr.bf16.mxu0 0
        %3983 = vmatpush1.bf16.msra.mxu0 0
        %3984 = vmatprep.subr.bf16.mxu0 0
        %3985 = vmatpush1.bf16.msra.mxu0 0
        %3986 = vmatprep.subr.bf16.mxu0 0
        %3987 = vmatpush1.bf16.msra.mxu0 0
        %3988 = vmatprep.subr.bf16.mxu0 0
        %3989 = vmatpush1.bf16.msra.mxu0 0
        %3990 = vmatprep.subr.bf16.mxu0 0
        %3991 = vmatpush1.bf16.msra.mxu0 0
        %3992 = vmatprep.subr.bf16.mxu0 0
        %3993 = vmatpush1.bf16.msra.mxu0 0
        %3994 = vmatprep.subr.bf16.mxu0 0
        %3995 = vmatpush1.bf16.msra.mxu0 0
        %3996 = vmatprep.subr.bf16.mxu0 0
        %3997 = vmatpush1.bf16.msra.mxu0 0
        %3998 = vmatprep.subr.bf16.mxu0 0
        %3999 = vmatpush1.bf16.msra.mxu0 0
        %4000 = vmatprep.subr.bf16.mxu0 0
        %4001 = vmatpush1.bf16.msra.mxu0 0
        %4002 = vmatprep.subr.bf16.mxu0 0
        %4003 = vmatpush1.bf16.msra.mxu0 0
        %4004 = vmatprep.subr.bf16.mxu0 0
        %4005 = vmatpush1.bf16.msra.mxu0 0
        %4006 = vmatprep.subr.bf16.mxu0 0
        %4007 = vmatpush1.bf16.msra.mxu0 0
        %4008 = vmatprep.mubr.bf16.mxu0 0
        %4009 = vmatmul.mubr.bf16.gmra.mrb[0].mxu0 %v3971
        %v4010 = vpop.f32.mrb[0].mxu0
        %v4011 = vadd.f32 0.0, %v4010
        %v4012 = vpop.f32.mrb[0].mxu0
        %v4013 = vpop.f32.mrb[0].mxu0
        %v4014 = vpop.f32.mrb[0].mxu0
        %4015 = vdwg.mxu0
        %4017 = vrot.lane.b32.xlu0 %v1261, 96
        %v4018 = vpop.permute.xlu0 %4017
        %v4020 = vsel %vm2013, %v3952, 0
        %v4023 = vsel %vm2209, %v4018, 0
        %4025 = vmatprep.subr.bf16.mxu0 0
        %4026 = vmatpush1.bf16.msra.mxu0 %v4023
        %4027 = vmatprep.subr.bf16.mxu0 0
        %4028 = vmatpush1.bf16.msra.mxu0 0
        %4029 = vmatprep.subr.bf16.mxu0 0
        %4030 = vmatpush1.bf16.msra.mxu0 0
        %4031 = vmatprep.subr.bf16.mxu0 0
        %4032 = vmatpush1.bf16.msra.mxu0 0
        %4033 = vmatprep.subr.bf16.mxu0 0
        %4034 = vmatpush1.bf16.msra.mxu0 0
        %4035 = vmatprep.subr.bf16.mxu0 0
        %4036 = vmatpush1.bf16.msra.mxu0 0
        %4037 = vmatprep.subr.bf16.mxu0 0
        %4038 = vmatpush1.bf16.msra.mxu0 0
        %4039 = vmatprep.subr.bf16.mxu0 0
        %4040 = vmatpush1.bf16.msra.mxu0 0
        %4041 = vmatprep.subr.bf16.mxu0 0
        %4042 = vmatpush1.bf16.msra.mxu0 0
        %4043 = vmatprep.subr.bf16.mxu0 0
        %4044 = vmatpush1.bf16.msra.mxu0 0
        %4045 = vmatprep.subr.bf16.mxu0 0
        %4046 = vmatpush1.bf16.msra.mxu0 0
        %4047 = vmatprep.subr.bf16.mxu0 0
        %4048 = vmatpush1.bf16.msra.mxu0 0
        %4049 = vmatprep.subr.bf16.mxu0 0
        %4050 = vmatpush1.bf16.msra.mxu0 0
        %4051 = vmatprep.subr.bf16.mxu0 0
        %4052 = vmatpush1.bf16.msra.mxu0 0
        %4053 = vmatprep.subr.bf16.mxu0 0
        %4054 = vmatpush1.bf16.msra.mxu0 0
        %4055 = vmatprep.subr.bf16.mxu0 0
        %4056 = vmatpush1.bf16.msra.mxu0 0
        %4057 = vmatprep.mubr.bf16.mxu0 0
        %4058 = vmatmul.mubr.bf16.gmra.mrb[0].mxu0 %v4020
        %v4059 = vpop.f32.mrb[0].mxu0
        %v4060 = vadd.f32 0.0, %v4059
        %v4061 = vpop.f32.mrb[0].mxu0
        %v4062 = vpop.f32.mrb[0].mxu0
        %v4063 = vpop.f32.mrb[0].mxu0
        %4064 = vdwg.mxu0
        %4066 = vrot.lane.b32.xlu0 %v1262, 96
        %v4067 = vpop.permute.xlu0 %4066
        %v4069 = vsel %vm2013, %v3953, 0
        %v4072 = vsel %vm2209, %v4067, 0
        %4074 = vmatprep.subr.bf16.mxu0 0
        %4075 = vmatpush1.bf16.msra.mxu0 %v4072
        %4076 = vmatprep.subr.bf16.mxu0 0
        %4077 = vmatpush1.bf16.msra.mxu0 0
        %4078 = vmatprep.subr.bf16.mxu0 0
        %4079 = vmatpush1.bf16.msra.mxu0 0
        %4080 = vmatprep.subr.bf16.mxu0 0
        %4081 = vmatpush1.bf16.msra.mxu0 0
        %4082 = vmatprep.subr.bf16.mxu0 0
        %4083 = vmatpush1.bf16.msra.mxu0 0
        %4084 = vmatprep.subr.bf16.mxu0 0
        %4085 = vmatpush1.bf16.msra.mxu0 0
        %4086 = vmatprep.subr.bf16.mxu0 0
        %4087 = vmatpush1.bf16.msra.mxu0 0
        %4088 = vmatprep.subr.bf16.mxu0 0
        %4089 = vmatpush1.bf16.msra.mxu0 0
        %4090 = vmatprep.subr.bf16.mxu0 0
        %4091 = vmatpush1.bf16.msra.mxu0 0
        %4092 = vmatprep.subr.bf16.mxu0 0
        %4093 = vmatpush1.bf16.msra.mxu0 0
        %4094 = vmatprep.subr.bf16.mxu0 0
        %4095 = vmatpush1.bf16.msra.mxu0 0
        %4096 = vmatprep.subr.bf16.mxu0 0
        %4097 = vmatpush1.bf16.msra.mxu0 0
        %4098 = vmatprep.subr.bf16.mxu0 0
        %4099 = vmatpush1.bf16.msra.mxu0 0
        %4100 = vmatprep.subr.bf16.mxu0 0
        %4101 = vmatpush1.bf16.msra.mxu0 0
        %4102 = vmatprep.subr.bf16.mxu0 0
        %4103 = vmatpush1.bf16.msra.mxu0 0
        %4104 = vmatprep.subr.bf16.mxu0 0
        %4105 = vmatpush1.bf16.msra.mxu0 0
        %4106 = vmatprep.mubr.bf16.mxu0 0
        %4107 = vmatmul.mubr.bf16.gmra.mrb[0].mxu0 %v4069
        %v4108 = vpop.f32.mrb[0].mxu0
        %v4109 = vadd.f32 0.0, %v4108
        %v4110 = vpop.f32.mrb[0].mxu0
        %v4111 = vpop.f32.mrb[0].mxu0
        %v4112 = vpop.f32.mrb[0].mxu0
        %4113 = vdwg.mxu0
        %4115 = vrot.lane.b32.xlu0 %v1263, 96
        %v4116 = vpop.permute.xlu0 %4115
        %v4118 = vsel %vm2013, %v3954, 0
        %v4121 = vsel %vm2209, %v4116, 0
        %4123 = vmatprep.subr.bf16.mxu0 0
        %4124 = vmatpush1.bf16.msra.mxu0 %v4121
        %4125 = vmatprep.subr.bf16.mxu0 0
        %4126 = vmatpush1.bf16.msra.mxu0 0
        %4127 = vmatprep.subr.bf16.mxu0 0
        %4128 = vmatpush1.bf16.msra.mxu0 0
        %4129 = vmatprep.subr.bf16.mxu0 0
        %4130 = vmatpush1.bf16.msra.mxu0 0
        %4131 = vmatprep.subr.bf16.mxu0 0
        %4132 = vmatpush1.bf16.msra.mxu0 0
        %4133 = vmatprep.subr.bf16.mxu0 0
        %4134 = vmatpush1.bf16.msra.mxu0 0
        %4135 = vmatprep.subr.bf16.mxu0 0
        %4136 = vmatpush1.bf16.msra.mxu0 0
        %4137 = vmatprep.subr.bf16.mxu0 0
        %4138 = vmatpush1.bf16.msra.mxu0 0
        %4139 = vmatprep.subr.bf16.mxu0 0
        %4140 = vmatpush1.bf16.msra.mxu0 0
        %4141 = vmatprep.subr.bf16.mxu0 0
        %4142 = vmatpush1.bf16.msra.mxu0 0
        %4143 = vmatprep.subr.bf16.mxu0 0
        %4144 = vmatpush1.bf16.msra.mxu0 0
        %4145 = vmatprep.subr.bf16.mxu0 0
        %4146 = vmatpush1.bf16.msra.mxu0 0
        %4147 = vmatprep.subr.bf16.mxu0 0
        %4148 = vmatpush1.bf16.msra.mxu0 0
        %4149 = vmatprep.subr.bf16.mxu0 0
        %4150 = vmatpush1.bf16.msra.mxu0 0
        %4151 = vmatprep.subr.bf16.mxu0 0
        %4152 = vmatpush1.bf16.msra.mxu0 0
        %4153 = vmatprep.subr.bf16.mxu0 0
        %4154 = vmatpush1.bf16.msra.mxu0 0
        %4155 = vmatprep.mubr.bf16.mxu0 0
        %4156 = vmatmul.mubr.bf16.gmra.mrb[0].mxu0 %v4118
        %v4157 = vpop.f32.mrb[0].mxu0
        %v4158 = vadd.f32 0.0, %v4157
        %v4159 = vpop.f32.mrb[0].mxu0
        %v4160 = vpop.f32.mrb[0].mxu0
        %v4161 = vpop.f32.mrb[0].mxu0
        %4162 = vdwg.mxu0
        %4164 = vrot.lane.b32.xlu0 %v1264, 96
        %v4165 = vpop.permute.xlu0 %4164
        %v4167 = vsel %vm2013, %v3955, 0
        %v4170 = vsel %vm2209, %v4165, 0
        %4172 = vmatprep.subr.bf16.mxu0 0
        %4173 = vmatpush1.bf16.msra.mxu0 %v4170
        %4174 = vmatprep.subr.bf16.mxu0 0
        %4175 = vmatpush1.bf16.msra.mxu0 0
        %4176 = vmatprep.subr.bf16.mxu0 0
        %4177 = vmatpush1.bf16.msra.mxu0 0
        %4178 = vmatprep.subr.bf16.mxu0 0
        %4179 = vmatpush1.bf16.msra.mxu0 0
        %4180 = vmatprep.subr.bf16.mxu0 0
        %4181 = vmatpush1.bf16.msra.mxu0 0
        %4182 = vmatprep.subr.bf16.mxu0 0
        %4183 = vmatpush1.bf16.msra.mxu0 0
        %4184 = vmatprep.subr.bf16.mxu0 0
        %4185 = vmatpush1.bf16.msra.mxu0 0
        %4186 = vmatprep.subr.bf16.mxu0 0
        %4187 = vmatpush1.bf16.msra.mxu0 0
        %4188 = vmatprep.subr.bf16.mxu0 0
        %4189 = vmatpush1.bf16.msra.mxu0 0
        %4190 = vmatprep.subr.bf16.mxu0 0
        %4191 = vmatpush1.bf16.msra.mxu0 0
        %4192 = vmatprep.subr.bf16.mxu0 0
        %4193 = vmatpush1.bf16.msra.mxu0 0
        %4194 = vmatprep.subr.bf16.mxu0 0
        %4195 = vmatpush1.bf16.msra.mxu0 0
        %4196 = vmatprep.subr.bf16.mxu0 0
        %4197 = vmatpush1.bf16.msra.mxu0 0
        %4198 = vmatprep.subr.bf16.mxu0 0
        %4199 = vmatpush1.bf16.msra.mxu0 0
        %4200 = vmatprep.subr.bf16.mxu0 0
        %4201 = vmatpush1.bf16.msra.mxu0 0
        %4202 = vmatprep.subr.bf16.mxu0 0
        %4203 = vmatpush1.bf16.msra.mxu0 0
        %4204 = vmatprep.mubr.bf16.mxu0 0
        %4205 = vmatmul.mubr.bf16.gmra.mrb[0].mxu0 %v4167
        %v4206 = vpop.f32.mrb[0].mxu0
        %v4207 = vadd.f32 0.0, %v4206
        %v4208 = vpop.f32.mrb[0].mxu0
        %v4209 = vpop.f32.mrb[0].mxu0
        %v4210 = vpop.f32.mrb[0].mxu0
        %4211 = vdwg.mxu0
        %4213 = vrot.lane.b32.xlu0 %v1265, 96
        %v4214 = vpop.permute.xlu0 %4213
        %v4216 = vsel %vm2013, %v3956, 0
        %v4219 = vsel %vm2209, %v4214, 0
        %4221 = vmatprep.subr.bf16.mxu0 0
        %4222 = vmatpush1.bf16.msra.mxu0 %v4219
        %4223 = vmatprep.subr.bf16.mxu0 0
        %4224 = vmatpush1.bf16.msra.mxu0 0
        %4225 = vmatprep.subr.bf16.mxu0 0
        %4226 = vmatpush1.bf16.msra.mxu0 0
        %4227 = vmatprep.subr.bf16.mxu0 0
        %4228 = vmatpush1.bf16.msra.mxu0 0
        %4229 = vmatprep.subr.bf16.mxu0 0
        %4230 = vmatpush1.bf16.msra.mxu0 0
        %4231 = vmatprep.subr.bf16.mxu0 0
        %4232 = vmatpush1.bf16.msra.mxu0 0
        %4233 = vmatprep.subr.bf16.mxu0 0
        %4234 = vmatpush1.bf16.msra.mxu0 0
        %4235 = vmatprep.subr.bf16.mxu0 0
        %4236 = vmatpush1.bf16.msra.mxu0 0
        %4237 = vmatprep.subr.bf16.mxu0 0
        %4238 = vmatpush1.bf16.msra.mxu0 0
        %4239 = vmatprep.subr.bf16.mxu0 0
        %4240 = vmatpush1.bf16.msra.mxu0 0
        %4241 = vmatprep.subr.bf16.mxu0 0
        %4242 = vmatpush1.bf16.msra.mxu0 0
        %4243 = vmatprep.subr.bf16.mxu0 0
        %4244 = vmatpush1.bf16.msra.mxu0 0
        %4245 = vmatprep.subr.bf16.mxu0 0
        %4246 = vmatpush1.bf16.msra.mxu0 0
        %4247 = vmatprep.subr.bf16.mxu0 0
        %4248 = vmatpush1.bf16.msra.mxu0 0
        %4249 = vmatprep.subr.bf16.mxu0 0
        %4250 = vmatpush1.bf16.msra.mxu0 0
        %4251 = vmatprep.subr.bf16.mxu0 0
        %4252 = vmatpush1.bf16.msra.mxu0 0
        %4253 = vmatprep.mubr.bf16.mxu0 0
        %4254 = vmatmul.mubr.bf16.gmra.mrb[0].mxu0 %v4216
        %v4255 = vpop.f32.mrb[0].mxu0
        %v4256 = vadd.f32 0.0, %v4255
        %v4257 = vpop.f32.mrb[0].mxu0
        %v4258 = vpop.f32.mrb[0].mxu0
        %v4259 = vpop.f32.mrb[0].mxu0
        %4260 = vdwg.mxu0
        %4262 = vrot.lane.b32.xlu0 %v1266, 96
        %v4263 = vpop.permute.xlu0 %4262
        %v4265 = vsel %vm2013, %v3957, 0
        %v4268 = vsel %vm2209, %v4263, 0
        %4270 = vmatprep.subr.bf16.mxu0 0
        %4271 = vmatpush1.bf16.msra.mxu0 %v4268
        %4272 = vmatprep.subr.bf16.mxu0 0
        %4273 = vmatpush1.bf16.msra.mxu0 0
        %4274 = vmatprep.subr.bf16.mxu0 0
        %4275 = vmatpush1.bf16.msra.mxu0 0
        %4276 = vmatprep.subr.bf16.mxu0 0
        %4277 = vmatpush1.bf16.msra.mxu0 0
        %4278 = vmatprep.subr.bf16.mxu0 0
        %4279 = vmatpush1.bf16.msra.mxu0 0
        %4280 = vmatprep.subr.bf16.mxu0 0
        %4281 = vmatpush1.bf16.msra.mxu0 0
        %4282 = vmatprep.subr.bf16.mxu0 0
        %4283 = vmatpush1.bf16.msra.mxu0 0
        %4284 = vmatprep.subr.bf16.mxu0 0
        %4285 = vmatpush1.bf16.msra.mxu0 0
        %4286 = vmatprep.subr.bf16.mxu0 0
        %4287 = vmatpush1.bf16.msra.mxu0 0
        %4288 = vmatprep.subr.bf16.mxu0 0
        %4289 = vmatpush1.bf16.msra.mxu0 0
        %4290 = vmatprep.subr.bf16.mxu0 0
        %4291 = vmatpush1.bf16.msra.mxu0 0
        %4292 = vmatprep.subr.bf16.mxu0 0
        %4293 = vmatpush1.bf16.msra.mxu0 0
        %4294 = vmatprep.subr.bf16.mxu0 0
        %4295 = vmatpush1.bf16.msra.mxu0 0
        %4296 = vmatprep.subr.bf16.mxu0 0
        %4297 = vmatpush1.bf16.msra.mxu0 0
        %4298 = vmatprep.subr.bf16.mxu0 0
        %4299 = vmatpush1.bf16.msra.mxu0 0
        %4300 = vmatprep.subr.bf16.mxu0 0
        %4301 = vmatpush1.bf16.msra.mxu0 0
        %4302 = vmatprep.mubr.bf16.mxu0 0
        %4303 = vmatmul.mubr.bf16.gmra.mrb[0].mxu0 %v4265
        %v4304 = vpop.f32.mrb[0].mxu0
        %v4305 = vadd.f32 0.0, %v4304
        %v4306 = vpop.f32.mrb[0].mxu0
        %v4307 = vpop.f32.mrb[0].mxu0
        %v4308 = vpop.f32.mrb[0].mxu0
        %4309 = vdwg.mxu0
        %4311 = vrot.lane.b32.xlu0 %v1267, 96
        %v4312 = vpop.permute.xlu0 %4311
        %v4314 = vsel %vm2013, %v3958, 0
        %v4317 = vsel %vm2209, %v4312, 0
        %4319 = vmatprep.subr.bf16.mxu0 0
        %4320 = vmatpush1.bf16.msra.mxu0 %v4317
        %4321 = vmatprep.subr.bf16.mxu0 0
        %4322 = vmatpush1.bf16.msra.mxu0 0
        %4323 = vmatprep.subr.bf16.mxu0 0
        %4324 = vmatpush1.bf16.msra.mxu0 0
        %4325 = vmatprep.subr.bf16.mxu0 0
        %4326 = vmatpush1.bf16.msra.mxu0 0
        %4327 = vmatprep.subr.bf16.mxu0 0
        %4328 = vmatpush1.bf16.msra.mxu0 0
        %4329 = vmatprep.subr.bf16.mxu0 0
        %4330 = vmatpush1.bf16.msra.mxu0 0
        %4331 = vmatprep.subr.bf16.mxu0 0
        %4332 = vmatpush1.bf16.msra.mxu0 0
        %4333 = vmatprep.subr.bf16.mxu0 0
        %4334 = vmatpush1.bf16.msra.mxu0 0
        %4335 = vmatprep.subr.bf16.mxu0 0
        %4336 = vmatpush1.bf16.msra.mxu0 0
        %4337 = vmatprep.subr.bf16.mxu0 0
        %4338 = vmatpush1.bf16.msra.mxu0 0
        %4339 = vmatprep.subr.bf16.mxu0 0
        %4340 = vmatpush1.bf16.msra.mxu0 0
        %4341 = vmatprep.subr.bf16.mxu0 0
        %4342 = vmatpush1.bf16.msra.mxu0 0
        %4343 = vmatprep.subr.bf16.mxu0 0
        %4344 = vmatpush1.bf16.msra.mxu0 0
        %4345 = vmatprep.subr.bf16.mxu0 0
        %4346 = vmatpush1.bf16.msra.mxu0 0
        %4347 = vmatprep.subr.bf16.mxu0 0
        %4348 = vmatpush1.bf16.msra.mxu0 0
        %4349 = vmatprep.subr.bf16.mxu0 0
        %4350 = vmatpush1.bf16.msra.mxu0 0
        %4351 = vmatprep.mubr.bf16.mxu0 0
        %4352 = vmatmul.mubr.bf16.gmra.mrb[0].mxu0 %v4314
        %v4353 = vpop.f32.mrb[0].mxu0
        %v4354 = vadd.f32 0.0, %v4353
        %v4355 = vpop.f32.mrb[0].mxu0
        %v4356 = vpop.f32.mrb[0].mxu0
        %v4357 = vpop.f32.mrb[0].mxu0
        %4358 = vdwg.mxu0
        %4360 = vrot.lane.b32.xlu0 %v1268, 96
        %v4361 = vpop.permute.xlu0 %4360
        %v4363 = vsel %vm2013, %v3959, 0
        %v4366 = vsel %vm2209, %v4361, 0
        %4368 = vmatprep.subr.bf16.mxu0 0
        %4369 = vmatpush1.bf16.msra.mxu0 %v4366
        %4370 = vmatprep.subr.bf16.mxu0 0
        %4371 = vmatpush1.bf16.msra.mxu0 0
        %4372 = vmatprep.subr.bf16.mxu0 0
        %4373 = vmatpush1.bf16.msra.mxu0 0
        %4374 = vmatprep.subr.bf16.mxu0 0
        %4375 = vmatpush1.bf16.msra.mxu0 0
        %4376 = vmatprep.subr.bf16.mxu0 0
        %4377 = vmatpush1.bf16.msra.mxu0 0
        %4378 = vmatprep.subr.bf16.mxu0 0
        %4379 = vmatpush1.bf16.msra.mxu0 0
        %4380 = vmatprep.subr.bf16.mxu0 0
        %4381 = vmatpush1.bf16.msra.mxu0 0
        %4382 = vmatprep.subr.bf16.mxu0 0
        %4383 = vmatpush1.bf16.msra.mxu0 0
        %4384 = vmatprep.subr.bf16.mxu0 0
        %4385 = vmatpush1.bf16.msra.mxu0 0
        %4386 = vmatprep.subr.bf16.mxu0 0
        %4387 = vmatpush1.bf16.msra.mxu0 0
        %4388 = vmatprep.subr.bf16.mxu0 0
        %4389 = vmatpush1.bf16.msra.mxu0 0
        %4390 = vmatprep.subr.bf16.mxu0 0
        %4391 = vmatpush1.bf16.msra.mxu0 0
        %4392 = vmatprep.subr.bf16.mxu0 0
        %4393 = vmatpush1.bf16.msra.mxu0 0
        %4394 = vmatprep.subr.bf16.mxu0 0
        %4395 = vmatpush1.bf16.msra.mxu0 0
        %4396 = vmatprep.subr.bf16.mxu0 0
        %4397 = vmatpush1.bf16.msra.mxu0 0
        %4398 = vmatprep.subr.bf16.mxu0 0
        %4399 = vmatpush1.bf16.msra.mxu0 0
        %4400 = vmatprep.mubr.bf16.mxu0 0
        %4401 = vmatmul.mubr.bf16.gmra.mrb[0].mxu0 %v4363
        %v4402 = vpop.f32.mrb[0].mxu0
        %v4403 = vadd.f32 0.0, %v4402
        %v4404 = vpop.f32.mrb[0].mxu0
        %v4405 = vpop.f32.mrb[0].mxu0
        %v4406 = vpop.f32.mrb[0].mxu0
        %4407 = vdwg.mxu0
        %4409 = vrot.lane.b32.xlu0 %v1269, 96
        %v4410 = vpop.permute.xlu0 %4409
        %v4412 = vsel %vm2013, %v3960, 0
        %v4415 = vsel %vm2209, %v4410, 0
        %4417 = vmatprep.subr.bf16.mxu0 0
        %4418 = vmatpush1.bf16.msra.mxu0 %v4415
        %4419 = vmatprep.subr.bf16.mxu0 0
        %4420 = vmatpush1.bf16.msra.mxu0 0
        %4421 = vmatprep.subr.bf16.mxu0 0
        %4422 = vmatpush1.bf16.msra.mxu0 0
        %4423 = vmatprep.subr.bf16.mxu0 0
        %4424 = vmatpush1.bf16.msra.mxu0 0
        %4425 = vmatprep.subr.bf16.mxu0 0
        %4426 = vmatpush1.bf16.msra.mxu0 0
        %4427 = vmatprep.subr.bf16.mxu0 0
        %4428 = vmatpush1.bf16.msra.mxu0 0
        %4429 = vmatprep.subr.bf16.mxu0 0
        %4430 = vmatpush1.bf16.msra.mxu0 0
        %4431 = vmatprep.subr.bf16.mxu0 0
        %4432 = vmatpush1.bf16.msra.mxu0 0
        %4433 = vmatprep.subr.bf16.mxu0 0
        %4434 = vmatpush1.bf16.msra.mxu0 0
        %4435 = vmatprep.subr.bf16.mxu0 0
        %4436 = vmatpush1.bf16.msra.mxu0 0
        %4437 = vmatprep.subr.bf16.mxu0 0
        %4438 = vmatpush1.bf16.msra.mxu0 0
        %4439 = vmatprep.subr.bf16.mxu0 0
        %4440 = vmatpush1.bf16.msra.mxu0 0
        %4441 = vmatprep.subr.bf16.mxu0 0
        %4442 = vmatpush1.bf16.msra.mxu0 0
        %4443 = vmatprep.subr.bf16.mxu0 0
        %4444 = vmatpush1.bf16.msra.mxu0 0
        %4445 = vmatprep.subr.bf16.mxu0 0
        %4446 = vmatpush1.bf16.msra.mxu0 0
        %4447 = vmatprep.subr.bf16.mxu0 0
        %4448 = vmatpush1.bf16.msra.mxu0 0
        %4449 = vmatprep.mubr.bf16.mxu0 0
        %4450 = vmatmul.mubr.bf16.gmra.mrb[0].mxu0 %v4412
        %v4451 = vpop.f32.mrb[0].mxu0
        %v4452 = vadd.f32 0.0, %v4451
        %v4453 = vpop.f32.mrb[0].mxu0
        %v4454 = vpop.f32.mrb[0].mxu0
        %v4455 = vpop.f32.mrb[0].mxu0
        %4456 = vdwg.mxu0
        %4458 = vrot.lane.b32.xlu0 %v1270, 96
        %v4459 = vpop.permute.xlu0 %4458
        %v4461 = vsel %vm2013, %v3961, 0
        %v4464 = vsel %vm2209, %v4459, 0
        %4466 = vmatprep.subr.bf16.mxu0 0
        %4467 = vmatpush1.bf16.msra.mxu0 %v4464
        %4468 = vmatprep.subr.bf16.mxu0 0
        %4469 = vmatpush1.bf16.msra.mxu0 0
        %4470 = vmatprep.subr.bf16.mxu0 0
        %4471 = vmatpush1.bf16.msra.mxu0 0
        %4472 = vmatprep.subr.bf16.mxu0 0
        %4473 = vmatpush1.bf16.msra.mxu0 0
        %4474 = vmatprep.subr.bf16.mxu0 0
        %4475 = vmatpush1.bf16.msra.mxu0 0
        %4476 = vmatprep.subr.bf16.mxu0 0
        %4477 = vmatpush1.bf16.msra.mxu0 0
        %4478 = vmatprep.subr.bf16.mxu0 0
        %4479 = vmatpush1.bf16.msra.mxu0 0
        %4480 = vmatprep.subr.bf16.mxu0 0
        %4481 = vmatpush1.bf16.msra.mxu0 0
        %4482 = vmatprep.subr.bf16.mxu0 0
        %4483 = vmatpush1.bf16.msra.mxu0 0
        %4484 = vmatprep.subr.bf16.mxu0 0
        %4485 = vmatpush1.bf16.msra.mxu0 0
        %4486 = vmatprep.subr.bf16.mxu0 0
        %4487 = vmatpush1.bf16.msra.mxu0 0
        %4488 = vmatprep.subr.bf16.mxu0 0
        %4489 = vmatpush1.bf16.msra.mxu0 0
        %4490 = vmatprep.subr.bf16.mxu0 0
        %4491 = vmatpush1.bf16.msra.mxu0 0
        %4492 = vmatprep.subr.bf16.mxu0 0
        %4493 = vmatpush1.bf16.msra.mxu0 0
        %4494 = vmatprep.subr.bf16.mxu0 0
        %4495 = vmatpush1.bf16.msra.mxu0 0
        %4496 = vmatprep.subr.bf16.mxu0 0
        %4497 = vmatpush1.bf16.msra.mxu0 0
        %4498 = vmatprep.mubr.bf16.mxu0 0
        %4499 = vmatmul.mubr.bf16.gmra.mrb[0].mxu0 %v4461
        %v4500 = vpop.f32.mrb[0].mxu0
        %v4501 = vadd.f32 0.0, %v4500
        %v4502 = vpop.f32.mrb[0].mxu0
        %v4503 = vpop.f32.mrb[0].mxu0
        %v4504 = vpop.f32.mrb[0].mxu0
        %4505 = vdwg.mxu0
        %4507 = vrot.lane.b32.xlu0 %v1271, 96
        %v4508 = vpop.permute.xlu0 %4507
        %v4510 = vsel %vm2013, %v3962, 0
        %v4513 = vsel %vm2209, %v4508, 0
        %4515 = vmatprep.subr.bf16.mxu0 0
        %4516 = vmatpush1.bf16.msra.mxu0 %v4513
        %4517 = vmatprep.subr.bf16.mxu0 0
        %4518 = vmatpush1.bf16.msra.mxu0 0
        %4519 = vmatprep.subr.bf16.mxu0 0
        %4520 = vmatpush1.bf16.msra.mxu0 0
        %4521 = vmatprep.subr.bf16.mxu0 0
        %4522 = vmatpush1.bf16.msra.mxu0 0
        %4523 = vmatprep.subr.bf16.mxu0 0
        %4524 = vmatpush1.bf16.msra.mxu0 0
        %4525 = vmatprep.subr.bf16.mxu0 0
        %4526 = vmatpush1.bf16.msra.mxu0 0
        %4527 = vmatprep.subr.bf16.mxu0 0
        %4528 = vmatpush1.bf16.msra.mxu0 0
        %4529 = vmatprep.subr.bf16.mxu0 0
        %4530 = vmatpush1.bf16.msra.mxu0 0
        %4531 = vmatprep.subr.bf16.mxu0 0
        %4532 = vmatpush1.bf16.msra.mxu0 0
        %4533 = vmatprep.subr.bf16.mxu0 0
        %4534 = vmatpush1.bf16.msra.mxu0 0
        %4535 = vmatprep.subr.bf16.mxu0 0
        %4536 = vmatpush1.bf16.msra.mxu0 0
        %4537 = vmatprep.subr.bf16.mxu0 0
        %4538 = vmatpush1.bf16.msra.mxu0 0
        %4539 = vmatprep.subr.bf16.mxu0 0
        %4540 = vmatpush1.bf16.msra.mxu0 0
        %4541 = vmatprep.subr.bf16.mxu0 0
        %4542 = vmatpush1.bf16.msra.mxu0 0
        %4543 = vmatprep.subr.bf16.mxu0 0
        %4544 = vmatpush1.bf16.msra.mxu0 0
        %4545 = vmatprep.subr.bf16.mxu0 0
        %4546 = vmatpush1.bf16.msra.mxu0 0
        %4547 = vmatprep.mubr.bf16.mxu0 0
        %4548 = vmatmul.mubr.bf16.gmra.mrb[0].mxu0 %v4510
        %v4549 = vpop.f32.mrb[0].mxu0
        %v4550 = vadd.f32 0.0, %v4549
        %v4551 = vpop.f32.mrb[0].mxu0
        %v4552 = vpop.f32.mrb[0].mxu0
        %v4553 = vpop.f32.mrb[0].mxu0
        %4554 = vdwg.mxu0
        %4556 = vrot.lane.b32.xlu0 %v1272, 96
        %v4557 = vpop.permute.xlu0 %4556
        %v4559 = vsel %vm2013, %v3963, 0
        %v4562 = vsel %vm2209, %v4557, 0
        %4564 = vmatprep.subr.bf16.mxu0 0
        %4565 = vmatpush1.bf16.msra.mxu0 %v4562
        %4566 = vmatprep.subr.bf16.mxu0 0
        %4567 = vmatpush1.bf16.msra.mxu0 0
        %4568 = vmatprep.subr.bf16.mxu0 0
        %4569 = vmatpush1.bf16.msra.mxu0 0
        %4570 = vmatprep.subr.bf16.mxu0 0
        %4571 = vmatpush1.bf16.msra.mxu0 0
        %4572 = vmatprep.subr.bf16.mxu0 0
        %4573 = vmatpush1.bf16.msra.mxu0 0
        %4574 = vmatprep.subr.bf16.mxu0 0
        %4575 = vmatpush1.bf16.msra.mxu0 0
        %4576 = vmatprep.subr.bf16.mxu0 0
        %4577 = vmatpush1.bf16.msra.mxu0 0
        %4578 = vmatprep.subr.bf16.mxu0 0
        %4579 = vmatpush1.bf16.msra.mxu0 0
        %4580 = vmatprep.subr.bf16.mxu0 0
        %4581 = vmatpush1.bf16.msra.mxu0 0
        %4582 = vmatprep.subr.bf16.mxu0 0
        %4583 = vmatpush1.bf16.msra.mxu0 0
        %4584 = vmatprep.subr.bf16.mxu0 0
        %4585 = vmatpush1.bf16.msra.mxu0 0
        %4586 = vmatprep.subr.bf16.mxu0 0
        %4587 = vmatpush1.bf16.msra.mxu0 0
        %4588 = vmatprep.subr.bf16.mxu0 0
        %4589 = vmatpush1.bf16.msra.mxu0 0
        %4590 = vmatprep.subr.bf16.mxu0 0
        %4591 = vmatpush1.bf16.msra.mxu0 0
        %4592 = vmatprep.subr.bf16.mxu0 0
        %4593 = vmatpush1.bf16.msra.mxu0 0
        %4594 = vmatprep.subr.bf16.mxu0 0
        %4595 = vmatpush1.bf16.msra.mxu0 0
        %4596 = vmatprep.mubr.bf16.mxu0 0
        %4597 = vmatmul.mubr.bf16.gmra.mrb[0].mxu0 %v4559
        %v4598 = vpop.f32.mrb[0].mxu0
        %v4599 = vadd.f32 0.0, %v4598
        %v4600 = vpop.f32.mrb[0].mxu0
        %v4601 = vpop.f32.mrb[0].mxu0
        %v4602 = vpop.f32.mrb[0].mxu0
        %4603 = vdwg.mxu0
        %4605 = vrot.lane.b32.xlu0 %v1273, 96
        %v4606 = vpop.permute.xlu0 %4605
        %v4608 = vsel %vm2013, %v3964, 0
        %v4611 = vsel %vm2209, %v4606, 0
        %4613 = vmatprep.subr.bf16.mxu0 0
        %4614 = vmatpush1.bf16.msra.mxu0 %v4611
        %4615 = vmatprep.subr.bf16.mxu0 0
        %4616 = vmatpush1.bf16.msra.mxu0 0
        %4617 = vmatprep.subr.bf16.mxu0 0
        %4618 = vmatpush1.bf16.msra.mxu0 0
        %4619 = vmatprep.subr.bf16.mxu0 0
        %4620 = vmatpush1.bf16.msra.mxu0 0
        %4621 = vmatprep.subr.bf16.mxu0 0
        %4622 = vmatpush1.bf16.msra.mxu0 0
        %4623 = vmatprep.subr.bf16.mxu0 0
        %4624 = vmatpush1.bf16.msra.mxu0 0
        %4625 = vmatprep.subr.bf16.mxu0 0
        %4626 = vmatpush1.bf16.msra.mxu0 0
        %4627 = vmatprep.subr.bf16.mxu0 0
        %4628 = vmatpush1.bf16.msra.mxu0 0
        %4629 = vmatprep.subr.bf16.mxu0 0
        %4630 = vmatpush1.bf16.msra.mxu0 0
        %4631 = vmatprep.subr.bf16.mxu0 0
        %4632 = vmatpush1.bf16.msra.mxu0 0
        %4633 = vmatprep.subr.bf16.mxu0 0
        %4634 = vmatpush1.bf16.msra.mxu0 0
        %4635 = vmatprep.subr.bf16.mxu0 0
        %4636 = vmatpush1.bf16.msra.mxu0 0
        %4637 = vmatprep.subr.bf16.mxu0 0
        %4638 = vmatpush1.bf16.msra.mxu0 0
        %4639 = vmatprep.subr.bf16.mxu0 0
        %4640 = vmatpush1.bf16.msra.mxu0 0
        %4641 = vmatprep.subr.bf16.mxu0 0
        %4642 = vmatpush1.bf16.msra.mxu0 0
        %4643 = vmatprep.subr.bf16.mxu0 0
        %4644 = vmatpush1.bf16.msra.mxu0 0
        %4645 = vmatprep.mubr.bf16.mxu0 0
        %4646 = vmatmul.mubr.bf16.gmra.mrb[0].mxu0 %v4608
        %v4647 = vpop.f32.mrb[0].mxu0
        %v4648 = vadd.f32 0.0, %v4647
        %v4649 = vpop.f32.mrb[0].mxu0
        %v4650 = vpop.f32.mrb[0].mxu0
        %v4651 = vpop.f32.mrb[0].mxu0
        %4652 = vdwg.mxu0
        %4654 = vrot.lane.b32.xlu0 %v1274, 96
        %v4655 = vpop.permute.xlu0 %4654
        %v4657 = vsel %vm2013, %v3965, 0
        %v4660 = vsel %vm2209, %v4655, 0
        %4662 = vmatprep.subr.bf16.mxu0 0
        %4663 = vmatpush1.bf16.msra.mxu0 %v4660
        %4664 = vmatprep.subr.bf16.mxu0 0
        %4665 = vmatpush1.bf16.msra.mxu0 0
        %4666 = vmatprep.subr.bf16.mxu0 0
        %4667 = vmatpush1.bf16.msra.mxu0 0
        %4668 = vmatprep.subr.bf16.mxu0 0
        %4669 = vmatpush1.bf16.msra.mxu0 0
        %4670 = vmatprep.subr.bf16.mxu0 0
        %4671 = vmatpush1.bf16.msra.mxu0 0
        %4672 = vmatprep.subr.bf16.mxu0 0
        %4673 = vmatpush1.bf16.msra.mxu0 0
        %4674 = vmatprep.subr.bf16.mxu0 0
        %4675 = vmatpush1.bf16.msra.mxu0 0
        %4676 = vmatprep.subr.bf16.mxu0 0
        %4677 = vmatpush1.bf16.msra.mxu0 0
        %4678 = vmatprep.subr.bf16.mxu0 0
        %4679 = vmatpush1.bf16.msra.mxu0 0
        %4680 = vmatprep.subr.bf16.mxu0 0
        %4681 = vmatpush1.bf16.msra.mxu0 0
        %4682 = vmatprep.subr.bf16.mxu0 0
        %4683 = vmatpush1.bf16.msra.mxu0 0
        %4684 = vmatprep.subr.bf16.mxu0 0
        %4685 = vmatpush1.bf16.msra.mxu0 0
        %4686 = vmatprep.subr.bf16.mxu0 0
        %4687 = vmatpush1.bf16.msra.mxu0 0
        %4688 = vmatprep.subr.bf16.mxu0 0
        %4689 = vmatpush1.bf16.msra.mxu0 0
        %4690 = vmatprep.subr.bf16.mxu0 0
        %4691 = vmatpush1.bf16.msra.mxu0 0
        %4692 = vmatprep.subr.bf16.mxu0 0
        %4693 = vmatpush1.bf16.msra.mxu0 0
        %4694 = vmatprep.mubr.bf16.mxu0 0
        %4695 = vmatmul.mubr.bf16.gmra.mrb[0].mxu0 %v4657
        %v4696 = vpop.f32.mrb[0].mxu0
        %v4697 = vadd.f32 0.0, %v4696
        %v4698 = vpop.f32.mrb[0].mxu0
        %v4699 = vpop.f32.mrb[0].mxu0
        %v4700 = vpop.f32.mrb[0].mxu0
        %4701 = vdwg.mxu0
        %4703 = vrot.lane.b32.xlu0 %v1275, 96
        %v4704 = vpop.permute.xlu0 %4703
        %v4706 = vsel %vm2013, %v3966, 0
        %v4709 = vsel %vm2209, %v4704, 0
        %4711 = vmatprep.subr.bf16.mxu0 0
        %4712 = vmatpush1.bf16.msra.mxu0 %v4709
        %4713 = vmatprep.subr.bf16.mxu0 0
        %4714 = vmatpush1.bf16.msra.mxu0 0
        %4715 = vmatprep.subr.bf16.mxu0 0
        %4716 = vmatpush1.bf16.msra.mxu0 0
        %4717 = vmatprep.subr.bf16.mxu0 0
        %4718 = vmatpush1.bf16.msra.mxu0 0
        %4719 = vmatprep.subr.bf16.mxu0 0
        %4720 = vmatpush1.bf16.msra.mxu0 0
        %4721 = vmatprep.subr.bf16.mxu0 0
        %4722 = vmatpush1.bf16.msra.mxu0 0
        %4723 = vmatprep.subr.bf16.mxu0 0
        %4724 = vmatpush1.bf16.msra.mxu0 0
        %4725 = vmatprep.subr.bf16.mxu0 0
        %4726 = vmatpush1.bf16.msra.mxu0 0
        %4727 = vmatprep.subr.bf16.mxu0 0
        %4728 = vmatpush1.bf16.msra.mxu0 0
        %4729 = vmatprep.subr.bf16.mxu0 0
        %4730 = vmatpush1.bf16.msra.mxu0 0
        %4731 = vmatprep.subr.bf16.mxu0 0
        %4732 = vmatpush1.bf16.msra.mxu0 0
        %4733 = vmatprep.subr.bf16.mxu0 0
        %4734 = vmatpush1.bf16.msra.mxu0 0
        %4735 = vmatprep.subr.bf16.mxu0 0
        %4736 = vmatpush1.bf16.msra.mxu0 0
        %4737 = vmatprep.subr.bf16.mxu0 0
        %4738 = vmatpush1.bf16.msra.mxu0 0
        %4739 = vmatprep.subr.bf16.mxu0 0
        %4740 = vmatpush1.bf16.msra.mxu0 0
        %4741 = vmatprep.subr.bf16.mxu0 0
        %4742 = vmatpush1.bf16.msra.mxu0 0
        %4743 = vmatprep.mubr.bf16.mxu0 0
        %4744 = vmatmul.mubr.bf16.gmra.mrb[0].mxu0 %v4706
        %v4745 = vpop.f32.mrb[0].mxu0
        %v4746 = vadd.f32 0.0, %v4745
        %v4747 = vpop.f32.mrb[0].mxu0
        %v4748 = vpop.f32.mrb[0].mxu0
        %v4749 = vpop.f32.mrb[0].mxu0
        %4750 = vdwg.mxu0
        %4751 = vrot.lane.b32.xlu0 %v1228, 64
        %v4752 = vpop.permute.xlu0 %4751
        %4753 = vrot.lane.b32.xlu0 %v1244, 64
        %v4754 = vpop.permute.xlu0 %4753
        %v4756 = vsel %vm1276, %v4752, 0
        %v4759 = vsel %vm1276, %v4754, 0
        %4761 = vmatprep.subr.bf16.mxu0 0
        %4762 = vmatpush1.bf16.xpose.msra.mxu0 %v4759
        %4763 = vmatprep.subr.bf16.mxu0 0
        %4764 = vmatpush1.bf16.xpose.msra.mxu0 0
        %4765 = vmatprep.subr.bf16.mxu0 0
        %4766 = vmatpush1.bf16.xpose.msra.mxu0 0
        %4767 = vmatprep.subr.bf16.mxu0 0
        %4768 = vmatpush1.bf16.xpose.msra.mxu0 0
        %4769 = vmatprep.subr.bf16.mxu0 0
        %4770 = vmatpush1.bf16.xpose.msra.mxu0 0
        %4771 = vmatprep.subr.bf16.mxu0 0
        %4772 = vmatpush1.bf16.xpose.msra.mxu0 0
        %4773 = vmatprep.subr.bf16.mxu0 0
        %4774 = vmatpush1.bf16.xpose.msra.mxu0 0
        %4775 = vmatprep.subr.bf16.mxu0 0
        %4776 = vmatpush1.bf16.xpose.msra.mxu0 0
        %4777 = vmatprep.subr.bf16.mxu0 0
        %4778 = vmatpush1.bf16.xpose.msra.mxu0 0
        %4779 = vmatprep.subr.bf16.mxu0 0
        %4780 = vmatpush1.bf16.xpose.msra.mxu0 0
        %4781 = vmatprep.subr.bf16.mxu0 0
        %4782 = vmatpush1.bf16.xpose.msra.mxu0 0
        %4783 = vmatprep.subr.bf16.mxu0 0
        %4784 = vmatpush1.bf16.xpose.msra.mxu0 0
        %4785 = vmatprep.subr.bf16.mxu0 0
        %4786 = vmatpush1.bf16.xpose.msra.mxu0 0
        %4787 = vmatprep.subr.bf16.mxu0 0
        %4788 = vmatpush1.bf16.xpose.msra.mxu0 0
        %4789 = vmatprep.subr.bf16.mxu0 0
        %4790 = vmatpush1.bf16.xpose.msra.mxu0 0
        %4791 = vmatprep.subr.bf16.mxu0 0
        %4792 = vmatpush1.bf16.xpose.msra.mxu0 0
        %4793 = vmatprep.mubr.bf16.mxu0 0
        %4794 = vmatmul.mubr.bf16.gmra.mrb[0].mxu0 %v4756
        %v4795 = vpop.f32.mrb[0].mxu0
        %v4796 = vadd.f32 0.0, %v4795
        %v4797 = vpop.f32.mrb[0].mxu0
        %v4798 = vpop.f32.mrb[0].mxu0
        %v4799 = vpop.f32.mrb[0].mxu0
        %4800 = vdwg.mxu0
        %4801 = vrot.lane.b32.xlu0 %v1229, 64
        %v4802 = vpop.permute.xlu0 %4801
        %4803 = vrot.lane.b32.xlu0 %v1245, 64
        %v4804 = vpop.permute.xlu0 %4803
        %v4806 = vsel %vm1276, %v4802, 0
        %v4809 = vsel %vm1276, %v4804, 0
        %4811 = vmatprep.subr.bf16.mxu0 0
        %4812 = vmatpush1.bf16.xpose.msra.mxu0 %v4809
        %4813 = vmatprep.subr.bf16.mxu0 0
        %4814 = vmatpush1.bf16.xpose.msra.mxu0 0
        %4815 = vmatprep.subr.bf16.mxu0 0
        %4816 = vmatpush1.bf16.xpose.msra.mxu0 0
        %4817 = vmatprep.subr.bf16.mxu0 0
        %4818 = vmatpush1.bf16.xpose.msra.mxu0 0
        %4819 = vmatprep.subr.bf16.mxu0 0
        %4820 = vmatpush1.bf16.xpose.msra.mxu0 0
        %4821 = vmatprep.subr.bf16.mxu0 0
        %4822 = vmatpush1.bf16.xpose.msra.mxu0 0
        %4823 = vmatprep.subr.bf16.mxu0 0
        %4824 = vmatpush1.bf16.xpose.msra.mxu0 0
        %4825 = vmatprep.subr.bf16.mxu0 0
        %4826 = vmatpush1.bf16.xpose.msra.mxu0 0
        %4827 = vmatprep.subr.bf16.mxu0 0
        %4828 = vmatpush1.bf16.xpose.msra.mxu0 0
        %4829 = vmatprep.subr.bf16.mxu0 0
        %4830 = vmatpush1.bf16.xpose.msra.mxu0 0
        %4831 = vmatprep.subr.bf16.mxu0 0
        %4832 = vmatpush1.bf16.xpose.msra.mxu0 0
        %4833 = vmatprep.subr.bf16.mxu0 0
        %4834 = vmatpush1.bf16.xpose.msra.mxu0 0
        %4835 = vmatprep.subr.bf16.mxu0 0
        %4836 = vmatpush1.bf16.xpose.msra.mxu0 0
        %4837 = vmatprep.subr.bf16.mxu0 0
        %4838 = vmatpush1.bf16.xpose.msra.mxu0 0
        %4839 = vmatprep.subr.bf16.mxu0 0
        %4840 = vmatpush1.bf16.xpose.msra.mxu0 0
        %4841 = vmatprep.subr.bf16.mxu0 0
        %4842 = vmatpush1.bf16.xpose.msra.mxu0 0
        %4843 = vmatprep.mubr.bf16.mxu0 0
        %4844 = vmatmul.mubr.bf16.gmra.mrb[0].mxu0 %v4806
        %v4845 = vpop.f32.mrb[0].mxu0
        %v4846 = vadd.f32 0.0, %v4845
        %v4847 = vpop.f32.mrb[0].mxu0
        %v4848 = vpop.f32.mrb[0].mxu0
        %v4849 = vpop.f32.mrb[0].mxu0
        %4850 = vdwg.mxu0
        %4851 = vrot.lane.b32.xlu0 %v1230, 64
        %v4852 = vpop.permute.xlu0 %4851
        %4853 = vrot.lane.b32.xlu0 %v1246, 64
        %v4854 = vpop.permute.xlu0 %4853
        %v4856 = vsel %vm1276, %v4852, 0
        %v4859 = vsel %vm1276, %v4854, 0
        %4861 = vmatprep.subr.bf16.mxu0 0
        %4862 = vmatpush1.bf16.xpose.msra.mxu0 %v4859
        %4863 = vmatprep.subr.bf16.mxu0 0
        %4864 = vmatpush1.bf16.xpose.msra.mxu0 0
        %4865 = vmatprep.subr.bf16.mxu0 0
        %4866 = vmatpush1.bf16.xpose.msra.mxu0 0
        %4867 = vmatprep.subr.bf16.mxu0 0
        %4868 = vmatpush1.bf16.xpose.msra.mxu0 0
        %4869 = vmatprep.subr.bf16.mxu0 0
        %4870 = vmatpush1.bf16.xpose.msra.mxu0 0
        %4871 = vmatprep.subr.bf16.mxu0 0
        %4872 = vmatpush1.bf16.xpose.msra.mxu0 0
        %4873 = vmatprep.subr.bf16.mxu0 0
        %4874 = vmatpush1.bf16.xpose.msra.mxu0 0
        %4875 = vmatprep.subr.bf16.mxu0 0
        %4876 = vmatpush1.bf16.xpose.msra.mxu0 0
        %4877 = vmatprep.subr.bf16.mxu0 0
        %4878 = vmatpush1.bf16.xpose.msra.mxu0 0
        %4879 = vmatprep.subr.bf16.mxu0 0
        %4880 = vmatpush1.bf16.xpose.msra.mxu0 0
        %4881 = vmatprep.subr.bf16.mxu0 0
        %4882 = vmatpush1.bf16.xpose.msra.mxu0 0
        %4883 = vmatprep.subr.bf16.mxu0 0
        %4884 = vmatpush1.bf16.xpose.msra.mxu0 0
        %4885 = vmatprep.subr.bf16.mxu0 0
        %4886 = vmatpush1.bf16.xpose.msra.mxu0 0
        %4887 = vmatprep.subr.bf16.mxu0 0
        %4888 = vmatpush1.bf16.xpose.msra.mxu0 0
        %4889 = vmatprep.subr.bf16.mxu0 0
        %4890 = vmatpush1.bf16.xpose.msra.mxu0 0
        %4891 = vmatprep.subr.bf16.mxu0 0
        %4892 = vmatpush1.bf16.xpose.msra.mxu0 0
        %4893 = vmatprep.mubr.bf16.mxu0 0
        %4894 = vmatmul.mubr.bf16.gmra.mrb[0].mxu0 %v4856
        %v4895 = vpop.f32.mrb[0].mxu0
        %v4896 = vadd.f32 0.0, %v4895
        %v4897 = vpop.f32.mrb[0].mxu0
        %v4898 = vpop.f32.mrb[0].mxu0
        %v4899 = vpop.f32.mrb[0].mxu0
        %4900 = vdwg.mxu0
        %4901 = vrot.lane.b32.xlu0 %v1231, 64
        %v4902 = vpop.permute.xlu0 %4901
        %4903 = vrot.lane.b32.xlu0 %v1247, 64
        %v4904 = vpop.permute.xlu0 %4903
        %v4906 = vsel %vm1276, %v4902, 0
        %v4909 = vsel %vm1276, %v4904, 0
        %4911 = vmatprep.subr.bf16.mxu0 0
        %4912 = vmatpush1.bf16.xpose.msra.mxu0 %v4909
        %4913 = vmatprep.subr.bf16.mxu0 0
        %4914 = vmatpush1.bf16.xpose.msra.mxu0 0
        %4915 = vmatprep.subr.bf16.mxu0 0
        %4916 = vmatpush1.bf16.xpose.msra.mxu0 0
        %4917 = vmatprep.subr.bf16.mxu0 0
        %4918 = vmatpush1.bf16.xpose.msra.mxu0 0
        %4919 = vmatprep.subr.bf16.mxu0 0
        %4920 = vmatpush1.bf16.xpose.msra.mxu0 0
        %4921 = vmatprep.subr.bf16.mxu0 0
        %4922 = vmatpush1.bf16.xpose.msra.mxu0 0
        %4923 = vmatprep.subr.bf16.mxu0 0
        %4924 = vmatpush1.bf16.xpose.msra.mxu0 0
        %4925 = vmatprep.subr.bf16.mxu0 0
        %4926 = vmatpush1.bf16.xpose.msra.mxu0 0
        %4927 = vmatprep.subr.bf16.mxu0 0
        %4928 = vmatpush1.bf16.xpose.msra.mxu0 0
        %4929 = vmatprep.subr.bf16.mxu0 0
        %4930 = vmatpush1.bf16.xpose.msra.mxu0 0
        %4931 = vmatprep.subr.bf16.mxu0 0
        %4932 = vmatpush1.bf16.xpose.msra.mxu0 0
        %4933 = vmatprep.subr.bf16.mxu0 0
        %4934 = vmatpush1.bf16.xpose.msra.mxu0 0
        %4935 = vmatprep.subr.bf16.mxu0 0
        %4936 = vmatpush1.bf16.xpose.msra.mxu0 0
        %4937 = vmatprep.subr.bf16.mxu0 0
        %4938 = vmatpush1.bf16.xpose.msra.mxu0 0
        %4939 = vmatprep.subr.bf16.mxu0 0
        %4940 = vmatpush1.bf16.xpose.msra.mxu0 0
        %4941 = vmatprep.subr.bf16.mxu0 0
        %4942 = vmatpush1.bf16.xpose.msra.mxu0 0
        %4943 = vmatprep.mubr.bf16.mxu0 0
        %4944 = vmatmul.mubr.bf16.gmra.mrb[0].mxu0 %v4906
        %v4945 = vpop.f32.mrb[0].mxu0
        %v4946 = vadd.f32 0.0, %v4945
        %v4947 = vpop.f32.mrb[0].mxu0
        %v4948 = vpop.f32.mrb[0].mxu0
        %v4949 = vpop.f32.mrb[0].mxu0
        %4950 = vdwg.mxu0
        %4951 = vrot.lane.b32.xlu0 %v1232, 64
        %v4952 = vpop.permute.xlu0 %4951
        %4953 = vrot.lane.b32.xlu0 %v1248, 64
        %v4954 = vpop.permute.xlu0 %4953
        %v4956 = vsel %vm1276, %v4952, 0
        %v4959 = vsel %vm1276, %v4954, 0
        %4961 = vmatprep.subr.bf16.mxu0 0
        %4962 = vmatpush1.bf16.xpose.msra.mxu0 %v4959
        %4963 = vmatprep.subr.bf16.mxu0 0
        %4964 = vmatpush1.bf16.xpose.msra.mxu0 0
        %4965 = vmatprep.subr.bf16.mxu0 0
        %4966 = vmatpush1.bf16.xpose.msra.mxu0 0
        %4967 = vmatprep.subr.bf16.mxu0 0
        %4968 = vmatpush1.bf16.xpose.msra.mxu0 0
        %4969 = vmatprep.subr.bf16.mxu0 0
        %4970 = vmatpush1.bf16.xpose.msra.mxu0 0
        %4971 = vmatprep.subr.bf16.mxu0 0
        %4972 = vmatpush1.bf16.xpose.msra.mxu0 0
        %4973 = vmatprep.subr.bf16.mxu0 0
        %4974 = vmatpush1.bf16.xpose.msra.mxu0 0
        %4975 = vmatprep.subr.bf16.mxu0 0
        %4976 = vmatpush1.bf16.xpose.msra.mxu0 0
        %4977 = vmatprep.subr.bf16.mxu0 0
        %4978 = vmatpush1.bf16.xpose.msra.mxu0 0
        %4979 = vmatprep.subr.bf16.mxu0 0
        %4980 = vmatpush1.bf16.xpose.msra.mxu0 0
        %4981 = vmatprep.subr.bf16.mxu0 0
        %4982 = vmatpush1.bf16.xpose.msra.mxu0 0
        %4983 = vmatprep.subr.bf16.mxu0 0
        %4984 = vmatpush1.bf16.xpose.msra.mxu0 0
        %4985 = vmatprep.subr.bf16.mxu0 0
        %4986 = vmatpush1.bf16.xpose.msra.mxu0 0
        %4987 = vmatprep.subr.bf16.mxu0 0
        %4988 = vmatpush1.bf16.xpose.msra.mxu0 0
        %4989 = vmatprep.subr.bf16.mxu0 0
        %4990 = vmatpush1.bf16.xpose.msra.mxu0 0
        %4991 = vmatprep.subr.bf16.mxu0 0
        %4992 = vmatpush1.bf16.xpose.msra.mxu0 0
        %4993 = vmatprep.mubr.bf16.mxu0 0
        %4994 = vmatmul.mubr.bf16.gmra.mrb[0].mxu0 %v4956
        %v4995 = vpop.f32.mrb[0].mxu0
        %v4996 = vadd.f32 0.0, %v4995
        %v4997 = vpop.f32.mrb[0].mxu0
        %v4998 = vpop.f32.mrb[0].mxu0
        %v4999 = vpop.f32.mrb[0].mxu0
        %5000 = vdwg.mxu0
        %5001 = vrot.lane.b32.xlu0 %v1233, 64
        %v5002 = vpop.permute.xlu0 %5001
        %5003 = vrot.lane.b32.xlu0 %v1249, 64
        %v5004 = vpop.permute.xlu0 %5003
        %v5006 = vsel %vm1276, %v5002, 0
        %v5009 = vsel %vm1276, %v5004, 0
        %5011 = vmatprep.subr.bf16.mxu0 0
        %5012 = vmatpush1.bf16.xpose.msra.mxu0 %v5009
        %5013 = vmatprep.subr.bf16.mxu0 0
        %5014 = vmatpush1.bf16.xpose.msra.mxu0 0
        %5015 = vmatprep.subr.bf16.mxu0 0
        %5016 = vmatpush1.bf16.xpose.msra.mxu0 0
        %5017 = vmatprep.subr.bf16.mxu0 0
        %5018 = vmatpush1.bf16.xpose.msra.mxu0 0
        %5019 = vmatprep.subr.bf16.mxu0 0
        %5020 = vmatpush1.bf16.xpose.msra.mxu0 0
        %5021 = vmatprep.subr.bf16.mxu0 0
        %5022 = vmatpush1.bf16.xpose.msra.mxu0 0
        %5023 = vmatprep.subr.bf16.mxu0 0
        %5024 = vmatpush1.bf16.xpose.msra.mxu0 0
        %5025 = vmatprep.subr.bf16.mxu0 0
        %5026 = vmatpush1.bf16.xpose.msra.mxu0 0
        %5027 = vmatprep.subr.bf16.mxu0 0
        %5028 = vmatpush1.bf16.xpose.msra.mxu0 0
        %5029 = vmatprep.subr.bf16.mxu0 0
        %5030 = vmatpush1.bf16.xpose.msra.mxu0 0
        %5031 = vmatprep.subr.bf16.mxu0 0
        %5032 = vmatpush1.bf16.xpose.msra.mxu0 0
        %5033 = vmatprep.subr.bf16.mxu0 0
        %5034 = vmatpush1.bf16.xpose.msra.mxu0 0
        %5035 = vmatprep.subr.bf16.mxu0 0
        %5036 = vmatpush1.bf16.xpose.msra.mxu0 0
        %5037 = vmatprep.subr.bf16.mxu0 0
        %5038 = vmatpush1.bf16.xpose.msra.mxu0 0
        %5039 = vmatprep.subr.bf16.mxu0 0
        %5040 = vmatpush1.bf16.xpose.msra.mxu0 0
        %5041 = vmatprep.subr.bf16.mxu0 0
        %5042 = vmatpush1.bf16.xpose.msra.mxu0 0
        %5043 = vmatprep.mubr.bf16.mxu0 0
        %5044 = vmatmul.mubr.bf16.gmra.mrb[0].mxu0 %v5006
        %v5045 = vpop.f32.mrb[0].mxu0
        %v5046 = vadd.f32 0.0, %v5045
        %v5047 = vpop.f32.mrb[0].mxu0
        %v5048 = vpop.f32.mrb[0].mxu0
        %v5049 = vpop.f32.mrb[0].mxu0
        %5050 = vdwg.mxu0
        %5051 = vrot.lane.b32.xlu0 %v1234, 64
        %v5052 = vpop.permute.xlu0 %5051
        %5053 = vrot.lane.b32.xlu0 %v1250, 64
        %v5054 = vpop.permute.xlu0 %5053
        %v5056 = vsel %vm1276, %v5052, 0
        %v5059 = vsel %vm1276, %v5054, 0
        %5061 = vmatprep.subr.bf16.mxu0 0
        %5062 = vmatpush1.bf16.xpose.msra.mxu0 %v5059
        %5063 = vmatprep.subr.bf16.mxu0 0
        %5064 = vmatpush1.bf16.xpose.msra.mxu0 0
        %5065 = vmatprep.subr.bf16.mxu0 0
        %5066 = vmatpush1.bf16.xpose.msra.mxu0 0
        %5067 = vmatprep.subr.bf16.mxu0 0
        %5068 = vmatpush1.bf16.xpose.msra.mxu0 0
        %5069 = vmatprep.subr.bf16.mxu0 0
        %5070 = vmatpush1.bf16.xpose.msra.mxu0 0
        %5071 = vmatprep.subr.bf16.mxu0 0
        %5072 = vmatpush1.bf16.xpose.msra.mxu0 0
        %5073 = vmatprep.subr.bf16.mxu0 0
        %5074 = vmatpush1.bf16.xpose.msra.mxu0 0
        %5075 = vmatprep.subr.bf16.mxu0 0
        %5076 = vmatpush1.bf16.xpose.msra.mxu0 0
        %5077 = vmatprep.subr.bf16.mxu0 0
        %5078 = vmatpush1.bf16.xpose.msra.mxu0 0
        %5079 = vmatprep.subr.bf16.mxu0 0
        %5080 = vmatpush1.bf16.xpose.msra.mxu0 0
        %5081 = vmatprep.subr.bf16.mxu0 0
        %5082 = vmatpush1.bf16.xpose.msra.mxu0 0
        %5083 = vmatprep.subr.bf16.mxu0 0
        %5084 = vmatpush1.bf16.xpose.msra.mxu0 0
        %5085 = vmatprep.subr.bf16.mxu0 0
        %5086 = vmatpush1.bf16.xpose.msra.mxu0 0
        %5087 = vmatprep.subr.bf16.mxu0 0
        %5088 = vmatpush1.bf16.xpose.msra.mxu0 0
        %5089 = vmatprep.subr.bf16.mxu0 0
        %5090 = vmatpush1.bf16.xpose.msra.mxu0 0
        %5091 = vmatprep.subr.bf16.mxu0 0
        %5092 = vmatpush1.bf16.xpose.msra.mxu0 0
        %5093 = vmatprep.mubr.bf16.mxu0 0
        %5094 = vmatmul.mubr.bf16.gmra.mrb[0].mxu0 %v5056
        %v5095 = vpop.f32.mrb[0].mxu0
        %v5096 = vadd.f32 0.0, %v5095
        %v5097 = vpop.f32.mrb[0].mxu0
        %v5098 = vpop.f32.mrb[0].mxu0
        %v5099 = vpop.f32.mrb[0].mxu0
        %5100 = vdwg.mxu0
        %5101 = vrot.lane.b32.xlu0 %v1235, 64
        %v5102 = vpop.permute.xlu0 %5101
        %5103 = vrot.lane.b32.xlu0 %v1251, 64
        %v5104 = vpop.permute.xlu0 %5103
        %v5106 = vsel %vm1276, %v5102, 0
        %v5109 = vsel %vm1276, %v5104, 0
        %5111 = vmatprep.subr.bf16.mxu0 0
        %5112 = vmatpush1.bf16.xpose.msra.mxu0 %v5109
        %5113 = vmatprep.subr.bf16.mxu0 0
        %5114 = vmatpush1.bf16.xpose.msra.mxu0 0
        %5115 = vmatprep.subr.bf16.mxu0 0
        %5116 = vmatpush1.bf16.xpose.msra.mxu0 0
        %5117 = vmatprep.subr.bf16.mxu0 0
        %5118 = vmatpush1.bf16.xpose.msra.mxu0 0
        %5119 = vmatprep.subr.bf16.mxu0 0
        %5120 = vmatpush1.bf16.xpose.msra.mxu0 0
        %5121 = vmatprep.subr.bf16.mxu0 0
        %5122 = vmatpush1.bf16.xpose.msra.mxu0 0
        %5123 = vmatprep.subr.bf16.mxu0 0
        %5124 = vmatpush1.bf16.xpose.msra.mxu0 0
        %5125 = vmatprep.subr.bf16.mxu0 0
        %5126 = vmatpush1.bf16.xpose.msra.mxu0 0
        %5127 = vmatprep.subr.bf16.mxu0 0
        %5128 = vmatpush1.bf16.xpose.msra.mxu0 0
        %5129 = vmatprep.subr.bf16.mxu0 0
        %5130 = vmatpush1.bf16.xpose.msra.mxu0 0
        %5131 = vmatprep.subr.bf16.mxu0 0
        %5132 = vmatpush1.bf16.xpose.msra.mxu0 0
        %5133 = vmatprep.subr.bf16.mxu0 0
        %5134 = vmatpush1.bf16.xpose.msra.mxu0 0
        %5135 = vmatprep.subr.bf16.mxu0 0
        %5136 = vmatpush1.bf16.xpose.msra.mxu0 0
        %5137 = vmatprep.subr.bf16.mxu0 0
        %5138 = vmatpush1.bf16.xpose.msra.mxu0 0
        %5139 = vmatprep.subr.bf16.mxu0 0
        %5140 = vmatpush1.bf16.xpose.msra.mxu0 0
        %5141 = vmatprep.subr.bf16.mxu0 0
        %5142 = vmatpush1.bf16.xpose.msra.mxu0 0
        %5143 = vmatprep.mubr.bf16.mxu0 0
        %5144 = vmatmul.mubr.bf16.gmra.mrb[0].mxu0 %v5106
        %v5145 = vpop.f32.mrb[0].mxu0
        %v5146 = vadd.f32 0.0, %v5145
        %v5147 = vpop.f32.mrb[0].mxu0
        %v5148 = vpop.f32.mrb[0].mxu0
        %v5149 = vpop.f32.mrb[0].mxu0
        %5150 = vdwg.mxu0
        %5151 = vrot.lane.b32.xlu0 %v1236, 64
        %v5152 = vpop.permute.xlu0 %5151
        %5153 = vrot.lane.b32.xlu0 %v1252, 64
        %v5154 = vpop.permute.xlu0 %5153
        %v5156 = vsel %vm1276, %v5152, 0
        %v5159 = vsel %vm1276, %v5154, 0
        %5161 = vmatprep.subr.bf16.mxu0 0
        %5162 = vmatpush1.bf16.xpose.msra.mxu0 %v5159
        %5163 = vmatprep.subr.bf16.mxu0 0
        %5164 = vmatpush1.bf16.xpose.msra.mxu0 0
        %5165 = vmatprep.subr.bf16.mxu0 0
        %5166 = vmatpush1.bf16.xpose.msra.mxu0 0
        %5167 = vmatprep.subr.bf16.mxu0 0
        %5168 = vmatpush1.bf16.xpose.msra.mxu0 0
        %5169 = vmatprep.subr.bf16.mxu0 0
        %5170 = vmatpush1.bf16.xpose.msra.mxu0 0
        %5171 = vmatprep.subr.bf16.mxu0 0
        %5172 = vmatpush1.bf16.xpose.msra.mxu0 0
        %5173 = vmatprep.subr.bf16.mxu0 0
        %5174 = vmatpush1.bf16.xpose.msra.mxu0 0
        %5175 = vmatprep.subr.bf16.mxu0 0
        %5176 = vmatpush1.bf16.xpose.msra.mxu0 0
        %5177 = vmatprep.subr.bf16.mxu0 0
        %5178 = vmatpush1.bf16.xpose.msra.mxu0 0
        %5179 = vmatprep.subr.bf16.mxu0 0
        %5180 = vmatpush1.bf16.xpose.msra.mxu0 0
        %5181 = vmatprep.subr.bf16.mxu0 0
        %5182 = vmatpush1.bf16.xpose.msra.mxu0 0
        %5183 = vmatprep.subr.bf16.mxu0 0
        %5184 = vmatpush1.bf16.xpose.msra.mxu0 0
        %5185 = vmatprep.subr.bf16.mxu0 0
        %5186 = vmatpush1.bf16.xpose.msra.mxu0 0
        %5187 = vmatprep.subr.bf16.mxu0 0
        %5188 = vmatpush1.bf16.xpose.msra.mxu0 0
        %5189 = vmatprep.subr.bf16.mxu0 0
        %5190 = vmatpush1.bf16.xpose.msra.mxu0 0
        %5191 = vmatprep.subr.bf16.mxu0 0
        %5192 = vmatpush1.bf16.xpose.msra.mxu0 0
        %5193 = vmatprep.mubr.bf16.mxu0 0
        %5194 = vmatmul.mubr.bf16.gmra.mrb[0].mxu0 %v5156
        %v5195 = vpop.f32.mrb[0].mxu0
        %v5196 = vadd.f32 0.0, %v5195
        %v5197 = vpop.f32.mrb[0].mxu0
        %v5198 = vpop.f32.mrb[0].mxu0
        %v5199 = vpop.f32.mrb[0].mxu0
        %5200 = vdwg.mxu0
        %5201 = vrot.lane.b32.xlu0 %v1237, 64
        %v5202 = vpop.permute.xlu0 %5201
        %5203 = vrot.lane.b32.xlu0 %v1253, 64
        %v5204 = vpop.permute.xlu0 %5203
        %v5206 = vsel %vm1276, %v5202, 0
        %v5209 = vsel %vm1276, %v5204, 0
        %5211 = vmatprep.subr.bf16.mxu0 0
        %5212 = vmatpush1.bf16.xpose.msra.mxu0 %v5209
        %5213 = vmatprep.subr.bf16.mxu0 0
        %5214 = vmatpush1.bf16.xpose.msra.mxu0 0
        %5215 = vmatprep.subr.bf16.mxu0 0
        %5216 = vmatpush1.bf16.xpose.msra.mxu0 0
        %5217 = vmatprep.subr.bf16.mxu0 0
        %5218 = vmatpush1.bf16.xpose.msra.mxu0 0
        %5219 = vmatprep.subr.bf16.mxu0 0
        %5220 = vmatpush1.bf16.xpose.msra.mxu0 0
        %5221 = vmatprep.subr.bf16.mxu0 0
        %5222 = vmatpush1.bf16.xpose.msra.mxu0 0
        %5223 = vmatprep.subr.bf16.mxu0 0
        %5224 = vmatpush1.bf16.xpose.msra.mxu0 0
        %5225 = vmatprep.subr.bf16.mxu0 0
        %5226 = vmatpush1.bf16.xpose.msra.mxu0 0
        %5227 = vmatprep.subr.bf16.mxu0 0
        %5228 = vmatpush1.bf16.xpose.msra.mxu0 0
        %5229 = vmatprep.subr.bf16.mxu0 0
        %5230 = vmatpush1.bf16.xpose.msra.mxu0 0
        %5231 = vmatprep.subr.bf16.mxu0 0
        %5232 = vmatpush1.bf16.xpose.msra.mxu0 0
        %5233 = vmatprep.subr.bf16.mxu0 0
        %5234 = vmatpush1.bf16.xpose.msra.mxu0 0
        %5235 = vmatprep.subr.bf16.mxu0 0
        %5236 = vmatpush1.bf16.xpose.msra.mxu0 0
        %5237 = vmatprep.subr.bf16.mxu0 0
        %5238 = vmatpush1.bf16.xpose.msra.mxu0 0
        %5239 = vmatprep.subr.bf16.mxu0 0
        %5240 = vmatpush1.bf16.xpose.msra.mxu0 0
        %5241 = vmatprep.subr.bf16.mxu0 0
        %5242 = vmatpush1.bf16.xpose.msra.mxu0 0
        %5243 = vmatprep.mubr.bf16.mxu0 0
        %5244 = vmatmul.mubr.bf16.gmra.mrb[0].mxu0 %v5206
        %v5245 = vpop.f32.mrb[0].mxu0
        %v5246 = vadd.f32 0.0, %v5245
        %v5247 = vpop.f32.mrb[0].mxu0
        %v5248 = vpop.f32.mrb[0].mxu0
        %v5249 = vpop.f32.mrb[0].mxu0
        %5250 = vdwg.mxu0
        %5251 = vrot.lane.b32.xlu0 %v1238, 64
        %v5252 = vpop.permute.xlu0 %5251
        %5253 = vrot.lane.b32.xlu0 %v1254, 64
        %v5254 = vpop.permute.xlu0 %5253
        %v5256 = vsel %vm1276, %v5252, 0
        %v5259 = vsel %vm1276, %v5254, 0
        %5261 = vmatprep.subr.bf16.mxu0 0
        %5262 = vmatpush1.bf16.xpose.msra.mxu0 %v5259
        %5263 = vmatprep.subr.bf16.mxu0 0
        %5264 = vmatpush1.bf16.xpose.msra.mxu0 0
        %5265 = vmatprep.subr.bf16.mxu0 0
        %5266 = vmatpush1.bf16.xpose.msra.mxu0 0
        %5267 = vmatprep.subr.bf16.mxu0 0
        %5268 = vmatpush1.bf16.xpose.msra.mxu0 0
        %5269 = vmatprep.subr.bf16.mxu0 0
        %5270 = vmatpush1.bf16.xpose.msra.mxu0 0
        %5271 = vmatprep.subr.bf16.mxu0 0
        %5272 = vmatpush1.bf16.xpose.msra.mxu0 0
        %5273 = vmatprep.subr.bf16.mxu0 0
        %5274 = vmatpush1.bf16.xpose.msra.mxu0 0
        %5275 = vmatprep.subr.bf16.mxu0 0
        %5276 = vmatpush1.bf16.xpose.msra.mxu0 0
        %5277 = vmatprep.subr.bf16.mxu0 0
        %5278 = vmatpush1.bf16.xpose.msra.mxu0 0
        %5279 = vmatprep.subr.bf16.mxu0 0
        %5280 = vmatpush1.bf16.xpose.msra.mxu0 0
        %5281 = vmatprep.subr.bf16.mxu0 0
        %5282 = vmatpush1.bf16.xpose.msra.mxu0 0
        %5283 = vmatprep.subr.bf16.mxu0 0
        %5284 = vmatpush1.bf16.xpose.msra.mxu0 0
        %5285 = vmatprep.subr.bf16.mxu0 0
        %5286 = vmatpush1.bf16.xpose.msra.mxu0 0
        %5287 = vmatprep.subr.bf16.mxu0 0
        %5288 = vmatpush1.bf16.xpose.msra.mxu0 0
        %5289 = vmatprep.subr.bf16.mxu0 0
        %5290 = vmatpush1.bf16.xpose.msra.mxu0 0
        %5291 = vmatprep.subr.bf16.mxu0 0
        %5292 = vmatpush1.bf16.xpose.msra.mxu0 0
        %5293 = vmatprep.mubr.bf16.mxu0 0
        %5294 = vmatmul.mubr.bf16.gmra.mrb[0].mxu0 %v5256
        %v5295 = vpop.f32.mrb[0].mxu0
        %v5296 = vadd.f32 0.0, %v5295
        %v5297 = vpop.f32.mrb[0].mxu0
        %v5298 = vpop.f32.mrb[0].mxu0
        %v5299 = vpop.f32.mrb[0].mxu0
        %5300 = vdwg.mxu0
        %5301 = vrot.lane.b32.xlu0 %v1239, 64
        %v5302 = vpop.permute.xlu0 %5301
        %5303 = vrot.lane.b32.xlu0 %v1255, 64
        %v5304 = vpop.permute.xlu0 %5303
        %v5306 = vsel %vm1276, %v5302, 0
        %v5309 = vsel %vm1276, %v5304, 0
        %5311 = vmatprep.subr.bf16.mxu0 0
        %5312 = vmatpush1.bf16.xpose.msra.mxu0 %v5309
        %5313 = vmatprep.subr.bf16.mxu0 0
        %5314 = vmatpush1.bf16.xpose.msra.mxu0 0
        %5315 = vmatprep.subr.bf16.mxu0 0
        %5316 = vmatpush1.bf16.xpose.msra.mxu0 0
        %5317 = vmatprep.subr.bf16.mxu0 0
        %5318 = vmatpush1.bf16.xpose.msra.mxu0 0
        %5319 = vmatprep.subr.bf16.mxu0 0
        %5320 = vmatpush1.bf16.xpose.msra.mxu0 0
        %5321 = vmatprep.subr.bf16.mxu0 0
        %5322 = vmatpush1.bf16.xpose.msra.mxu0 0
        %5323 = vmatprep.subr.bf16.mxu0 0
        %5324 = vmatpush1.bf16.xpose.msra.mxu0 0
        %5325 = vmatprep.subr.bf16.mxu0 0
        %5326 = vmatpush1.bf16.xpose.msra.mxu0 0
        %5327 = vmatprep.subr.bf16.mxu0 0
        %5328 = vmatpush1.bf16.xpose.msra.mxu0 0
        %5329 = vmatprep.subr.bf16.mxu0 0
        %5330 = vmatpush1.bf16.xpose.msra.mxu0 0
        %5331 = vmatprep.subr.bf16.mxu0 0
        %5332 = vmatpush1.bf16.xpose.msra.mxu0 0
        %5333 = vmatprep.subr.bf16.mxu0 0
        %5334 = vmatpush1.bf16.xpose.msra.mxu0 0
        %5335 = vmatprep.subr.bf16.mxu0 0
        %5336 = vmatpush1.bf16.xpose.msra.mxu0 0
        %5337 = vmatprep.subr.bf16.mxu0 0
        %5338 = vmatpush1.bf16.xpose.msra.mxu0 0
        %5339 = vmatprep.subr.bf16.mxu0 0
        %5340 = vmatpush1.bf16.xpose.msra.mxu0 0
        %5341 = vmatprep.subr.bf16.mxu0 0
        %5342 = vmatpush1.bf16.xpose.msra.mxu0 0
        %5343 = vmatprep.mubr.bf16.mxu0 0
        %5344 = vmatmul.mubr.bf16.gmra.mrb[0].mxu0 %v5306
        %v5345 = vpop.f32.mrb[0].mxu0
        %v5346 = vadd.f32 0.0, %v5345
        %v5347 = vpop.f32.mrb[0].mxu0
        %v5348 = vpop.f32.mrb[0].mxu0
        %v5349 = vpop.f32.mrb[0].mxu0
        %5350 = vdwg.mxu0
        %5351 = vrot.lane.b32.xlu0 %v1240, 64
        %v5352 = vpop.permute.xlu0 %5351
        %5353 = vrot.lane.b32.xlu0 %v1256, 64
        %v5354 = vpop.permute.xlu0 %5353
        %v5356 = vsel %vm1276, %v5352, 0
        %v5359 = vsel %vm1276, %v5354, 0
        %5361 = vmatprep.subr.bf16.mxu0 0
        %5362 = vmatpush1.bf16.xpose.msra.mxu0 %v5359
        %5363 = vmatprep.subr.bf16.mxu0 0
        %5364 = vmatpush1.bf16.xpose.msra.mxu0 0
        %5365 = vmatprep.subr.bf16.mxu0 0
        %5366 = vmatpush1.bf16.xpose.msra.mxu0 0
        %5367 = vmatprep.subr.bf16.mxu0 0
        %5368 = vmatpush1.bf16.xpose.msra.mxu0 0
        %5369 = vmatprep.subr.bf16.mxu0 0
        %5370 = vmatpush1.bf16.xpose.msra.mxu0 0
        %5371 = vmatprep.subr.bf16.mxu0 0
        %5372 = vmatpush1.bf16.xpose.msra.mxu0 0
        %5373 = vmatprep.subr.bf16.mxu0 0
        %5374 = vmatpush1.bf16.xpose.msra.mxu0 0
        %5375 = vmatprep.subr.bf16.mxu0 0
        %5376 = vmatpush1.bf16.xpose.msra.mxu0 0
        %5377 = vmatprep.subr.bf16.mxu0 0
        %5378 = vmatpush1.bf16.xpose.msra.mxu0 0
        %5379 = vmatprep.subr.bf16.mxu0 0
        %5380 = vmatpush1.bf16.xpose.msra.mxu0 0
        %5381 = vmatprep.subr.bf16.mxu0 0
        %5382 = vmatpush1.bf16.xpose.msra.mxu0 0
        %5383 = vmatprep.subr.bf16.mxu0 0
        %5384 = vmatpush1.bf16.xpose.msra.mxu0 0
        %5385 = vmatprep.subr.bf16.mxu0 0
        %5386 = vmatpush1.bf16.xpose.msra.mxu0 0
        %5387 = vmatprep.subr.bf16.mxu0 0
        %5388 = vmatpush1.bf16.xpose.msra.mxu0 0
        %5389 = vmatprep.subr.bf16.mxu0 0
        %5390 = vmatpush1.bf16.xpose.msra.mxu0 0
        %5391 = vmatprep.subr.bf16.mxu0 0
        %5392 = vmatpush1.bf16.xpose.msra.mxu0 0
        %5393 = vmatprep.mubr.bf16.mxu0 0
        %5394 = vmatmul.mubr.bf16.gmra.mrb[0].mxu0 %v5356
        %v5395 = vpop.f32.mrb[0].mxu0
        %v5396 = vadd.f32 0.0, %v5395
        %v5397 = vpop.f32.mrb[0].mxu0
        %v5398 = vpop.f32.mrb[0].mxu0
        %v5399 = vpop.f32.mrb[0].mxu0
        %5400 = vdwg.mxu0
        %5401 = vrot.lane.b32.xlu0 %v1241, 64
        %v5402 = vpop.permute.xlu0 %5401
        %5403 = vrot.lane.b32.xlu0 %v1257, 64
        %v5404 = vpop.permute.xlu0 %5403
        %v5406 = vsel %vm1276, %v5402, 0
        %v5409 = vsel %vm1276, %v5404, 0
        %5411 = vmatprep.subr.bf16.mxu0 0
        %5412 = vmatpush1.bf16.xpose.msra.mxu0 %v5409
        %5413 = vmatprep.subr.bf16.mxu0 0
        %5414 = vmatpush1.bf16.xpose.msra.mxu0 0
        %5415 = vmatprep.subr.bf16.mxu0 0
        %5416 = vmatpush1.bf16.xpose.msra.mxu0 0
        %5417 = vmatprep.subr.bf16.mxu0 0
        %5418 = vmatpush1.bf16.xpose.msra.mxu0 0
        %5419 = vmatprep.subr.bf16.mxu0 0
        %5420 = vmatpush1.bf16.xpose.msra.mxu0 0
        %5421 = vmatprep.subr.bf16.mxu0 0
        %5422 = vmatpush1.bf16.xpose.msra.mxu0 0
        %5423 = vmatprep.subr.bf16.mxu0 0
        %5424 = vmatpush1.bf16.xpose.msra.mxu0 0
        %5425 = vmatprep.subr.bf16.mxu0 0
        %5426 = vmatpush1.bf16.xpose.msra.mxu0 0
        %5427 = vmatprep.subr.bf16.mxu0 0
        %5428 = vmatpush1.bf16.xpose.msra.mxu0 0
        %5429 = vmatprep.subr.bf16.mxu0 0
        %5430 = vmatpush1.bf16.xpose.msra.mxu0 0
        %5431 = vmatprep.subr.bf16.mxu0 0
        %5432 = vmatpush1.bf16.xpose.msra.mxu0 0
        %5433 = vmatprep.subr.bf16.mxu0 0
        %5434 = vmatpush1.bf16.xpose.msra.mxu0 0
        %5435 = vmatprep.subr.bf16.mxu0 0
        %5436 = vmatpush1.bf16.xpose.msra.mxu0 0
        %5437 = vmatprep.subr.bf16.mxu0 0
        %5438 = vmatpush1.bf16.xpose.msra.mxu0 0
        %5439 = vmatprep.subr.bf16.mxu0 0
        %5440 = vmatpush1.bf16.xpose.msra.mxu0 0
        %5441 = vmatprep.subr.bf16.mxu0 0
        %5442 = vmatpush1.bf16.xpose.msra.mxu0 0
        %5443 = vmatprep.mubr.bf16.mxu0 0
        %5444 = vmatmul.mubr.bf16.gmra.mrb[0].mxu0 %v5406
        %v5445 = vpop.f32.mrb[0].mxu0
        %v5446 = vadd.f32 0.0, %v5445
        %v5447 = vpop.f32.mrb[0].mxu0
        %v5448 = vpop.f32.mrb[0].mxu0
        %v5449 = vpop.f32.mrb[0].mxu0
        %5450 = vdwg.mxu0
        %5451 = vrot.lane.b32.xlu0 %v1242, 64
        %v5452 = vpop.permute.xlu0 %5451
        %5453 = vrot.lane.b32.xlu0 %v1258, 64
        %v5454 = vpop.permute.xlu0 %5453
        %v5456 = vsel %vm1276, %v5452, 0
        %v5459 = vsel %vm1276, %v5454, 0
        %5461 = vmatprep.subr.bf16.mxu0 0
        %5462 = vmatpush1.bf16.xpose.msra.mxu0 %v5459
        %5463 = vmatprep.subr.bf16.mxu0 0
        %5464 = vmatpush1.bf16.xpose.msra.mxu0 0
        %5465 = vmatprep.subr.bf16.mxu0 0
        %5466 = vmatpush1.bf16.xpose.msra.mxu0 0
        %5467 = vmatprep.subr.bf16.mxu0 0
        %5468 = vmatpush1.bf16.xpose.msra.mxu0 0
        %5469 = vmatprep.subr.bf16.mxu0 0
        %5470 = vmatpush1.bf16.xpose.msra.mxu0 0
        %5471 = vmatprep.subr.bf16.mxu0 0
        %5472 = vmatpush1.bf16.xpose.msra.mxu0 0
        %5473 = vmatprep.subr.bf16.mxu0 0
        %5474 = vmatpush1.bf16.xpose.msra.mxu0 0
        %5475 = vmatprep.subr.bf16.mxu0 0
        %5476 = vmatpush1.bf16.xpose.msra.mxu0 0
        %5477 = vmatprep.subr.bf16.mxu0 0
        %5478 = vmatpush1.bf16.xpose.msra.mxu0 0
        %5479 = vmatprep.subr.bf16.mxu0 0
        %5480 = vmatpush1.bf16.xpose.msra.mxu0 0
        %5481 = vmatprep.subr.bf16.mxu0 0
        %5482 = vmatpush1.bf16.xpose.msra.mxu0 0
        %5483 = vmatprep.subr.bf16.mxu0 0
        %5484 = vmatpush1.bf16.xpose.msra.mxu0 0
        %5485 = vmatprep.subr.bf16.mxu0 0
        %5486 = vmatpush1.bf16.xpose.msra.mxu0 0
        %5487 = vmatprep.subr.bf16.mxu0 0
        %5488 = vmatpush1.bf16.xpose.msra.mxu0 0
        %5489 = vmatprep.subr.bf16.mxu0 0
        %5490 = vmatpush1.bf16.xpose.msra.mxu0 0
        %5491 = vmatprep.subr.bf16.mxu0 0
        %5492 = vmatpush1.bf16.xpose.msra.mxu0 0
        %5493 = vmatprep.mubr.bf16.mxu0 0
        %5494 = vmatmul.mubr.bf16.gmra.mrb[0].mxu0 %v5456
        %v5495 = vpop.f32.mrb[0].mxu0
        %v5496 = vadd.f32 0.0, %v5495
        %v5497 = vpop.f32.mrb[0].mxu0
        %v5498 = vpop.f32.mrb[0].mxu0
        %v5499 = vpop.f32.mrb[0].mxu0
        %5500 = vdwg.mxu0
        %5501 = vrot.lane.b32.xlu0 %v1243, 64
        %v5502 = vpop.permute.xlu0 %5501
        %5503 = vrot.lane.b32.xlu0 %v1259, 64
        %v5504 = vpop.permute.xlu0 %5503
        %v5506 = vsel %vm1276, %v5502, 0
        %v5509 = vsel %vm1276, %v5504, 0
        %5511 = vmatprep.subr.bf16.mxu0 0
        %5512 = vmatpush1.bf16.xpose.msra.mxu0 %v5509
        %5513 = vmatprep.subr.bf16.mxu0 0
        %5514 = vmatpush1.bf16.xpose.msra.mxu0 0
        %5515 = vmatprep.subr.bf16.mxu0 0
        %5516 = vmatpush1.bf16.xpose.msra.mxu0 0
        %5517 = vmatprep.subr.bf16.mxu0 0
        %5518 = vmatpush1.bf16.xpose.msra.mxu0 0
        %5519 = vmatprep.subr.bf16.mxu0 0
        %5520 = vmatpush1.bf16.xpose.msra.mxu0 0
        %5521 = vmatprep.subr.bf16.mxu0 0
        %5522 = vmatpush1.bf16.xpose.msra.mxu0 0
        %5523 = vmatprep.subr.bf16.mxu0 0
        %5524 = vmatpush1.bf16.xpose.msra.mxu0 0
        %5525 = vmatprep.subr.bf16.mxu0 0
        %5526 = vmatpush1.bf16.xpose.msra.mxu0 0
        %5527 = vmatprep.subr.bf16.mxu0 0
        %5528 = vmatpush1.bf16.xpose.msra.mxu0 0
        %5529 = vmatprep.subr.bf16.mxu0 0
        %5530 = vmatpush1.bf16.xpose.msra.mxu0 0
        %5531 = vmatprep.subr.bf16.mxu0 0
        %5532 = vmatpush1.bf16.xpose.msra.mxu0 0
        %5533 = vmatprep.subr.bf16.mxu0 0
        %5534 = vmatpush1.bf16.xpose.msra.mxu0 0
        %5535 = vmatprep.subr.bf16.mxu0 0
        %5536 = vmatpush1.bf16.xpose.msra.mxu0 0
        %5537 = vmatprep.subr.bf16.mxu0 0
        %5538 = vmatpush1.bf16.xpose.msra.mxu0 0
        %5539 = vmatprep.subr.bf16.mxu0 0
        %5540 = vmatpush1.bf16.xpose.msra.mxu0 0
        %5541 = vmatprep.subr.bf16.mxu0 0
        %5542 = vmatpush1.bf16.xpose.msra.mxu0 0
        %5543 = vmatprep.mubr.bf16.mxu0 0
        %5544 = vmatmul.mubr.bf16.gmra.mrb[0].mxu0 %v5506
        %v5545 = vpop.f32.mrb[0].mxu0
        %v5546 = vadd.f32 0.0, %v5545
        %v5547 = vpop.f32.mrb[0].mxu0
        %v5548 = vpop.f32.mrb[0].mxu0
        %v5549 = vpop.f32.mrb[0].mxu0
        %5550 = vdwg.mxu0
        %v5551 = vsel %vm2013, %v4796, -inf
        %5552 = vmax.xlane.f32.xlu0 %v5551
        %v5553 = vpop.xlane.xlu0 %5552
        %v5554 = vsel %vm2013, %v4846, -inf
        %5555 = vmax.xlane.f32.xlu0 %v5554
        %v5556 = vpop.xlane.xlu0 %5555
        %v5557 = vsel %vm2013, %v4896, -inf
        %5558 = vmax.xlane.f32.xlu0 %v5557
        %v5559 = vpop.xlane.xlu0 %5558
        %v5560 = vsel %vm2013, %v4946, -inf
        %5561 = vmax.xlane.f32.xlu0 %v5560
        %v5562 = vpop.xlane.xlu0 %5561
        %v5563 = vsel %vm2013, %v4996, -inf
        %5564 = vmax.xlane.f32.xlu0 %v5563
        %v5565 = vpop.xlane.xlu0 %5564
        %v5566 = vsel %vm2013, %v5046, -inf
        %5567 = vmax.xlane.f32.xlu0 %v5566
        %v5568 = vpop.xlane.xlu0 %5567
        %v5569 = vsel %vm2013, %v5096, -inf
        %5570 = vmax.xlane.f32.xlu0 %v5569
        %v5571 = vpop.xlane.xlu0 %5570
        %v5572 = vsel %vm2013, %v5146, -inf
        %5573 = vmax.xlane.f32.xlu0 %v5572
        %v5574 = vpop.xlane.xlu0 %5573
        %v5575 = vsel %vm2013, %v5196, -inf
        %5576 = vmax.xlane.f32.xlu0 %v5575
        %v5577 = vpop.xlane.xlu0 %5576
        %v5578 = vsel %vm2013, %v5246, -inf
        %5579 = vmax.xlane.f32.xlu0 %v5578
        %v5580 = vpop.xlane.xlu0 %5579
        %v5581 = vsel %vm2013, %v5296, -inf
        %5582 = vmax.xlane.f32.xlu0 %v5581
        %v5583 = vpop.xlane.xlu0 %5582
        %v5584 = vsel %vm2013, %v5346, -inf
        %5585 = vmax.xlane.f32.xlu0 %v5584
        %v5586 = vpop.xlane.xlu0 %5585
        %v5587 = vsel %vm2013, %v5396, -inf
        %5588 = vmax.xlane.f32.xlu0 %v5587
        %v5589 = vpop.xlane.xlu0 %5588
        %v5590 = vsel %vm2013, %v5446, -inf
        %5591 = vmax.xlane.f32.xlu0 %v5590
        %v5592 = vpop.xlane.xlu0 %5591
        %v5593 = vsel %vm2013, %v5496, -inf
        %5594 = vmax.xlane.f32.xlu0 %v5593
        %v5595 = vpop.xlane.xlu0 %5594
        %v5596 = vsel %vm2013, %v5546, -inf
        %5597 = vmax.xlane.f32.xlu0 %v5596
        %v5598 = vpop.xlane.xlu0 %5597
        %v5599 = vsub.f32 %v4796, %v5553
        %v5600 = vsub.f32 %v4846, %v5556
        %v5601 = vsub.f32 %v4896, %v5559
        %v5602 = vsub.f32 %v4946, %v5562
        %v5603 = vsub.f32 %v4996, %v5565
        %v5604 = vsub.f32 %v5046, %v5568
        %v5605 = vsub.f32 %v5096, %v5571
        %v5606 = vsub.f32 %v5146, %v5574
        %v5607 = vsub.f32 %v5196, %v5577
        %v5608 = vsub.f32 %v5246, %v5580
        %v5609 = vsub.f32 %v5296, %v5583
        %v5610 = vsub.f32 %v5346, %v5586
        %v5611 = vsub.f32 %v5396, %v5589
        %v5612 = vsub.f32 %v5446, %v5592
        %v5613 = vsub.f32 %v5496, %v5595
        %v5614 = vsub.f32 %v5546, %v5598
        %v5615 = vmul.f32 %v5599, 1.442695
        %v5616 = vpow.pop %v5615
        %v5617 = vmul.f32 %v5600, 1.442695
        %v5618 = vpow.pop %v5617
        %v5619 = vmul.f32 %v5601, 1.442695
        %v5620 = vpow.pop %v5619
        %v5621 = vmul.f32 %v5602, 1.442695
        %v5622 = vpow.pop %v5621
        %v5623 = vmul.f32 %v5603, 1.442695
        %v5624 = vpow.pop %v5623
        %v5625 = vmul.f32 %v5604, 1.442695
        %v5626 = vpow.pop %v5625
        %v5627 = vmul.f32 %v5605, 1.442695
        %v5628 = vpow.pop %v5627
        %v5629 = vmul.f32 %v5606, 1.442695
        %v5630 = vpow.pop %v5629
        %v5631 = vmul.f32 %v5607, 1.442695
        %v5632 = vpow.pop %v5631
        %v5633 = vmul.f32 %v5608, 1.442695
        %v5634 = vpow.pop %v5633
        %v5635 = vmul.f32 %v5609, 1.442695
        %v5636 = vpow.pop %v5635
        %v5637 = vmul.f32 %v5610, 1.442695
        %v5638 = vpow.pop %v5637
        %v5639 = vmul.f32 %v5611, 1.442695
        %v5640 = vpow.pop %v5639
        %v5641 = vmul.f32 %v5612, 1.442695
        %v5642 = vpow.pop %v5641
        %v5643 = vmul.f32 %v5613, 1.442695
        %v5644 = vpow.pop %v5643
        %v5645 = vmul.f32 %v5614, 1.442695
        %v5646 = vpow.pop %v5645
        %v5647 = vsel %vm2013, %v5616, 0.0
        %5648 = vadd.xlane.f32.xlu0 %v5647
        %v5649 = vpop.xlane.xlu0 %5648
        %v5650 = vsel %vm2013, %v5618, 0.0
        %5651 = vadd.xlane.f32.xlu0 %v5650
        %v5652 = vpop.xlane.xlu0 %5651
        %v5653 = vsel %vm2013, %v5620, 0.0
        %5654 = vadd.xlane.f32.xlu0 %v5653
        %v5655 = vpop.xlane.xlu0 %5654
        %v5656 = vsel %vm2013, %v5622, 0.0
        %5657 = vadd.xlane.f32.xlu0 %v5656
        %v5658 = vpop.xlane.xlu0 %5657
        %v5659 = vsel %vm2013, %v5624, 0.0
        %5660 = vadd.xlane.f32.xlu0 %v5659
        %v5661 = vpop.xlane.xlu0 %5660
        %v5662 = vsel %vm2013, %v5626, 0.0
        %5663 = vadd.xlane.f32.xlu0 %v5662
        %v5664 = vpop.xlane.xlu0 %5663
        %v5665 = vsel %vm2013, %v5628, 0.0
        %5666 = vadd.xlane.f32.xlu0 %v5665
        %v5667 = vpop.xlane.xlu0 %5666
        %v5668 = vsel %vm2013, %v5630, 0.0
        %5669 = vadd.xlane.f32.xlu0 %v5668
        %v5670 = vpop.xlane.xlu0 %5669
        %v5671 = vsel %vm2013, %v5632, 0.0
        %5672 = vadd.xlane.f32.xlu0 %v5671
        %v5673 = vpop.xlane.xlu0 %5672
        %v5674 = vsel %vm2013, %v5634, 0.0
        %5675 = vadd.xlane.f32.xlu0 %v5674
        %v5676 = vpop.xlane.xlu0 %5675
        %v5677 = vsel %vm2013, %v5636, 0.0
        %5678 = vadd.xlane.f32.xlu0 %v5677
        %v5679 = vpop.xlane.xlu0 %5678
        %v5680 = vsel %vm2013, %v5638, 0.0
        %5681 = vadd.xlane.f32.xlu0 %v5680
        %v5682 = vpop.xlane.xlu0 %5681
        %v5683 = vsel %vm2013, %v5640, 0.0
        %5684 = vadd.xlane.f32.xlu0 %v5683
        %v5685 = vpop.xlane.xlu0 %5684
        %v5686 = vsel %vm2013, %v5642, 0.0
        %5687 = vadd.xlane.f32.xlu0 %v5686
        %v5688 = vpop.xlane.xlu0 %5687
        %v5689 = vsel %vm2013, %v5644, 0.0
        %5690 = vadd.xlane.f32.xlu0 %v5689
        %v5691 = vpop.xlane.xlu0 %5690
        %v5692 = vsel %vm2013, %v5646, 0.0
        %5693 = vadd.xlane.f32.xlu0 %v5692
        %v5694 = vpop.xlane.xlu0 %5693
        %v5695 = vrcp.pop %v5649
        %v5696 = vrcp.pop %v5652
        %v5697 = vrcp.pop %v5655
        %v5698 = vrcp.pop %v5658
        %v5699 = vrcp.pop %v5661
        %v5700 = vrcp.pop %v5664
        %v5701 = vrcp.pop %v5667
        %v5702 = vrcp.pop %v5670
        %v5703 = vrcp.pop %v5673
        %v5704 = vrcp.pop %v5676
        %v5705 = vrcp.pop %v5679
        %v5706 = vrcp.pop %v5682
        %v5707 = vrcp.pop %v5685
        %v5708 = vrcp.pop %v5688
        %v5709 = vrcp.pop %v5691
        %v5710 = vrcp.pop %v5694
        %v5711 = vmul.f32 %v5616, %v5695
        %v5712 = vmul.f32 %v5618, %v5696
        %v5713 = vmul.f32 %v5620, %v5697
        %v5714 = vmul.f32 %v5622, %v5698
        %v5715 = vmul.f32 %v5624, %v5699
        %v5716 = vmul.f32 %v5626, %v5700
        %v5717 = vmul.f32 %v5628, %v5701
        %v5718 = vmul.f32 %v5630, %v5702
        %v5719 = vmul.f32 %v5632, %v5703
        %v5720 = vmul.f32 %v5634, %v5704
        %v5721 = vmul.f32 %v5636, %v5705
        %v5722 = vmul.f32 %v5638, %v5706
        %v5723 = vmul.f32 %v5640, %v5707
        %v5724 = vmul.f32 %v5642, %v5708
        %v5725 = vmul.f32 %v5644, %v5709
        %v5726 = vmul.f32 %v5646, %v5710
        %v5727 = vpack.c.bf16 %v5711, %v5711
        %v5728 = vpack.c.bf16 %v5712, %v5712
        %v5729 = vpack.c.bf16 %v5713, %v5713
        %v5730 = vpack.c.bf16 %v5714, %v5714
        %v5731 = vpack.c.bf16 %v5715, %v5715
        %v5732 = vpack.c.bf16 %v5716, %v5716
        %v5733 = vpack.c.bf16 %v5717, %v5717
        %v5734 = vpack.c.bf16 %v5718, %v5718
        %v5735 = vpack.c.bf16 %v5719, %v5719
        %v5736 = vpack.c.bf16 %v5720, %v5720
        %v5737 = vpack.c.bf16 %v5721, %v5721
        %v5738 = vpack.c.bf16 %v5722, %v5722
        %v5739 = vpack.c.bf16 %v5723, %v5723
        %v5740 = vpack.c.bf16 %v5724, %v5724
        %v5741 = vpack.c.bf16 %v5725, %v5725
        %v5742 = vpack.c.bf16 %v5726, %v5726
        %5743 = vrot.lane.b32.xlu0 %v1260, 64
        %v5744 = vpop.permute.xlu0 %5743
        %v5746 = vsel %vm2013, %v5727, 0
        %v5749 = vsel %vm2209, %v5744, 0
        %5751 = vmatprep.subr.bf16.mxu0 0
        %5752 = vmatpush1.bf16.msra.mxu0 %v5749
        %5753 = vmatprep.subr.bf16.mxu0 0
        %5754 = vmatpush1.bf16.msra.mxu0 0
        %5755 = vmatprep.subr.bf16.mxu0 0
        %5756 = vmatpush1.bf16.msra.mxu0 0
        %5757 = vmatprep.subr.bf16.mxu0 0
        %5758 = vmatpush1.bf16.msra.mxu0 0
        %5759 = vmatprep.subr.bf16.mxu0 0
        %5760 = vmatpush1.bf16.msra.mxu0 0
        %5761 = vmatprep.subr.bf16.mxu0 0
        %5762 = vmatpush1.bf16.msra.mxu0 0
        %5763 = vmatprep.subr.bf16.mxu0 0
        %5764 = vmatpush1.bf16.msra.mxu0 0
        %5765 = vmatprep.subr.bf16.mxu0 0
        %5766 = vmatpush1.bf16.msra.mxu0 0
        %5767 = vmatprep.subr.bf16.mxu0 0
        %5768 = vmatpush1.bf16.msra.mxu0 0
        %5769 = vmatprep.subr.bf16.mxu0 0
        %5770 = vmatpush1.bf16.msra.mxu0 0
        %5771 = vmatprep.subr.bf16.mxu0 0
        %5772 = vmatpush1.bf16.msra.mxu0 0
        %5773 = vmatprep.subr.bf16.mxu0 0
        %5774 = vmatpush1.bf16.msra.mxu0 0
        %5775 = vmatprep.subr.bf16.mxu0 0
        %5776 = vmatpush1.bf16.msra.mxu0 0
        %5777 = vmatprep.subr.bf16.mxu0 0
        %5778 = vmatpush1.bf16.msra.mxu0 0
        %5779 = vmatprep.subr.bf16.mxu0 0
        %5780 = vmatpush1.bf16.msra.mxu0 0
        %5781 = vmatprep.subr.bf16.mxu0 0
        %5782 = vmatpush1.bf16.msra.mxu0 0
        %5783 = vmatprep.mubr.bf16.mxu0 0
        %5784 = vmatmul.mubr.bf16.gmra.mrb[0].mxu0 %v5746
        %v5785 = vpop.f32.mrb[0].mxu0
        %v5786 = vadd.f32 0.0, %v5785
        %v5787 = vpop.f32.mrb[0].mxu0
        %v5788 = vpop.f32.mrb[0].mxu0
        %v5789 = vpop.f32.mrb[0].mxu0
        %5790 = vdwg.mxu0
        %5791 = vrot.lane.b32.xlu0 %v1261, 64
        %v5792 = vpop.permute.xlu0 %5791
        %v5794 = vsel %vm2013, %v5728, 0
        %v5797 = vsel %vm2209, %v5792, 0
        %5799 = vmatprep.subr.bf16.mxu0 0
        %5800 = vmatpush1.bf16.msra.mxu0 %v5797
        %5801 = vmatprep.subr.bf16.mxu0 0
        %5802 = vmatpush1.bf16.msra.mxu0 0
        %5803 = vmatprep.subr.bf16.mxu0 0
        %5804 = vmatpush1.bf16.msra.mxu0 0
        %5805 = vmatprep.subr.bf16.mxu0 0
        %5806 = vmatpush1.bf16.msra.mxu0 0
        %5807 = vmatprep.subr.bf16.mxu0 0
        %5808 = vmatpush1.bf16.msra.mxu0 0
        %5809 = vmatprep.subr.bf16.mxu0 0
        %5810 = vmatpush1.bf16.msra.mxu0 0
        %5811 = vmatprep.subr.bf16.mxu0 0
        %5812 = vmatpush1.bf16.msra.mxu0 0
        %5813 = vmatprep.subr.bf16.mxu0 0
        %5814 = vmatpush1.bf16.msra.mxu0 0
        %5815 = vmatprep.subr.bf16.mxu0 0
        %5816 = vmatpush1.bf16.msra.mxu0 0
        %5817 = vmatprep.subr.bf16.mxu0 0
        %5818 = vmatpush1.bf16.msra.mxu0 0
        %5819 = vmatprep.subr.bf16.mxu0 0
        %5820 = vmatpush1.bf16.msra.mxu0 0
        %5821 = vmatprep.subr.bf16.mxu0 0
        %5822 = vmatpush1.bf16.msra.mxu0 0
        %5823 = vmatprep.subr.bf16.mxu0 0
        %5824 = vmatpush1.bf16.msra.mxu0 0
        %5825 = vmatprep.subr.bf16.mxu0 0
        %5826 = vmatpush1.bf16.msra.mxu0 0
        %5827 = vmatprep.subr.bf16.mxu0 0
        %5828 = vmatpush1.bf16.msra.mxu0 0
        %5829 = vmatprep.subr.bf16.mxu0 0
        %5830 = vmatpush1.bf16.msra.mxu0 0
        %5831 = vmatprep.mubr.bf16.mxu0 0
        %5832 = vmatmul.mubr.bf16.gmra.mrb[0].mxu0 %v5794
        %v5833 = vpop.f32.mrb[0].mxu0
        %v5834 = vadd.f32 0.0, %v5833
        %v5835 = vpop.f32.mrb[0].mxu0
        %v5836 = vpop.f32.mrb[0].mxu0
        %v5837 = vpop.f32.mrb[0].mxu0
        %5838 = vdwg.mxu0
        %5839 = vrot.lane.b32.xlu0 %v1262, 64
        %v5840 = vpop.permute.xlu0 %5839
        %v5842 = vsel %vm2013, %v5729, 0
        %v5845 = vsel %vm2209, %v5840, 0
        %5847 = vmatprep.subr.bf16.mxu0 0
        %5848 = vmatpush1.bf16.msra.mxu0 %v5845
        %5849 = vmatprep.subr.bf16.mxu0 0
        %5850 = vmatpush1.bf16.msra.mxu0 0
        %5851 = vmatprep.subr.bf16.mxu0 0
        %5852 = vmatpush1.bf16.msra.mxu0 0
        %5853 = vmatprep.subr.bf16.mxu0 0
        %5854 = vmatpush1.bf16.msra.mxu0 0
        %5855 = vmatprep.subr.bf16.mxu0 0
        %5856 = vmatpush1.bf16.msra.mxu0 0
        %5857 = vmatprep.subr.bf16.mxu0 0
        %5858 = vmatpush1.bf16.msra.mxu0 0
        %5859 = vmatprep.subr.bf16.mxu0 0
        %5860 = vmatpush1.bf16.msra.mxu0 0
        %5861 = vmatprep.subr.bf16.mxu0 0
        %5862 = vmatpush1.bf16.msra.mxu0 0
        %5863 = vmatprep.subr.bf16.mxu0 0
        %5864 = vmatpush1.bf16.msra.mxu0 0
        %5865 = vmatprep.subr.bf16.mxu0 0
        %5866 = vmatpush1.bf16.msra.mxu0 0
        %5867 = vmatprep.subr.bf16.mxu0 0
        %5868 = vmatpush1.bf16.msra.mxu0 0
        %5869 = vmatprep.subr.bf16.mxu0 0
        %5870 = vmatpush1.bf16.msra.mxu0 0
        %5871 = vmatprep.subr.bf16.mxu0 0
        %5872 = vmatpush1.bf16.msra.mxu0 0
        %5873 = vmatprep.subr.bf16.mxu0 0
        %5874 = vmatpush1.bf16.msra.mxu0 0
        %5875 = vmatprep.subr.bf16.mxu0 0
        %5876 = vmatpush1.bf16.msra.mxu0 0
        %5877 = vmatprep.subr.bf16.mxu0 0
        %5878 = vmatpush1.bf16.msra.mxu0 0
        %5879 = vmatprep.mubr.bf16.mxu0 0
        %5880 = vmatmul.mubr.bf16.gmra.mrb[0].mxu0 %v5842
        %v5881 = vpop.f32.mrb[0].mxu0
        %v5882 = vadd.f32 0.0, %v5881
        %v5883 = vpop.f32.mrb[0].mxu0
        %v5884 = vpop.f32.mrb[0].mxu0
        %v5885 = vpop.f32.mrb[0].mxu0
        %5886 = vdwg.mxu0
        %5887 = vrot.lane.b32.xlu0 %v1263, 64
        %v5888 = vpop.permute.xlu0 %5887
        %v5890 = vsel %vm2013, %v5730, 0
        %v5893 = vsel %vm2209, %v5888, 0
        %5895 = vmatprep.subr.bf16.mxu0 0
        %5896 = vmatpush1.bf16.msra.mxu0 %v5893
        %5897 = vmatprep.subr.bf16.mxu0 0
        %5898 = vmatpush1.bf16.msra.mxu0 0
        %5899 = vmatprep.subr.bf16.mxu0 0
        %5900 = vmatpush1.bf16.msra.mxu0 0
        %5901 = vmatprep.subr.bf16.mxu0 0
        %5902 = vmatpush1.bf16.msra.mxu0 0
        %5903 = vmatprep.subr.bf16.mxu0 0
        %5904 = vmatpush1.bf16.msra.mxu0 0
        %5905 = vmatprep.subr.bf16.mxu0 0
        %5906 = vmatpush1.bf16.msra.mxu0 0
        %5907 = vmatprep.subr.bf16.mxu0 0
        %5908 = vmatpush1.bf16.msra.mxu0 0
        %5909 = vmatprep.subr.bf16.mxu0 0
        %5910 = vmatpush1.bf16.msra.mxu0 0
        %5911 = vmatprep.subr.bf16.mxu0 0
        %5912 = vmatpush1.bf16.msra.mxu0 0
        %5913 = vmatprep.subr.bf16.mxu0 0
        %5914 = vmatpush1.bf16.msra.mxu0 0
        %5915 = vmatprep.subr.bf16.mxu0 0
        %5916 = vmatpush1.bf16.msra.mxu0 0
        %5917 = vmatprep.subr.bf16.mxu0 0
        %5918 = vmatpush1.bf16.msra.mxu0 0
        %5919 = vmatprep.subr.bf16.mxu0 0
        %5920 = vmatpush1.bf16.msra.mxu0 0
        %5921 = vmatprep.subr.bf16.mxu0 0
        %5922 = vmatpush1.bf16.msra.mxu0 0
        %5923 = vmatprep.subr.bf16.mxu0 0
        %5924 = vmatpush1.bf16.msra.mxu0 0
        %5925 = vmatprep.subr.bf16.mxu0 0
        %5926 = vmatpush1.bf16.msra.mxu0 0
        %5927 = vmatprep.mubr.bf16.mxu0 0
        %5928 = vmatmul.mubr.bf16.gmra.mrb[0].mxu0 %v5890
        %v5929 = vpop.f32.mrb[0].mxu0
        %v5930 = vadd.f32 0.0, %v5929
        %v5931 = vpop.f32.mrb[0].mxu0
        %v5932 = vpop.f32.mrb[0].mxu0
        %v5933 = vpop.f32.mrb[0].mxu0
        %5934 = vdwg.mxu0
        %5935 = vrot.lane.b32.xlu0 %v1264, 64
        %v5936 = vpop.permute.xlu0 %5935
        %v5938 = vsel %vm2013, %v5731, 0
        %v5941 = vsel %vm2209, %v5936, 0
        %5943 = vmatprep.subr.bf16.mxu0 0
        %5944 = vmatpush1.bf16.msra.mxu0 %v5941
        %5945 = vmatprep.subr.bf16.mxu0 0
        %5946 = vmatpush1.bf16.msra.mxu0 0
        %5947 = vmatprep.subr.bf16.mxu0 0
        %5948 = vmatpush1.bf16.msra.mxu0 0
        %5949 = vmatprep.subr.bf16.mxu0 0
        %5950 = vmatpush1.bf16.msra.mxu0 0
        %5951 = vmatprep.subr.bf16.mxu0 0
        %5952 = vmatpush1.bf16.msra.mxu0 0
        %5953 = vmatprep.subr.bf16.mxu0 0
        %5954 = vmatpush1.bf16.msra.mxu0 0
        %5955 = vmatprep.subr.bf16.mxu0 0
        %5956 = vmatpush1.bf16.msra.mxu0 0
        %5957 = vmatprep.subr.bf16.mxu0 0
        %5958 = vmatpush1.bf16.msra.mxu0 0
        %5959 = vmatprep.subr.bf16.mxu0 0
        %5960 = vmatpush1.bf16.msra.mxu0 0
        %5961 = vmatprep.subr.bf16.mxu0 0
        %5962 = vmatpush1.bf16.msra.mxu0 0
        %5963 = vmatprep.subr.bf16.mxu0 0
        %5964 = vmatpush1.bf16.msra.mxu0 0
        %5965 = vmatprep.subr.bf16.mxu0 0
        %5966 = vmatpush1.bf16.msra.mxu0 0
        %5967 = vmatprep.subr.bf16.mxu0 0
        %5968 = vmatpush1.bf16.msra.mxu0 0
        %5969 = vmatprep.subr.bf16.mxu0 0
        %5970 = vmatpush1.bf16.msra.mxu0 0
        %5971 = vmatprep.subr.bf16.mxu0 0
        %5972 = vmatpush1.bf16.msra.mxu0 0
        %5973 = vmatprep.subr.bf16.mxu0 0
        %5974 = vmatpush1.bf16.msra.mxu0 0
        %5975 = vmatprep.mubr.bf16.mxu0 0
        %5976 = vmatmul.mubr.bf16.gmra.mrb[0].mxu0 %v5938
        %v5977 = vpop.f32.mrb[0].mxu0
        %v5978 = vadd.f32 0.0, %v5977
        %v5979 = vpop.f32.mrb[0].mxu0
        %v5980 = vpop.f32.mrb[0].mxu0
        %v5981 = vpop.f32.mrb[0].mxu0
        %5982 = vdwg.mxu0
        %5983 = vrot.lane.b32.xlu0 %v1265, 64
        %v5984 = vpop.permute.xlu0 %5983
        %v5986 = vsel %vm2013, %v5732, 0
        %v5989 = vsel %vm2209, %v5984, 0
        %5991 = vmatprep.subr.bf16.mxu0 0
        %5992 = vmatpush1.bf16.msra.mxu0 %v5989
        %5993 = vmatprep.subr.bf16.mxu0 0
        %5994 = vmatpush1.bf16.msra.mxu0 0
        %5995 = vmatprep.subr.bf16.mxu0 0
        %5996 = vmatpush1.bf16.msra.mxu0 0
        %5997 = vmatprep.subr.bf16.mxu0 0
        %5998 = vmatpush1.bf16.msra.mxu0 0
        %5999 = vmatprep.subr.bf16.mxu0 0
        %6000 = vmatpush1.bf16.msra.mxu0 0
        %6001 = vmatprep.subr.bf16.mxu0 0
        %6002 = vmatpush1.bf16.msra.mxu0 0
        %6003 = vmatprep.subr.bf16.mxu0 0
        %6004 = vmatpush1.bf16.msra.mxu0 0
        %6005 = vmatprep.subr.bf16.mxu0 0
        %6006 = vmatpush1.bf16.msra.mxu0 0
        %6007 = vmatprep.subr.bf16.mxu0 0
        %6008 = vmatpush1.bf16.msra.mxu0 0
        %6009 = vmatprep.subr.bf16.mxu0 0
        %6010 = vmatpush1.bf16.msra.mxu0 0
        %6011 = vmatprep.subr.bf16.mxu0 0
        %6012 = vmatpush1.bf16.msra.mxu0 0
        %6013 = vmatprep.subr.bf16.mxu0 0
        %6014 = vmatpush1.bf16.msra.mxu0 0
        %6015 = vmatprep.subr.bf16.mxu0 0
        %6016 = vmatpush1.bf16.msra.mxu0 0
        %6017 = vmatprep.subr.bf16.mxu0 0
        %6018 = vmatpush1.bf16.msra.mxu0 0
        %6019 = vmatprep.subr.bf16.mxu0 0
        %6020 = vmatpush1.bf16.msra.mxu0 0
        %6021 = vmatprep.subr.bf16.mxu0 0
        %6022 = vmatpush1.bf16.msra.mxu0 0
        %6023 = vmatprep.mubr.bf16.mxu0 0
        %6024 = vmatmul.mubr.bf16.gmra.mrb[0].mxu0 %v5986
        %v6025 = vpop.f32.mrb[0].mxu0
        %v6026 = vadd.f32 0.0, %v6025
        %v6027 = vpop.f32.mrb[0].mxu0
        %v6028 = vpop.f32.mrb[0].mxu0
        %v6029 = vpop.f32.mrb[0].mxu0
        %6030 = vdwg.mxu0
        %6031 = vrot.lane.b32.xlu0 %v1266, 64
        %v6032 = vpop.permute.xlu0 %6031
        %v6034 = vsel %vm2013, %v5733, 0
        %v6037 = vsel %vm2209, %v6032, 0
        %6039 = vmatprep.subr.bf16.mxu0 0
        %6040 = vmatpush1.bf16.msra.mxu0 %v6037
        %6041 = vmatprep.subr.bf16.mxu0 0
        %6042 = vmatpush1.bf16.msra.mxu0 0
        %6043 = vmatprep.subr.bf16.mxu0 0
        %6044 = vmatpush1.bf16.msra.mxu0 0
        %6045 = vmatprep.subr.bf16.mxu0 0
        %6046 = vmatpush1.bf16.msra.mxu0 0
        %6047 = vmatprep.subr.bf16.mxu0 0
        %6048 = vmatpush1.bf16.msra.mxu0 0
        %6049 = vmatprep.subr.bf16.mxu0 0
        %6050 = vmatpush1.bf16.msra.mxu0 0
        %6051 = vmatprep.subr.bf16.mxu0 0
        %6052 = vmatpush1.bf16.msra.mxu0 0
        %6053 = vmatprep.subr.bf16.mxu0 0
        %6054 = vmatpush1.bf16.msra.mxu0 0
        %6055 = vmatprep.subr.bf16.mxu0 0
        %6056 = vmatpush1.bf16.msra.mxu0 0
        %6057 = vmatprep.subr.bf16.mxu0 0
        %6058 = vmatpush1.bf16.msra.mxu0 0
        %6059 = vmatprep.subr.bf16.mxu0 0
        %6060 = vmatpush1.bf16.msra.mxu0 0
        %6061 = vmatprep.subr.bf16.mxu0 0
        %6062 = vmatpush1.bf16.msra.mxu0 0
        %6063 = vmatprep.subr.bf16.mxu0 0
        %6064 = vmatpush1.bf16.msra.mxu0 0
        %6065 = vmatprep.subr.bf16.mxu0 0
        %6066 = vmatpush1.bf16.msra.mxu0 0
        %6067 = vmatprep.subr.bf16.mxu0 0
        %6068 = vmatpush1.bf16.msra.mxu0 0
        %6069 = vmatprep.subr.bf16.mxu0 0
        %6070 = vmatpush1.bf16.msra.mxu0 0
        %6071 = vmatprep.mubr.bf16.mxu0 0
        %6072 = vmatmul.mubr.bf16.gmra.mrb[0].mxu0 %v6034
        %v6073 = vpop.f32.mrb[0].mxu0
        %v6074 = vadd.f32 0.0, %v6073
        %v6075 = vpop.f32.mrb[0].mxu0
        %v6076 = vpop.f32.mrb[0].mxu0
        %v6077 = vpop.f32.mrb[0].mxu0
        %6078 = vdwg.mxu0
        %6079 = vrot.lane.b32.xlu0 %v1267, 64
        %v6080 = vpop.permute.xlu0 %6079
        %v6082 = vsel %vm2013, %v5734, 0
        %v6085 = vsel %vm2209, %v6080, 0
        %6087 = vmatprep.subr.bf16.mxu0 0
        %6088 = vmatpush1.bf16.msra.mxu0 %v6085
        %6089 = vmatprep.subr.bf16.mxu0 0
        %6090 = vmatpush1.bf16.msra.mxu0 0
        %6091 = vmatprep.subr.bf16.mxu0 0
        %6092 = vmatpush1.bf16.msra.mxu0 0
        %6093 = vmatprep.subr.bf16.mxu0 0
        %6094 = vmatpush1.bf16.msra.mxu0 0
        %6095 = vmatprep.subr.bf16.mxu0 0
        %6096 = vmatpush1.bf16.msra.mxu0 0
        %6097 = vmatprep.subr.bf16.mxu0 0
        %6098 = vmatpush1.bf16.msra.mxu0 0
        %6099 = vmatprep.subr.bf16.mxu0 0
        %6100 = vmatpush1.bf16.msra.mxu0 0
        %6101 = vmatprep.subr.bf16.mxu0 0
        %6102 = vmatpush1.bf16.msra.mxu0 0
        %6103 = vmatprep.subr.bf16.mxu0 0
        %6104 = vmatpush1.bf16.msra.mxu0 0
        %6105 = vmatprep.subr.bf16.mxu0 0
        %6106 = vmatpush1.bf16.msra.mxu0 0
        %6107 = vmatprep.subr.bf16.mxu0 0
        %6108 = vmatpush1.bf16.msra.mxu0 0
        %6109 = vmatprep.subr.bf16.mxu0 0
        %6110 = vmatpush1.bf16.msra.mxu0 0
        %6111 = vmatprep.subr.bf16.mxu0 0
        %6112 = vmatpush1.bf16.msra.mxu0 0
        %6113 = vmatprep.subr.bf16.mxu0 0
        %6114 = vmatpush1.bf16.msra.mxu0 0
        %6115 = vmatprep.subr.bf16.mxu0 0
        %6116 = vmatpush1.bf16.msra.mxu0 0
        %6117 = vmatprep.subr.bf16.mxu0 0
        %6118 = vmatpush1.bf16.msra.mxu0 0
        %6119 = vmatprep.mubr.bf16.mxu0 0
        %6120 = vmatmul.mubr.bf16.gmra.mrb[0].mxu0 %v6082
        %v6121 = vpop.f32.mrb[0].mxu0
        %v6122 = vadd.f32 0.0, %v6121
        %v6123 = vpop.f32.mrb[0].mxu0
        %v6124 = vpop.f32.mrb[0].mxu0
        %v6125 = vpop.f32.mrb[0].mxu0
        %6126 = vdwg.mxu0
        %6127 = vrot.lane.b32.xlu0 %v1268, 64
        %v6128 = vpop.permute.xlu0 %6127
        %v6130 = vsel %vm2013, %v5735, 0
        %v6133 = vsel %vm2209, %v6128, 0
        %6135 = vmatprep.subr.bf16.mxu0 0
        %6136 = vmatpush1.bf16.msra.mxu0 %v6133
        %6137 = vmatprep.subr.bf16.mxu0 0
        %6138 = vmatpush1.bf16.msra.mxu0 0
        %6139 = vmatprep.subr.bf16.mxu0 0
        %6140 = vmatpush1.bf16.msra.mxu0 0
        %6141 = vmatprep.subr.bf16.mxu0 0
        %6142 = vmatpush1.bf16.msra.mxu0 0
        %6143 = vmatprep.subr.bf16.mxu0 0
        %6144 = vmatpush1.bf16.msra.mxu0 0
        %6145 = vmatprep.subr.bf16.mxu0 0
        %6146 = vmatpush1.bf16.msra.mxu0 0
        %6147 = vmatprep.subr.bf16.mxu0 0
        %6148 = vmatpush1.bf16.msra.mxu0 0
        %6149 = vmatprep.subr.bf16.mxu0 0
        %6150 = vmatpush1.bf16.msra.mxu0 0
        %6151 = vmatprep.subr.bf16.mxu0 0
        %6152 = vmatpush1.bf16.msra.mxu0 0
        %6153 = vmatprep.subr.bf16.mxu0 0
        %6154 = vmatpush1.bf16.msra.mxu0 0
        %6155 = vmatprep.subr.bf16.mxu0 0
        %6156 = vmatpush1.bf16.msra.mxu0 0
        %6157 = vmatprep.subr.bf16.mxu0 0
        %6158 = vmatpush1.bf16.msra.mxu0 0
        %6159 = vmatprep.subr.bf16.mxu0 0
        %6160 = vmatpush1.bf16.msra.mxu0 0
        %6161 = vmatprep.subr.bf16.mxu0 0
        %6162 = vmatpush1.bf16.msra.mxu0 0
        %6163 = vmatprep.subr.bf16.mxu0 0
        %6164 = vmatpush1.bf16.msra.mxu0 0
        %6165 = vmatprep.subr.bf16.mxu0 0
        %6166 = vmatpush1.bf16.msra.mxu0 0
        %6167 = vmatprep.mubr.bf16.mxu0 0
        %6168 = vmatmul.mubr.bf16.gmra.mrb[0].mxu0 %v6130
        %v6169 = vpop.f32.mrb[0].mxu0
        %v6170 = vadd.f32 0.0, %v6169
        %v6171 = vpop.f32.mrb[0].mxu0
        %v6172 = vpop.f32.mrb[0].mxu0
        %v6173 = vpop.f32.mrb[0].mxu0
        %6174 = vdwg.mxu0
        %6175 = vrot.lane.b32.xlu0 %v1269, 64
        %v6176 = vpop.permute.xlu0 %6175
        %v6178 = vsel %vm2013, %v5736, 0
        %v6181 = vsel %vm2209, %v6176, 0
        %6183 = vmatprep.subr.bf16.mxu0 0
        %6184 = vmatpush1.bf16.msra.mxu0 %v6181
        %6185 = vmatprep.subr.bf16.mxu0 0
        %6186 = vmatpush1.bf16.msra.mxu0 0
        %6187 = vmatprep.subr.bf16.mxu0 0
        %6188 = vmatpush1.bf16.msra.mxu0 0
        %6189 = vmatprep.subr.bf16.mxu0 0
        %6190 = vmatpush1.bf16.msra.mxu0 0
        %6191 = vmatprep.subr.bf16.mxu0 0
        %6192 = vmatpush1.bf16.msra.mxu0 0
        %6193 = vmatprep.subr.bf16.mxu0 0
        %6194 = vmatpush1.bf16.msra.mxu0 0
        %6195 = vmatprep.subr.bf16.mxu0 0
        %6196 = vmatpush1.bf16.msra.mxu0 0
        %6197 = vmatprep.subr.bf16.mxu0 0
        %6198 = vmatpush1.bf16.msra.mxu0 0
        %6199 = vmatprep.subr.bf16.mxu0 0
        %6200 = vmatpush1.bf16.msra.mxu0 0
        %6201 = vmatprep.subr.bf16.mxu0 0
        %6202 = vmatpush1.bf16.msra.mxu0 0
        %6203 = vmatprep.subr.bf16.mxu0 0
        %6204 = vmatpush1.bf16.msra.mxu0 0
        %6205 = vmatprep.subr.bf16.mxu0 0
        %6206 = vmatpush1.bf16.msra.mxu0 0
        %6207 = vmatprep.subr.bf16.mxu0 0
        %6208 = vmatpush1.bf16.msra.mxu0 0
        %6209 = vmatprep.subr.bf16.mxu0 0
        %6210 = vmatpush1.bf16.msra.mxu0 0
        %6211 = vmatprep.subr.bf16.mxu0 0
        %6212 = vmatpush1.bf16.msra.mxu0 0
        %6213 = vmatprep.subr.bf16.mxu0 0
        %6214 = vmatpush1.bf16.msra.mxu0 0
        %6215 = vmatprep.mubr.bf16.mxu0 0
        %6216 = vmatmul.mubr.bf16.gmra.mrb[0].mxu0 %v6178
        %v6217 = vpop.f32.mrb[0].mxu0
        %v6218 = vadd.f32 0.0, %v6217
        %v6219 = vpop.f32.mrb[0].mxu0
        %v6220 = vpop.f32.mrb[0].mxu0
        %v6221 = vpop.f32.mrb[0].mxu0
        %6222 = vdwg.mxu0
        %6223 = vrot.lane.b32.xlu0 %v1270, 64
        %v6224 = vpop.permute.xlu0 %6223
        %v6226 = vsel %vm2013, %v5737, 0
        %v6229 = vsel %vm2209, %v6224, 0
        %6231 = vmatprep.subr.bf16.mxu0 0
        %6232 = vmatpush1.bf16.msra.mxu0 %v6229
        %6233 = vmatprep.subr.bf16.mxu0 0
        %6234 = vmatpush1.bf16.msra.mxu0 0
        %6235 = vmatprep.subr.bf16.mxu0 0
        %6236 = vmatpush1.bf16.msra.mxu0 0
        %6237 = vmatprep.subr.bf16.mxu0 0
        %6238 = vmatpush1.bf16.msra.mxu0 0
        %6239 = vmatprep.subr.bf16.mxu0 0
        %6240 = vmatpush1.bf16.msra.mxu0 0
        %6241 = vmatprep.subr.bf16.mxu0 0
        %6242 = vmatpush1.bf16.msra.mxu0 0
        %6243 = vmatprep.subr.bf16.mxu0 0
        %6244 = vmatpush1.bf16.msra.mxu0 0
        %6245 = vmatprep.subr.bf16.mxu0 0
        %6246 = vmatpush1.bf16.msra.mxu0 0
        %6247 = vmatprep.subr.bf16.mxu0 0
        %6248 = vmatpush1.bf16.msra.mxu0 0
        %6249 = vmatprep.subr.bf16.mxu0 0
        %6250 = vmatpush1.bf16.msra.mxu0 0
        %6251 = vmatprep.subr.bf16.mxu0 0
        %6252 = vmatpush1.bf16.msra.mxu0 0
        %6253 = vmatprep.subr.bf16.mxu0 0
        %6254 = vmatpush1.bf16.msra.mxu0 0
        %6255 = vmatprep.subr.bf16.mxu0 0
        %6256 = vmatpush1.bf16.msra.mxu0 0
        %6257 = vmatprep.subr.bf16.mxu0 0
        %6258 = vmatpush1.bf16.msra.mxu0 0
        %6259 = vmatprep.subr.bf16.mxu0 0
        %6260 = vmatpush1.bf16.msra.mxu0 0
        %6261 = vmatprep.subr.bf16.mxu0 0
        %6262 = vmatpush1.bf16.msra.mxu0 0
        %6263 = vmatprep.mubr.bf16.mxu0 0
        %6264 = vmatmul.mubr.bf16.gmra.mrb[0].mxu0 %v6226
        %v6265 = vpop.f32.mrb[0].mxu0
        %v6266 = vadd.f32 0.0, %v6265
        %v6267 = vpop.f32.mrb[0].mxu0
        %v6268 = vpop.f32.mrb[0].mxu0
        %v6269 = vpop.f32.mrb[0].mxu0
        %6270 = vdwg.mxu0
        %6271 = vrot.lane.b32.xlu0 %v1271, 64
        %v6272 = vpop.permute.xlu0 %6271
        %v6274 = vsel %vm2013, %v5738, 0
        %v6277 = vsel %vm2209, %v6272, 0
        %6279 = vmatprep.subr.bf16.mxu0 0
        %6280 = vmatpush1.bf16.msra.mxu0 %v6277
        %6281 = vmatprep.subr.bf16.mxu0 0
        %6282 = vmatpush1.bf16.msra.mxu0 0
        %6283 = vmatprep.subr.bf16.mxu0 0
        %6284 = vmatpush1.bf16.msra.mxu0 0
        %6285 = vmatprep.subr.bf16.mxu0 0
        %6286 = vmatpush1.bf16.msra.mxu0 0
        %6287 = vmatprep.subr.bf16.mxu0 0
        %6288 = vmatpush1.bf16.msra.mxu0 0
        %6289 = vmatprep.subr.bf16.mxu0 0
        %6290 = vmatpush1.bf16.msra.mxu0 0
        %6291 = vmatprep.subr.bf16.mxu0 0
        %6292 = vmatpush1.bf16.msra.mxu0 0
        %6293 = vmatprep.subr.bf16.mxu0 0
        %6294 = vmatpush1.bf16.msra.mxu0 0
        %6295 = vmatprep.subr.bf16.mxu0 0
        %6296 = vmatpush1.bf16.msra.mxu0 0
        %6297 = vmatprep.subr.bf16.mxu0 0
        %6298 = vmatpush1.bf16.msra.mxu0 0
        %6299 = vmatprep.subr.bf16.mxu0 0
        %6300 = vmatpush1.bf16.msra.mxu0 0
        %6301 = vmatprep.subr.bf16.mxu0 0
        %6302 = vmatpush1.bf16.msra.mxu0 0
        %6303 = vmatprep.subr.bf16.mxu0 0
        %6304 = vmatpush1.bf16.msra.mxu0 0
        %6305 = vmatprep.subr.bf16.mxu0 0
        %6306 = vmatpush1.bf16.msra.mxu0 0
        %6307 = vmatprep.subr.bf16.mxu0 0
        %6308 = vmatpush1.bf16.msra.mxu0 0
        %6309 = vmatprep.subr.bf16.mxu0 0
        %6310 = vmatpush1.bf16.msra.mxu0 0
        %6311 = vmatprep.mubr.bf16.mxu0 0
        %6312 = vmatmul.mubr.bf16.gmra.mrb[0].mxu0 %v6274
        %v6313 = vpop.f32.mrb[0].mxu0
        %v6314 = vadd.f32 0.0, %v6313
        %v6315 = vpop.f32.mrb[0].mxu0
        %v6316 = vpop.f32.mrb[0].mxu0
        %v6317 = vpop.f32.mrb[0].mxu0
        %6318 = vdwg.mxu0
        %6319 = vrot.lane.b32.xlu0 %v1272, 64
        %v6320 = vpop.permute.xlu0 %6319
        %v6322 = vsel %vm2013, %v5739, 0
        %v6325 = vsel %vm2209, %v6320, 0
        %6327 = vmatprep.subr.bf16.mxu0 0
        %6328 = vmatpush1.bf16.msra.mxu0 %v6325
        %6329 = vmatprep.subr.bf16.mxu0 0
        %6330 = vmatpush1.bf16.msra.mxu0 0
        %6331 = vmatprep.subr.bf16.mxu0 0
        %6332 = vmatpush1.bf16.msra.mxu0 0
        %6333 = vmatprep.subr.bf16.mxu0 0
        %6334 = vmatpush1.bf16.msra.mxu0 0
        %6335 = vmatprep.subr.bf16.mxu0 0
        %6336 = vmatpush1.bf16.msra.mxu0 0
        %6337 = vmatprep.subr.bf16.mxu0 0
        %6338 = vmatpush1.bf16.msra.mxu0 0
        %6339 = vmatprep.subr.bf16.mxu0 0
        %6340 = vmatpush1.bf16.msra.mxu0 0
        %6341 = vmatprep.subr.bf16.mxu0 0
        %6342 = vmatpush1.bf16.msra.mxu0 0
        %6343 = vmatprep.subr.bf16.mxu0 0
        %6344 = vmatpush1.bf16.msra.mxu0 0
        %6345 = vmatprep.subr.bf16.mxu0 0
        %6346 = vmatpush1.bf16.msra.mxu0 0
        %6347 = vmatprep.subr.bf16.mxu0 0
        %6348 = vmatpush1.bf16.msra.mxu0 0
        %6349 = vmatprep.subr.bf16.mxu0 0
        %6350 = vmatpush1.bf16.msra.mxu0 0
        %6351 = vmatprep.subr.bf16.mxu0 0
        %6352 = vmatpush1.bf16.msra.mxu0 0
        %6353 = vmatprep.subr.bf16.mxu0 0
        %6354 = vmatpush1.bf16.msra.mxu0 0
        %6355 = vmatprep.subr.bf16.mxu0 0
        %6356 = vmatpush1.bf16.msra.mxu0 0
        %6357 = vmatprep.subr.bf16.mxu0 0
        %6358 = vmatpush1.bf16.msra.mxu0 0
        %6359 = vmatprep.mubr.bf16.mxu0 0
        %6360 = vmatmul.mubr.bf16.gmra.mrb[0].mxu0 %v6322
        %v6361 = vpop.f32.mrb[0].mxu0
        %v6362 = vadd.f32 0.0, %v6361
        %v6363 = vpop.f32.mrb[0].mxu0
        %v6364 = vpop.f32.mrb[0].mxu0
        %v6365 = vpop.f32.mrb[0].mxu0
        %6366 = vdwg.mxu0
        %6367 = vrot.lane.b32.xlu0 %v1273, 64
        %v6368 = vpop.permute.xlu0 %6367
        %v6370 = vsel %vm2013, %v5740, 0
        %v6373 = vsel %vm2209, %v6368, 0
        %6375 = vmatprep.subr.bf16.mxu0 0
        %6376 = vmatpush1.bf16.msra.mxu0 %v6373
        %6377 = vmatprep.subr.bf16.mxu0 0
        %6378 = vmatpush1.bf16.msra.mxu0 0
        %6379 = vmatprep.subr.bf16.mxu0 0
        %6380 = vmatpush1.bf16.msra.mxu0 0
        %6381 = vmatprep.subr.bf16.mxu0 0
        %6382 = vmatpush1.bf16.msra.mxu0 0
        %6383 = vmatprep.subr.bf16.mxu0 0
        %6384 = vmatpush1.bf16.msra.mxu0 0
        %6385 = vmatprep.subr.bf16.mxu0 0
        %6386 = vmatpush1.bf16.msra.mxu0 0
        %6387 = vmatprep.subr.bf16.mxu0 0
        %6388 = vmatpush1.bf16.msra.mxu0 0
        %6389 = vmatprep.subr.bf16.mxu0 0
        %6390 = vmatpush1.bf16.msra.mxu0 0
        %6391 = vmatprep.subr.bf16.mxu0 0
        %6392 = vmatpush1.bf16.msra.mxu0 0
        %6393 = vmatprep.subr.bf16.mxu0 0
        %6394 = vmatpush1.bf16.msra.mxu0 0
        %6395 = vmatprep.subr.bf16.mxu0 0
        %6396 = vmatpush1.bf16.msra.mxu0 0
        %6397 = vmatprep.subr.bf16.mxu0 0
        %6398 = vmatpush1.bf16.msra.mxu0 0
        %6399 = vmatprep.subr.bf16.mxu0 0
        %6400 = vmatpush1.bf16.msra.mxu0 0
        %6401 = vmatprep.subr.bf16.mxu0 0
        %6402 = vmatpush1.bf16.msra.mxu0 0
        %6403 = vmatprep.subr.bf16.mxu0 0
        %6404 = vmatpush1.bf16.msra.mxu0 0
        %6405 = vmatprep.subr.bf16.mxu0 0
        %6406 = vmatpush1.bf16.msra.mxu0 0
        %6407 = vmatprep.mubr.bf16.mxu0 0
        %6408 = vmatmul.mubr.bf16.gmra.mrb[0].mxu0 %v6370
        %v6409 = vpop.f32.mrb[0].mxu0
        %v6410 = vadd.f32 0.0, %v6409
        %v6411 = vpop.f32.mrb[0].mxu0
        %v6412 = vpop.f32.mrb[0].mxu0
        %v6413 = vpop.f32.mrb[0].mxu0
        %6414 = vdwg.mxu0
        %6415 = vrot.lane.b32.xlu0 %v1274, 64
        %v6416 = vpop.permute.xlu0 %6415
        %v6418 = vsel %vm2013, %v5741, 0
        %v6421 = vsel %vm2209, %v6416, 0
        %6423 = vmatprep.subr.bf16.mxu0 0
        %6424 = vmatpush1.bf16.msra.mxu0 %v6421
        %6425 = vmatprep.subr.bf16.mxu0 0
        %6426 = vmatpush1.bf16.msra.mxu0 0
        %6427 = vmatprep.subr.bf16.mxu0 0
        %6428 = vmatpush1.bf16.msra.mxu0 0
        %6429 = vmatprep.subr.bf16.mxu0 0
        %6430 = vmatpush1.bf16.msra.mxu0 0
        %6431 = vmatprep.subr.bf16.mxu0 0
        %6432 = vmatpush1.bf16.msra.mxu0 0
        %6433 = vmatprep.subr.bf16.mxu0 0
        %6434 = vmatpush1.bf16.msra.mxu0 0
        %6435 = vmatprep.subr.bf16.mxu0 0
        %6436 = vmatpush1.bf16.msra.mxu0 0
        %6437 = vmatprep.subr.bf16.mxu0 0
        %6438 = vmatpush1.bf16.msra.mxu0 0
        %6439 = vmatprep.subr.bf16.mxu0 0
        %6440 = vmatpush1.bf16.msra.mxu0 0
        %6441 = vmatprep.subr.bf16.mxu0 0
        %6442 = vmatpush1.bf16.msra.mxu0 0
        %6443 = vmatprep.subr.bf16.mxu0 0
        %6444 = vmatpush1.bf16.msra.mxu0 0
        %6445 = vmatprep.subr.bf16.mxu0 0
        %6446 = vmatpush1.bf16.msra.mxu0 0
        %6447 = vmatprep.subr.bf16.mxu0 0
        %6448 = vmatpush1.bf16.msra.mxu0 0
        %6449 = vmatprep.subr.bf16.mxu0 0
        %6450 = vmatpush1.bf16.msra.mxu0 0
        %6451 = vmatprep.subr.bf16.mxu0 0
        %6452 = vmatpush1.bf16.msra.mxu0 0
        %6453 = vmatprep.subr.bf16.mxu0 0
        %6454 = vmatpush1.bf16.msra.mxu0 0
        %6455 = vmatprep.mubr.bf16.mxu0 0
        %6456 = vmatmul.mubr.bf16.gmra.mrb[0].mxu0 %v6418
        %v6457 = vpop.f32.mrb[0].mxu0
        %v6458 = vadd.f32 0.0, %v6457
        %v6459 = vpop.f32.mrb[0].mxu0
        %v6460 = vpop.f32.mrb[0].mxu0
        %v6461 = vpop.f32.mrb[0].mxu0
        %6462 = vdwg.mxu0
        %6463 = vrot.lane.b32.xlu0 %v1275, 64
        %v6464 = vpop.permute.xlu0 %6463
        %v6466 = vsel %vm2013, %v5742, 0
        %v6469 = vsel %vm2209, %v6464, 0
        %6471 = vmatprep.subr.bf16.mxu0 0
        %6472 = vmatpush1.bf16.msra.mxu0 %v6469
        %6473 = vmatprep.subr.bf16.mxu0 0
        %6474 = vmatpush1.bf16.msra.mxu0 0
        %6475 = vmatprep.subr.bf16.mxu0 0
        %6476 = vmatpush1.bf16.msra.mxu0 0
        %6477 = vmatprep.subr.bf16.mxu0 0
        %6478 = vmatpush1.bf16.msra.mxu0 0
        %6479 = vmatprep.subr.bf16.mxu0 0
        %6480 = vmatpush1.bf16.msra.mxu0 0
        %6481 = vmatprep.subr.bf16.mxu0 0
        %6482 = vmatpush1.bf16.msra.mxu0 0
        %6483 = vmatprep.subr.bf16.mxu0 0
        %6484 = vmatpush1.bf16.msra.mxu0 0
        %6485 = vmatprep.subr.bf16.mxu0 0
        %6486 = vmatpush1.bf16.msra.mxu0 0
        %6487 = vmatprep.subr.bf16.mxu0 0
        %6488 = vmatpush1.bf16.msra.mxu0 0
        %6489 = vmatprep.subr.bf16.mxu0 0
        %6490 = vmatpush1.bf16.msra.mxu0 0
        %6491 = vmatprep.subr.bf16.mxu0 0
        %6492 = vmatpush1.bf16.msra.mxu0 0
        %6493 = vmatprep.subr.bf16.mxu0 0
        %6494 = vmatpush1.bf16.msra.mxu0 0
        %6495 = vmatprep.subr.bf16.mxu0 0
        %6496 = vmatpush1.bf16.msra.mxu0 0
        %6497 = vmatprep.subr.bf16.mxu0 0
        %6498 = vmatpush1.bf16.msra.mxu0 0
        %6499 = vmatprep.subr.bf16.mxu0 0
        %6500 = vmatpush1.bf16.msra.mxu0 0
        %6501 = vmatprep.subr.bf16.mxu0 0
        %6502 = vmatpush1.bf16.msra.mxu0 0
        %6503 = vmatprep.mubr.bf16.mxu0 0
        %6504 = vmatmul.mubr.bf16.gmra.mrb[0].mxu0 %v6466
        %v6505 = vpop.f32.mrb[0].mxu0
        %v6506 = vadd.f32 0.0, %v6505
        %v6507 = vpop.f32.mrb[0].mxu0
        %v6508 = vpop.f32.mrb[0].mxu0
        %v6509 = vpop.f32.mrb[0].mxu0
        %6510 = vdwg.mxu0
        %6511 = vrot.lane.b32.xlu0 %v1228, 32
        %v6512 = vpop.permute.xlu0 %6511
        %6513 = vrot.lane.b32.xlu0 %v1244, 32
        %v6514 = vpop.permute.xlu0 %6513
        %v6516 = vsel %vm1276, %v6512, 0
        %v6519 = vsel %vm1276, %v6514, 0
        %6521 = vmatprep.subr.bf16.mxu0 0
        %6522 = vmatpush1.bf16.xpose.msra.mxu0 %v6519
        %6523 = vmatprep.subr.bf16.mxu0 0
        %6524 = vmatpush1.bf16.xpose.msra.mxu0 0
        %6525 = vmatprep.subr.bf16.mxu0 0
        %6526 = vmatpush1.bf16.xpose.msra.mxu0 0
        %6527 = vmatprep.subr.bf16.mxu0 0
        %6528 = vmatpush1.bf16.xpose.msra.mxu0 0
        %6529 = vmatprep.subr.bf16.mxu0 0
        %6530 = vmatpush1.bf16.xpose.msra.mxu0 0
        %6531 = vmatprep.subr.bf16.mxu0 0
        %6532 = vmatpush1.bf16.xpose.msra.mxu0 0
        %6533 = vmatprep.subr.bf16.mxu0 0
        %6534 = vmatpush1.bf16.xpose.msra.mxu0 0
        %6535 = vmatprep.subr.bf16.mxu0 0
        %6536 = vmatpush1.bf16.xpose.msra.mxu0 0
        %6537 = vmatprep.subr.bf16.mxu0 0
        %6538 = vmatpush1.bf16.xpose.msra.mxu0 0
        %6539 = vmatprep.subr.bf16.mxu0 0
        %6540 = vmatpush1.bf16.xpose.msra.mxu0 0
        %6541 = vmatprep.subr.bf16.mxu0 0
        %6542 = vmatpush1.bf16.xpose.msra.mxu0 0
        %6543 = vmatprep.subr.bf16.mxu0 0
        %6544 = vmatpush1.bf16.xpose.msra.mxu0 0
        %6545 = vmatprep.subr.bf16.mxu0 0
        %6546 = vmatpush1.bf16.xpose.msra.mxu0 0
        %6547 = vmatprep.subr.bf16.mxu0 0
        %6548 = vmatpush1.bf16.xpose.msra.mxu0 0
        %6549 = vmatprep.subr.bf16.mxu0 0
        %6550 = vmatpush1.bf16.xpose.msra.mxu0 0
        %6551 = vmatprep.subr.bf16.mxu0 0
        %6552 = vmatpush1.bf16.xpose.msra.mxu0 0
        %6553 = vmatprep.mubr.bf16.mxu0 0
        %6554 = vmatmul.mubr.bf16.gmra.mrb[0].mxu0 %v6516
        %v6555 = vpop.f32.mrb[0].mxu0
        %v6556 = vadd.f32 0.0, %v6555
        %v6557 = vpop.f32.mrb[0].mxu0
        %v6558 = vpop.f32.mrb[0].mxu0
        %v6559 = vpop.f32.mrb[0].mxu0
        %6560 = vdwg.mxu0
        %6561 = vrot.lane.b32.xlu0 %v1229, 32
        %v6562 = vpop.permute.xlu0 %6561
        %6563 = vrot.lane.b32.xlu0 %v1245, 32
        %v6564 = vpop.permute.xlu0 %6563
        %v6566 = vsel %vm1276, %v6562, 0
        %v6569 = vsel %vm1276, %v6564, 0
        %6571 = vmatprep.subr.bf16.mxu0 0
        %6572 = vmatpush1.bf16.xpose.msra.mxu0 %v6569
        %6573 = vmatprep.subr.bf16.mxu0 0
        %6574 = vmatpush1.bf16.xpose.msra.mxu0 0
        %6575 = vmatprep.subr.bf16.mxu0 0
        %6576 = vmatpush1.bf16.xpose.msra.mxu0 0
        %6577 = vmatprep.subr.bf16.mxu0 0
        %6578 = vmatpush1.bf16.xpose.msra.mxu0 0
        %6579 = vmatprep.subr.bf16.mxu0 0
        %6580 = vmatpush1.bf16.xpose.msra.mxu0 0
        %6581 = vmatprep.subr.bf16.mxu0 0
        %6582 = vmatpush1.bf16.xpose.msra.mxu0 0
        %6583 = vmatprep.subr.bf16.mxu0 0
        %6584 = vmatpush1.bf16.xpose.msra.mxu0 0
        %6585 = vmatprep.subr.bf16.mxu0 0
        %6586 = vmatpush1.bf16.xpose.msra.mxu0 0
        %6587 = vmatprep.subr.bf16.mxu0 0
        %6588 = vmatpush1.bf16.xpose.msra.mxu0 0
        %6589 = vmatprep.subr.bf16.mxu0 0
        %6590 = vmatpush1.bf16.xpose.msra.mxu0 0
        %6591 = vmatprep.subr.bf16.mxu0 0
        %6592 = vmatpush1.bf16.xpose.msra.mxu0 0
        %6593 = vmatprep.subr.bf16.mxu0 0
        %6594 = vmatpush1.bf16.xpose.msra.mxu0 0
        %6595 = vmatprep.subr.bf16.mxu0 0
        %6596 = vmatpush1.bf16.xpose.msra.mxu0 0
        %6597 = vmatprep.subr.bf16.mxu0 0
        %6598 = vmatpush1.bf16.xpose.msra.mxu0 0
        %6599 = vmatprep.subr.bf16.mxu0 0
        %6600 = vmatpush1.bf16.xpose.msra.mxu0 0
        %6601 = vmatprep.subr.bf16.mxu0 0
        %6602 = vmatpush1.bf16.xpose.msra.mxu0 0
        %6603 = vmatprep.mubr.bf16.mxu0 0
        %6604 = vmatmul.mubr.bf16.gmra.mrb[0].mxu0 %v6566
        %v6605 = vpop.f32.mrb[0].mxu0
        %v6606 = vadd.f32 0.0, %v6605
        %v6607 = vpop.f32.mrb[0].mxu0
        %v6608 = vpop.f32.mrb[0].mxu0
        %v6609 = vpop.f32.mrb[0].mxu0
        %6610 = vdwg.mxu0
        %6611 = vrot.lane.b32.xlu0 %v1230, 32
        %v6612 = vpop.permute.xlu0 %6611
        %6613 = vrot.lane.b32.xlu0 %v1246, 32
        %v6614 = vpop.permute.xlu0 %6613
        %v6616 = vsel %vm1276, %v6612, 0
        %v6619 = vsel %vm1276, %v6614, 0
        %6621 = vmatprep.subr.bf16.mxu0 0
        %6622 = vmatpush1.bf16.xpose.msra.mxu0 %v6619
        %6623 = vmatprep.subr.bf16.mxu0 0
        %6624 = vmatpush1.bf16.xpose.msra.mxu0 0
        %6625 = vmatprep.subr.bf16.mxu0 0
        %6626 = vmatpush1.bf16.xpose.msra.mxu0 0
        %6627 = vmatprep.subr.bf16.mxu0 0
        %6628 = vmatpush1.bf16.xpose.msra.mxu0 0
        %6629 = vmatprep.subr.bf16.mxu0 0
        %6630 = vmatpush1.bf16.xpose.msra.mxu0 0
        %6631 = vmatprep.subr.bf16.mxu0 0
        %6632 = vmatpush1.bf16.xpose.msra.mxu0 0
        %6633 = vmatprep.subr.bf16.mxu0 0
        %6634 = vmatpush1.bf16.xpose.msra.mxu0 0
        %6635 = vmatprep.subr.bf16.mxu0 0
        %6636 = vmatpush1.bf16.xpose.msra.mxu0 0
        %6637 = vmatprep.subr.bf16.mxu0 0
        %6638 = vmatpush1.bf16.xpose.msra.mxu0 0
        %6639 = vmatprep.subr.bf16.mxu0 0
        %6640 = vmatpush1.bf16.xpose.msra.mxu0 0
        %6641 = vmatprep.subr.bf16.mxu0 0
        %6642 = vmatpush1.bf16.xpose.msra.mxu0 0
        %6643 = vmatprep.subr.bf16.mxu0 0
        %6644 = vmatpush1.bf16.xpose.msra.mxu0 0
        %6645 = vmatprep.subr.bf16.mxu0 0
        %6646 = vmatpush1.bf16.xpose.msra.mxu0 0
        %6647 = vmatprep.subr.bf16.mxu0 0
        %6648 = vmatpush1.bf16.xpose.msra.mxu0 0
        %6649 = vmatprep.subr.bf16.mxu0 0
        %6650 = vmatpush1.bf16.xpose.msra.mxu0 0
        %6651 = vmatprep.subr.bf16.mxu0 0
        %6652 = vmatpush1.bf16.xpose.msra.mxu0 0
        %6653 = vmatprep.mubr.bf16.mxu0 0
        %6654 = vmatmul.mubr.bf16.gmra.mrb[0].mxu0 %v6616
        %v6655 = vpop.f32.mrb[0].mxu0
        %v6656 = vadd.f32 0.0, %v6655
        %v6657 = vpop.f32.mrb[0].mxu0
        %v6658 = vpop.f32.mrb[0].mxu0
        %v6659 = vpop.f32.mrb[0].mxu0
        %6660 = vdwg.mxu0
        %6661 = vrot.lane.b32.xlu0 %v1231, 32
        %v6662 = vpop.permute.xlu0 %6661
        %6663 = vrot.lane.b32.xlu0 %v1247, 32
        %v6664 = vpop.permute.xlu0 %6663
        %v6666 = vsel %vm1276, %v6662, 0
        %v6669 = vsel %vm1276, %v6664, 0
        %6671 = vmatprep.subr.bf16.mxu0 0
        %6672 = vmatpush1.bf16.xpose.msra.mxu0 %v6669
        %6673 = vmatprep.subr.bf16.mxu0 0
        %6674 = vmatpush1.bf16.xpose.msra.mxu0 0
        %6675 = vmatprep.subr.bf16.mxu0 0
        %6676 = vmatpush1.bf16.xpose.msra.mxu0 0
        %6677 = vmatprep.subr.bf16.mxu0 0
        %6678 = vmatpush1.bf16.xpose.msra.mxu0 0
        %6679 = vmatprep.subr.bf16.mxu0 0
        %6680 = vmatpush1.bf16.xpose.msra.mxu0 0
        %6681 = vmatprep.subr.bf16.mxu0 0
        %6682 = vmatpush1.bf16.xpose.msra.mxu0 0
        %6683 = vmatprep.subr.bf16.mxu0 0
        %6684 = vmatpush1.bf16.xpose.msra.mxu0 0
        %6685 = vmatprep.subr.bf16.mxu0 0
        %6686 = vmatpush1.bf16.xpose.msra.mxu0 0
        %6687 = vmatprep.subr.bf16.mxu0 0
        %6688 = vmatpush1.bf16.xpose.msra.mxu0 0
        %6689 = vmatprep.subr.bf16.mxu0 0
        %6690 = vmatpush1.bf16.xpose.msra.mxu0 0
        %6691 = vmatprep.subr.bf16.mxu0 0
        %6692 = vmatpush1.bf16.xpose.msra.mxu0 0
        %6693 = vmatprep.subr.bf16.mxu0 0
        %6694 = vmatpush1.bf16.xpose.msra.mxu0 0
        %6695 = vmatprep.subr.bf16.mxu0 0
        %6696 = vmatpush1.bf16.xpose.msra.mxu0 0
        %6697 = vmatprep.subr.bf16.mxu0 0
        %6698 = vmatpush1.bf16.xpose.msra.mxu0 0
        %6699 = vmatprep.subr.bf16.mxu0 0
        %6700 = vmatpush1.bf16.xpose.msra.mxu0 0
        %6701 = vmatprep.subr.bf16.mxu0 0
        %6702 = vmatpush1.bf16.xpose.msra.mxu0 0
        %6703 = vmatprep.mubr.bf16.mxu0 0
        %6704 = vmatmul.mubr.bf16.gmra.mrb[0].mxu0 %v6666
        %v6705 = vpop.f32.mrb[0].mxu0
        %v6706 = vadd.f32 0.0, %v6705
        %v6707 = vpop.f32.mrb[0].mxu0
        %v6708 = vpop.f32.mrb[0].mxu0
        %v6709 = vpop.f32.mrb[0].mxu0
        %6710 = vdwg.mxu0
        %6711 = vrot.lane.b32.xlu0 %v1232, 32
        %v6712 = vpop.permute.xlu0 %6711
        %6713 = vrot.lane.b32.xlu0 %v1248, 32
        %v6714 = vpop.permute.xlu0 %6713
        %v6716 = vsel %vm1276, %v6712, 0
        %v6719 = vsel %vm1276, %v6714, 0
        %6721 = vmatprep.subr.bf16.mxu0 0
        %6722 = vmatpush1.bf16.xpose.msra.mxu0 %v6719
        %6723 = vmatprep.subr.bf16.mxu0 0
        %6724 = vmatpush1.bf16.xpose.msra.mxu0 0
        %6725 = vmatprep.subr.bf16.mxu0 0
        %6726 = vmatpush1.bf16.xpose.msra.mxu0 0
        %6727 = vmatprep.subr.bf16.mxu0 0
        %6728 = vmatpush1.bf16.xpose.msra.mxu0 0
        %6729 = vmatprep.subr.bf16.mxu0 0
        %6730 = vmatpush1.bf16.xpose.msra.mxu0 0
        %6731 = vmatprep.subr.bf16.mxu0 0
        %6732 = vmatpush1.bf16.xpose.msra.mxu0 0
        %6733 = vmatprep.subr.bf16.mxu0 0
        %6734 = vmatpush1.bf16.xpose.msra.mxu0 0
        %6735 = vmatprep.subr.bf16.mxu0 0
        %6736 = vmatpush1.bf16.xpose.msra.mxu0 0
        %6737 = vmatprep.subr.bf16.mxu0 0
        %6738 = vmatpush1.bf16.xpose.msra.mxu0 0
        %6739 = vmatprep.subr.bf16.mxu0 0
        %6740 = vmatpush1.bf16.xpose.msra.mxu0 0
        %6741 = vmatprep.subr.bf16.mxu0 0
        %6742 = vmatpush1.bf16.xpose.msra.mxu0 0
        %6743 = vmatprep.subr.bf16.mxu0 0
        %6744 = vmatpush1.bf16.xpose.msra.mxu0 0
        %6745 = vmatprep.subr.bf16.mxu0 0
        %6746 = vmatpush1.bf16.xpose.msra.mxu0 0
        %6747 = vmatprep.subr.bf16.mxu0 0
        %6748 = vmatpush1.bf16.xpose.msra.mxu0 0
        %6749 = vmatprep.subr.bf16.mxu0 0
        %6750 = vmatpush1.bf16.xpose.msra.mxu0 0
        %6751 = vmatprep.subr.bf16.mxu0 0
        %6752 = vmatpush1.bf16.xpose.msra.mxu0 0
        %6753 = vmatprep.mubr.bf16.mxu0 0
        %6754 = vmatmul.mubr.bf16.gmra.mrb[0].mxu0 %v6716
        %v6755 = vpop.f32.mrb[0].mxu0
        %v6756 = vadd.f32 0.0, %v6755
        %v6757 = vpop.f32.mrb[0].mxu0
        %v6758 = vpop.f32.mrb[0].mxu0
        %v6759 = vpop.f32.mrb[0].mxu0
        %6760 = vdwg.mxu0
        %6761 = vrot.lane.b32.xlu0 %v1233, 32
        %v6762 = vpop.permute.xlu0 %6761
        %6763 = vrot.lane.b32.xlu0 %v1249, 32
        %v6764 = vpop.permute.xlu0 %6763
        %v6766 = vsel %vm1276, %v6762, 0
        %v6769 = vsel %vm1276, %v6764, 0
        %6771 = vmatprep.subr.bf16.mxu0 0
        %6772 = vmatpush1.bf16.xpose.msra.mxu0 %v6769
        %6773 = vmatprep.subr.bf16.mxu0 0
        %6774 = vmatpush1.bf16.xpose.msra.mxu0 0
        %6775 = vmatprep.subr.bf16.mxu0 0
        %6776 = vmatpush1.bf16.xpose.msra.mxu0 0
        %6777 = vmatprep.subr.bf16.mxu0 0
        %6778 = vmatpush1.bf16.xpose.msra.mxu0 0
        %6779 = vmatprep.subr.bf16.mxu0 0
        %6780 = vmatpush1.bf16.xpose.msra.mxu0 0
        %6781 = vmatprep.subr.bf16.mxu0 0
        %6782 = vmatpush1.bf16.xpose.msra.mxu0 0
        %6783 = vmatprep.subr.bf16.mxu0 0
        %6784 = vmatpush1.bf16.xpose.msra.mxu0 0
        %6785 = vmatprep.subr.bf16.mxu0 0
        %6786 = vmatpush1.bf16.xpose.msra.mxu0 0
        %6787 = vmatprep.subr.bf16.mxu0 0
        %6788 = vmatpush1.bf16.xpose.msra.mxu0 0
        %6789 = vmatprep.subr.bf16.mxu0 0
        %6790 = vmatpush1.bf16.xpose.msra.mxu0 0
        %6791 = vmatprep.subr.bf16.mxu0 0
        %6792 = vmatpush1.bf16.xpose.msra.mxu0 0
        %6793 = vmatprep.subr.bf16.mxu0 0
        %6794 = vmatpush1.bf16.xpose.msra.mxu0 0
        %6795 = vmatprep.subr.bf16.mxu0 0
        %6796 = vmatpush1.bf16.xpose.msra.mxu0 0
        %6797 = vmatprep.subr.bf16.mxu0 0
        %6798 = vmatpush1.bf16.xpose.msra.mxu0 0
        %6799 = vmatprep.subr.bf16.mxu0 0
        %6800 = vmatpush1.bf16.xpose.msra.mxu0 0
        %6801 = vmatprep.subr.bf16.mxu0 0
        %6802 = vmatpush1.bf16.xpose.msra.mxu0 0
        %6803 = vmatprep.mubr.bf16.mxu0 0
        %6804 = vmatmul.mubr.bf16.gmra.mrb[0].mxu0 %v6766
        %v6805 = vpop.f32.mrb[0].mxu0
        %v6806 = vadd.f32 0.0, %v6805
        %v6807 = vpop.f32.mrb[0].mxu0
        %v6808 = vpop.f32.mrb[0].mxu0
        %v6809 = vpop.f32.mrb[0].mxu0
        %6810 = vdwg.mxu0
        %6811 = vrot.lane.b32.xlu0 %v1234, 32
        %v6812 = vpop.permute.xlu0 %6811
        %6813 = vrot.lane.b32.xlu0 %v1250, 32
        %v6814 = vpop.permute.xlu0 %6813
        %v6816 = vsel %vm1276, %v6812, 0
        %v6819 = vsel %vm1276, %v6814, 0
        %6821 = vmatprep.subr.bf16.mxu0 0
        %6822 = vmatpush1.bf16.xpose.msra.mxu0 %v6819
        %6823 = vmatprep.subr.bf16.mxu0 0
        %6824 = vmatpush1.bf16.xpose.msra.mxu0 0
        %6825 = vmatprep.subr.bf16.mxu0 0
        %6826 = vmatpush1.bf16.xpose.msra.mxu0 0
        %6827 = vmatprep.subr.bf16.mxu0 0
        %6828 = vmatpush1.bf16.xpose.msra.mxu0 0
        %6829 = vmatprep.subr.bf16.mxu0 0
        %6830 = vmatpush1.bf16.xpose.msra.mxu0 0
        %6831 = vmatprep.subr.bf16.mxu0 0
        %6832 = vmatpush1.bf16.xpose.msra.mxu0 0
        %6833 = vmatprep.subr.bf16.mxu0 0
        %6834 = vmatpush1.bf16.xpose.msra.mxu0 0
        %6835 = vmatprep.subr.bf16.mxu0 0
        %6836 = vmatpush1.bf16.xpose.msra.mxu0 0
        %6837 = vmatprep.subr.bf16.mxu0 0
        %6838 = vmatpush1.bf16.xpose.msra.mxu0 0
        %6839 = vmatprep.subr.bf16.mxu0 0
        %6840 = vmatpush1.bf16.xpose.msra.mxu0 0
        %6841 = vmatprep.subr.bf16.mxu0 0
        %6842 = vmatpush1.bf16.xpose.msra.mxu0 0
        %6843 = vmatprep.subr.bf16.mxu0 0
        %6844 = vmatpush1.bf16.xpose.msra.mxu0 0
        %6845 = vmatprep.subr.bf16.mxu0 0
        %6846 = vmatpush1.bf16.xpose.msra.mxu0 0
        %6847 = vmatprep.subr.bf16.mxu0 0
        %6848 = vmatpush1.bf16.xpose.msra.mxu0 0
        %6849 = vmatprep.subr.bf16.mxu0 0
        %6850 = vmatpush1.bf16.xpose.msra.mxu0 0
        %6851 = vmatprep.subr.bf16.mxu0 0
        %6852 = vmatpush1.bf16.xpose.msra.mxu0 0
        %6853 = vmatprep.mubr.bf16.mxu0 0
        %6854 = vmatmul.mubr.bf16.gmra.mrb[0].mxu0 %v6816
        %v6855 = vpop.f32.mrb[0].mxu0
        %v6856 = vadd.f32 0.0, %v6855
        %v6857 = vpop.f32.mrb[0].mxu0
        %v6858 = vpop.f32.mrb[0].mxu0
        %v6859 = vpop.f32.mrb[0].mxu0
        %6860 = vdwg.mxu0
        %6861 = vrot.lane.b32.xlu0 %v1235, 32
        %v6862 = vpop.permute.xlu0 %6861
        %6863 = vrot.lane.b32.xlu0 %v1251, 32
        %v6864 = vpop.permute.xlu0 %6863
        %v6866 = vsel %vm1276, %v6862, 0
        %v6869 = vsel %vm1276, %v6864, 0
        %6871 = vmatprep.subr.bf16.mxu0 0
        %6872 = vmatpush1.bf16.xpose.msra.mxu0 %v6869
        %6873 = vmatprep.subr.bf16.mxu0 0
        %6874 = vmatpush1.bf16.xpose.msra.mxu0 0
        %6875 = vmatprep.subr.bf16.mxu0 0
        %6876 = vmatpush1.bf16.xpose.msra.mxu0 0
        %6877 = vmatprep.subr.bf16.mxu0 0
        %6878 = vmatpush1.bf16.xpose.msra.mxu0 0
        %6879 = vmatprep.subr.bf16.mxu0 0
        %6880 = vmatpush1.bf16.xpose.msra.mxu0 0
        %6881 = vmatprep.subr.bf16.mxu0 0
        %6882 = vmatpush1.bf16.xpose.msra.mxu0 0
        %6883 = vmatprep.subr.bf16.mxu0 0
        %6884 = vmatpush1.bf16.xpose.msra.mxu0 0
        %6885 = vmatprep.subr.bf16.mxu0 0
        %6886 = vmatpush1.bf16.xpose.msra.mxu0 0
        %6887 = vmatprep.subr.bf16.mxu0 0
        %6888 = vmatpush1.bf16.xpose.msra.mxu0 0
        %6889 = vmatprep.subr.bf16.mxu0 0
        %6890 = vmatpush1.bf16.xpose.msra.mxu0 0
        %6891 = vmatprep.subr.bf16.mxu0 0
        %6892 = vmatpush1.bf16.xpose.msra.mxu0 0
        %6893 = vmatprep.subr.bf16.mxu0 0
        %6894 = vmatpush1.bf16.xpose.msra.mxu0 0
        %6895 = vmatprep.subr.bf16.mxu0 0
        %6896 = vmatpush1.bf16.xpose.msra.mxu0 0
        %6897 = vmatprep.subr.bf16.mxu0 0
        %6898 = vmatpush1.bf16.xpose.msra.mxu0 0
        %6899 = vmatprep.subr.bf16.mxu0 0
        %6900 = vmatpush1.bf16.xpose.msra.mxu0 0
        %6901 = vmatprep.subr.bf16.mxu0 0
        %6902 = vmatpush1.bf16.xpose.msra.mxu0 0
        %6903 = vmatprep.mubr.bf16.mxu0 0
        %6904 = vmatmul.mubr.bf16.gmra.mrb[0].mxu0 %v6866
        %v6905 = vpop.f32.mrb[0].mxu0
        %v6906 = vadd.f32 0.0, %v6905
        %v6907 = vpop.f32.mrb[0].mxu0
        %v6908 = vpop.f32.mrb[0].mxu0
        %v6909 = vpop.f32.mrb[0].mxu0
        %6910 = vdwg.mxu0
        %6911 = vrot.lane.b32.xlu0 %v1236, 32
        %v6912 = vpop.permute.xlu0 %6911
        %6913 = vrot.lane.b32.xlu0 %v1252, 32
        %v6914 = vpop.permute.xlu0 %6913
        %v6916 = vsel %vm1276, %v6912, 0
        %v6919 = vsel %vm1276, %v6914, 0
        %6921 = vmatprep.subr.bf16.mxu0 0
        %6922 = vmatpush1.bf16.xpose.msra.mxu0 %v6919
        %6923 = vmatprep.subr.bf16.mxu0 0
        %6924 = vmatpush1.bf16.xpose.msra.mxu0 0
        %6925 = vmatprep.subr.bf16.mxu0 0
        %6926 = vmatpush1.bf16.xpose.msra.mxu0 0
        %6927 = vmatprep.subr.bf16.mxu0 0
        %6928 = vmatpush1.bf16.xpose.msra.mxu0 0
        %6929 = vmatprep.subr.bf16.mxu0 0
        %6930 = vmatpush1.bf16.xpose.msra.mxu0 0
        %6931 = vmatprep.subr.bf16.mxu0 0
        %6932 = vmatpush1.bf16.xpose.msra.mxu0 0
        %6933 = vmatprep.subr.bf16.mxu0 0
        %6934 = vmatpush1.bf16.xpose.msra.mxu0 0
        %6935 = vmatprep.subr.bf16.mxu0 0
        %6936 = vmatpush1.bf16.xpose.msra.mxu0 0
        %6937 = vmatprep.subr.bf16.mxu0 0
        %6938 = vmatpush1.bf16.xpose.msra.mxu0 0
        %6939 = vmatprep.subr.bf16.mxu0 0
        %6940 = vmatpush1.bf16.xpose.msra.mxu0 0
        %6941 = vmatprep.subr.bf16.mxu0 0
        %6942 = vmatpush1.bf16.xpose.msra.mxu0 0
        %6943 = vmatprep.subr.bf16.mxu0 0
        %6944 = vmatpush1.bf16.xpose.msra.mxu0 0
        %6945 = vmatprep.subr.bf16.mxu0 0
        %6946 = vmatpush1.bf16.xpose.msra.mxu0 0
        %6947 = vmatprep.subr.bf16.mxu0 0
        %6948 = vmatpush1.bf16.xpose.msra.mxu0 0
        %6949 = vmatprep.subr.bf16.mxu0 0
        %6950 = vmatpush1.bf16.xpose.msra.mxu0 0
        %6951 = vmatprep.subr.bf16.mxu0 0
        %6952 = vmatpush1.bf16.xpose.msra.mxu0 0
        %6953 = vmatprep.mubr.bf16.mxu0 0
        %6954 = vmatmul.mubr.bf16.gmra.mrb[0].mxu0 %v6916
        %v6955 = vpop.f32.mrb[0].mxu0
        %v6956 = vadd.f32 0.0, %v6955
        %v6957 = vpop.f32.mrb[0].mxu0
        %v6958 = vpop.f32.mrb[0].mxu0
        %v6959 = vpop.f32.mrb[0].mxu0
        %6960 = vdwg.mxu0
        %6961 = vrot.lane.b32.xlu0 %v1237, 32
        %v6962 = vpop.permute.xlu0 %6961
        %6963 = vrot.lane.b32.xlu0 %v1253, 32
        %v6964 = vpop.permute.xlu0 %6963
        %v6966 = vsel %vm1276, %v6962, 0
        %v6969 = vsel %vm1276, %v6964, 0
        %6971 = vmatprep.subr.bf16.mxu0 0
        %6972 = vmatpush1.bf16.xpose.msra.mxu0 %v6969
        %6973 = vmatprep.subr.bf16.mxu0 0
        %6974 = vmatpush1.bf16.xpose.msra.mxu0 0
        %6975 = vmatprep.subr.bf16.mxu0 0
        %6976 = vmatpush1.bf16.xpose.msra.mxu0 0
        %6977 = vmatprep.subr.bf16.mxu0 0
        %6978 = vmatpush1.bf16.xpose.msra.mxu0 0
        %6979 = vmatprep.subr.bf16.mxu0 0
        %6980 = vmatpush1.bf16.xpose.msra.mxu0 0
        %6981 = vmatprep.subr.bf16.mxu0 0
        %6982 = vmatpush1.bf16.xpose.msra.mxu0 0
        %6983 = vmatprep.subr.bf16.mxu0 0
        %6984 = vmatpush1.bf16.xpose.msra.mxu0 0
        %6985 = vmatprep.subr.bf16.mxu0 0
        %6986 = vmatpush1.bf16.xpose.msra.mxu0 0
        %6987 = vmatprep.subr.bf16.mxu0 0
        %6988 = vmatpush1.bf16.xpose.msra.mxu0 0
        %6989 = vmatprep.subr.bf16.mxu0 0
        %6990 = vmatpush1.bf16.xpose.msra.mxu0 0
        %6991 = vmatprep.subr.bf16.mxu0 0
        %6992 = vmatpush1.bf16.xpose.msra.mxu0 0
        %6993 = vmatprep.subr.bf16.mxu0 0
        %6994 = vmatpush1.bf16.xpose.msra.mxu0 0
        %6995 = vmatprep.subr.bf16.mxu0 0
        %6996 = vmatpush1.bf16.xpose.msra.mxu0 0
        %6997 = vmatprep.subr.bf16.mxu0 0
        %6998 = vmatpush1.bf16.xpose.msra.mxu0 0
        %6999 = vmatprep.subr.bf16.mxu0 0
        %7000 = vmatpush1.bf16.xpose.msra.mxu0 0
        %7001 = vmatprep.subr.bf16.mxu0 0
        %7002 = vmatpush1.bf16.xpose.msra.mxu0 0
        %7003 = vmatprep.mubr.bf16.mxu0 0
        %7004 = vmatmul.mubr.bf16.gmra.mrb[0].mxu0 %v6966
        %v7005 = vpop.f32.mrb[0].mxu0
        %v7006 = vadd.f32 0.0, %v7005
        %v7007 = vpop.f32.mrb[0].mxu0
        %v7008 = vpop.f32.mrb[0].mxu0
        %v7009 = vpop.f32.mrb[0].mxu0
        %7010 = vdwg.mxu0
        %7011 = vrot.lane.b32.xlu0 %v1238, 32
        %v7012 = vpop.permute.xlu0 %7011
        %7013 = vrot.lane.b32.xlu0 %v1254, 32
        %v7014 = vpop.permute.xlu0 %7013
        %v7016 = vsel %vm1276, %v7012, 0
        %v7019 = vsel %vm1276, %v7014, 0
        %7021 = vmatprep.subr.bf16.mxu0 0
        %7022 = vmatpush1.bf16.xpose.msra.mxu0 %v7019
        %7023 = vmatprep.subr.bf16.mxu0 0
        %7024 = vmatpush1.bf16.xpose.msra.mxu0 0
        %7025 = vmatprep.subr.bf16.mxu0 0
        %7026 = vmatpush1.bf16.xpose.msra.mxu0 0
        %7027 = vmatprep.subr.bf16.mxu0 0
        %7028 = vmatpush1.bf16.xpose.msra.mxu0 0
        %7029 = vmatprep.subr.bf16.mxu0 0
        %7030 = vmatpush1.bf16.xpose.msra.mxu0 0
        %7031 = vmatprep.subr.bf16.mxu0 0
        %7032 = vmatpush1.bf16.xpose.msra.mxu0 0
        %7033 = vmatprep.subr.bf16.mxu0 0
        %7034 = vmatpush1.bf16.xpose.msra.mxu0 0
        %7035 = vmatprep.subr.bf16.mxu0 0
        %7036 = vmatpush1.bf16.xpose.msra.mxu0 0
        %7037 = vmatprep.subr.bf16.mxu0 0
        %7038 = vmatpush1.bf16.xpose.msra.mxu0 0
        %7039 = vmatprep.subr.bf16.mxu0 0
        %7040 = vmatpush1.bf16.xpose.msra.mxu0 0
        %7041 = vmatprep.subr.bf16.mxu0 0
        %7042 = vmatpush1.bf16.xpose.msra.mxu0 0
        %7043 = vmatprep.subr.bf16.mxu0 0
        %7044 = vmatpush1.bf16.xpose.msra.mxu0 0
        %7045 = vmatprep.subr.bf16.mxu0 0
        %7046 = vmatpush1.bf16.xpose.msra.mxu0 0
        %7047 = vmatprep.subr.bf16.mxu0 0
        %7048 = vmatpush1.bf16.xpose.msra.mxu0 0
        %7049 = vmatprep.subr.bf16.mxu0 0
        %7050 = vmatpush1.bf16.xpose.msra.mxu0 0
        %7051 = vmatprep.subr.bf16.mxu0 0
        %7052 = vmatpush1.bf16.xpose.msra.mxu0 0
        %7053 = vmatprep.mubr.bf16.mxu0 0
        %7054 = vmatmul.mubr.bf16.gmra.mrb[0].mxu0 %v7016
        %v7055 = vpop.f32.mrb[0].mxu0
        %v7056 = vadd.f32 0.0, %v7055
        %v7057 = vpop.f32.mrb[0].mxu0
        %v7058 = vpop.f32.mrb[0].mxu0
        %v7059 = vpop.f32.mrb[0].mxu0
        %7060 = vdwg.mxu0
        %7061 = vrot.lane.b32.xlu0 %v1239, 32
        %v7062 = vpop.permute.xlu0 %7061
        %7063 = vrot.lane.b32.xlu0 %v1255, 32
        %v7064 = vpop.permute.xlu0 %7063
        %v7066 = vsel %vm1276, %v7062, 0
        %v7069 = vsel %vm1276, %v7064, 0
        %7071 = vmatprep.subr.bf16.mxu0 0
        %7072 = vmatpush1.bf16.xpose.msra.mxu0 %v7069
        %7073 = vmatprep.subr.bf16.mxu0 0
        %7074 = vmatpush1.bf16.xpose.msra.mxu0 0
        %7075 = vmatprep.subr.bf16.mxu0 0
        %7076 = vmatpush1.bf16.xpose.msra.mxu0 0
        %7077 = vmatprep.subr.bf16.mxu0 0
        %7078 = vmatpush1.bf16.xpose.msra.mxu0 0
        %7079 = vmatprep.subr.bf16.mxu0 0
        %7080 = vmatpush1.bf16.xpose.msra.mxu0 0
        %7081 = vmatprep.subr.bf16.mxu0 0
        %7082 = vmatpush1.bf16.xpose.msra.mxu0 0
        %7083 = vmatprep.subr.bf16.mxu0 0
        %7084 = vmatpush1.bf16.xpose.msra.mxu0 0
        %7085 = vmatprep.subr.bf16.mxu0 0
        %7086 = vmatpush1.bf16.xpose.msra.mxu0 0
        %7087 = vmatprep.subr.bf16.mxu0 0
        %7088 = vmatpush1.bf16.xpose.msra.mxu0 0
        %7089 = vmatprep.subr.bf16.mxu0 0
        %7090 = vmatpush1.bf16.xpose.msra.mxu0 0
        %7091 = vmatprep.subr.bf16.mxu0 0
        %7092 = vmatpush1.bf16.xpose.msra.mxu0 0
        %7093 = vmatprep.subr.bf16.mxu0 0
        %7094 = vmatpush1.bf16.xpose.msra.mxu0 0
        %7095 = vmatprep.subr.bf16.mxu0 0
        %7096 = vmatpush1.bf16.xpose.msra.mxu0 0
        %7097 = vmatprep.subr.bf16.mxu0 0
        %7098 = vmatpush1.bf16.xpose.msra.mxu0 0
        %7099 = vmatprep.subr.bf16.mxu0 0
        %7100 = vmatpush1.bf16.xpose.msra.mxu0 0
        %7101 = vmatprep.subr.bf16.mxu0 0
        %7102 = vmatpush1.bf16.xpose.msra.mxu0 0
        %7103 = vmatprep.mubr.bf16.mxu0 0
        %7104 = vmatmul.mubr.bf16.gmra.mrb[0].mxu0 %v7066
        %v7105 = vpop.f32.mrb[0].mxu0
        %v7106 = vadd.f32 0.0, %v7105
        %v7107 = vpop.f32.mrb[0].mxu0
        %v7108 = vpop.f32.mrb[0].mxu0
        %v7109 = vpop.f32.mrb[0].mxu0
        %7110 = vdwg.mxu0
        %7111 = vrot.lane.b32.xlu0 %v1240, 32
        %v7112 = vpop.permute.xlu0 %7111
        %7113 = vrot.lane.b32.xlu0 %v1256, 32
        %v7114 = vpop.permute.xlu0 %7113
        %v7116 = vsel %vm1276, %v7112, 0
        %v7119 = vsel %vm1276, %v7114, 0
        %7121 = vmatprep.subr.bf16.mxu0 0
        %7122 = vmatpush1.bf16.xpose.msra.mxu0 %v7119
        %7123 = vmatprep.subr.bf16.mxu0 0
        %7124 = vmatpush1.bf16.xpose.msra.mxu0 0
        %7125 = vmatprep.subr.bf16.mxu0 0
        %7126 = vmatpush1.bf16.xpose.msra.mxu0 0
        %7127 = vmatprep.subr.bf16.mxu0 0
        %7128 = vmatpush1.bf16.xpose.msra.mxu0 0
        %7129 = vmatprep.subr.bf16.mxu0 0
        %7130 = vmatpush1.bf16.xpose.msra.mxu0 0
        %7131 = vmatprep.subr.bf16.mxu0 0
        %7132 = vmatpush1.bf16.xpose.msra.mxu0 0
        %7133 = vmatprep.subr.bf16.mxu0 0
        %7134 = vmatpush1.bf16.xpose.msra.mxu0 0
        %7135 = vmatprep.subr.bf16.mxu0 0
        %7136 = vmatpush1.bf16.xpose.msra.mxu0 0
        %7137 = vmatprep.subr.bf16.mxu0 0
        %7138 = vmatpush1.bf16.xpose.msra.mxu0 0
        %7139 = vmatprep.subr.bf16.mxu0 0
        %7140 = vmatpush1.bf16.xpose.msra.mxu0 0
        %7141 = vmatprep.subr.bf16.mxu0 0
        %7142 = vmatpush1.bf16.xpose.msra.mxu0 0
        %7143 = vmatprep.subr.bf16.mxu0 0
        %7144 = vmatpush1.bf16.xpose.msra.mxu0 0
        %7145 = vmatprep.subr.bf16.mxu0 0
        %7146 = vmatpush1.bf16.xpose.msra.mxu0 0
        %7147 = vmatprep.subr.bf16.mxu0 0
        %7148 = vmatpush1.bf16.xpose.msra.mxu0 0
        %7149 = vmatprep.subr.bf16.mxu0 0
        %7150 = vmatpush1.bf16.xpose.msra.mxu0 0
        %7151 = vmatprep.subr.bf16.mxu0 0
        %7152 = vmatpush1.bf16.xpose.msra.mxu0 0
        %7153 = vmatprep.mubr.bf16.mxu0 0
        %7154 = vmatmul.mubr.bf16.gmra.mrb[0].mxu0 %v7116
        %v7155 = vpop.f32.mrb[0].mxu0
        %v7156 = vadd.f32 0.0, %v7155
        %v7157 = vpop.f32.mrb[0].mxu0
        %v7158 = vpop.f32.mrb[0].mxu0
        %v7159 = vpop.f32.mrb[0].mxu0
        %7160 = vdwg.mxu0
        %7161 = vrot.lane.b32.xlu0 %v1241, 32
        %v7162 = vpop.permute.xlu0 %7161
        %7163 = vrot.lane.b32.xlu0 %v1257, 32
        %v7164 = vpop.permute.xlu0 %7163
        %v7166 = vsel %vm1276, %v7162, 0
        %v7169 = vsel %vm1276, %v7164, 0
        %7171 = vmatprep.subr.bf16.mxu0 0
        %7172 = vmatpush1.bf16.xpose.msra.mxu0 %v7169
        %7173 = vmatprep.subr.bf16.mxu0 0
        %7174 = vmatpush1.bf16.xpose.msra.mxu0 0
        %7175 = vmatprep.subr.bf16.mxu0 0
        %7176 = vmatpush1.bf16.xpose.msra.mxu0 0
        %7177 = vmatprep.subr.bf16.mxu0 0
        %7178 = vmatpush1.bf16.xpose.msra.mxu0 0
        %7179 = vmatprep.subr.bf16.mxu0 0
        %7180 = vmatpush1.bf16.xpose.msra.mxu0 0
        %7181 = vmatprep.subr.bf16.mxu0 0
        %7182 = vmatpush1.bf16.xpose.msra.mxu0 0
        %7183 = vmatprep.subr.bf16.mxu0 0
        %7184 = vmatpush1.bf16.xpose.msra.mxu0 0
        %7185 = vmatprep.subr.bf16.mxu0 0
        %7186 = vmatpush1.bf16.xpose.msra.mxu0 0
        %7187 = vmatprep.subr.bf16.mxu0 0
        %7188 = vmatpush1.bf16.xpose.msra.mxu0 0
        %7189 = vmatprep.subr.bf16.mxu0 0
        %7190 = vmatpush1.bf16.xpose.msra.mxu0 0
        %7191 = vmatprep.subr.bf16.mxu0 0
        %7192 = vmatpush1.bf16.xpose.msra.mxu0 0
        %7193 = vmatprep.subr.bf16.mxu0 0
        %7194 = vmatpush1.bf16.xpose.msra.mxu0 0
        %7195 = vmatprep.subr.bf16.mxu0 0
        %7196 = vmatpush1.bf16.xpose.msra.mxu0 0
        %7197 = vmatprep.subr.bf16.mxu0 0
        %7198 = vmatpush1.bf16.xpose.msra.mxu0 0
        %7199 = vmatprep.subr.bf16.mxu0 0
        %7200 = vmatpush1.bf16.xpose.msra.mxu0 0
        %7201 = vmatprep.subr.bf16.mxu0 0
        %7202 = vmatpush1.bf16.xpose.msra.mxu0 0
        %7203 = vmatprep.mubr.bf16.mxu0 0
        %7204 = vmatmul.mubr.bf16.gmra.mrb[0].mxu0 %v7166
        %v7205 = vpop.f32.mrb[0].mxu0
        %v7206 = vadd.f32 0.0, %v7205
        %v7207 = vpop.f32.mrb[0].mxu0
        %v7208 = vpop.f32.mrb[0].mxu0
        %v7209 = vpop.f32.mrb[0].mxu0
        %7210 = vdwg.mxu0
        %7211 = vrot.lane.b32.xlu0 %v1242, 32
        %v7212 = vpop.permute.xlu0 %7211
        %7213 = vrot.lane.b32.xlu0 %v1258, 32
        %v7214 = vpop.permute.xlu0 %7213
        %v7216 = vsel %vm1276, %v7212, 0
        %v7219 = vsel %vm1276, %v7214, 0
        %7221 = vmatprep.subr.bf16.mxu0 0
        %7222 = vmatpush1.bf16.xpose.msra.mxu0 %v7219
        %7223 = vmatprep.subr.bf16.mxu0 0
        %7224 = vmatpush1.bf16.xpose.msra.mxu0 0
        %7225 = vmatprep.subr.bf16.mxu0 0
        %7226 = vmatpush1.bf16.xpose.msra.mxu0 0
        %7227 = vmatprep.subr.bf16.mxu0 0
        %7228 = vmatpush1.bf16.xpose.msra.mxu0 0
        %7229 = vmatprep.subr.bf16.mxu0 0
        %7230 = vmatpush1.bf16.xpose.msra.mxu0 0
        %7231 = vmatprep.subr.bf16.mxu0 0
        %7232 = vmatpush1.bf16.xpose.msra.mxu0 0
        %7233 = vmatprep.subr.bf16.mxu0 0
        %7234 = vmatpush1.bf16.xpose.msra.mxu0 0
        %7235 = vmatprep.subr.bf16.mxu0 0
        %7236 = vmatpush1.bf16.xpose.msra.mxu0 0
        %7237 = vmatprep.subr.bf16.mxu0 0
        %7238 = vmatpush1.bf16.xpose.msra.mxu0 0
        %7239 = vmatprep.subr.bf16.mxu0 0
        %7240 = vmatpush1.bf16.xpose.msra.mxu0 0
        %7241 = vmatprep.subr.bf16.mxu0 0
        %7242 = vmatpush1.bf16.xpose.msra.mxu0 0
        %7243 = vmatprep.subr.bf16.mxu0 0
        %7244 = vmatpush1.bf16.xpose.msra.mxu0 0
        %7245 = vmatprep.subr.bf16.mxu0 0
        %7246 = vmatpush1.bf16.xpose.msra.mxu0 0
        %7247 = vmatprep.subr.bf16.mxu0 0
        %7248 = vmatpush1.bf16.xpose.msra.mxu0 0
        %7249 = vmatprep.subr.bf16.mxu0 0
        %7250 = vmatpush1.bf16.xpose.msra.mxu0 0
        %7251 = vmatprep.subr.bf16.mxu0 0
        %7252 = vmatpush1.bf16.xpose.msra.mxu0 0
        %7253 = vmatprep.mubr.bf16.mxu0 0
        %7254 = vmatmul.mubr.bf16.gmra.mrb[0].mxu0 %v7216
        %v7255 = vpop.f32.mrb[0].mxu0
        %v7256 = vadd.f32 0.0, %v7255
        %v7257 = vpop.f32.mrb[0].mxu0
        %v7258 = vpop.f32.mrb[0].mxu0
        %v7259 = vpop.f32.mrb[0].mxu0
        %7260 = vdwg.mxu0
        %7261 = vrot.lane.b32.xlu0 %v1243, 32
        %v7262 = vpop.permute.xlu0 %7261
        %7263 = vrot.lane.b32.xlu0 %v1259, 32
        %v7264 = vpop.permute.xlu0 %7263
        %v7266 = vsel %vm1276, %v7262, 0
        %v7269 = vsel %vm1276, %v7264, 0
        %7271 = vmatprep.subr.bf16.mxu0 0
        %7272 = vmatpush1.bf16.xpose.msra.mxu0 %v7269
        %7273 = vmatprep.subr.bf16.mxu0 0
        %7274 = vmatpush1.bf16.xpose.msra.mxu0 0
        %7275 = vmatprep.subr.bf16.mxu0 0
        %7276 = vmatpush1.bf16.xpose.msra.mxu0 0
        %7277 = vmatprep.subr.bf16.mxu0 0
        %7278 = vmatpush1.bf16.xpose.msra.mxu0 0
        %7279 = vmatprep.subr.bf16.mxu0 0
        %7280 = vmatpush1.bf16.xpose.msra.mxu0 0
        %7281 = vmatprep.subr.bf16.mxu0 0
        %7282 = vmatpush1.bf16.xpose.msra.mxu0 0
        %7283 = vmatprep.subr.bf16.mxu0 0
        %7284 = vmatpush1.bf16.xpose.msra.mxu0 0
        %7285 = vmatprep.subr.bf16.mxu0 0
        %7286 = vmatpush1.bf16.xpose.msra.mxu0 0
        %7287 = vmatprep.subr.bf16.mxu0 0
        %7288 = vmatpush1.bf16.xpose.msra.mxu0 0
        %7289 = vmatprep.subr.bf16.mxu0 0
        %7290 = vmatpush1.bf16.xpose.msra.mxu0 0
        %7291 = vmatprep.subr.bf16.mxu0 0
        %7292 = vmatpush1.bf16.xpose.msra.mxu0 0
        %7293 = vmatprep.subr.bf16.mxu0 0
        %7294 = vmatpush1.bf16.xpose.msra.mxu0 0
        %7295 = vmatprep.subr.bf16.mxu0 0
        %7296 = vmatpush1.bf16.xpose.msra.mxu0 0
        %7297 = vmatprep.subr.bf16.mxu0 0
        %7298 = vmatpush1.bf16.xpose.msra.mxu0 0
        %7299 = vmatprep.subr.bf16.mxu0 0
        %7300 = vmatpush1.bf16.xpose.msra.mxu0 0
        %7301 = vmatprep.subr.bf16.mxu0 0
        %7302 = vmatpush1.bf16.xpose.msra.mxu0 0
        %7303 = vmatprep.mubr.bf16.mxu0 0
        %7304 = vmatmul.mubr.bf16.gmra.mrb[0].mxu0 %v7266
        %v7305 = vpop.f32.mrb[0].mxu0
        %v7306 = vadd.f32 0.0, %v7305
        %v7307 = vpop.f32.mrb[0].mxu0
        %v7308 = vpop.f32.mrb[0].mxu0
        %v7309 = vpop.f32.mrb[0].mxu0
        %7310 = vdwg.mxu0
        %v7311 = vsel %vm2013, %v6556, -inf
        %7312 = vmax.xlane.f32.xlu0 %v7311
        %v7313 = vpop.xlane.xlu0 %7312
        %v7314 = vsel %vm2013, %v6606, -inf
        %7315 = vmax.xlane.f32.xlu0 %v7314
        %v7316 = vpop.xlane.xlu0 %7315
        %v7317 = vsel %vm2013, %v6656, -inf
        %7318 = vmax.xlane.f32.xlu0 %v7317
        %v7319 = vpop.xlane.xlu0 %7318
        %v7320 = vsel %vm2013, %v6706, -inf
        %7321 = vmax.xlane.f32.xlu0 %v7320
        %v7322 = vpop.xlane.xlu0 %7321
        %v7323 = vsel %vm2013, %v6756, -inf
        %7324 = vmax.xlane.f32.xlu0 %v7323
        %v7325 = vpop.xlane.xlu0 %7324
        %v7326 = vsel %vm2013, %v6806, -inf
        %7327 = vmax.xlane.f32.xlu0 %v7326
        %v7328 = vpop.xlane.xlu0 %7327
        %v7329 = vsel %vm2013, %v6856, -inf
        %7330 = vmax.xlane.f32.xlu0 %v7329
        %v7331 = vpop.xlane.xlu0 %7330
        %v7332 = vsel %vm2013, %v6906, -inf
        %7333 = vmax.xlane.f32.xlu0 %v7332
        %v7334 = vpop.xlane.xlu0 %7333
        %v7335 = vsel %vm2013, %v6956, -inf
        %7336 = vmax.xlane.f32.xlu0 %v7335
        %v7337 = vpop.xlane.xlu0 %7336
        %v7338 = vsel %vm2013, %v7006, -inf
        %7339 = vmax.xlane.f32.xlu0 %v7338
        %v7340 = vpop.xlane.xlu0 %7339
        %v7341 = vsel %vm2013, %v7056, -inf
        %7342 = vmax.xlane.f32.xlu0 %v7341
        %v7343 = vpop.xlane.xlu0 %7342
        %v7344 = vsel %vm2013, %v7106, -inf
        %7345 = vmax.xlane.f32.xlu0 %v7344
        %v7346 = vpop.xlane.xlu0 %7345
        %v7347 = vsel %vm2013, %v7156, -inf
        %7348 = vmax.xlane.f32.xlu0 %v7347
        %v7349 = vpop.xlane.xlu0 %7348
        %v7350 = vsel %vm2013, %v7206, -inf
        %7351 = vmax.xlane.f32.xlu0 %v7350
        %v7352 = vpop.xlane.xlu0 %7351
        %v7353 = vsel %vm2013, %v7256, -inf
        %7354 = vmax.xlane.f32.xlu0 %v7353
        %v7355 = vpop.xlane.xlu0 %7354
        %v7356 = vsel %vm2013, %v7306, -inf
        %7357 = vmax.xlane.f32.xlu0 %v7356
        %v7358 = vpop.xlane.xlu0 %7357
        %v7359 = vsub.f32 %v6556, %v7313
        %v7360 = vsub.f32 %v6606, %v7316
        %v7361 = vsub.f32 %v6656, %v7319
        %v7362 = vsub.f32 %v6706, %v7322
        %v7363 = vsub.f32 %v6756, %v7325
        %v7364 = vsub.f32 %v6806, %v7328
        %v7365 = vsub.f32 %v6856, %v7331
        %v7366 = vsub.f32 %v6906, %v7334
        %v7367 = vsub.f32 %v6956, %v7337
        %v7368 = vsub.f32 %v7006, %v7340
        %v7369 = vsub.f32 %v7056, %v7343
        %v7370 = vsub.f32 %v7106, %v7346
        %v7371 = vsub.f32 %v7156, %v7349
        %v7372 = vsub.f32 %v7206, %v7352
        %v7373 = vsub.f32 %v7256, %v7355
        %v7374 = vsub.f32 %v7306, %v7358
        %v7375 = vmul.f32 %v7359, 1.442695
        %v7376 = vpow.pop %v7375
        %v7377 = vmul.f32 %v7360, 1.442695
        %v7378 = vpow.pop %v7377
        %v7379 = vmul.f32 %v7361, 1.442695
        %v7380 = vpow.pop %v7379
        %v7381 = vmul.f32 %v7362, 1.442695
        %v7382 = vpow.pop %v7381
        %v7383 = vmul.f32 %v7363, 1.442695
        %v7384 = vpow.pop %v7383
        %v7385 = vmul.f32 %v7364, 1.442695
        %v7386 = vpow.pop %v7385
        %v7387 = vmul.f32 %v7365, 1.442695
        %v7388 = vpow.pop %v7387
        %v7389 = vmul.f32 %v7366, 1.442695
        %v7390 = vpow.pop %v7389
        %v7391 = vmul.f32 %v7367, 1.442695
        %v7392 = vpow.pop %v7391
        %v7393 = vmul.f32 %v7368, 1.442695
        %v7394 = vpow.pop %v7393
        %v7395 = vmul.f32 %v7369, 1.442695
        %v7396 = vpow.pop %v7395
        %v7397 = vmul.f32 %v7370, 1.442695
        %v7398 = vpow.pop %v7397
        %v7399 = vmul.f32 %v7371, 1.442695
        %v7400 = vpow.pop %v7399
        %v7401 = vmul.f32 %v7372, 1.442695
        %v7402 = vpow.pop %v7401
        %v7403 = vmul.f32 %v7373, 1.442695
        %v7404 = vpow.pop %v7403
        %v7405 = vmul.f32 %v7374, 1.442695
        %v7406 = vpow.pop %v7405
        %v7407 = vsel %vm2013, %v7376, 0.0
        %7408 = vadd.xlane.f32.xlu0 %v7407
        %v7409 = vpop.xlane.xlu0 %7408
        %v7410 = vsel %vm2013, %v7378, 0.0
        %7411 = vadd.xlane.f32.xlu0 %v7410
        %v7412 = vpop.xlane.xlu0 %7411
        %v7413 = vsel %vm2013, %v7380, 0.0
        %7414 = vadd.xlane.f32.xlu0 %v7413
        %v7415 = vpop.xlane.xlu0 %7414
        %v7416 = vsel %vm2013, %v7382, 0.0
        %7417 = vadd.xlane.f32.xlu0 %v7416
        %v7418 = vpop.xlane.xlu0 %7417
        %v7419 = vsel %vm2013, %v7384, 0.0
        %7420 = vadd.xlane.f32.xlu0 %v7419
        %v7421 = vpop.xlane.xlu0 %7420
        %v7422 = vsel %vm2013, %v7386, 0.0
        %7423 = vadd.xlane.f32.xlu0 %v7422
        %v7424 = vpop.xlane.xlu0 %7423
        %v7425 = vsel %vm2013, %v7388, 0.0
        %7426 = vadd.xlane.f32.xlu0 %v7425
        %v7427 = vpop.xlane.xlu0 %7426
        %v7428 = vsel %vm2013, %v7390, 0.0
        %7429 = vadd.xlane.f32.xlu0 %v7428
        %v7430 = vpop.xlane.xlu0 %7429
        %v7431 = vsel %vm2013, %v7392, 0.0
        %7432 = vadd.xlane.f32.xlu0 %v7431
        %v7433 = vpop.xlane.xlu0 %7432
        %v7434 = vsel %vm2013, %v7394, 0.0
        %7435 = vadd.xlane.f32.xlu0 %v7434
        %v7436 = vpop.xlane.xlu0 %7435
        %v7437 = vsel %vm2013, %v7396, 0.0
        %7438 = vadd.xlane.f32.xlu0 %v7437
        %v7439 = vpop.xlane.xlu0 %7438
        %v7440 = vsel %vm2013, %v7398, 0.0
        %7441 = vadd.xlane.f32.xlu0 %v7440
        %v7442 = vpop.xlane.xlu0 %7441
        %v7443 = vsel %vm2013, %v7400, 0.0
        %7444 = vadd.xlane.f32.xlu0 %v7443
        %v7445 = vpop.xlane.xlu0 %7444
        %v7446 = vsel %vm2013, %v7402, 0.0
        %7447 = vadd.xlane.f32.xlu0 %v7446
        %v7448 = vpop.xlane.xlu0 %7447
        %v7449 = vsel %vm2013, %v7404, 0.0
        %7450 = vadd.xlane.f32.xlu0 %v7449
        %v7451 = vpop.xlane.xlu0 %7450
        %v7452 = vsel %vm2013, %v7406, 0.0
        %7453 = vadd.xlane.f32.xlu0 %v7452
        %v7454 = vpop.xlane.xlu0 %7453
        %v7455 = vrcp.pop %v7409
        %v7456 = vrcp.pop %v7412
        %v7457 = vrcp.pop %v7415
        %v7458 = vrcp.pop %v7418
        %v7459 = vrcp.pop %v7421
        %v7460 = vrcp.pop %v7424
        %v7461 = vrcp.pop %v7427
        %v7462 = vrcp.pop %v7430
        %v7463 = vrcp.pop %v7433
        %v7464 = vrcp.pop %v7436
        %v7465 = vrcp.pop %v7439
        %v7466 = vrcp.pop %v7442
        %v7467 = vrcp.pop %v7445
        %v7468 = vrcp.pop %v7448
        %v7469 = vrcp.pop %v7451
        %v7470 = vrcp.pop %v7454
        %v7471 = vmul.f32 %v7376, %v7455
        %v7472 = vmul.f32 %v7378, %v7456
        %v7473 = vmul.f32 %v7380, %v7457
        %v7474 = vmul.f32 %v7382, %v7458
        %v7475 = vmul.f32 %v7384, %v7459
        %v7476 = vmul.f32 %v7386, %v7460
        %v7477 = vmul.f32 %v7388, %v7461
        %v7478 = vmul.f32 %v7390, %v7462
        %v7479 = vmul.f32 %v7392, %v7463
        %v7480 = vmul.f32 %v7394, %v7464
        %v7481 = vmul.f32 %v7396, %v7465
        %v7482 = vmul.f32 %v7398, %v7466
        %v7483 = vmul.f32 %v7400, %v7467
        %v7484 = vmul.f32 %v7402, %v7468
        %v7485 = vmul.f32 %v7404, %v7469
        %v7486 = vmul.f32 %v7406, %v7470
        %v7487 = vpack.c.bf16 %v7471, %v7471
        %v7488 = vpack.c.bf16 %v7472, %v7472
        %v7489 = vpack.c.bf16 %v7473, %v7473
        %v7490 = vpack.c.bf16 %v7474, %v7474
        %v7491 = vpack.c.bf16 %v7475, %v7475
        %v7492 = vpack.c.bf16 %v7476, %v7476
        %v7493 = vpack.c.bf16 %v7477, %v7477
        %v7494 = vpack.c.bf16 %v7478, %v7478
        %v7495 = vpack.c.bf16 %v7479, %v7479
        %v7496 = vpack.c.bf16 %v7480, %v7480
        %v7497 = vpack.c.bf16 %v7481, %v7481
        %v7498 = vpack.c.bf16 %v7482, %v7482
        %v7499 = vpack.c.bf16 %v7483, %v7483
        %v7500 = vpack.c.bf16 %v7484, %v7484
        %v7501 = vpack.c.bf16 %v7485, %v7485
        %v7502 = vpack.c.bf16 %v7486, %v7486
        %7503 = vrot.lane.b32.xlu0 %v1260, 32
        %v7504 = vpop.permute.xlu0 %7503
        %v7506 = vsel %vm2013, %v7487, 0
        %v7509 = vsel %vm2209, %v7504, 0
        %7511 = vmatprep.subr.bf16.mxu0 0
        %7512 = vmatpush1.bf16.msra.mxu0 %v7509
        %7513 = vmatprep.subr.bf16.mxu0 0
        %7514 = vmatpush1.bf16.msra.mxu0 0
        %7515 = vmatprep.subr.bf16.mxu0 0
        %7516 = vmatpush1.bf16.msra.mxu0 0
        %7517 = vmatprep.subr.bf16.mxu0 0
        %7518 = vmatpush1.bf16.msra.mxu0 0
        %7519 = vmatprep.subr.bf16.mxu0 0
        %7520 = vmatpush1.bf16.msra.mxu0 0
        %7521 = vmatprep.subr.bf16.mxu0 0
        %7522 = vmatpush1.bf16.msra.mxu0 0
        %7523 = vmatprep.subr.bf16.mxu0 0
        %7524 = vmatpush1.bf16.msra.mxu0 0
        %7525 = vmatprep.subr.bf16.mxu0 0
        %7526 = vmatpush1.bf16.msra.mxu0 0
        %7527 = vmatprep.subr.bf16.mxu0 0
        %7528 = vmatpush1.bf16.msra.mxu0 0
        %7529 = vmatprep.subr.bf16.mxu0 0
        %7530 = vmatpush1.bf16.msra.mxu0 0
        %7531 = vmatprep.subr.bf16.mxu0 0
        %7532 = vmatpush1.bf16.msra.mxu0 0
        %7533 = vmatprep.subr.bf16.mxu0 0
        %7534 = vmatpush1.bf16.msra.mxu0 0
        %7535 = vmatprep.subr.bf16.mxu0 0
        %7536 = vmatpush1.bf16.msra.mxu0 0
        %7537 = vmatprep.subr.bf16.mxu0 0
        %7538 = vmatpush1.bf16.msra.mxu0 0
        %7539 = vmatprep.subr.bf16.mxu0 0
        %7540 = vmatpush1.bf16.msra.mxu0 0
        %7541 = vmatprep.subr.bf16.mxu0 0
        %7542 = vmatpush1.bf16.msra.mxu0 0
        %7543 = vmatprep.mubr.bf16.mxu0 0
        %7544 = vmatmul.mubr.bf16.gmra.mrb[0].mxu0 %v7506
        %v7545 = vpop.f32.mrb[0].mxu0
        %v7546 = vadd.f32 0.0, %v7545
        %v7547 = vpop.f32.mrb[0].mxu0
        %v7548 = vpop.f32.mrb[0].mxu0
        %v7549 = vpop.f32.mrb[0].mxu0
        %7550 = vdwg.mxu0
        %7551 = vrot.lane.b32.xlu0 %v1261, 32
        %v7552 = vpop.permute.xlu0 %7551
        %v7554 = vsel %vm2013, %v7488, 0
        %v7557 = vsel %vm2209, %v7552, 0
        %7559 = vmatprep.subr.bf16.mxu0 0
        %7560 = vmatpush1.bf16.msra.mxu0 %v7557
        %7561 = vmatprep.subr.bf16.mxu0 0
        %7562 = vmatpush1.bf16.msra.mxu0 0
        %7563 = vmatprep.subr.bf16.mxu0 0
        %7564 = vmatpush1.bf16.msra.mxu0 0
        %7565 = vmatprep.subr.bf16.mxu0 0
        %7566 = vmatpush1.bf16.msra.mxu0 0
        %7567 = vmatprep.subr.bf16.mxu0 0
        %7568 = vmatpush1.bf16.msra.mxu0 0
        %7569 = vmatprep.subr.bf16.mxu0 0
        %7570 = vmatpush1.bf16.msra.mxu0 0
        %7571 = vmatprep.subr.bf16.mxu0 0
        %7572 = vmatpush1.bf16.msra.mxu0 0
        %7573 = vmatprep.subr.bf16.mxu0 0
        %7574 = vmatpush1.bf16.msra.mxu0 0
        %7575 = vmatprep.subr.bf16.mxu0 0
        %7576 = vmatpush1.bf16.msra.mxu0 0
        %7577 = vmatprep.subr.bf16.mxu0 0
        %7578 = vmatpush1.bf16.msra.mxu0 0
        %7579 = vmatprep.subr.bf16.mxu0 0
        %7580 = vmatpush1.bf16.msra.mxu0 0
        %7581 = vmatprep.subr.bf16.mxu0 0
        %7582 = vmatpush1.bf16.msra.mxu0 0
        %7583 = vmatprep.subr.bf16.mxu0 0
        %7584 = vmatpush1.bf16.msra.mxu0 0
        %7585 = vmatprep.subr.bf16.mxu0 0
        %7586 = vmatpush1.bf16.msra.mxu0 0
        %7587 = vmatprep.subr.bf16.mxu0 0
        %7588 = vmatpush1.bf16.msra.mxu0 0
        %7589 = vmatprep.subr.bf16.mxu0 0
        %7590 = vmatpush1.bf16.msra.mxu0 0
        %7591 = vmatprep.mubr.bf16.mxu0 0
        %7592 = vmatmul.mubr.bf16.gmra.mrb[0].mxu0 %v7554
        %v7593 = vpop.f32.mrb[0].mxu0
        %v7594 = vadd.f32 0.0, %v7593
        %v7595 = vpop.f32.mrb[0].mxu0
        %v7596 = vpop.f32.mrb[0].mxu0
        %v7597 = vpop.f32.mrb[0].mxu0
        %7598 = vdwg.mxu0
        %7599 = vrot.lane.b32.xlu0 %v1262, 32
        %v7600 = vpop.permute.xlu0 %7599
        %v7602 = vsel %vm2013, %v7489, 0
        %v7605 = vsel %vm2209, %v7600, 0
        %7607 = vmatprep.subr.bf16.mxu0 0
        %7608 = vmatpush1.bf16.msra.mxu0 %v7605
        %7609 = vmatprep.subr.bf16.mxu0 0
        %7610 = vmatpush1.bf16.msra.mxu0 0
        %7611 = vmatprep.subr.bf16.mxu0 0
        %7612 = vmatpush1.bf16.msra.mxu0 0
        %7613 = vmatprep.subr.bf16.mxu0 0
        %7614 = vmatpush1.bf16.msra.mxu0 0
        %7615 = vmatprep.subr.bf16.mxu0 0
        %7616 = vmatpush1.bf16.msra.mxu0 0
        %7617 = vmatprep.subr.bf16.mxu0 0
        %7618 = vmatpush1.bf16.msra.mxu0 0
        %7619 = vmatprep.subr.bf16.mxu0 0
        %7620 = vmatpush1.bf16.msra.mxu0 0
        %7621 = vmatprep.subr.bf16.mxu0 0
        %7622 = vmatpush1.bf16.msra.mxu0 0
        %7623 = vmatprep.subr.bf16.mxu0 0
        %7624 = vmatpush1.bf16.msra.mxu0 0
        %7625 = vmatprep.subr.bf16.mxu0 0
        %7626 = vmatpush1.bf16.msra.mxu0 0
        %7627 = vmatprep.subr.bf16.mxu0 0
        %7628 = vmatpush1.bf16.msra.mxu0 0
        %7629 = vmatprep.subr.bf16.mxu0 0
        %7630 = vmatpush1.bf16.msra.mxu0 0
        %7631 = vmatprep.subr.bf16.mxu0 0
        %7632 = vmatpush1.bf16.msra.mxu0 0
        %7633 = vmatprep.subr.bf16.mxu0 0
        %7634 = vmatpush1.bf16.msra.mxu0 0
        %7635 = vmatprep.subr.bf16.mxu0 0
        %7636 = vmatpush1.bf16.msra.mxu0 0
        %7637 = vmatprep.subr.bf16.mxu0 0
        %7638 = vmatpush1.bf16.msra.mxu0 0
        %7639 = vmatprep.mubr.bf16.mxu0 0
        %7640 = vmatmul.mubr.bf16.gmra.mrb[0].mxu0 %v7602
        %v7641 = vpop.f32.mrb[0].mxu0
        %v7642 = vadd.f32 0.0, %v7641
        %v7643 = vpop.f32.mrb[0].mxu0
        %v7644 = vpop.f32.mrb[0].mxu0
        %v7645 = vpop.f32.mrb[0].mxu0
        %7646 = vdwg.mxu0
        %7647 = vrot.lane.b32.xlu0 %v1263, 32
        %v7648 = vpop.permute.xlu0 %7647
        %v7650 = vsel %vm2013, %v7490, 0
        %v7653 = vsel %vm2209, %v7648, 0
        %7655 = vmatprep.subr.bf16.mxu0 0
        %7656 = vmatpush1.bf16.msra.mxu0 %v7653
        %7657 = vmatprep.subr.bf16.mxu0 0
        %7658 = vmatpush1.bf16.msra.mxu0 0
        %7659 = vmatprep.subr.bf16.mxu0 0
        %7660 = vmatpush1.bf16.msra.mxu0 0
        %7661 = vmatprep.subr.bf16.mxu0 0
        %7662 = vmatpush1.bf16.msra.mxu0 0
        %7663 = vmatprep.subr.bf16.mxu0 0
        %7664 = vmatpush1.bf16.msra.mxu0 0
        %7665 = vmatprep.subr.bf16.mxu0 0
        %7666 = vmatpush1.bf16.msra.mxu0 0
        %7667 = vmatprep.subr.bf16.mxu0 0
        %7668 = vmatpush1.bf16.msra.mxu0 0
        %7669 = vmatprep.subr.bf16.mxu0 0
        %7670 = vmatpush1.bf16.msra.mxu0 0
        %7671 = vmatprep.subr.bf16.mxu0 0
        %7672 = vmatpush1.bf16.msra.mxu0 0
        %7673 = vmatprep.subr.bf16.mxu0 0
        %7674 = vmatpush1.bf16.msra.mxu0 0
        %7675 = vmatprep.subr.bf16.mxu0 0
        %7676 = vmatpush1.bf16.msra.mxu0 0
        %7677 = vmatprep.subr.bf16.mxu0 0
        %7678 = vmatpush1.bf16.msra.mxu0 0
        %7679 = vmatprep.subr.bf16.mxu0 0
        %7680 = vmatpush1.bf16.msra.mxu0 0
        %7681 = vmatprep.subr.bf16.mxu0 0
        %7682 = vmatpush1.bf16.msra.mxu0 0
        %7683 = vmatprep.subr.bf16.mxu0 0
        %7684 = vmatpush1.bf16.msra.mxu0 0
        %7685 = vmatprep.subr.bf16.mxu0 0
        %7686 = vmatpush1.bf16.msra.mxu0 0
        %7687 = vmatprep.mubr.bf16.mxu0 0
        %7688 = vmatmul.mubr.bf16.gmra.mrb[0].mxu0 %v7650
        %v7689 = vpop.f32.mrb[0].mxu0
        %v7690 = vadd.f32 0.0, %v7689
        %v7691 = vpop.f32.mrb[0].mxu0
        %v7692 = vpop.f32.mrb[0].mxu0
        %v7693 = vpop.f32.mrb[0].mxu0
        %7694 = vdwg.mxu0
        %7695 = vrot.lane.b32.xlu0 %v1264, 32
        %v7696 = vpop.permute.xlu0 %7695
        %v7698 = vsel %vm2013, %v7491, 0
        %v7701 = vsel %vm2209, %v7696, 0
        %7703 = vmatprep.subr.bf16.mxu0 0
        %7704 = vmatpush1.bf16.msra.mxu0 %v7701
        %7705 = vmatprep.subr.bf16.mxu0 0
        %7706 = vmatpush1.bf16.msra.mxu0 0
        %7707 = vmatprep.subr.bf16.mxu0 0
        %7708 = vmatpush1.bf16.msra.mxu0 0
        %7709 = vmatprep.subr.bf16.mxu0 0
        %7710 = vmatpush1.bf16.msra.mxu0 0
        %7711 = vmatprep.subr.bf16.mxu0 0
        %7712 = vmatpush1.bf16.msra.mxu0 0
        %7713 = vmatprep.subr.bf16.mxu0 0
        %7714 = vmatpush1.bf16.msra.mxu0 0
        %7715 = vmatprep.subr.bf16.mxu0 0
        %7716 = vmatpush1.bf16.msra.mxu0 0
        %7717 = vmatprep.subr.bf16.mxu0 0
        %7718 = vmatpush1.bf16.msra.mxu0 0
        %7719 = vmatprep.subr.bf16.mxu0 0
        %7720 = vmatpush1.bf16.msra.mxu0 0
        %7721 = vmatprep.subr.bf16.mxu0 0
        %7722 = vmatpush1.bf16.msra.mxu0 0
        %7723 = vmatprep.subr.bf16.mxu0 0
        %7724 = vmatpush1.bf16.msra.mxu0 0
        %7725 = vmatprep.subr.bf16.mxu0 0
        %7726 = vmatpush1.bf16.msra.mxu0 0
        %7727 = vmatprep.subr.bf16.mxu0 0
        %7728 = vmatpush1.bf16.msra.mxu0 0
        %7729 = vmatprep.subr.bf16.mxu0 0
        %7730 = vmatpush1.bf16.msra.mxu0 0
        %7731 = vmatprep.subr.bf16.mxu0 0
        %7732 = vmatpush1.bf16.msra.mxu0 0
        %7733 = vmatprep.subr.bf16.mxu0 0
        %7734 = vmatpush1.bf16.msra.mxu0 0
        %7735 = vmatprep.mubr.bf16.mxu0 0
        %7736 = vmatmul.mubr.bf16.gmra.mrb[0].mxu0 %v7698
        %v7737 = vpop.f32.mrb[0].mxu0
        %v7738 = vadd.f32 0.0, %v7737
        %v7739 = vpop.f32.mrb[0].mxu0
        %v7740 = vpop.f32.mrb[0].mxu0
        %v7741 = vpop.f32.mrb[0].mxu0
        %7742 = vdwg.mxu0
        %7743 = vrot.lane.b32.xlu0 %v1265, 32
        %v7744 = vpop.permute.xlu0 %7743
        %v7746 = vsel %vm2013, %v7492, 0
        %v7749 = vsel %vm2209, %v7744, 0
        %7751 = vmatprep.subr.bf16.mxu0 0
        %7752 = vmatpush1.bf16.msra.mxu0 %v7749
        %7753 = vmatprep.subr.bf16.mxu0 0
        %7754 = vmatpush1.bf16.msra.mxu0 0
        %7755 = vmatprep.subr.bf16.mxu0 0
        %7756 = vmatpush1.bf16.msra.mxu0 0
        %7757 = vmatprep.subr.bf16.mxu0 0
        %7758 = vmatpush1.bf16.msra.mxu0 0
        %7759 = vmatprep.subr.bf16.mxu0 0
        %7760 = vmatpush1.bf16.msra.mxu0 0
        %7761 = vmatprep.subr.bf16.mxu0 0
        %7762 = vmatpush1.bf16.msra.mxu0 0
        %7763 = vmatprep.subr.bf16.mxu0 0
        %7764 = vmatpush1.bf16.msra.mxu0 0
        %7765 = vmatprep.subr.bf16.mxu0 0
        %7766 = vmatpush1.bf16.msra.mxu0 0
        %7767 = vmatprep.subr.bf16.mxu0 0
        %7768 = vmatpush1.bf16.msra.mxu0 0
        %7769 = vmatprep.subr.bf16.mxu0 0
        %7770 = vmatpush1.bf16.msra.mxu0 0
        %7771 = vmatprep.subr.bf16.mxu0 0
        %7772 = vmatpush1.bf16.msra.mxu0 0
        %7773 = vmatprep.subr.bf16.mxu0 0
        %7774 = vmatpush1.bf16.msra.mxu0 0
        %7775 = vmatprep.subr.bf16.mxu0 0
        %7776 = vmatpush1.bf16.msra.mxu0 0
        %7777 = vmatprep.subr.bf16.mxu0 0
        %7778 = vmatpush1.bf16.msra.mxu0 0
        %7779 = vmatprep.subr.bf16.mxu0 0
        %7780 = vmatpush1.bf16.msra.mxu0 0
        %7781 = vmatprep.subr.bf16.mxu0 0
        %7782 = vmatpush1.bf16.msra.mxu0 0
        %7783 = vmatprep.mubr.bf16.mxu0 0
        %7784 = vmatmul.mubr.bf16.gmra.mrb[0].mxu0 %v7746
        %v7785 = vpop.f32.mrb[0].mxu0
        %v7786 = vadd.f32 0.0, %v7785
        %v7787 = vpop.f32.mrb[0].mxu0
        %v7788 = vpop.f32.mrb[0].mxu0
        %v7789 = vpop.f32.mrb[0].mxu0
        %7790 = vdwg.mxu0
        %7791 = vrot.lane.b32.xlu0 %v1266, 32
        %v7792 = vpop.permute.xlu0 %7791
        %v7794 = vsel %vm2013, %v7493, 0
        %v7797 = vsel %vm2209, %v7792, 0
        %7799 = vmatprep.subr.bf16.mxu0 0
        %7800 = vmatpush1.bf16.msra.mxu0 %v7797
        %7801 = vmatprep.subr.bf16.mxu0 0
        %7802 = vmatpush1.bf16.msra.mxu0 0
        %7803 = vmatprep.subr.bf16.mxu0 0
        %7804 = vmatpush1.bf16.msra.mxu0 0
        %7805 = vmatprep.subr.bf16.mxu0 0
        %7806 = vmatpush1.bf16.msra.mxu0 0
        %7807 = vmatprep.subr.bf16.mxu0 0
        %7808 = vmatpush1.bf16.msra.mxu0 0
        %7809 = vmatprep.subr.bf16.mxu0 0
        %7810 = vmatpush1.bf16.msra.mxu0 0
        %7811 = vmatprep.subr.bf16.mxu0 0
        %7812 = vmatpush1.bf16.msra.mxu0 0
        %7813 = vmatprep.subr.bf16.mxu0 0
        %7814 = vmatpush1.bf16.msra.mxu0 0
        %7815 = vmatprep.subr.bf16.mxu0 0
        %7816 = vmatpush1.bf16.msra.mxu0 0
        %7817 = vmatprep.subr.bf16.mxu0 0
        %7818 = vmatpush1.bf16.msra.mxu0 0
        %7819 = vmatprep.subr.bf16.mxu0 0
        %7820 = vmatpush1.bf16.msra.mxu0 0
        %7821 = vmatprep.subr.bf16.mxu0 0
        %7822 = vmatpush1.bf16.msra.mxu0 0
        %7823 = vmatprep.subr.bf16.mxu0 0
        %7824 = vmatpush1.bf16.msra.mxu0 0
        %7825 = vmatprep.subr.bf16.mxu0 0
        %7826 = vmatpush1.bf16.msra.mxu0 0
        %7827 = vmatprep.subr.bf16.mxu0 0
        %7828 = vmatpush1.bf16.msra.mxu0 0
        %7829 = vmatprep.subr.bf16.mxu0 0
        %7830 = vmatpush1.bf16.msra.mxu0 0
        %7831 = vmatprep.mubr.bf16.mxu0 0
        %7832 = vmatmul.mubr.bf16.gmra.mrb[0].mxu0 %v7794
        %v7833 = vpop.f32.mrb[0].mxu0
        %v7834 = vadd.f32 0.0, %v7833
        %v7835 = vpop.f32.mrb[0].mxu0
        %v7836 = vpop.f32.mrb[0].mxu0
        %v7837 = vpop.f32.mrb[0].mxu0
        %7838 = vdwg.mxu0
        %7839 = vrot.lane.b32.xlu0 %v1267, 32
        %v7840 = vpop.permute.xlu0 %7839
        %v7842 = vsel %vm2013, %v7494, 0
        %v7845 = vsel %vm2209, %v7840, 0
        %7847 = vmatprep.subr.bf16.mxu0 0
        %7848 = vmatpush1.bf16.msra.mxu0 %v7845
        %7849 = vmatprep.subr.bf16.mxu0 0
        %7850 = vmatpush1.bf16.msra.mxu0 0
        %7851 = vmatprep.subr.bf16.mxu0 0
        %7852 = vmatpush1.bf16.msra.mxu0 0
        %7853 = vmatprep.subr.bf16.mxu0 0
        %7854 = vmatpush1.bf16.msra.mxu0 0
        %7855 = vmatprep.subr.bf16.mxu0 0
        %7856 = vmatpush1.bf16.msra.mxu0 0
        %7857 = vmatprep.subr.bf16.mxu0 0
        %7858 = vmatpush1.bf16.msra.mxu0 0
        %7859 = vmatprep.subr.bf16.mxu0 0
        %7860 = vmatpush1.bf16.msra.mxu0 0
        %7861 = vmatprep.subr.bf16.mxu0 0
        %7862 = vmatpush1.bf16.msra.mxu0 0
        %7863 = vmatprep.subr.bf16.mxu0 0
        %7864 = vmatpush1.bf16.msra.mxu0 0
        %7865 = vmatprep.subr.bf16.mxu0 0
        %7866 = vmatpush1.bf16.msra.mxu0 0
        %7867 = vmatprep.subr.bf16.mxu0 0
        %7868 = vmatpush1.bf16.msra.mxu0 0
        %7869 = vmatprep.subr.bf16.mxu0 0
        %7870 = vmatpush1.bf16.msra.mxu0 0
        %7871 = vmatprep.subr.bf16.mxu0 0
        %7872 = vmatpush1.bf16.msra.mxu0 0
        %7873 = vmatprep.subr.bf16.mxu0 0
        %7874 = vmatpush1.bf16.msra.mxu0 0
        %7875 = vmatprep.subr.bf16.mxu0 0
        %7876 = vmatpush1.bf16.msra.mxu0 0
        %7877 = vmatprep.subr.bf16.mxu0 0
        %7878 = vmatpush1.bf16.msra.mxu0 0
        %7879 = vmatprep.mubr.bf16.mxu0 0
        %7880 = vmatmul.mubr.bf16.gmra.mrb[0].mxu0 %v7842
        %v7881 = vpop.f32.mrb[0].mxu0
        %v7882 = vadd.f32 0.0, %v7881
        %v7883 = vpop.f32.mrb[0].mxu0
        %v7884 = vpop.f32.mrb[0].mxu0
        %v7885 = vpop.f32.mrb[0].mxu0
        %7886 = vdwg.mxu0
        %7887 = vrot.lane.b32.xlu0 %v1268, 32
        %v7888 = vpop.permute.xlu0 %7887
        %v7890 = vsel %vm2013, %v7495, 0
        %v7893 = vsel %vm2209, %v7888, 0
        %7895 = vmatprep.subr.bf16.mxu0 0
        %7896 = vmatpush1.bf16.msra.mxu0 %v7893
        %7897 = vmatprep.subr.bf16.mxu0 0
        %7898 = vmatpush1.bf16.msra.mxu0 0
        %7899 = vmatprep.subr.bf16.mxu0 0
        %7900 = vmatpush1.bf16.msra.mxu0 0
        %7901 = vmatprep.subr.bf16.mxu0 0
        %7902 = vmatpush1.bf16.msra.mxu0 0
        %7903 = vmatprep.subr.bf16.mxu0 0
        %7904 = vmatpush1.bf16.msra.mxu0 0
        %7905 = vmatprep.subr.bf16.mxu0 0
        %7906 = vmatpush1.bf16.msra.mxu0 0
        %7907 = vmatprep.subr.bf16.mxu0 0
        %7908 = vmatpush1.bf16.msra.mxu0 0
        %7909 = vmatprep.subr.bf16.mxu0 0
        %7910 = vmatpush1.bf16.msra.mxu0 0
        %7911 = vmatprep.subr.bf16.mxu0 0
        %7912 = vmatpush1.bf16.msra.mxu0 0
        %7913 = vmatprep.subr.bf16.mxu0 0
        %7914 = vmatpush1.bf16.msra.mxu0 0
        %7915 = vmatprep.subr.bf16.mxu0 0
        %7916 = vmatpush1.bf16.msra.mxu0 0
        %7917 = vmatprep.subr.bf16.mxu0 0
        %7918 = vmatpush1.bf16.msra.mxu0 0
        %7919 = vmatprep.subr.bf16.mxu0 0
        %7920 = vmatpush1.bf16.msra.mxu0 0
        %7921 = vmatprep.subr.bf16.mxu0 0
        %7922 = vmatpush1.bf16.msra.mxu0 0
        %7923 = vmatprep.subr.bf16.mxu0 0
        %7924 = vmatpush1.bf16.msra.mxu0 0
        %7925 = vmatprep.subr.bf16.mxu0 0
        %7926 = vmatpush1.bf16.msra.mxu0 0
        %7927 = vmatprep.mubr.bf16.mxu0 0
        %7928 = vmatmul.mubr.bf16.gmra.mrb[0].mxu0 %v7890
        %v7929 = vpop.f32.mrb[0].mxu0
        %v7930 = vadd.f32 0.0, %v7929
        %v7931 = vpop.f32.mrb[0].mxu0
        %v7932 = vpop.f32.mrb[0].mxu0
        %v7933 = vpop.f32.mrb[0].mxu0
        %7934 = vdwg.mxu0
        %7935 = vrot.lane.b32.xlu0 %v1269, 32
        %v7936 = vpop.permute.xlu0 %7935
        %v7938 = vsel %vm2013, %v7496, 0
        %v7941 = vsel %vm2209, %v7936, 0
        %7943 = vmatprep.subr.bf16.mxu0 0
        %7944 = vmatpush1.bf16.msra.mxu0 %v7941
        %7945 = vmatprep.subr.bf16.mxu0 0
        %7946 = vmatpush1.bf16.msra.mxu0 0
        %7947 = vmatprep.subr.bf16.mxu0 0
        %7948 = vmatpush1.bf16.msra.mxu0 0
        %7949 = vmatprep.subr.bf16.mxu0 0
        %7950 = vmatpush1.bf16.msra.mxu0 0
        %7951 = vmatprep.subr.bf16.mxu0 0
        %7952 = vmatpush1.bf16.msra.mxu0 0
        %7953 = vmatprep.subr.bf16.mxu0 0
        %7954 = vmatpush1.bf16.msra.mxu0 0
        %7955 = vmatprep.subr.bf16.mxu0 0
        %7956 = vmatpush1.bf16.msra.mxu0 0
        %7957 = vmatprep.subr.bf16.mxu0 0
        %7958 = vmatpush1.bf16.msra.mxu0 0
        %7959 = vmatprep.subr.bf16.mxu0 0
        %7960 = vmatpush1.bf16.msra.mxu0 0
        %7961 = vmatprep.subr.bf16.mxu0 0
        %7962 = vmatpush1.bf16.msra.mxu0 0
        %7963 = vmatprep.subr.bf16.mxu0 0
        %7964 = vmatpush1.bf16.msra.mxu0 0
        %7965 = vmatprep.subr.bf16.mxu0 0
        %7966 = vmatpush1.bf16.msra.mxu0 0
        %7967 = vmatprep.subr.bf16.mxu0 0
        %7968 = vmatpush1.bf16.msra.mxu0 0
        %7969 = vmatprep.subr.bf16.mxu0 0
        %7970 = vmatpush1.bf16.msra.mxu0 0
        %7971 = vmatprep.subr.bf16.mxu0 0
        %7972 = vmatpush1.bf16.msra.mxu0 0
        %7973 = vmatprep.subr.bf16.mxu0 0
        %7974 = vmatpush1.bf16.msra.mxu0 0
        %7975 = vmatprep.mubr.bf16.mxu0 0
        %7976 = vmatmul.mubr.bf16.gmra.mrb[0].mxu0 %v7938
        %v7977 = vpop.f32.mrb[0].mxu0
        %v7978 = vadd.f32 0.0, %v7977
        %v7979 = vpop.f32.mrb[0].mxu0
        %v7980 = vpop.f32.mrb[0].mxu0
        %v7981 = vpop.f32.mrb[0].mxu0
        %7982 = vdwg.mxu0
        %7983 = vrot.lane.b32.xlu0 %v1270, 32
        %v7984 = vpop.permute.xlu0 %7983
        %v7986 = vsel %vm2013, %v7497, 0
        %v7989 = vsel %vm2209, %v7984, 0
        %7991 = vmatprep.subr.bf16.mxu0 0
        %7992 = vmatpush1.bf16.msra.mxu0 %v7989
        %7993 = vmatprep.subr.bf16.mxu0 0
        %7994 = vmatpush1.bf16.msra.mxu0 0
        %7995 = vmatprep.subr.bf16.mxu0 0
        %7996 = vmatpush1.bf16.msra.mxu0 0
        %7997 = vmatprep.subr.bf16.mxu0 0
        %7998 = vmatpush1.bf16.msra.mxu0 0
        %7999 = vmatprep.subr.bf16.mxu0 0
        %8000 = vmatpush1.bf16.msra.mxu0 0
        %8001 = vmatprep.subr.bf16.mxu0 0
        %8002 = vmatpush1.bf16.msra.mxu0 0
        %8003 = vmatprep.subr.bf16.mxu0 0
        %8004 = vmatpush1.bf16.msra.mxu0 0
        %8005 = vmatprep.subr.bf16.mxu0 0
        %8006 = vmatpush1.bf16.msra.mxu0 0
        %8007 = vmatprep.subr.bf16.mxu0 0
        %8008 = vmatpush1.bf16.msra.mxu0 0
        %8009 = vmatprep.subr.bf16.mxu0 0
        %8010 = vmatpush1.bf16.msra.mxu0 0
        %8011 = vmatprep.subr.bf16.mxu0 0
        %8012 = vmatpush1.bf16.msra.mxu0 0
        %8013 = vmatprep.subr.bf16.mxu0 0
        %8014 = vmatpush1.bf16.msra.mxu0 0
        %8015 = vmatprep.subr.bf16.mxu0 0
        %8016 = vmatpush1.bf16.msra.mxu0 0
        %8017 = vmatprep.subr.bf16.mxu0 0
        %8018 = vmatpush1.bf16.msra.mxu0 0
        %8019 = vmatprep.subr.bf16.mxu0 0
        %8020 = vmatpush1.bf16.msra.mxu0 0
        %8021 = vmatprep.subr.bf16.mxu0 0
        %8022 = vmatpush1.bf16.msra.mxu0 0
        %8023 = vmatprep.mubr.bf16.mxu0 0
        %8024 = vmatmul.mubr.bf16.gmra.mrb[0].mxu0 %v7986
        %v8025 = vpop.f32.mrb[0].mxu0
        %v8026 = vadd.f32 0.0, %v8025
        %v8027 = vpop.f32.mrb[0].mxu0
        %v8028 = vpop.f32.mrb[0].mxu0
        %v8029 = vpop.f32.mrb[0].mxu0
        %8030 = vdwg.mxu0
        %8031 = vrot.lane.b32.xlu0 %v1271, 32
        %v8032 = vpop.permute.xlu0 %8031
        %v8034 = vsel %vm2013, %v7498, 0
        %v8037 = vsel %vm2209, %v8032, 0
        %8039 = vmatprep.subr.bf16.mxu0 0
        %8040 = vmatpush1.bf16.msra.mxu0 %v8037
        %8041 = vmatprep.subr.bf16.mxu0 0
        %8042 = vmatpush1.bf16.msra.mxu0 0
        %8043 = vmatprep.subr.bf16.mxu0 0
        %8044 = vmatpush1.bf16.msra.mxu0 0
        %8045 = vmatprep.subr.bf16.mxu0 0
        %8046 = vmatpush1.bf16.msra.mxu0 0
        %8047 = vmatprep.subr.bf16.mxu0 0
        %8048 = vmatpush1.bf16.msra.mxu0 0
        %8049 = vmatprep.subr.bf16.mxu0 0
        %8050 = vmatpush1.bf16.msra.mxu0 0
        %8051 = vmatprep.subr.bf16.mxu0 0
        %8052 = vmatpush1.bf16.msra.mxu0 0
        %8053 = vmatprep.subr.bf16.mxu0 0
        %8054 = vmatpush1.bf16.msra.mxu0 0
        %8055 = vmatprep.subr.bf16.mxu0 0
        %8056 = vmatpush1.bf16.msra.mxu0 0
        %8057 = vmatprep.subr.bf16.mxu0 0
        %8058 = vmatpush1.bf16.msra.mxu0 0
        %8059 = vmatprep.subr.bf16.mxu0 0
        %8060 = vmatpush1.bf16.msra.mxu0 0
        %8061 = vmatprep.subr.bf16.mxu0 0
        %8062 = vmatpush1.bf16.msra.mxu0 0
        %8063 = vmatprep.subr.bf16.mxu0 0
        %8064 = vmatpush1.bf16.msra.mxu0 0
        %8065 = vmatprep.subr.bf16.mxu0 0
        %8066 = vmatpush1.bf16.msra.mxu0 0
        %8067 = vmatprep.subr.bf16.mxu0 0
        %8068 = vmatpush1.bf16.msra.mxu0 0
        %8069 = vmatprep.subr.bf16.mxu0 0
        %8070 = vmatpush1.bf16.msra.mxu0 0
        %8071 = vmatprep.mubr.bf16.mxu0 0
        %8072 = vmatmul.mubr.bf16.gmra.mrb[0].mxu0 %v8034
        %v8073 = vpop.f32.mrb[0].mxu0
        %v8074 = vadd.f32 0.0, %v8073
        %v8075 = vpop.f32.mrb[0].mxu0
        %v8076 = vpop.f32.mrb[0].mxu0
        %v8077 = vpop.f32.mrb[0].mxu0
        %8078 = vdwg.mxu0
        %8079 = vrot.lane.b32.xlu0 %v1272, 32
        %v8080 = vpop.permute.xlu0 %8079
        %v8082 = vsel %vm2013, %v7499, 0
        %v8085 = vsel %vm2209, %v8080, 0
        %8087 = vmatprep.subr.bf16.mxu0 0
        %8088 = vmatpush1.bf16.msra.mxu0 %v8085
        %8089 = vmatprep.subr.bf16.mxu0 0
        %8090 = vmatpush1.bf16.msra.mxu0 0
        %8091 = vmatprep.subr.bf16.mxu0 0
        %8092 = vmatpush1.bf16.msra.mxu0 0
        %8093 = vmatprep.subr.bf16.mxu0 0
        %8094 = vmatpush1.bf16.msra.mxu0 0
        %8095 = vmatprep.subr.bf16.mxu0 0
        %8096 = vmatpush1.bf16.msra.mxu0 0
        %8097 = vmatprep.subr.bf16.mxu0 0
        %8098 = vmatpush1.bf16.msra.mxu0 0
        %8099 = vmatprep.subr.bf16.mxu0 0
        %8100 = vmatpush1.bf16.msra.mxu0 0
        %8101 = vmatprep.subr.bf16.mxu0 0
        %8102 = vmatpush1.bf16.msra.mxu0 0
        %8103 = vmatprep.subr.bf16.mxu0 0
        %8104 = vmatpush1.bf16.msra.mxu0 0
        %8105 = vmatprep.subr.bf16.mxu0 0
        %8106 = vmatpush1.bf16.msra.mxu0 0
        %8107 = vmatprep.subr.bf16.mxu0 0
        %8108 = vmatpush1.bf16.msra.mxu0 0
        %8109 = vmatprep.subr.bf16.mxu0 0
        %8110 = vmatpush1.bf16.msra.mxu0 0
        %8111 = vmatprep.subr.bf16.mxu0 0
        %8112 = vmatpush1.bf16.msra.mxu0 0
        %8113 = vmatprep.subr.bf16.mxu0 0
        %8114 = vmatpush1.bf16.msra.mxu0 0
        %8115 = vmatprep.subr.bf16.mxu0 0
        %8116 = vmatpush1.bf16.msra.mxu0 0
        %8117 = vmatprep.subr.bf16.mxu0 0
        %8118 = vmatpush1.bf16.msra.mxu0 0
        %8119 = vmatprep.mubr.bf16.mxu0 0
        %8120 = vmatmul.mubr.bf16.gmra.mrb[0].mxu0 %v8082
        %v8121 = vpop.f32.mrb[0].mxu0
        %v8122 = vadd.f32 0.0, %v8121
        %v8123 = vpop.f32.mrb[0].mxu0
        %v8124 = vpop.f32.mrb[0].mxu0
        %v8125 = vpop.f32.mrb[0].mxu0
        %8126 = vdwg.mxu0
        %8127 = vrot.lane.b32.xlu0 %v1273, 32
        %v8128 = vpop.permute.xlu0 %8127
        %v8130 = vsel %vm2013, %v7500, 0
        %v8133 = vsel %vm2209, %v8128, 0
        %8135 = vmatprep.subr.bf16.mxu0 0
        %8136 = vmatpush1.bf16.msra.mxu0 %v8133
        %8137 = vmatprep.subr.bf16.mxu0 0
        %8138 = vmatpush1.bf16.msra.mxu0 0
        %8139 = vmatprep.subr.bf16.mxu0 0
        %8140 = vmatpush1.bf16.msra.mxu0 0
        %8141 = vmatprep.subr.bf16.mxu0 0
        %8142 = vmatpush1.bf16.msra.mxu0 0
        %8143 = vmatprep.subr.bf16.mxu0 0
        %8144 = vmatpush1.bf16.msra.mxu0 0
        %8145 = vmatprep.subr.bf16.mxu0 0
        %8146 = vmatpush1.bf16.msra.mxu0 0
        %8147 = vmatprep.subr.bf16.mxu0 0
        %8148 = vmatpush1.bf16.msra.mxu0 0
        %8149 = vmatprep.subr.bf16.mxu0 0
        %8150 = vmatpush1.bf16.msra.mxu0 0
        %8151 = vmatprep.subr.bf16.mxu0 0
        %8152 = vmatpush1.bf16.msra.mxu0 0
        %8153 = vmatprep.subr.bf16.mxu0 0
        %8154 = vmatpush1.bf16.msra.mxu0 0
        %8155 = vmatprep.subr.bf16.mxu0 0
        %8156 = vmatpush1.bf16.msra.mxu0 0
        %8157 = vmatprep.subr.bf16.mxu0 0
        %8158 = vmatpush1.bf16.msra.mxu0 0
        %8159 = vmatprep.subr.bf16.mxu0 0
        %8160 = vmatpush1.bf16.msra.mxu0 0
        %8161 = vmatprep.subr.bf16.mxu0 0
        %8162 = vmatpush1.bf16.msra.mxu0 0
        %8163 = vmatprep.subr.bf16.mxu0 0
        %8164 = vmatpush1.bf16.msra.mxu0 0
        %8165 = vmatprep.subr.bf16.mxu0 0
        %8166 = vmatpush1.bf16.msra.mxu0 0
        %8167 = vmatprep.mubr.bf16.mxu0 0
        %8168 = vmatmul.mubr.bf16.gmra.mrb[0].mxu0 %v8130
        %v8169 = vpop.f32.mrb[0].mxu0
        %v8170 = vadd.f32 0.0, %v8169
        %v8171 = vpop.f32.mrb[0].mxu0
        %v8172 = vpop.f32.mrb[0].mxu0
        %v8173 = vpop.f32.mrb[0].mxu0
        %8174 = vdwg.mxu0
        %8175 = vrot.lane.b32.xlu0 %v1274, 32
        %v8176 = vpop.permute.xlu0 %8175
        %v8178 = vsel %vm2013, %v7501, 0
        %v8181 = vsel %vm2209, %v8176, 0
        %8183 = vmatprep.subr.bf16.mxu0 0
        %8184 = vmatpush1.bf16.msra.mxu0 %v8181
        %8185 = vmatprep.subr.bf16.mxu0 0
        %8186 = vmatpush1.bf16.msra.mxu0 0
        %8187 = vmatprep.subr.bf16.mxu0 0
        %8188 = vmatpush1.bf16.msra.mxu0 0
        %8189 = vmatprep.subr.bf16.mxu0 0
        %8190 = vmatpush1.bf16.msra.mxu0 0
        %8191 = vmatprep.subr.bf16.mxu0 0
        %8192 = vmatpush1.bf16.msra.mxu0 0
        %8193 = vmatprep.subr.bf16.mxu0 0
        %8194 = vmatpush1.bf16.msra.mxu0 0
        %8195 = vmatprep.subr.bf16.mxu0 0
        %8196 = vmatpush1.bf16.msra.mxu0 0
        %8197 = vmatprep.subr.bf16.mxu0 0
        %8198 = vmatpush1.bf16.msra.mxu0 0
        %8199 = vmatprep.subr.bf16.mxu0 0
        %8200 = vmatpush1.bf16.msra.mxu0 0
        %8201 = vmatprep.subr.bf16.mxu0 0
        %8202 = vmatpush1.bf16.msra.mxu0 0
        %8203 = vmatprep.subr.bf16.mxu0 0
        %8204 = vmatpush1.bf16.msra.mxu0 0
        %8205 = vmatprep.subr.bf16.mxu0 0
        %8206 = vmatpush1.bf16.msra.mxu0 0
        %8207 = vmatprep.subr.bf16.mxu0 0
        %8208 = vmatpush1.bf16.msra.mxu0 0
        %8209 = vmatprep.subr.bf16.mxu0 0
        %8210 = vmatpush1.bf16.msra.mxu0 0
        %8211 = vmatprep.subr.bf16.mxu0 0
        %8212 = vmatpush1.bf16.msra.mxu0 0
        %8213 = vmatprep.subr.bf16.mxu0 0
        %8214 = vmatpush1.bf16.msra.mxu0 0
        %8215 = vmatprep.mubr.bf16.mxu0 0
        %8216 = vmatmul.mubr.bf16.gmra.mrb[0].mxu0 %v8178
        %v8217 = vpop.f32.mrb[0].mxu0
        %v8218 = vadd.f32 0.0, %v8217
        %v8219 = vpop.f32.mrb[0].mxu0
        %v8220 = vpop.f32.mrb[0].mxu0
        %v8221 = vpop.f32.mrb[0].mxu0
        %8222 = vdwg.mxu0
        %8223 = vrot.lane.b32.xlu0 %v1275, 32
        %v8224 = vpop.permute.xlu0 %8223
        %v8226 = vsel %vm2013, %v7502, 0
        %v8229 = vsel %vm2209, %v8224, 0
        %8231 = vmatprep.subr.bf16.mxu0 0
        %8232 = vmatpush1.bf16.msra.mxu0 %v8229
        %8233 = vmatprep.subr.bf16.mxu0 0
        %8234 = vmatpush1.bf16.msra.mxu0 0
        %8235 = vmatprep.subr.bf16.mxu0 0
        %8236 = vmatpush1.bf16.msra.mxu0 0
        %8237 = vmatprep.subr.bf16.mxu0 0
        %8238 = vmatpush1.bf16.msra.mxu0 0
        %8239 = vmatprep.subr.bf16.mxu0 0
        %8240 = vmatpush1.bf16.msra.mxu0 0
        %8241 = vmatprep.subr.bf16.mxu0 0
        %8242 = vmatpush1.bf16.msra.mxu0 0
        %8243 = vmatprep.subr.bf16.mxu0 0
        %8244 = vmatpush1.bf16.msra.mxu0 0
        %8245 = vmatprep.subr.bf16.mxu0 0
        %8246 = vmatpush1.bf16.msra.mxu0 0
        %8247 = vmatprep.subr.bf16.mxu0 0
        %8248 = vmatpush1.bf16.msra.mxu0 0
        %8249 = vmatprep.subr.bf16.mxu0 0
        %8250 = vmatpush1.bf16.msra.mxu0 0
        %8251 = vmatprep.subr.bf16.mxu0 0
        %8252 = vmatpush1.bf16.msra.mxu0 0
        %8253 = vmatprep.subr.bf16.mxu0 0
        %8254 = vmatpush1.bf16.msra.mxu0 0
        %8255 = vmatprep.subr.bf16.mxu0 0
        %8256 = vmatpush1.bf16.msra.mxu0 0
        %8257 = vmatprep.subr.bf16.mxu0 0
        %8258 = vmatpush1.bf16.msra.mxu0 0
        %8259 = vmatprep.subr.bf16.mxu0 0
        %8260 = vmatpush1.bf16.msra.mxu0 0
        %8261 = vmatprep.subr.bf16.mxu0 0
        %8262 = vmatpush1.bf16.msra.mxu0 0
        %8263 = vmatprep.mubr.bf16.mxu0 0
        %8264 = vmatmul.mubr.bf16.gmra.mrb[0].mxu0 %v8226
        %v8265 = vpop.f32.mrb[0].mxu0
        %v8266 = vadd.f32 0.0, %v8265
        %v8267 = vpop.f32.mrb[0].mxu0
        %v8268 = vpop.f32.mrb[0].mxu0
        %v8269 = vpop.f32.mrb[0].mxu0
        %8270 = vdwg.mxu0
        %8287 = vrot.lane.b32.xlu0 %v4011, 32
        %v8288 = vpop.permute.xlu0 %8287
        %8289 = vrot.lane.b32.xlu0 %v4060, 32
        %v8290 = vpop.permute.xlu0 %8289
        %8291 = vrot.lane.b32.xlu0 %v4109, 32
        %v8292 = vpop.permute.xlu0 %8291
        %8293 = vrot.lane.b32.xlu0 %v4158, 32
        %v8294 = vpop.permute.xlu0 %8293
        %8295 = vrot.lane.b32.xlu0 %v4207, 32
        %v8296 = vpop.permute.xlu0 %8295
        %8297 = vrot.lane.b32.xlu0 %v4256, 32
        %v8298 = vpop.permute.xlu0 %8297
        %8299 = vrot.lane.b32.xlu0 %v4305, 32
        %v8300 = vpop.permute.xlu0 %8299
        %8301 = vrot.lane.b32.xlu0 %v4354, 32
        %v8302 = vpop.permute.xlu0 %8301
        %8303 = vrot.lane.b32.xlu0 %v4403, 32
        %v8304 = vpop.permute.xlu0 %8303
        %8305 = vrot.lane.b32.xlu0 %v4452, 32
        %v8306 = vpop.permute.xlu0 %8305
        %8307 = vrot.lane.b32.xlu0 %v4501, 32
        %v8308 = vpop.permute.xlu0 %8307
        %8309 = vrot.lane.b32.xlu0 %v4550, 32
        %v8310 = vpop.permute.xlu0 %8309
        %8311 = vrot.lane.b32.xlu0 %v4599, 32
        %v8312 = vpop.permute.xlu0 %8311
        %8313 = vrot.lane.b32.xlu0 %v4648, 32
        %v8314 = vpop.permute.xlu0 %8313
        %8315 = vrot.lane.b32.xlu0 %v4697, 32
        %v8316 = vpop.permute.xlu0 %8315
        %8317 = vrot.lane.b32.xlu0 %v4746, 32
        %v8318 = vpop.permute.xlu0 %8317
        %8351 = vrot.lane.b32.xlu0 %v5786, 64
        %v8352 = vpop.permute.xlu0 %8351
        %8353 = vrot.lane.b32.xlu0 %v5834, 64
        %v8354 = vpop.permute.xlu0 %8353
        %8355 = vrot.lane.b32.xlu0 %v5882, 64
        %v8356 = vpop.permute.xlu0 %8355
        %8357 = vrot.lane.b32.xlu0 %v5930, 64
        %v8358 = vpop.permute.xlu0 %8357
        %8359 = vrot.lane.b32.xlu0 %v5978, 64
        %v8360 = vpop.permute.xlu0 %8359
        %8361 = vrot.lane.b32.xlu0 %v6026, 64
        %v8362 = vpop.permute.xlu0 %8361
        %8363 = vrot.lane.b32.xlu0 %v6074, 64
        %v8364 = vpop.permute.xlu0 %8363
        %8365 = vrot.lane.b32.xlu0 %v6122, 64
        %v8366 = vpop.permute.xlu0 %8365
        %8367 = vrot.lane.b32.xlu0 %v6170, 64
        %v8368 = vpop.permute.xlu0 %8367
        %8369 = vrot.lane.b32.xlu0 %v6218, 64
        %v8370 = vpop.permute.xlu0 %8369
        %8371 = vrot.lane.b32.xlu0 %v6266, 64
        %v8372 = vpop.permute.xlu0 %8371
        %8373 = vrot.lane.b32.xlu0 %v6314, 64
        %v8374 = vpop.permute.xlu0 %8373
        %8375 = vrot.lane.b32.xlu0 %v6362, 64
        %v8376 = vpop.permute.xlu0 %8375
        %8377 = vrot.lane.b32.xlu0 %v6410, 64
        %v8378 = vpop.permute.xlu0 %8377
        %8379 = vrot.lane.b32.xlu0 %v6458, 64
        %v8380 = vpop.permute.xlu0 %8379
        %8381 = vrot.lane.b32.xlu0 %v6506, 64
        %v8382 = vpop.permute.xlu0 %8381
        %8415 = vrot.lane.b32.xlu0 %v7546, 96
        %v8416 = vpop.permute.xlu0 %8415
        %8417 = vrot.lane.b32.xlu0 %v7594, 96
        %v8418 = vpop.permute.xlu0 %8417
        %8419 = vrot.lane.b32.xlu0 %v7642, 96
        %v8420 = vpop.permute.xlu0 %8419
        %8421 = vrot.lane.b32.xlu0 %v7690, 96
        %v8422 = vpop.permute.xlu0 %8421
        %8423 = vrot.lane.b32.xlu0 %v7738, 96
        %v8424 = vpop.permute.xlu0 %8423
        %8425 = vrot.lane.b32.xlu0 %v7786, 96
        %v8426 = vpop.permute.xlu0 %8425
        %8427 = vrot.lane.b32.xlu0 %v7834, 96
        %v8428 = vpop.permute.xlu0 %8427
        %8429 = vrot.lane.b32.xlu0 %v7882, 96
        %v8430 = vpop.permute.xlu0 %8429
        %8431 = vrot.lane.b32.xlu0 %v7930, 96
        %v8432 = vpop.permute.xlu0 %8431
        %8433 = vrot.lane.b32.xlu0 %v7978, 96
        %v8434 = vpop.permute.xlu0 %8433
        %8435 = vrot.lane.b32.xlu0 %v8026, 96
        %v8436 = vpop.permute.xlu0 %8435
        %8437 = vrot.lane.b32.xlu0 %v8074, 96
        %v8438 = vpop.permute.xlu0 %8437
        %8439 = vrot.lane.b32.xlu0 %v8122, 96
        %v8440 = vpop.permute.xlu0 %8439
        %8441 = vrot.lane.b32.xlu0 %v8170, 96
        %v8442 = vpop.permute.xlu0 %8441
        %8443 = vrot.lane.b32.xlu0 %v8218, 96
        %v8444 = vpop.permute.xlu0 %8443
        %8445 = vrot.lane.b32.xlu0 %v8266, 96
        %v8446 = vpop.permute.xlu0 %8445
        %v8463 = vsel %vm1276, %v2248, %v8288
        %v8464 = vsel %vm1276, %v2294, %v8290
        %v8465 = vsel %vm1276, %v2340, %v8292
        %v8466 = vsel %vm1276, %v2386, %v8294
        %v8467 = vsel %vm1276, %v2432, %v8296
        %v8468 = vsel %vm1276, %v2478, %v8298
        %v8469 = vsel %vm1276, %v2524, %v8300
        %v8470 = vsel %vm1276, %v2570, %v8302
        %v8471 = vsel %vm1276, %v2616, %v8304
        %v8472 = vsel %vm1276, %v2662, %v8306
        %v8473 = vsel %vm1276, %v2708, %v8308
        %v8474 = vsel %vm1276, %v2754, %v8310
        %v8475 = vsel %vm1276, %v2800, %v8312
        %v8476 = vsel %vm1276, %v2846, %v8314
        %v8477 = vsel %vm1276, %v2892, %v8316
        %v8478 = vsel %vm1276, %v2938, %v8318
        %vm8479 = vcmask 523264
        %v8480 = vsel %vm8479, %v8463, %v8352
        %v8481 = vsel %vm8479, %v8464, %v8354
        %v8482 = vsel %vm8479, %v8465, %v8356
        %v8483 = vsel %vm8479, %v8466, %v8358
        %v8484 = vsel %vm8479, %v8467, %v8360
        %v8485 = vsel %vm8479, %v8468, %v8362
        %v8486 = vsel %vm8479, %v8469, %v8364
        %v8487 = vsel %vm8479, %v8470, %v8366
        %v8488 = vsel %vm8479, %v8471, %v8368
        %v8489 = vsel %vm8479, %v8472, %v8370
        %v8490 = vsel %vm8479, %v8473, %v8372
        %v8491 = vsel %vm8479, %v8474, %v8374
        %v8492 = vsel %vm8479, %v8475, %v8376
        %v8493 = vsel %vm8479, %v8476, %v8378
        %v8494 = vsel %vm8479, %v8477, %v8380
        %v8495 = vsel %vm8479, %v8478, %v8382
        %vm8496 = vcmask 785408
        %v8497 = vsel %vm8496, %v8480, %v8416
        %v8498 = vsel %vm8496, %v8481, %v8418
        %v8499 = vsel %vm8496, %v8482, %v8420
        %v8500 = vsel %vm8496, %v8483, %v8422
        %v8501 = vsel %vm8496, %v8484, %v8424
        %v8502 = vsel %vm8496, %v8485, %v8426
        %v8503 = vsel %vm8496, %v8486, %v8428
        %v8504 = vsel %vm8496, %v8487, %v8430
        %v8505 = vsel %vm8496, %v8488, %v8432
        %v8506 = vsel %vm8496, %v8489, %v8434
        %v8507 = vsel %vm8496, %v8490, %v8436
        %v8508 = vsel %vm8496, %v8491, %v8438
        %v8509 = vsel %vm8496, %v8492, %v8440
        %v8510 = vsel %vm8496, %v8493, %v8442
        %v8511 = vsel %vm8496, %v8494, %v8444
        %v8512 = vsel %vm8496, %v8495, %v8446
        %v8513 = vpack.c.bf16 %v8498, %v8497
        %v8514 = vpack.c.bf16 %v8500, %v8499
        %v8515 = vpack.c.bf16 %v8502, %v8501
        %v8516 = vpack.c.bf16 %v8504, %v8503
        %v8517 = vpack.c.bf16 %v8506, %v8505
        %v8518 = vpack.c.bf16 %v8508, %v8507
        %v8519 = vpack.c.bf16 %v8510, %v8509
        %v8520 = vpack.c.bf16 %v8512, %v8511
        %v8521 = vld [vmem:[%s634] sm:$0xf]
        %v8522 = vld [vmem:[%s634 + $0x4] sm:$0xf]
        %v8523 = vld [vmem:[%s634 + $0x8] sm:$0xf]
        %v8524 = vld [vmem:[%s634 + $0xc] sm:$0xf]
        %v8525 = vld [vmem:[%s634 + $0x10] sm:$0xf]
        %v8526 = vld [vmem:[%s634 + $0x14] sm:$0xf]
        %v8527 = vld [vmem:[%s634 + $0x18] sm:$0xf]
        %v8528 = vld [vmem:[%s634 + $0x1c] sm:$0xf]
        %v8529 = vld [vmem:[%s634 + $0x20] sm:$0xf]
        %v8530 = vld [vmem:[%s634 + $0x24] sm:$0xf]
        %v8531 = vld [vmem:[%s634 + $0x28] sm:$0xf]
        %v8532 = vld [vmem:[%s634 + $0x2c] sm:$0xf]
        %v8533 = vld [vmem:[%s634 + $0x30] sm:$0xf]
        %v8534 = vld [vmem:[%s634 + $0x34] sm:$0xf]
        %v8535 = vld [vmem:[%s634 + $0x38] sm:$0xf]
        %v8536 = vld [vmem:[%s634 + $0x3c] sm:$0xf]
        %v8537 = vld [vmem:[%s744] sm:$0x1]
        %v8539 = vlaneseq
        %v8540 = vshrl.u32 %v8539, 7
        %v8541 = vsub.s32 0, %v8540
        %v8542 = vrot.slane %v8537, %v8541
        %v8560 = vunpack.c.l.b16 %v8521
        %v8561 = vunpack.c.l.b16 %v8522
        %v8562 = vunpack.c.l.b16 %v8523
        %v8563 = vunpack.c.l.b16 %v8524
        %v8564 = vunpack.c.l.b16 %v8525
        %v8565 = vunpack.c.l.b16 %v8526
        %v8566 = vunpack.c.l.b16 %v8527
        %v8567 = vunpack.c.l.b16 %v8528
        %v8568 = vunpack.c.l.b16 %v8529
        %v8569 = vunpack.c.l.b16 %v8530
        %v8570 = vunpack.c.l.b16 %v8531
        %v8571 = vunpack.c.l.b16 %v8532
        %v8572 = vunpack.c.l.b16 %v8533
        %v8573 = vunpack.c.l.b16 %v8534
        %v8574 = vunpack.c.l.b16 %v8535
        %v8575 = vunpack.c.l.b16 %v8536
        %v8576 = vpack.c.b16 %v8561, %v8560
        %v8577 = vpack.c.b16 %v8563, %v8562
        %v8578 = vpack.c.b16 %v8565, %v8564
        %v8579 = vpack.c.b16 %v8567, %v8566
        %v8580 = vpack.c.b16 %v8569, %v8568
        %v8581 = vpack.c.b16 %v8571, %v8570
        %v8582 = vpack.c.b16 %v8573, %v8572
        %v8583 = vpack.c.b16 %v8575, %v8574
        %8592 = vmatprep.subr.bf16.mxu0 0
        %8593 = vmatpush1.bf16.msra.mxu0 %v8576
        %8594 = vmatprep.subr.bf16.mxu0 0
        %8595 = vmatpush1.bf16.msra.mxu0 %v8577
        %8596 = vmatprep.subr.bf16.mxu0 0
        %8597 = vmatpush1.bf16.msra.mxu0 %v8578
        %8598 = vmatprep.subr.bf16.mxu0 0
        %8599 = vmatpush1.bf16.msra.mxu0 %v8579
        %8600 = vmatprep.subr.bf16.mxu0 0
        %8601 = vmatpush1.bf16.msra.mxu0 %v8580
        %8602 = vmatprep.subr.bf16.mxu0 0
        %8603 = vmatpush1.bf16.msra.mxu0 %v8581
        %8604 = vmatprep.subr.bf16.mxu0 0
        %8605 = vmatpush1.bf16.msra.mxu0 %v8582
        %8606 = vmatprep.subr.bf16.mxu0 0
        %8607 = vmatpush1.bf16.msra.mxu0 %v8583
        %8608 = vmatprep.subr.bf16.mxu0 0
        %8609 = vmatpush1.bf16.msra.mxu0 0
        %8610 = vmatprep.subr.bf16.mxu0 0
        %8611 = vmatpush1.bf16.msra.mxu0 0
        %8612 = vmatprep.subr.bf16.mxu0 0
        %8613 = vmatpush1.bf16.msra.mxu0 0
        %8614 = vmatprep.subr.bf16.mxu0 0
        %8615 = vmatpush1.bf16.msra.mxu0 0
        %8616 = vmatprep.subr.bf16.mxu0 0
        %8617 = vmatpush1.bf16.msra.mxu0 0
        %8618 = vmatprep.subr.bf16.mxu0 0
        %8619 = vmatpush1.bf16.msra.mxu0 0
        %8620 = vmatprep.subr.bf16.mxu0 0
        %8621 = vmatpush1.bf16.msra.mxu0 0
        %8622 = vmatprep.subr.bf16.mxu0 0
        %8623 = vmatpush1.bf16.msra.mxu0 0
        %8624 = vmatprep.mubr.bf16.mxu0 0
        %8625 = vmatmul.mubr.bf16.gmra.mrb[0].mxu0 %v8513
        %v8626 = vpop.f32.mrb[0].mxu0
        %v8627 = vadd.f32 %v8542, %v8626
        %v8628 = vpop.f32.mrb[0].mxu0
        %v8629 = vpop.f32.mrb[0].mxu0
        %v8630 = vadd.f32 %v8542, %v8629
        %v8631 = vpop.f32.mrb[0].mxu0
        %8632 = vmatprep.mubr.bf16.mxu0 0
        %8633 = vmatmul.mubr.bf16.gmra.mrb[0].mxu0 %v8514
        %v8634 = vpop.f32.mrb[0].mxu0
        %v8635 = vadd.f32 %v8542, %v8634
        %v8636 = vpop.f32.mrb[0].mxu0
        %v8637 = vpop.f32.mrb[0].mxu0
        %v8638 = vadd.f32 %v8542, %v8637
        %v8639 = vpop.f32.mrb[0].mxu0
        %8640 = vmatprep.mubr.bf16.mxu0 0
        %8641 = vmatmul.mubr.bf16.gmra.mrb[0].mxu0 %v8515
        %v8642 = vpop.f32.mrb[0].mxu0
        %v8643 = vadd.f32 %v8542, %v8642
        %v8644 = vpop.f32.mrb[0].mxu0
        %v8645 = vpop.f32.mrb[0].mxu0
        %v8646 = vadd.f32 %v8542, %v8645
        %v8647 = vpop.f32.mrb[0].mxu0
        %8648 = vmatprep.mubr.bf16.mxu0 0
        %8649 = vmatmul.mubr.bf16.gmra.mrb[0].mxu0 %v8516
        %v8650 = vpop.f32.mrb[0].mxu0
        %v8651 = vadd.f32 %v8542, %v8650
        %v8652 = vpop.f32.mrb[0].mxu0
        %v8653 = vpop.f32.mrb[0].mxu0
        %v8654 = vadd.f32 %v8542, %v8653
        %v8655 = vpop.f32.mrb[0].mxu0
        %8656 = vmatprep.mubr.bf16.mxu0 0
        %8657 = vmatmul.mubr.bf16.gmra.mrb[0].mxu0 %v8517
        %v8658 = vpop.f32.mrb[0].mxu0
        %v8659 = vadd.f32 %v8542, %v8658
        %v8660 = vpop.f32.mrb[0].mxu0
        %v8661 = vpop.f32.mrb[0].mxu0
        %v8662 = vadd.f32 %v8542, %v8661
        %v8663 = vpop.f32.mrb[0].mxu0
        %8664 = vmatprep.mubr.bf16.mxu0 0
        %8665 = vmatmul.mubr.bf16.gmra.mrb[0].mxu0 %v8518
        %v8666 = vpop.f32.mrb[0].mxu0
        %v8667 = vadd.f32 %v8542, %v8666
        %v8668 = vpop.f32.mrb[0].mxu0
        %v8669 = vpop.f32.mrb[0].mxu0
        %v8670 = vadd.f32 %v8542, %v8669
        %v8671 = vpop.f32.mrb[0].mxu0
        %8672 = vmatprep.mubr.bf16.mxu0 0
        %8673 = vmatmul.mubr.bf16.gmra.mrb[0].mxu0 %v8519
        %v8674 = vpop.f32.mrb[0].mxu0
        %v8675 = vadd.f32 %v8542, %v8674
        %v8676 = vpop.f32.mrb[0].mxu0
        %v8677 = vpop.f32.mrb[0].mxu0
        %v8678 = vadd.f32 %v8542, %v8677
        %v8679 = vpop.f32.mrb[0].mxu0
        %8680 = vmatprep.mubr.bf16.mxu0 0
        %8681 = vmatmul.mubr.bf16.gmra.mrb[0].mxu0 %v8520
        %v8682 = vpop.f32.mrb[0].mxu0
        %v8683 = vadd.f32 %v8542, %v8682
        %v8684 = vpop.f32.mrb[0].mxu0
        %v8685 = vpop.f32.mrb[0].mxu0
        %v8686 = vadd.f32 %v8542, %v8685
        %v8687 = vpop.f32.mrb[0].mxu0
        %8688 = vdwg.mxu0
        %v8689 = vadd.f32 %v801, %v8627
        %v8690 = vadd.f32 %v802, %v8630
        %v8691 = vadd.f32 %v803, %v8635
        %v8692 = vadd.f32 %v804, %v8638
        %v8693 = vadd.f32 %v805, %v8643
        %v8694 = vadd.f32 %v806, %v8646
        %v8695 = vadd.f32 %v807, %v8651
        %v8696 = vadd.f32 %v808, %v8654
        %v8697 = vadd.f32 %v809, %v8659
        %v8698 = vadd.f32 %v810, %v8662
        %v8699 = vadd.f32 %v811, %v8667
        %v8700 = vadd.f32 %v812, %v8670
        %v8701 = vadd.f32 %v813, %v8675
        %v8702 = vadd.f32 %v814, %v8678
        %v8703 = vadd.f32 %v815, %v8683
        %v8704 = vadd.f32 %v816, %v8686
        %v8705 = vld [vmem:[%s747] sm:$0x1]
        %v8706 = vld [vmem:[%s750] sm:$0x1]
        %8707 = vadd.xlane.f32.xlu0 %v8689
        %v8708 = vpop.xlane.xlu0 %8707
        %8709 = vadd.xlane.f32.xlu0 %v8690
        %v8710 = vpop.xlane.xlu0 %8709
        %8711 = vadd.xlane.f32.xlu0 %v8691
        %v8712 = vpop.xlane.xlu0 %8711
        %8713 = vadd.xlane.f32.xlu0 %v8692
        %v8714 = vpop.xlane.xlu0 %8713
        %8715 = vadd.xlane.f32.xlu0 %v8693
        %v8716 = vpop.xlane.xlu0 %8715
        %8717 = vadd.xlane.f32.xlu0 %v8694
        %v8718 = vpop.xlane.xlu0 %8717
        %8719 = vadd.xlane.f32.xlu0 %v8695
        %v8720 = vpop.xlane.xlu0 %8719
        %8721 = vadd.xlane.f32.xlu0 %v8696
        %v8722 = vpop.xlane.xlu0 %8721
        %8723 = vadd.xlane.f32.xlu0 %v8697
        %v8724 = vpop.xlane.xlu0 %8723
        %8725 = vadd.xlane.f32.xlu0 %v8698
        %v8726 = vpop.xlane.xlu0 %8725
        %8727 = vadd.xlane.f32.xlu0 %v8699
        %v8728 = vpop.xlane.xlu0 %8727
        %8729 = vadd.xlane.f32.xlu0 %v8700
        %v8730 = vpop.xlane.xlu0 %8729
        %8731 = vadd.xlane.f32.xlu0 %v8701
        %v8732 = vpop.xlane.xlu0 %8731
        %8733 = vadd.xlane.f32.xlu0 %v8702
        %v8734 = vpop.xlane.xlu0 %8733
        %8735 = vadd.xlane.f32.xlu0 %v8703
        %v8736 = vpop.xlane.xlu0 %8735
        %8737 = vadd.xlane.f32.xlu0 %v8704
        %v8738 = vpop.xlane.xlu0 %8737
        %v8739 = vrcp.pop 128.0
        %v8740 = vmul.f32 %v8708, %v8739
        %v8741 = vmul.f32 %v8710, %v8739
        %v8742 = vmul.f32 %v8712, %v8739
        %v8743 = vmul.f32 %v8714, %v8739
        %v8744 = vmul.f32 %v8716, %v8739
        %v8745 = vmul.f32 %v8718, %v8739
        %v8746 = vmul.f32 %v8720, %v8739
        %v8747 = vmul.f32 %v8722, %v8739
        %v8748 = vmul.f32 %v8724, %v8739
        %v8749 = vmul.f32 %v8726, %v8739
        %v8750 = vmul.f32 %v8728, %v8739
        %v8751 = vmul.f32 %v8730, %v8739
        %v8752 = vmul.f32 %v8732, %v8739
        %v8753 = vmul.f32 %v8734, %v8739
        %v8754 = vmul.f32 %v8736, %v8739
        %v8755 = vmul.f32 %v8738, %v8739
        %v8756 = vsub.f32 %v8689, %v8740
        %v8757 = vsub.f32 %v8690, %v8741
        %v8758 = vsub.f32 %v8691, %v8742
        %v8759 = vsub.f32 %v8692, %v8743
        %v8760 = vsub.f32 %v8693, %v8744
        %v8761 = vsub.f32 %v8694, %v8745
        %v8762 = vsub.f32 %v8695, %v8746
        %v8763 = vsub.f32 %v8696, %v8747
        %v8764 = vsub.f32 %v8697, %v8748
        %v8765 = vsub.f32 %v8698, %v8749
        %v8766 = vsub.f32 %v8699, %v8750
        %v8767 = vsub.f32 %v8700, %v8751
        %v8768 = vsub.f32 %v8701, %v8752
        %v8769 = vsub.f32 %v8702, %v8753
        %v8770 = vsub.f32 %v8703, %v8754
        %v8771 = vsub.f32 %v8704, %v8755
        %v8772 = vmul.f32 %v8756, %v8756
        %v8773 = vmul.f32 %v8757, %v8757
        %v8774 = vmul.f32 %v8758, %v8758
        %v8775 = vmul.f32 %v8759, %v8759
        %v8776 = vmul.f32 %v8760, %v8760
        %v8777 = vmul.f32 %v8761, %v8761
        %v8778 = vmul.f32 %v8762, %v8762
        %v8779 = vmul.f32 %v8763, %v8763
        %v8780 = vmul.f32 %v8764, %v8764
        %v8781 = vmul.f32 %v8765, %v8765
        %v8782 = vmul.f32 %v8766, %v8766
        %v8783 = vmul.f32 %v8767, %v8767
        %v8784 = vmul.f32 %v8768, %v8768
        %v8785 = vmul.f32 %v8769, %v8769
        %v8786 = vmul.f32 %v8770, %v8770
        %v8787 = vmul.f32 %v8771, %v8771
        %8788 = vadd.xlane.f32.xlu0 %v8772
        %v8789 = vpop.xlane.xlu0 %8788
        %8790 = vadd.xlane.f32.xlu0 %v8773
        %v8791 = vpop.xlane.xlu0 %8790
        %8792 = vadd.xlane.f32.xlu0 %v8774
        %v8793 = vpop.xlane.xlu0 %8792
        %8794 = vadd.xlane.f32.xlu0 %v8775
        %v8795 = vpop.xlane.xlu0 %8794
        %8796 = vadd.xlane.f32.xlu0 %v8776
        %v8797 = vpop.xlane.xlu0 %8796
        %8798 = vadd.xlane.f32.xlu0 %v8777
        %v8799 = vpop.xlane.xlu0 %8798
        %8800 = vadd.xlane.f32.xlu0 %v8778
        %v8801 = vpop.xlane.xlu0 %8800
        %8802 = vadd.xlane.f32.xlu0 %v8779
        %v8803 = vpop.xlane.xlu0 %8802
        %8804 = vadd.xlane.f32.xlu0 %v8780
        %v8805 = vpop.xlane.xlu0 %8804
        %8806 = vadd.xlane.f32.xlu0 %v8781
        %v8807 = vpop.xlane.xlu0 %8806
        %8808 = vadd.xlane.f32.xlu0 %v8782
        %v8809 = vpop.xlane.xlu0 %8808
        %8810 = vadd.xlane.f32.xlu0 %v8783
        %v8811 = vpop.xlane.xlu0 %8810
        %8812 = vadd.xlane.f32.xlu0 %v8784
        %v8813 = vpop.xlane.xlu0 %8812
        %8814 = vadd.xlane.f32.xlu0 %v8785
        %v8815 = vpop.xlane.xlu0 %8814
        %8816 = vadd.xlane.f32.xlu0 %v8786
        %v8817 = vpop.xlane.xlu0 %8816
        %8818 = vadd.xlane.f32.xlu0 %v8787
        %v8819 = vpop.xlane.xlu0 %8818
        %v8820 = vmul.f32 %v8789, %v8739
        %v8821 = vmul.f32 %v8791, %v8739
        %v8822 = vmul.f32 %v8793, %v8739
        %v8823 = vmul.f32 %v8795, %v8739
        %v8824 = vmul.f32 %v8797, %v8739
        %v8825 = vmul.f32 %v8799, %v8739
        %v8826 = vmul.f32 %v8801, %v8739
        %v8827 = vmul.f32 %v8803, %v8739
        %v8828 = vmul.f32 %v8805, %v8739
        %v8829 = vmul.f32 %v8807, %v8739
        %v8830 = vmul.f32 %v8809, %v8739
        %v8831 = vmul.f32 %v8811, %v8739
        %v8832 = vmul.f32 %v8813, %v8739
        %v8833 = vmul.f32 %v8815, %v8739
        %v8834 = vmul.f32 %v8817, %v8739
        %v8835 = vmul.f32 %v8819, %v8739
        %v8836 = vadd.f32 %v8820, 1e-05
        %v8837 = vadd.f32 %v8821, 1e-05
        %v8838 = vadd.f32 %v8822, 1e-05
        %v8839 = vadd.f32 %v8823, 1e-05
        %v8840 = vadd.f32 %v8824, 1e-05
        %v8841 = vadd.f32 %v8825, 1e-05
        %v8842 = vadd.f32 %v8826, 1e-05
        %v8843 = vadd.f32 %v8827, 1e-05
        %v8844 = vadd.f32 %v8828, 1e-05
        %v8845 = vadd.f32 %v8829, 1e-05
        %v8846 = vadd.f32 %v8830, 1e-05
        %v8847 = vadd.f32 %v8831, 1e-05
        %v8848 = vadd.f32 %v8832, 1e-05
        %v8849 = vadd.f32 %v8833, 1e-05
        %v8850 = vadd.f32 %v8834, 1e-05
        %v8851 = vadd.f32 %v8835, 1e-05
        %v8852 = vrsqrt.pop %v8836
        %v8853 = vrsqrt.pop %v8837
        %v8854 = vrsqrt.pop %v8838
        %v8855 = vrsqrt.pop %v8839
        %v8856 = vrsqrt.pop %v8840
        %v8857 = vrsqrt.pop %v8841
        %v8858 = vrsqrt.pop %v8842
        %v8859 = vrsqrt.pop %v8843
        %v8860 = vrsqrt.pop %v8844
        %v8861 = vrsqrt.pop %v8845
        %v8862 = vrsqrt.pop %v8846
        %v8863 = vrsqrt.pop %v8847
        %v8864 = vrsqrt.pop %v8848
        %v8865 = vrsqrt.pop %v8849
        %v8866 = vrsqrt.pop %v8850
        %v8867 = vrsqrt.pop %v8851
        %v8868 = vmul.f32 %v8756, %v8852
        %v8869 = vmul.f32 %v8757, %v8853
        %v8870 = vmul.f32 %v8758, %v8854
        %v8871 = vmul.f32 %v8759, %v8855
        %v8872 = vmul.f32 %v8760, %v8856
        %v8873 = vmul.f32 %v8761, %v8857
        %v8874 = vmul.f32 %v8762, %v8858
        %v8875 = vmul.f32 %v8763, %v8859
        %v8876 = vmul.f32 %v8764, %v8860
        %v8877 = vmul.f32 %v8765, %v8861
        %v8878 = vmul.f32 %v8766, %v8862
        %v8879 = vmul.f32 %v8767, %v8863
        %v8880 = vmul.f32 %v8768, %v8864
        %v8881 = vmul.f32 %v8769, %v8865
        %v8882 = vmul.f32 %v8770, %v8866
        %v8883 = vmul.f32 %v8771, %v8867
        %v8885 = vlaneseq
        %v8886 = vshrl.u32 %v8885, 7
        %v8887 = vsub.s32 0, %v8886
        %v8888 = vrot.slane %v8705, %v8887
        %v8890 = vmul.f32 %v8868, %v8888
        %v8891 = vmul.f32 %v8869, %v8888
        %v8892 = vmul.f32 %v8870, %v8888
        %v8893 = vmul.f32 %v8871, %v8888
        %v8894 = vmul.f32 %v8872, %v8888
        %v8895 = vmul.f32 %v8873, %v8888
        %v8896 = vmul.f32 %v8874, %v8888
        %v8897 = vmul.f32 %v8875, %v8888
        %v8898 = vmul.f32 %v8876, %v8888
        %v8899 = vmul.f32 %v8877, %v8888
        %v8900 = vmul.f32 %v8878, %v8888
        %v8901 = vmul.f32 %v8879, %v8888
        %v8902 = vmul.f32 %v8880, %v8888
        %v8903 = vmul.f32 %v8881, %v8888
        %v8904 = vmul.f32 %v8882, %v8888
        %v8905 = vmul.f32 %v8883, %v8888
        %v8907 = vlaneseq
        %v8908 = vshrl.u32 %v8907, 7
        %v8909 = vsub.s32 0, %v8908
        %v8910 = vrot.slane %v8706, %v8909
        %v8912 = vadd.f32 %v8890, %v8910
        %v8913 = vadd.f32 %v8891, %v8910
        %v8914 = vadd.f32 %v8892, %v8910
        %v8915 = vadd.f32 %v8893, %v8910
        %v8916 = vadd.f32 %v8894, %v8910
        %v8917 = vadd.f32 %v8895, %v8910
        %v8918 = vadd.f32 %v8896, %v8910
        %v8919 = vadd.f32 %v8897, %v8910
        %v8920 = vadd.f32 %v8898, %v8910
        %v8921 = vadd.f32 %v8899, %v8910
        %v8922 = vadd.f32 %v8900, %v8910
        %v8923 = vadd.f32 %v8901, %v8910
        %v8924 = vadd.f32 %v8902, %v8910
        %v8925 = vadd.f32 %v8903, %v8910
        %v8926 = vadd.f32 %v8904, %v8910
        %v8927 = vadd.f32 %v8905, %v8910
        %v8928 = vpack.c.bf16 %v8913, %v8912
        %v8929 = vpack.c.bf16 %v8915, %v8914
        %v8930 = vpack.c.bf16 %v8917, %v8916
        %v8931 = vpack.c.bf16 %v8919, %v8918
        %v8932 = vpack.c.bf16 %v8921, %v8920
        %v8933 = vpack.c.bf16 %v8923, %v8922
        %v8934 = vpack.c.bf16 %v8925, %v8924
        %v8935 = vpack.c.bf16 %v8927, %v8926
        %v8936 = vld [vmem:[%s643] sm:$0xff]
        %v8937 = vld [vmem:[%s643 + $0x8] sm:$0xff]
        %v8938 = vld [vmem:[%s643 + $0x10] sm:$0xff]
        %v8939 = vld [vmem:[%s643 + $0x18] sm:$0xff]
        %v8940 = vld [vmem:[%s643 + $0x20] sm:$0xff]
        %v8941 = vld [vmem:[%s643 + $0x28] sm:$0xff]
        %v8942 = vld [vmem:[%s643 + $0x30] sm:$0xff]
        %v8943 = vld [vmem:[%s643 + $0x38] sm:$0xff]
        %v8944 = vld [vmem:[%s643 + $0x40] sm:$0xff]
        %v8945 = vld [vmem:[%s643 + $0x48] sm:$0xff]
        %v8946 = vld [vmem:[%s643 + $0x50] sm:$0xff]
        %v8947 = vld [vmem:[%s643 + $0x58] sm:$0xff]
        %v8948 = vld [vmem:[%s643 + $0x60] sm:$0xff]
        %v8949 = vld [vmem:[%s643 + $0x68] sm:$0xff]
        %v8950 = vld [vmem:[%s643 + $0x70] sm:$0xff]
        %v8951 = vld [vmem:[%s643 + $0x78] sm:$0xff]
        %v8952 = vld [vmem:[%s754] sm:$0x3]
        %v8954 = vlaneseq
        %v8955 = vshrl.u32 %v8954, 7
        %v8956 = vsub.s32 0, %v8955
        %v8957 = vrot.slane %v8952, %v8956
        %v8958 = vlaneseq
        %v8959 = vshrl.u32 %v8958, 7
        %v8960 = vsub.s32 1, %v8959
        %v8961 = vrot.slane %v8952, %v8960
        %v8980 = vunpack.c.l.b16 %v8936
        %v8981 = vunpack.c.h.b16 %v8936
        %v8982 = vunpack.c.l.b16 %v8937
        %v8983 = vunpack.c.h.b16 %v8937
        %v8984 = vunpack.c.l.b16 %v8938
        %v8985 = vunpack.c.h.b16 %v8938
        %v8986 = vunpack.c.l.b16 %v8939
        %v8987 = vunpack.c.h.b16 %v8939
        %v8988 = vunpack.c.l.b16 %v8940
        %v8989 = vunpack.c.h.b16 %v8940
        %v8990 = vunpack.c.l.b16 %v8941
        %v8991 = vunpack.c.h.b16 %v8941
        %v8992 = vunpack.c.l.b16 %v8942
        %v8993 = vunpack.c.h.b16 %v8942
        %v8994 = vunpack.c.l.b16 %v8943
        %v8995 = vunpack.c.h.b16 %v8943
        %v8996 = vunpack.c.l.b16 %v8944
        %v8997 = vunpack.c.h.b16 %v8944
        %v8998 = vunpack.c.l.b16 %v8945
        %v8999 = vunpack.c.h.b16 %v8945
        %v9000 = vunpack.c.l.b16 %v8946
        %v9001 = vunpack.c.h.b16 %v8946
        %v9002 = vunpack.c.l.b16 %v8947
        %v9003 = vunpack.c.h.b16 %v8947
        %v9004 = vunpack.c.l.b16 %v8948
        %v9005 = vunpack.c.h.b16 %v8948
        %v9006 = vunpack.c.l.b16 %v8949
        %v9007 = vunpack.c.h.b16 %v8949
        %v9008 = vunpack.c.l.b16 %v8950
        %v9009 = vunpack.c.h.b16 %v8950
        %v9010 = vunpack.c.l.b16 %v8951
        %v9011 = vunpack.c.h.b16 %v8951
        %v9012 = vpack.c.b16 %v8982, %v8980
        %v9013 = vpack.c.b16 %v8983, %v8981
        %v9014 = vpack.c.b16 %v8986, %v8984
        %v9015 = vpack.c.b16 %v8987, %v8985
        %v9016 = vpack.c.b16 %v8990, %v8988
        %v9017 = vpack.c.b16 %v8991, %v8989
        %v9018 = vpack.c.b16 %v8994, %v8992
        %v9019 = vpack.c.b16 %v8995, %v8993
        %v9020 = vpack.c.b16 %v8998, %v8996
        %v9021 = vpack.c.b16 %v8999, %v8997
        %v9022 = vpack.c.b16 %v9002, %v9000
        %v9023 = vpack.c.b16 %v9003, %v9001
        %v9024 = vpack.c.b16 %v9006, %v9004
        %v9025 = vpack.c.b16 %v9007, %v9005
        %v9026 = vpack.c.b16 %v9010, %v9008
        %v9027 = vpack.c.b16 %v9011, %v9009
        %9044 = vmatprep.subr.bf16.mxu0 %v9013
        %9045 = vmatpush1.bf16.msra.mxu0 %v9012
        %9046 = vmatprep.subr.bf16.mxu0 %v9015
        %9047 = vmatpush1.bf16.msra.mxu0 %v9014
        %9048 = vmatprep.subr.bf16.mxu0 %v9017
        %9049 = vmatpush1.bf16.msra.mxu0 %v9016
        %9050 = vmatprep.subr.bf16.mxu0 %v9019
        %9051 = vmatpush1.bf16.msra.mxu0 %v9018
        %9052 = vmatprep.subr.bf16.mxu0 %v9021
        %9053 = vmatpush1.bf16.msra.mxu0 %v9020
        %9054 = vmatprep.subr.bf16.mxu0 %v9023
        %9055 = vmatpush1.bf16.msra.mxu0 %v9022
        %9056 = vmatprep.subr.bf16.mxu0 %v9025
        %9057 = vmatpush1.bf16.msra.mxu0 %v9024
        %9058 = vmatprep.subr.bf16.mxu0 %v9027
        %9059 = vmatpush1.bf16.msra.mxu0 %v9026
        %9060 = vmatprep.subr.bf16.mxu0 0
        %9061 = vmatpush1.bf16.msra.mxu0 0
        %9062 = vmatprep.subr.bf16.mxu0 0
        %9063 = vmatpush1.bf16.msra.mxu0 0
        %9064 = vmatprep.subr.bf16.mxu0 0
        %9065 = vmatpush1.bf16.msra.mxu0 0
        %9066 = vmatprep.subr.bf16.mxu0 0
        %9067 = vmatpush1.bf16.msra.mxu0 0
        %9068 = vmatprep.subr.bf16.mxu0 0
        %9069 = vmatpush1.bf16.msra.mxu0 0
        %9070 = vmatprep.subr.bf16.mxu0 0
        %9071 = vmatpush1.bf16.msra.mxu0 0
        %9072 = vmatprep.subr.bf16.mxu0 0
        %9073 = vmatpush1.bf16.msra.mxu0 0
        %9074 = vmatprep.subr.bf16.mxu0 0
        %9075 = vmatpush1.bf16.msra.mxu0 0
        %9076 = vmatprep.mubr.bf16.mxu0 0
        %9077 = vmatmul.mubr.bf16.gmra.mrb[0].mxu0 %v8928
        %v9078 = vpop.f32.mrb[0].mxu0
        %v9079 = vadd.f32 %v8957, %v9078
        %v9080 = vpop.f32.mrb[0].mxu0
        %v9081 = vadd.f32 %v8961, %v9080
        %v9082 = vpop.f32.mrb[0].mxu0
        %v9083 = vadd.f32 %v8957, %v9082
        %v9084 = vpop.f32.mrb[0].mxu0
        %v9085 = vadd.f32 %v8961, %v9084
        %9086 = vmatprep.mubr.bf16.mxu0 0
        %9087 = vmatmul.mubr.bf16.gmra.mrb[0].mxu0 %v8929
        %v9088 = vpop.f32.mrb[0].mxu0
        %v9089 = vadd.f32 %v8957, %v9088
        %v9090 = vpop.f32.mrb[0].mxu0
        %v9091 = vadd.f32 %v8961, %v9090
        %v9092 = vpop.f32.mrb[0].mxu0
        %v9093 = vadd.f32 %v8957, %v9092
        %v9094 = vpop.f32.mrb[0].mxu0
        %v9095 = vadd.f32 %v8961, %v9094
        %9096 = vmatprep.mubr.bf16.mxu0 0
        %9097 = vmatmul.mubr.bf16.gmra.mrb[0].mxu0 %v8930
        %v9098 = vpop.f32.mrb[0].mxu0
        %v9099 = vadd.f32 %v8957, %v9098
        %v9100 = vpop.f32.mrb[0].mxu0
        %v9101 = vadd.f32 %v8961, %v9100
        %v9102 = vpop.f32.mrb[0].mxu0
        %v9103 = vadd.f32 %v8957, %v9102
        %v9104 = vpop.f32.mrb[0].mxu0
        %v9105 = vadd.f32 %v8961, %v9104
        %9106 = vmatprep.mubr.bf16.mxu0 0
        %9107 = vmatmul.mubr.bf16.gmra.mrb[0].mxu0 %v8931
        %v9108 = vpop.f32.mrb[0].mxu0
        %v9109 = vadd.f32 %v8957, %v9108
        %v9110 = vpop.f32.mrb[0].mxu0
        %v9111 = vadd.f32 %v8961, %v9110
        %v9112 = vpop.f32.mrb[0].mxu0
        %v9113 = vadd.f32 %v8957, %v9112
        %v9114 = vpop.f32.mrb[0].mxu0
        %v9115 = vadd.f32 %v8961, %v9114
        %9116 = vmatprep.mubr.bf16.mxu0 0
        %9117 = vmatmul.mubr.bf16.gmra.mrb[0].mxu0 %v8932
        %v9118 = vpop.f32.mrb[0].mxu0
        %v9119 = vadd.f32 %v8957, %v9118
        %v9120 = vpop.f32.mrb[0].mxu0
        %v9121 = vadd.f32 %v8961, %v9120
        %v9122 = vpop.f32.mrb[0].mxu0
        %v9123 = vadd.f32 %v8957, %v9122
        %v9124 = vpop.f32.mrb[0].mxu0
        %v9125 = vadd.f32 %v8961, %v9124
        %9126 = vmatprep.mubr.bf16.mxu0 0
        %9127 = vmatmul.mubr.bf16.gmra.mrb[0].mxu0 %v8933
        %v9128 = vpop.f32.mrb[0].mxu0
        %v9129 = vadd.f32 %v8957, %v9128
        %v9130 = vpop.f32.mrb[0].mxu0
        %v9131 = vadd.f32 %v8961, %v9130
        %v9132 = vpop.f32.mrb[0].mxu0
        %v9133 = vadd.f32 %v8957, %v9132
        %v9134 = vpop.f32.mrb[0].mxu0
        %v9135 = vadd.f32 %v8961, %v9134
        %9136 = vmatprep.mubr.bf16.mxu0 0
        %9137 = vmatmul.mubr.bf16.gmra.mrb[0].mxu0 %v8934
        %v9138 = vpop.f32.mrb[0].mxu0
        %v9139 = vadd.f32 %v8957, %v9138
        %v9140 = vpop.f32.mrb[0].mxu0
        %v9141 = vadd.f32 %v8961, %v9140
        %v9142 = vpop.f32.mrb[0].mxu0
        %v9143 = vadd.f32 %v8957, %v9142
        %v9144 = vpop.f32.mrb[0].mxu0
        %v9145 = vadd.f32 %v8961, %v9144
        %9146 = vmatprep.mubr.bf16.mxu0 0
        %9147 = vmatmul.mubr.bf16.gmra.mrb[0].mxu0 %v8935
        %v9148 = vpop.f32.mrb[0].mxu0
        %v9149 = vadd.f32 %v8957, %v9148
        %v9150 = vpop.f32.mrb[0].mxu0
        %v9151 = vadd.f32 %v8961, %v9150
        %v9152 = vpop.f32.mrb[0].mxu0
        %v9153 = vadd.f32 %v8957, %v9152
        %v9154 = vpop.f32.mrb[0].mxu0
        %v9155 = vadd.f32 %v8961, %v9154
        %9156 = vdwg.mxu0
        %v9157 = vmax.f32 %v9079, 0.0
        %v9158 = vmax.f32 %v9081, 0.0
        %v9159 = vmax.f32 %v9083, 0.0
        %v9160 = vmax.f32 %v9085, 0.0
        %v9161 = vmax.f32 %v9089, 0.0
        %v9162 = vmax.f32 %v9091, 0.0
        %v9163 = vmax.f32 %v9093, 0.0
        %v9164 = vmax.f32 %v9095, 0.0
        %v9165 = vmax.f32 %v9099, 0.0
        %v9166 = vmax.f32 %v9101, 0.0
        %v9167 = vmax.f32 %v9103, 0.0
        %v9168 = vmax.f32 %v9105, 0.0
        %v9169 = vmax.f32 %v9109, 0.0
        %v9170 = vmax.f32 %v9111, 0.0
        %v9171 = vmax.f32 %v9113, 0.0
        %v9172 = vmax.f32 %v9115, 0.0
        %v9173 = vmax.f32 %v9119, 0.0
        %v9174 = vmax.f32 %v9121, 0.0
        %v9175 = vmax.f32 %v9123, 0.0
        %v9176 = vmax.f32 %v9125, 0.0
        %v9177 = vmax.f32 %v9129, 0.0
        %v9178 = vmax.f32 %v9131, 0.0
        %v9179 = vmax.f32 %v9133, 0.0
        %v9180 = vmax.f32 %v9135, 0.0
        %v9181 = vmax.f32 %v9139, 0.0
        %v9182 = vmax.f32 %v9141, 0.0
        %v9183 = vmax.f32 %v9143, 0.0
        %v9184 = vmax.f32 %v9145, 0.0
        %v9185 = vmax.f32 %v9149, 0.0
        %v9186 = vmax.f32 %v9151, 0.0
        %v9187 = vmax.f32 %v9153, 0.0
        %v9188 = vmax.f32 %v9155, 0.0
        %v9189 = vpack.c.bf16 %v9159, %v9157
        %v9190 = vpack.c.bf16 %v9160, %v9158
        %v9191 = vpack.c.bf16 %v9163, %v9161
        %v9192 = vpack.c.bf16 %v9164, %v9162
        %v9193 = vpack.c.bf16 %v9167, %v9165
        %v9194 = vpack.c.bf16 %v9168, %v9166
        %v9195 = vpack.c.bf16 %v9171, %v9169
        %v9196 = vpack.c.bf16 %v9172, %v9170
        %v9197 = vpack.c.bf16 %v9175, %v9173
        %v9198 = vpack.c.bf16 %v9176, %v9174
        %v9199 = vpack.c.bf16 %v9179, %v9177
        %v9200 = vpack.c.bf16 %v9180, %v9178
        %v9201 = vpack.c.bf16 %v9183, %v9181
        %v9202 = vpack.c.bf16 %v9184, %v9182
        %v9203 = vpack.c.bf16 %v9187, %v9185
        %v9204 = vpack.c.bf16 %v9188, %v9186
        %v9205 = vld [vmem:[%s652] sm:$0xf]
        %v9206 = vld [vmem:[%s652 + $0x4] sm:$0xf]
        %v9207 = vld [vmem:[%s652 + $0x8] sm:$0xf]
        %v9208 = vld [vmem:[%s652 + $0xc] sm:$0xf]
        %v9209 = vld [vmem:[%s652 + $0x10] sm:$0xf]
        %v9210 = vld [vmem:[%s652 + $0x14] sm:$0xf]
        %v9211 = vld [vmem:[%s652 + $0x18] sm:$0xf]
        %v9212 = vld [vmem:[%s652 + $0x1c] sm:$0xf]
        %v9213 = vld [vmem:[%s652 + $0x20] sm:$0xf]
        %v9214 = vld [vmem:[%s652 + $0x24] sm:$0xf]
        %v9215 = vld [vmem:[%s652 + $0x28] sm:$0xf]
        %v9216 = vld [vmem:[%s652 + $0x2c] sm:$0xf]
        %v9217 = vld [vmem:[%s652 + $0x30] sm:$0xf]
        %v9218 = vld [vmem:[%s652 + $0x34] sm:$0xf]
        %v9219 = vld [vmem:[%s652 + $0x38] sm:$0xf]
        %v9220 = vld [vmem:[%s652 + $0x3c] sm:$0xf]
        %v9221 = vld [vmem:[%s652 + $0x40] sm:$0xf]
        %v9222 = vld [vmem:[%s652 + $0x44] sm:$0xf]
        %v9223 = vld [vmem:[%s652 + $0x48] sm:$0xf]
        %v9224 = vld [vmem:[%s652 + $0x4c] sm:$0xf]
        %v9225 = vld [vmem:[%s652 + $0x50] sm:$0xf]
        %v9226 = vld [vmem:[%s652 + $0x54] sm:$0xf]
        %v9227 = vld [vmem:[%s652 + $0x58] sm:$0xf]
        %v9228 = vld [vmem:[%s652 + $0x5c] sm:$0xf]
        %v9229 = vld [vmem:[%s652 + $0x60] sm:$0xf]
        %v9230 = vld [vmem:[%s652 + $0x64] sm:$0xf]
        %v9231 = vld [vmem:[%s652 + $0x68] sm:$0xf]
        %v9232 = vld [vmem:[%s652 + $0x6c] sm:$0xf]
        %v9233 = vld [vmem:[%s652 + $0x70] sm:$0xf]
        %v9234 = vld [vmem:[%s652 + $0x74] sm:$0xf]
        %v9235 = vld [vmem:[%s652 + $0x78] sm:$0xf]
        %v9236 = vld [vmem:[%s652 + $0x7c] sm:$0xf]
        %v9237 = vld [vmem:[%s757] sm:$0x1]
        %v9239 = vlaneseq
        %v9240 = vshrl.u32 %v9239, 7
        %v9241 = vsub.s32 0, %v9240
        %v9242 = vrot.slane %v9237, %v9241
        %v9276 = vunpack.c.l.b16 %v9205
        %v9277 = vunpack.c.l.b16 %v9206
        %v9278 = vunpack.c.l.b16 %v9207
        %v9279 = vunpack.c.l.b16 %v9208
        %v9280 = vunpack.c.l.b16 %v9209
        %v9281 = vunpack.c.l.b16 %v9210
        %v9282 = vunpack.c.l.b16 %v9211
        %v9283 = vunpack.c.l.b16 %v9212
        %v9284 = vunpack.c.l.b16 %v9213
        %v9285 = vunpack.c.l.b16 %v9214
        %v9286 = vunpack.c.l.b16 %v9215
        %v9287 = vunpack.c.l.b16 %v9216
        %v9288 = vunpack.c.l.b16 %v9217
        %v9289 = vunpack.c.l.b16 %v9218
        %v9290 = vunpack.c.l.b16 %v9219
        %v9291 = vunpack.c.l.b16 %v9220
        %v9292 = vunpack.c.l.b16 %v9221
        %v9293 = vunpack.c.l.b16 %v9222
        %v9294 = vunpack.c.l.b16 %v9223
        %v9295 = vunpack.c.l.b16 %v9224
        %v9296 = vunpack.c.l.b16 %v9225
        %v9297 = vunpack.c.l.b16 %v9226
        %v9298 = vunpack.c.l.b16 %v9227
        %v9299 = vunpack.c.l.b16 %v9228
        %v9300 = vunpack.c.l.b16 %v9229
        %v9301 = vunpack.c.l.b16 %v9230
        %v9302 = vunpack.c.l.b16 %v9231
        %v9303 = vunpack.c.l.b16 %v9232
        %v9304 = vunpack.c.l.b16 %v9233
        %v9305 = vunpack.c.l.b16 %v9234
        %v9306 = vunpack.c.l.b16 %v9235
        %v9307 = vunpack.c.l.b16 %v9236
        %v9308 = vpack.c.b16 %v9277, %v9276
        %v9309 = vpack.c.b16 %v9279, %v9278
        %v9310 = vpack.c.b16 %v9281, %v9280
        %v9311 = vpack.c.b16 %v9283, %v9282
        %v9312 = vpack.c.b16 %v9285, %v9284
        %v9313 = vpack.c.b16 %v9287, %v9286
        %v9314 = vpack.c.b16 %v9289, %v9288
        %v9315 = vpack.c.b16 %v9291, %v9290
        %v9316 = vpack.c.b16 %v9293, %v9292
        %v9317 = vpack.c.b16 %v9295, %v9294
        %v9318 = vpack.c.b16 %v9297, %v9296
        %v9319 = vpack.c.b16 %v9299, %v9298
        %v9320 = vpack.c.b16 %v9301, %v9300
        %v9321 = vpack.c.b16 %v9303, %v9302
        %v9322 = vpack.c.b16 %v9305, %v9304
        %v9323 = vpack.c.b16 %v9307, %v9306
        %9340 = vmatprep.subr.bf16.mxu0 0
        %9341 = vmatpush1.bf16.msra.mxu0 %v9308
        %9342 = vmatprep.subr.bf16.mxu0 0
        %9343 = vmatpush1.bf16.msra.mxu0 %v9309
        %9344 = vmatprep.subr.bf16.mxu0 0
        %9345 = vmatpush1.bf16.msra.mxu0 %v9310
        %9346 = vmatprep.subr.bf16.mxu0 0
        %9347 = vmatpush1.bf16.msra.mxu0 %v9311
        %9348 = vmatprep.subr.bf16.mxu0 0
        %9349 = vmatpush1.bf16.msra.mxu0 %v9312
        %9350 = vmatprep.subr.bf16.mxu0 0
        %9351 = vmatpush1.bf16.msra.mxu0 %v9313
        %9352 = vmatprep.subr.bf16.mxu0 0
        %9353 = vmatpush1.bf16.msra.mxu0 %v9314
        %9354 = vmatprep.subr.bf16.mxu0 0
        %9355 = vmatpush1.bf16.msra.mxu0 %v9315
        %9356 = vmatprep.subr.bf16.mxu0 0
        %9357 = vmatpush1.bf16.msra.mxu0 %v9316
        %9358 = vmatprep.subr.bf16.mxu0 0
        %9359 = vmatpush1.bf16.msra.mxu0 %v9317
        %9360 = vmatprep.subr.bf16.mxu0 0
        %9361 = vmatpush1.bf16.msra.mxu0 %v9318
        %9362 = vmatprep.subr.bf16.mxu0 0
        %9363 = vmatpush1.bf16.msra.mxu0 %v9319
        %9364 = vmatprep.subr.bf16.mxu0 0
        %9365 = vmatpush1.bf16.msra.mxu0 %v9320
        %9366 = vmatprep.subr.bf16.mxu0 0
        %9367 = vmatpush1.bf16.msra.mxu0 %v9321
        %9368 = vmatprep.subr.bf16.mxu0 0
        %9369 = vmatpush1.bf16.msra.mxu0 %v9322
        %9370 = vmatprep.subr.bf16.mxu0 0
        %9371 = vmatpush1.bf16.msra.mxu0 %v9323
        %9372 = vmatprep.mubr.bf16.mxu0 %v9190
        %9373 = vmatmul.mubr.bf16.gmra.mrb[0].mxu0 %v9189
        %v9374 = vpop.f32.mrb[0].mxu0
        %v9375 = vadd.f32 %v9242, %v9374
        %v9376 = vpop.f32.mrb[0].mxu0
        %v9377 = vpop.f32.mrb[0].mxu0
        %v9378 = vadd.f32 %v9242, %v9377
        %v9379 = vpop.f32.mrb[0].mxu0
        %9380 = vmatprep.mubr.bf16.mxu0 %v9192
        %9381 = vmatmul.mubr.bf16.gmra.mrb[0].mxu0 %v9191
        %v9382 = vpop.f32.mrb[0].mxu0
        %v9383 = vadd.f32 %v9242, %v9382
        %v9384 = vpop.f32.mrb[0].mxu0
        %v9385 = vpop.f32.mrb[0].mxu0
        %v9386 = vadd.f32 %v9242, %v9385
        %v9387 = vpop.f32.mrb[0].mxu0
        %9388 = vmatprep.mubr.bf16.mxu0 %v9194
        %9389 = vmatmul.mubr.bf16.gmra.mrb[0].mxu0 %v9193
        %v9390 = vpop.f32.mrb[0].mxu0
        %v9391 = vadd.f32 %v9242, %v9390
        %v9392 = vpop.f32.mrb[0].mxu0
        %v9393 = vpop.f32.mrb[0].mxu0
        %v9394 = vadd.f32 %v9242, %v9393
        %v9395 = vpop.f32.mrb[0].mxu0
        %9396 = vmatprep.mubr.bf16.mxu0 %v9196
        %9397 = vmatmul.mubr.bf16.gmra.mrb[0].mxu0 %v9195
        %v9398 = vpop.f32.mrb[0].mxu0
        %v9399 = vadd.f32 %v9242, %v9398
        %v9400 = vpop.f32.mrb[0].mxu0
        %v9401 = vpop.f32.mrb[0].mxu0
        %v9402 = vadd.f32 %v9242, %v9401
        %v9403 = vpop.f32.mrb[0].mxu0
        %9404 = vmatprep.mubr.bf16.mxu0 %v9198
        %9405 = vmatmul.mubr.bf16.gmra.mrb[0].mxu0 %v9197
        %v9406 = vpop.f32.mrb[0].mxu0
        %v9407 = vadd.f32 %v9242, %v9406
        %v9408 = vpop.f32.mrb[0].mxu0
        %v9409 = vpop.f32.mrb[0].mxu0
        %v9410 = vadd.f32 %v9242, %v9409
        %v9411 = vpop.f32.mrb[0].mxu0
        %9412 = vmatprep.mubr.bf16.mxu0 %v9200
        %9413 = vmatmul.mubr.bf16.gmra.mrb[0].mxu0 %v9199
        %v9414 = vpop.f32.mrb[0].mxu0
        %v9415 = vadd.f32 %v9242, %v9414
        %v9416 = vpop.f32.mrb[0].mxu0
        %v9417 = vpop.f32.mrb[0].mxu0
        %v9418 = vadd.f32 %v9242, %v9417
        %v9419 = vpop.f32.mrb[0].mxu0
        %9420 = vmatprep.mubr.bf16.mxu0 %v9202
        %9421 = vmatmul.mubr.bf16.gmra.mrb[0].mxu0 %v9201
        %v9422 = vpop.f32.mrb[0].mxu0
        %v9423 = vadd.f32 %v9242, %v9422
        %v9424 = vpop.f32.mrb[0].mxu0
        %v9425 = vpop.f32.mrb[0].mxu0
        %v9426 = vadd.f32 %v9242, %v9425
        %v9427 = vpop.f32.mrb[0].mxu0
        %9428 = vmatprep.mubr.bf16.mxu0 %v9204
        %9429 = vmatmul.mubr.bf16.gmra.mrb[0].mxu0 %v9203
        %v9430 = vpop.f32.mrb[0].mxu0
        %v9431 = vadd.f32 %v9242, %v9430
        %v9432 = vpop.f32.mrb[0].mxu0
        %v9433 = vpop.f32.mrb[0].mxu0
        %v9434 = vadd.f32 %v9242, %v9433
        %v9435 = vpop.f32.mrb[0].mxu0
        %9436 = vdwg.mxu0
        %v9437 = vadd.f32 %v8912, %v9375
        %v9438 = vadd.f32 %v8913, %v9378
        %v9439 = vadd.f32 %v8914, %v9383
        %v9440 = vadd.f32 %v8915, %v9386
        %v9441 = vadd.f32 %v8916, %v9391
        %v9442 = vadd.f32 %v8917, %v9394
        %v9443 = vadd.f32 %v8918, %v9399
        %v9444 = vadd.f32 %v8919, %v9402
        %v9445 = vadd.f32 %v8920, %v9407
        %v9446 = vadd.f32 %v8921, %v9410
        %v9447 = vadd.f32 %v8922, %v9415
        %v9448 = vadd.f32 %v8923, %v9418
        %v9449 = vadd.f32 %v8924, %v9423
        %v9450 = vadd.f32 %v8925, %v9426
        %v9451 = vadd.f32 %v8926, %v9431
        %v9452 = vadd.f32 %v8927, %v9434
        %v9453 = vld [vmem:[%s760] sm:$0x1]
        %v9454 = vld [vmem:[%s763] sm:$0x1]
        %9455 = vadd.xlane.f32.xlu0 %v9437
        %v9456 = vpop.xlane.xlu0 %9455
        %9457 = vadd.xlane.f32.xlu0 %v9438
        %v9458 = vpop.xlane.xlu0 %9457
        %9459 = vadd.xlane.f32.xlu0 %v9439
        %v9460 = vpop.xlane.xlu0 %9459
        %9461 = vadd.xlane.f32.xlu0 %v9440
        %v9462 = vpop.xlane.xlu0 %9461
        %9463 = vadd.xlane.f32.xlu0 %v9441
        %v9464 = vpop.xlane.xlu0 %9463
        %9465 = vadd.xlane.f32.xlu0 %v9442
        %v9466 = vpop.xlane.xlu0 %9465
        %9467 = vadd.xlane.f32.xlu0 %v9443
        %v9468 = vpop.xlane.xlu0 %9467
        %9469 = vadd.xlane.f32.xlu0 %v9444
        %v9470 = vpop.xlane.xlu0 %9469
        %9471 = vadd.xlane.f32.xlu0 %v9445
        %v9472 = vpop.xlane.xlu0 %9471
        %9473 = vadd.xlane.f32.xlu0 %v9446
        %v9474 = vpop.xlane.xlu0 %9473
        %9475 = vadd.xlane.f32.xlu0 %v9447
        %v9476 = vpop.xlane.xlu0 %9475
        %9477 = vadd.xlane.f32.xlu0 %v9448
        %v9478 = vpop.xlane.xlu0 %9477
        %9479 = vadd.xlane.f32.xlu0 %v9449
        %v9480 = vpop.xlane.xlu0 %9479
        %9481 = vadd.xlane.f32.xlu0 %v9450
        %v9482 = vpop.xlane.xlu0 %9481
        %9483 = vadd.xlane.f32.xlu0 %v9451
        %v9484 = vpop.xlane.xlu0 %9483
        %9485 = vadd.xlane.f32.xlu0 %v9452
        %v9486 = vpop.xlane.xlu0 %9485
        %v9487 = vmul.f32 %v9456, %v8739
        %v9488 = vmul.f32 %v9458, %v8739
        %v9489 = vmul.f32 %v9460, %v8739
        %v9490 = vmul.f32 %v9462, %v8739
        %v9491 = vmul.f32 %v9464, %v8739
        %v9492 = vmul.f32 %v9466, %v8739
        %v9493 = vmul.f32 %v9468, %v8739
        %v9494 = vmul.f32 %v9470, %v8739
        %v9495 = vmul.f32 %v9472, %v8739
        %v9496 = vmul.f32 %v9474, %v8739
        %v9497 = vmul.f32 %v9476, %v8739
        %v9498 = vmul.f32 %v9478, %v8739
        %v9499 = vmul.f32 %v9480, %v8739
        %v9500 = vmul.f32 %v9482, %v8739
        %v9501 = vmul.f32 %v9484, %v8739
        %v9502 = vmul.f32 %v9486, %v8739
        %v9503 = vsub.f32 %v9437, %v9487
        %v9504 = vsub.f32 %v9438, %v9488
        %v9505 = vsub.f32 %v9439, %v9489
        %v9506 = vsub.f32 %v9440, %v9490
        %v9507 = vsub.f32 %v9441, %v9491
        %v9508 = vsub.f32 %v9442, %v9492
        %v9509 = vsub.f32 %v9443, %v9493
        %v9510 = vsub.f32 %v9444, %v9494
        %v9511 = vsub.f32 %v9445, %v9495
        %v9512 = vsub.f32 %v9446, %v9496
        %v9513 = vsub.f32 %v9447, %v9497
        %v9514 = vsub.f32 %v9448, %v9498
        %v9515 = vsub.f32 %v9449, %v9499
        %v9516 = vsub.f32 %v9450, %v9500
        %v9517 = vsub.f32 %v9451, %v9501
        %v9518 = vsub.f32 %v9452, %v9502
        %v9519 = vmul.f32 %v9503, %v9503
        %v9520 = vmul.f32 %v9504, %v9504
        %v9521 = vmul.f32 %v9505, %v9505
        %v9522 = vmul.f32 %v9506, %v9506
        %v9523 = vmul.f32 %v9507, %v9507
        %v9524 = vmul.f32 %v9508, %v9508
        %v9525 = vmul.f32 %v9509, %v9509
        %v9526 = vmul.f32 %v9510, %v9510
        %v9527 = vmul.f32 %v9511, %v9511
        %v9528 = vmul.f32 %v9512, %v9512
        %v9529 = vmul.f32 %v9513, %v9513
        %v9530 = vmul.f32 %v9514, %v9514
        %v9531 = vmul.f32 %v9515, %v9515
        %v9532 = vmul.f32 %v9516, %v9516
        %v9533 = vmul.f32 %v9517, %v9517
        %v9534 = vmul.f32 %v9518, %v9518
        %9535 = vadd.xlane.f32.xlu0 %v9519
        %v9536 = vpop.xlane.xlu0 %9535
        %9537 = vadd.xlane.f32.xlu0 %v9520
        %v9538 = vpop.xlane.xlu0 %9537
        %9539 = vadd.xlane.f32.xlu0 %v9521
        %v9540 = vpop.xlane.xlu0 %9539
        %9541 = vadd.xlane.f32.xlu0 %v9522
        %v9542 = vpop.xlane.xlu0 %9541
        %9543 = vadd.xlane.f32.xlu0 %v9523
        %v9544 = vpop.xlane.xlu0 %9543
        %9545 = vadd.xlane.f32.xlu0 %v9524
        %v9546 = vpop.xlane.xlu0 %9545
        %9547 = vadd.xlane.f32.xlu0 %v9525
        %v9548 = vpop.xlane.xlu0 %9547
        %9549 = vadd.xlane.f32.xlu0 %v9526
        %v9550 = vpop.xlane.xlu0 %9549
        %9551 = vadd.xlane.f32.xlu0 %v9527
        %v9552 = vpop.xlane.xlu0 %9551
        %9553 = vadd.xlane.f32.xlu0 %v9528
        %v9554 = vpop.xlane.xlu0 %9553
        %9555 = vadd.xlane.f32.xlu0 %v9529
        %v9556 = vpop.xlane.xlu0 %9555
        %9557 = vadd.xlane.f32.xlu0 %v9530
        %v9558 = vpop.xlane.xlu0 %9557
        %9559 = vadd.xlane.f32.xlu0 %v9531
        %v9560 = vpop.xlane.xlu0 %9559
        %9561 = vadd.xlane.f32.xlu0 %v9532
        %v9562 = vpop.xlane.xlu0 %9561
        %9563 = vadd.xlane.f32.xlu0 %v9533
        %v9564 = vpop.xlane.xlu0 %9563
        %9565 = vadd.xlane.f32.xlu0 %v9534
        %v9566 = vpop.xlane.xlu0 %9565
        %v9567 = vmul.f32 %v9536, %v8739
        %v9568 = vmul.f32 %v9538, %v8739
        %v9569 = vmul.f32 %v9540, %v8739
        %v9570 = vmul.f32 %v9542, %v8739
        %v9571 = vmul.f32 %v9544, %v8739
        %v9572 = vmul.f32 %v9546, %v8739
        %v9573 = vmul.f32 %v9548, %v8739
        %v9574 = vmul.f32 %v9550, %v8739
        %v9575 = vmul.f32 %v9552, %v8739
        %v9576 = vmul.f32 %v9554, %v8739
        %v9577 = vmul.f32 %v9556, %v8739
        %v9578 = vmul.f32 %v9558, %v8739
        %v9579 = vmul.f32 %v9560, %v8739
        %v9580 = vmul.f32 %v9562, %v8739
        %v9581 = vmul.f32 %v9564, %v8739
        %v9582 = vmul.f32 %v9566, %v8739
        %v9583 = vadd.f32 %v9567, 1e-05
        %v9584 = vadd.f32 %v9568, 1e-05
        %v9585 = vadd.f32 %v9569, 1e-05
        %v9586 = vadd.f32 %v9570, 1e-05
        %v9587 = vadd.f32 %v9571, 1e-05
        %v9588 = vadd.f32 %v9572, 1e-05
        %v9589 = vadd.f32 %v9573, 1e-05
        %v9590 = vadd.f32 %v9574, 1e-05
        %v9591 = vadd.f32 %v9575, 1e-05
        %v9592 = vadd.f32 %v9576, 1e-05
        %v9593 = vadd.f32 %v9577, 1e-05
        %v9594 = vadd.f32 %v9578, 1e-05
        %v9595 = vadd.f32 %v9579, 1e-05
        %v9596 = vadd.f32 %v9580, 1e-05
        %v9597 = vadd.f32 %v9581, 1e-05
        %v9598 = vadd.f32 %v9582, 1e-05
        %v9599 = vrsqrt.pop %v9583
        %v9600 = vrsqrt.pop %v9584
        %v9601 = vrsqrt.pop %v9585
        %v9602 = vrsqrt.pop %v9586
        %v9603 = vrsqrt.pop %v9587
        %v9604 = vrsqrt.pop %v9588
        %v9605 = vrsqrt.pop %v9589
        %v9606 = vrsqrt.pop %v9590
        %v9607 = vrsqrt.pop %v9591
        %v9608 = vrsqrt.pop %v9592
        %v9609 = vrsqrt.pop %v9593
        %v9610 = vrsqrt.pop %v9594
        %v9611 = vrsqrt.pop %v9595
        %v9612 = vrsqrt.pop %v9596
        %v9613 = vrsqrt.pop %v9597
        %v9614 = vrsqrt.pop %v9598
        %v9615 = vmul.f32 %v9503, %v9599
        %v9616 = vmul.f32 %v9504, %v9600
        %v9617 = vmul.f32 %v9505, %v9601
        %v9618 = vmul.f32 %v9506, %v9602
        %v9619 = vmul.f32 %v9507, %v9603
        %v9620 = vmul.f32 %v9508, %v9604
        %v9621 = vmul.f32 %v9509, %v9605
        %v9622 = vmul.f32 %v9510, %v9606
        %v9623 = vmul.f32 %v9511, %v9607
        %v9624 = vmul.f32 %v9512, %v9608
        %v9625 = vmul.f32 %v9513, %v9609
        %v9626 = vmul.f32 %v9514, %v9610
        %v9627 = vmul.f32 %v9515, %v9611
        %v9628 = vmul.f32 %v9516, %v9612
        %v9629 = vmul.f32 %v9517, %v9613
        %v9630 = vmul.f32 %v9518, %v9614
        %v9632 = vlaneseq
        %v9633 = vshrl.u32 %v9632, 7
        %v9634 = vsub.s32 0, %v9633
        %v9635 = vrot.slane %v9453, %v9634
        %v9637 = vmul.f32 %v9615, %v9635
        %v9638 = vmul.f32 %v9616, %v9635
        %v9639 = vmul.f32 %v9617, %v9635
        %v9640 = vmul.f32 %v9618, %v9635
        %v9641 = vmul.f32 %v9619, %v9635
        %v9642 = vmul.f32 %v9620, %v9635
        %v9643 = vmul.f32 %v9621, %v9635
        %v9644 = vmul.f32 %v9622, %v9635
        %v9645 = vmul.f32 %v9623, %v9635
        %v9646 = vmul.f32 %v9624, %v9635
        %v9647 = vmul.f32 %v9625, %v9635
        %v9648 = vmul.f32 %v9626, %v9635
        %v9649 = vmul.f32 %v9627, %v9635
        %v9650 = vmul.f32 %v9628, %v9635
        %v9651 = vmul.f32 %v9629, %v9635
        %v9652 = vmul.f32 %v9630, %v9635
        %v9654 = vlaneseq
        %v9655 = vshrl.u32 %v9654, 7
        %v9656 = vsub.s32 0, %v9655
        %v9657 = vrot.slane %v9454, %v9656
        %v9659 = vadd.f32 %v9637, %v9657
        %v9660 = vadd.f32 %v9638, %v9657
        %v9661 = vadd.f32 %v9639, %v9657
        %v9662 = vadd.f32 %v9640, %v9657
        %v9663 = vadd.f32 %v9641, %v9657
        %v9664 = vadd.f32 %v9642, %v9657
        %v9665 = vadd.f32 %v9643, %v9657
        %v9666 = vadd.f32 %v9644, %v9657
        %v9667 = vadd.f32 %v9645, %v9657
        %v9668 = vadd.f32 %v9646, %v9657
        %v9669 = vadd.f32 %v9647, %v9657
        %v9670 = vadd.f32 %v9648, %v9657
        %v9671 = vadd.f32 %v9649, %v9657
        %v9672 = vadd.f32 %v9650, %v9657
        %v9673 = vadd.f32 %v9651, %v9657
        %v9674 = vadd.f32 %v9652, %v9657
        %9675 = vst [vmem:[#allocation2] sm:$0xff] %v9659
        %9676 = vst [vmem:[#allocation2 + $0x8] sm:$0xff] %v9660
        %9677 = vst [vmem:[#allocation2 + $0x10] sm:$0xff] %v9661
        %9678 = vst [vmem:[#allocation2 + $0x18] sm:$0xff] %v9662
        %9679 = vst [vmem:[#allocation2 + $0x20] sm:$0xff] %v9663
        %9680 = vst [vmem:[#allocation2 + $0x28] sm:$0xff] %v9664
        %9681 = vst [vmem:[#allocation2 + $0x30] sm:$0xff] %v9665
        %9682 = vst [vmem:[#allocation2 + $0x38] sm:$0xff] %v9666
        %9683 = vst [vmem:[#allocation2 + $0x40] sm:$0xff] %v9667
        %9684 = vst [vmem:[#allocation2 + $0x48] sm:$0xff] %v9668
        %9685 = vst [vmem:[#allocation2 + $0x50] sm:$0xff] %v9669
        %9686 = vst [vmem:[#allocation2 + $0x58] sm:$0xff] %v9670
        %9687 = vst [vmem:[#allocation2 + $0x60] sm:$0xff] %v9671
        %9688 = vst [vmem:[#allocation2 + $0x68] sm:$0xff] %v9672
        %9689 = vst [vmem:[#allocation2 + $0x70] sm:$0xff] %v9673
        %9690 = vst [vmem:[#allocation2 + $0x78] sm:$0xff] %v9674
        %p9691 = scmp.eq.s32.totalorder %s44, 2
        // Predicated region
        $region101: #{tpu_custom_call.1} parent=71 // pred_check
          %p9692 = pneg %p9691
        $region102: #{tpu_custom_call.1} parent=71 // pred_check_branch
          %9694 = sbr.rel (%p9692) target = $region104
        $region103: #{tpu_custom_call.1} parent=71 // pred_region
          %9695 = vadd.xlane.f32.xlu0 %v9659
          %v9696 = vpop.xlane.xlu0 %9695
          %9697 = vadd.xlane.f32.xlu0 %v9660
          %v9698 = vpop.xlane.xlu0 %9697
          %9699 = vadd.xlane.f32.xlu0 %v9661
          %v9700 = vpop.xlane.xlu0 %9699
          %9701 = vadd.xlane.f32.xlu0 %v9662
          %v9702 = vpop.xlane.xlu0 %9701
          %9703 = vadd.xlane.f32.xlu0 %v9663
          %v9704 = vpop.xlane.xlu0 %9703
          %9705 = vadd.xlane.f32.xlu0 %v9664
          %v9706 = vpop.xlane.xlu0 %9705
          %9707 = vadd.xlane.f32.xlu0 %v9665
          %v9708 = vpop.xlane.xlu0 %9707
          %9709 = vadd.xlane.f32.xlu0 %v9666
          %v9710 = vpop.xlane.xlu0 %9709
          %9711 = vadd.xlane.f32.xlu0 %v9667
          %v9712 = vpop.xlane.xlu0 %9711
          %9713 = vadd.xlane.f32.xlu0 %v9668
          %v9714 = vpop.xlane.xlu0 %9713
          %9715 = vadd.xlane.f32.xlu0 %v9669
          %v9716 = vpop.xlane.xlu0 %9715
          %9717 = vadd.xlane.f32.xlu0 %v9670
          %v9718 = vpop.xlane.xlu0 %9717
          %9719 = vadd.xlane.f32.xlu0 %v9671
          %v9720 = vpop.xlane.xlu0 %9719
          %9721 = vadd.xlane.f32.xlu0 %v9672
          %v9722 = vpop.xlane.xlu0 %9721
          %9723 = vadd.xlane.f32.xlu0 %v9673
          %v9724 = vpop.xlane.xlu0 %9723
          %9725 = vadd.xlane.f32.xlu0 %v9674
          %v9726 = vpop.xlane.xlu0 %9725
          %v9727 = vmul.f32 %v9696, %v8739
          %v9728 = vmul.f32 %v9698, %v8739
          %v9729 = vmul.f32 %v9700, %v8739
          %v9730 = vmul.f32 %v9702, %v8739
          %v9731 = vmul.f32 %v9704, %v8739
          %v9732 = vmul.f32 %v9706, %v8739
          %v9733 = vmul.f32 %v9708, %v8739
          %v9734 = vmul.f32 %v9710, %v8739
          %v9735 = vmul.f32 %v9712, %v8739
          %v9736 = vmul.f32 %v9714, %v8739
          %v9737 = vmul.f32 %v9716, %v8739
          %v9738 = vmul.f32 %v9718, %v8739
          %v9739 = vmul.f32 %v9720, %v8739
          %v9740 = vmul.f32 %v9722, %v8739
          %v9741 = vmul.f32 %v9724, %v8739
          %v9742 = vmul.f32 %v9726, %v8739
          %v9759 = vlaneseq
          %v9760 = vand.u32 %v9759, 127
          %v9761 = vlaneseq
          %v9762 = vshrl.u32 %v9761, 7
          %v9763 = vsub.s32 %v9760, %v9762
          %v9764 = vrot.slane %v9727, %v9763
          %v9765 = vadd.s32 %v9760, 4294967288
          %v9766 = vlaneseq
          %v9767 = vshrl.u32 %v9766, 7
          %v9768 = vsub.s32 %v9765, %v9767
          %v9769 = vrot.slane %v9728, %v9768
          %vm9770 = vcmask 130112
          %v9771 = vsel %vm9770, %v9769, %v9764
          %v9772 = vadd.s32 %v9760, 4294967280
          %v9773 = vlaneseq
          %v9774 = vshrl.u32 %v9773, 7
          %v9775 = vsub.s32 %v9772, %v9774
          %v9776 = vrot.slane %v9729, %v9775
          %vm9777 = vcmask 195712
          %v9778 = vsel %vm9777, %v9776, %v9771
          %v9779 = vadd.s32 %v9760, 4294967272
          %v9780 = vlaneseq
          %v9781 = vshrl.u32 %v9780, 7
          %v9782 = vsub.s32 %v9779, %v9781
          %v9783 = vrot.slane %v9730, %v9782
          %vm9784 = vcmask 261312
          %v9785 = vsel %vm9784, %v9783, %v9778
          %v9786 = vadd.s32 %v9760, 4294967264
          %v9787 = vlaneseq
          %v9788 = vshrl.u32 %v9787, 7
          %v9789 = vsub.s32 %v9786, %v9788
          %v9790 = vrot.slane %v9731, %v9789
          %vm9791 = vcmask 326912
          %v9792 = vsel %vm9791, %v9790, %v9785
          %v9793 = vadd.s32 %v9760, 4294967256
          %v9794 = vlaneseq
          %v9795 = vshrl.u32 %v9794, 7
          %v9796 = vsub.s32 %v9793, %v9795
          %v9797 = vrot.slane %v9732, %v9796
          %vm9798 = vcmask 392512
          %v9799 = vsel %vm9798, %v9797, %v9792
          %v9800 = vadd.s32 %v9760, 4294967248
          %v9801 = vlaneseq
          %v9802 = vshrl.u32 %v9801, 7
          %v9803 = vsub.s32 %v9800, %v9802
          %v9804 = vrot.slane %v9733, %v9803
          %vm9805 = vcmask 458112
          %v9806 = vsel %vm9805, %v9804, %v9799
          %v9807 = vadd.s32 %v9760, 4294967240
          %v9808 = vlaneseq
          %v9809 = vshrl.u32 %v9808, 7
          %v9810 = vsub.s32 %v9807, %v9809
          %v9811 = vrot.slane %v9734, %v9810
          %vm9812 = vcmask 523712
          %v9813 = vsel %vm9812, %v9811, %v9806
          %v9814 = vadd.s32 %v9760, 4294967232
          %v9815 = vlaneseq
          %v9816 = vshrl.u32 %v9815, 7
          %v9817 = vsub.s32 %v9814, %v9816
          %v9818 = vrot.slane %v9735, %v9817
          %vm9819 = vcmask 589312
          %v9820 = vsel %vm9819, %v9818, %v9813
          %v9821 = vadd.s32 %v9760, 4294967224
          %v9822 = vlaneseq
          %v9823 = vshrl.u32 %v9822, 7
          %v9824 = vsub.s32 %v9821, %v9823
          %v9825 = vrot.slane %v9736, %v9824
          %vm9826 = vcmask 654912
          %v9827 = vsel %vm9826, %v9825, %v9820
          %v9828 = vadd.s32 %v9760, 4294967216
          %v9829 = vlaneseq
          %v9830 = vshrl.u32 %v9829, 7
          %v9831 = vsub.s32 %v9828, %v9830
          %v9832 = vrot.slane %v9737, %v9831
          %vm9833 = vcmask 720512
          %v9834 = vsel %vm9833, %v9832, %v9827
          %v9835 = vadd.s32 %v9760, 4294967208
          %v9836 = vlaneseq
          %v9837 = vshrl.u32 %v9836, 7
          %v9838 = vsub.s32 %v9835, %v9837
          %v9839 = vrot.slane %v9738, %v9838
          %vm9840 = vcmask 786112
          %v9841 = vsel %vm9840, %v9839, %v9834
          %v9842 = vadd.s32 %v9760, 4294967200
          %v9843 = vlaneseq
          %v9844 = vshrl.u32 %v9843, 7
          %v9845 = vsub.s32 %v9842, %v9844
          %v9846 = vrot.slane %v9739, %v9845
          %vm9847 = vcmask 851712
          %v9848 = vsel %vm9847, %v9846, %v9841
          %v9849 = vadd.s32 %v9760, 4294967192
          %v9850 = vlaneseq
          %v9851 = vshrl.u32 %v9850, 7
          %v9852 = vsub.s32 %v9849, %v9851
          %v9853 = vrot.slane %v9740, %v9852
          %vm9854 = vcmask 917312
          %v9855 = vsel %vm9854, %v9853, %v9848
          %v9856 = vadd.s32 %v9760, 4294967184
          %v9857 = vlaneseq
          %v9858 = vshrl.u32 %v9857, 7
          %v9859 = vsub.s32 %v9856, %v9858
          %v9860 = vrot.slane %v9741, %v9859
          %vm9861 = vcmask 982912
          %v9862 = vsel %vm9861, %v9860, %v9855
          %v9863 = vadd.s32 %v9760, 4294967176
          %v9864 = vlaneseq
          %v9865 = vshrl.u32 %v9864, 7
          %v9866 = vsub.s32 %v9863, %v9865
          %v9867 = vrot.slane %v9742, %v9866
          %vm9868 = vcmask 1048512
          %v9869 = vsel %vm9868, %v9867, %v9862
          %9871 = vst [vmem:[%s740] sm:$0x1] %v9869
        $region104: #{tpu_custom_call.1} parent=71 // pred_fallthru
          _
        %s9872 = sand.u32 %s397, 1
        %s9873 = scalar_lea.sflag [#allocation5], %s9872
        %s9874 = sand.u32 %s397, 1
        %s9875 = scalar_lea.vmem [#allocation14], %s9874
        // Predicated region
        $region105: #{tpu_custom_call.1} parent=71 // pred_check
          %p9876 = pneg %p407
        $region106: #{tpu_custom_call.1} parent=71 // pred_check_branch
          %9878 = sbr.rel (%p9876) target = $region108
        $region107: #{tpu_custom_call.1} parent=71 // pred_region
          %s9880 = ssub.s32 16, 16
          %9881 = vsyncadd %s9873, %s9880
          %s9882 = smul.addr %s43, 16
          %s9883 = scalar_lea.hbm %s13, %s9882
          %s9885 = sshll.u32 %s9875, 4
          %s9886 = int_to_ptr.vmem [resolvable:$true] %s9885
          %9888 = dma.vmem_to_hbm [thread:$0]  %s9886, 16, %s9883, %s9873
        $region108: #{tpu_custom_call.1} parent=71 // pred_fallthru
          _
      $region72: #{tpu_custom_call.1} parent=5 // pred_fallthru
        _
      %p9889 = scmp.le.s32.totalorder 2, %s34
      // Predicated region
      $region109: #{tpu_custom_call.1} parent=5 // pred_check
        %p9890 = pneg %p9889
      $region110: #{tpu_custom_call.1} parent=5 // pred_check_branch
        %9892 = sbr.rel (%p9890) target = $region112
      $region111: #{tpu_custom_call.1} parent=5 // pred_region
        %s9893 = ssub.s32 %s34, 2
        // Predicated region
        $region113: #{tpu_custom_call.1} parent=111 // pred_check
          %p9894 = pneg %p413
        $region114: #{tpu_custom_call.1} parent=111 // pred_check_branch
          %9896 = sbr.rel (%p9894) target = $region116
        $region115: #{tpu_custom_call.1} parent=111 // pred_region
          %s9897 = sand.u32 %s398, 1
          %s9898 = scalar_lea.sflag [#allocation5], %s9897
          %s9899 = sand.u32 %s398, 1
          %s9900 = scalar_lea.vmem [#allocation14], %s9899
          %9901 = dma.done %s9898, 16
        $region116: #{tpu_custom_call.1} parent=111 // pred_fallthru
          _
      $region112: #{tpu_custom_call.1} parent=5 // pred_fallthru
        _
    $region6: #{tpu_custom_call.1} parent=1 // loop_footer
      %s38 = sadd.s32 1, %s34
    $region7: #{tpu_custom_call.1} parent=1 // loop_footer_branch
      %33 = sbr.rel target = $region3
    $region8: #{tpu_custom_call.1} parent=1 // loop_exit
      _
    %9902 = vsyncpa [#allocation4], 1
    %s9903 = scalar_lea.sflag [#allocation4], 1
    %9904 = vsyncpa %s9903, 1
    %9905 = vsyncpa [#allocation7], 1
    %s9906 = scalar_lea.sflag [#allocation7], 1
    %9907 = vsyncpa %s9906, 1
    %9908 = vsyncpa [#allocation10], 1
    %s9909 = scalar_lea.sflag [#allocation10], 1
    %9910 = vsyncpa %s9909, 1
    %9911 = vsyncpa [#allocation13], 1
    %s9912 = scalar_lea.sflag [#allocation13], 1
    %9913 = vsyncpa %s9912, 1
    %9914 = vsyncpa [#allocation5], 1
    %s9915 = scalar_lea.sflag [#allocation5], 1
    %9916 = vsyncpa %s9915, 1

</llo_original>
